<compile_context>
chip_gen: v7x
topology: tpu7x:2x2x1
jax: 0.10.0
libtpu: 0.0.40
codegen_flags: <defaults>
</compile_context>

<pallas_src>
import numpy as np
import jax
import jax.numpy as jnp
from jax.experimental import pallas as pl
from jax.experimental.pallas import tpu as pltpu

# ---- hyperparameters (small, consistent with MambaNet(input_size=L, output_size=3)) ----
B = 2        # batch
L = 16       # input_size (number of LiDAR beams)
F = 2        # in_features per beam
D = 32       # d_model
NB = 2       # num_blocks
S = 16       # d_state
DCONV = 2    # d_conv
EXPAND = 2
DIN = EXPAND * D                 # d_inner  (= 64)
R = max(1, (D + 15) // 16)       # dt_rank = ceil(d_model / 16)  (= 2)
OUT = 3                          # output_size (pos_x, pos_y, orientation_z)
BL = B * L                       # 32   rows of folded per-token activations
BLS = B * L * S                  # 512  rows of stacked scan tensors (t-major, then b, then s)


# ------------------------- small helpers (pure jnp, used in-kernel) -------------------------
def _softplus(x):
    return jnp.where(x > 20.0, x, jnp.log1p(jnp.exp(jnp.minimum(x, 20.0))))


def _silu(x):
    return x * jax.nn.sigmoid(x)


def _roll_time(x2, shift):
    # circular roll by `shift` along time within each batch's L-row block of a (B*L, C) array.
    s = shift % L
    parts = []
    for b in range(B):
        lo, hi = b * L, (b + 1) * L
        if s == 0:
            parts.append(x2[lo:hi])
        else:
            parts.append(x2[hi - s:hi])
            parts.append(x2[lo:hi - s])
    return jnp.concatenate(parts, axis=0)


def _shift_time(x2, s):
    # causal shift (delay by s rows) along time within each batch block; zero fill.
    if s == 0:
        return x2
    zpad = jnp.zeros((s, x2.shape[1]), x2.dtype)
    parts = []
    for b in range(B):
        lo, hi = b * L, (b + 1) * L
        parts.append(zpad)
        parts.append(x2[lo:hi - s])
    return jnp.concatenate(parts, axis=0)


# ------------------------------------ the Pallas kernel ------------------------------------
def mamba_net_kernel(x_ref, emb_w, emb_b, pcw_cat, pcb, ln_g, ln_b, inp_wx,
                     inp_wz, cv_w, cv_b, w_dt, dtp_b, xp_wb, xp_wc, a_t,
                     d_par, outp_w, fc_w, fc_b, er, ert, m1,
                     out_ref, h_scr):
    f32 = jnp.float32
    x2 = x_ref[...]                                   # (BL, F)

    # constant 0/1 scatter / replicate matrices for the vectorized scan (loaded once)
    ER = er[...]                                      # (BLS, BL)   row replicate
    ERT = ert[...]                                    # (BL, BLS)   segment sum
    M1 = m1[...]                                      # (BLS, S)    tiled identity

    # ---- embedding: Linear(in_features, d_model) ----
    h2 = jnp.dot(x2, emb_w[...], preferred_element_type=f32) + emb_b[...]      # (BL, D)

    # ---- pos_conv: Conv1d(D, D, k=3, circular) fused into one K=3D matmul ----
    hc = jnp.concatenate([_roll_time(h2, 1), h2, _roll_time(h2, -1)], axis=-1)  # (BL, 3D)
    h2 = jnp.dot(hc, pcw_cat[...], preferred_element_type=f32) + pcb[...]       # (BL, D)

    # ---- residual blocks: h = h + Mamba(LayerNorm(h))   (Dropout = identity) ----
    for blk in range(NB):
        # LayerNorm(d_model)
        mu = jnp.mean(h2, axis=-1, keepdims=True)
        var = jnp.mean(jnp.square(h2 - mu), axis=-1, keepdims=True)
        xn = (h2 - mu) * jax.lax.rsqrt(var + 1e-5) * ln_g[blk] + ln_b[blk]

        # in_proj, split into x / z branches (no lane extracts of a fused output)
        xm = jnp.dot(xn, inp_wx[blk], preferred_element_type=f32)               # (BL, DIN)
        z = jnp.dot(xn, inp_wz[blk], preferred_element_type=f32)                # (BL, DIN)

        # causal depthwise conv1d (kernel DCONV) + SiLU
        xc = cv_b[blk] + xm * cv_w[blk, DCONV - 1]
        for k in range(DCONV - 1):
            xc = xc + _shift_time(xm, DCONV - 1 - k) * cv_w[blk, k]
        xc = _silu(xc)                                                          # (BL, DIN)

        # SSM projections.  dt path is algebraically fused: W_dt = xp_w[:, :R] @ dtp_w.
        delta = _softplus(jnp.dot(xc, w_dt[blk], preferred_element_type=f32)
                          + dtp_b[blk])                                          # (BL, DIN)
        Bm = jnp.dot(xc, xp_wb[blk], preferred_element_type=f32)                 # (BL, S)
        Cm = jnp.dot(xc, xp_wc[blk], preferred_element_type=f32)                 # (BL, S)

        # ---- vectorized selective-scan prologue (stacked row = t*B*S + b*S + s) ----
        xcr = jnp.dot(ER, xc, preferred_element_type=f32)                        # (BLS, DIN)
        dltr = jnp.dot(ER, delta, preferred_element_type=f32)                    # (BLS, DIN)
        bcol = jnp.sum(jnp.dot(ER, Bm, preferred_element_type=f32) * M1,
                       axis=-1, keepdims=True)                                   # (BLS, 1)
        ccol = jnp.sum(jnp.dot(ER, Cm, preferred_element_type=f32) * M1,
                       axis=-1, keepdims=True)                                   # (BLS, 1)
        a_stk = jnp.dot(M1, a_t[blk], preferred_element_type=f32)                # (BLS, DIN)
        dA = jnp.exp(dltr * a_stk)          # one batched EUP exp for all (t, b, s)
        dBu = (dltr * xcr) * bcol

        # ---- recurrence: one small FMA + a scratch store per timestep ----
        hstate = jnp.zeros((B * S, DIN), f32)
        for t in range(L):
            r0 = t * B * S
            hstate = dA[r0:r0 + B * S] * hstate + dBu[r0:r0 + B * S]
            h_scr[r0:r0 + B * S, :] = hstate

        # ---- vectorized epilogue: y[r] = sum_s C[r, s] * H[row(r, s)] + D * xc ----
        y = jnp.dot(ERT, h_scr[...] * ccol, preferred_element_type=f32)          # (BL, DIN)
        y = y + xc * d_par[blk]

        # gate with SiLU(z), out_proj, residual add
        y = y * _silu(z)
        h2 = h2 + jnp.dot(y, outp_w[blk], preferred_element_type=f32)

    # ---- AdaptiveAvgPool1d(1) over L (per batch), then fc -> (pos_x, pos_y, orientation_z) ----
    pooled = jnp.concatenate(
        [jnp.mean(h2[b * L:(b + 1) * L], axis=0, keepdims=True) for b in range(B)],
        axis=0)                                                                  # (B, D)
    out_ref[...] = (jnp.dot(pooled, fc_w[...], preferred_element_type=f32)
                    + fc_b[...])                                                 # (B, OUT)


# ------------------------------- constant scan matrices -------------------------------
def _scan_constants():
    er = np.zeros((BLS, BL), np.float32)   # replicate row (b*L+t) into the S rows of (t, b)
    m1 = np.zeros((BLS, S), np.float32)    # tiled identity: picks element s of a replicated row
    for t in range(L):
        for b in range(B):
            for s in range(S):
                row = t * B * S + b * S + s
                er[row, b * L + t] = 1.0
                m1[row, s] = 1.0
    return (jnp.asarray(er),
            jnp.asarray(np.ascontiguousarray(er.T)),
            jnp.asarray(m1))


# ------------------------------------ wrapper / pallas_call ------------------------------------
def mamba_net_forward(x, params):
    p = params
    # constant re-parameterization (hoisted out of the kernel; pure weight transforms)
    a_t = -jnp.exp(p["a_log_t"])                                       # (NB, S, DIN)
    inp_wx = p["inp_w"][:, :, :DIN]                                    # (NB, D, DIN)
    inp_wz = p["inp_w"][:, :, DIN:]                                    # (NB, D, DIN)
    w_dt = jnp.einsum("ndr,nrk->ndk", p["xp_w"][:, :, :R], p["dtp_w"],
                      precision=jax.lax.Precision.HIGHEST)             # (NB, DIN, DIN)
    xp_wb = p["xp_w"][:, :, R:R + S]                                   # (NB, DIN, S)
    xp_wc = p["xp_w"][:, :, R + S:]                                    # (NB, DIN, S)
    pcw_cat = p["pcw"].reshape(3 * D, D)                               # (3D, D)
    er, ert, m1 = _scan_constants()
    x2 = x.reshape(BL, F)

    args = [p["emb_w"], p["emb_b"], pcw_cat, p["pcb"], p["ln_g"], p["ln_b"],
            inp_wx, inp_wz, p["cv_w"], p["cv_b"], w_dt, p["dtp_b"],
            xp_wb, xp_wc, a_t, p["d_par"], p["outp_w"], p["fc_w"], p["fc_b"],
            er, ert, m1]

    def full_spec(a):
        nd = a.ndim
        return pl.BlockSpec(a.shape, lambda i, _n=nd: (0,) * _n)

    out = pl.pallas_call(
        mamba_net_kernel,
        out_shape=jax.ShapeDtypeStruct((B, OUT), jnp.float32),
        grid_spec=pltpu.PrefetchScalarGridSpec(
            num_scalar_prefetch=0,
            grid=(1,),
            in_specs=[full_spec(x2)] + [full_spec(a) for a in args],
            out_specs=pl.BlockSpec((B, OUT), lambda i: (0, 0)),
            scratch_shapes=[pltpu.VMEM((BLS, DIN), jnp.float32)],
        ),
        compiler_params=pltpu.CompilerParams(
            dimension_semantics=("arbitrary",)),
    )(x2, *args)
    return out


# ------------------------------------ deterministic parameters ------------------------------------
def init_params(key):
    keys = iter(jax.random.split(key, 16))

    def rnd(shape, scale):
        return (scale * jax.random.normal(next(keys), shape)).astype(jnp.float32)

    return dict(
        emb_w=rnd((F, D), 0.5),                          # Linear(F, D) weight^T
        emb_b=rnd((1, D), 0.1),
        pcw=rnd((3, D, D), 1.0 / np.sqrt(3 * D)),        # pcw[k] = conv_w[:, :, k]^T
        pcb=rnd((1, D), 0.05),
        ln_g=jnp.ones((NB, 1, D), jnp.float32),
        ln_b=jnp.zeros((NB, 1, D), jnp.float32),
        inp_w=rnd((NB, D, 2 * DIN), 1.0 / np.sqrt(D)),   # in_proj weight^T (x | z)
        cv_w=rnd((NB, DCONV, 1, DIN), 1.0 / np.sqrt(DCONV)),  # depthwise conv taps
        cv_b=rnd((NB, 1, DIN), 0.05),
        xp_w=rnd((NB, DIN, R + 2 * S), 1.0 / np.sqrt(DIN)),   # x_proj weight^T (dt|B|C)
        dtp_w=rnd((NB, R, DIN), 1.0 / np.sqrt(R)),
        dtp_b=jnp.log(jnp.expm1(jnp.full((NB, 1, DIN), 0.05, jnp.float32))),  # softplus^-1(0.05)
        a_log_t=jnp.broadcast_to(
            jnp.log(jnp.arange(1, S + 1, dtype=jnp.float32))[None, :, None],
            (NB, S, DIN)) + jnp.zeros((NB, S, DIN), jnp.float32),  # A_log^T (Mamba S4D init)
        d_par=jnp.ones((NB, 1, DIN), jnp.float32),
        outp_w=rnd((NB, DIN, D), 1.0 / np.sqrt(DIN)),
        fc_w=rnd((D, OUT), 1.0 / np.sqrt(D)),
        fc_b=jnp.zeros((1, OUT), jnp.float32),
    )


# ------------------------------------ plain-JAX reference ------------------------------------
def reference_forward(x, p):
    outs = []
    for bi in range(B):
        h = x[bi] @ p["emb_w"] + p["emb_b"]
        acc = jnp.zeros((L, D), jnp.float32) + p["pcb"]
        for k in range(3):
            acc = acc + jnp.roll(h, 1 - k, axis=0) @ p["pcw"][k]
        h = acc
        for blk in range(NB):
            mu = h.mean(-1, keepdims=True)
            var = ((h - mu) ** 2).mean(-1, keepdims=True)
            xn = (h - mu) / jnp.sqrt(var + 1e-5) * p["ln_g"][blk] + p["ln_b"][blk]
            xz = xn @ p["inp_w"][blk]
            xm, z = xz[:, :DIN], xz[:, DIN:]
            xc = jnp.zeros((L, DIN), jnp.float32) + p["cv_b"][blk]
            for k in range(DCONV):
                s = DCONV - 1 - k
                shifted = xm if s == 0 else jnp.concatenate(
                    [jnp.zeros((s, DIN), jnp.float32), xm[:L - s]], axis=0)
                xc = xc + shifted * p["cv_w"][blk, k]
            xc = xc * jax.nn.sigmoid(xc)
            xdbl = xc @ p["xp_w"][blk]
            dt, Bm, Cm = xdbl[:, :R], xdbl[:, R:R + S], xdbl[:, R + S:]
            delta = jax.nn.softplus(dt @ p["dtp_w"][blk] + p["dtp_b"][blk])
            A = -jnp.exp(p["a_log_t"][blk])              # (S, DIN)
            hs = jnp.zeros((S, DIN), jnp.float32)
            ys = []
            for t in range(L):
                dA = jnp.exp(delta[t][None, :] * A)
                hs = dA * hs + (delta[t] * xc[t])[None, :] * Bm[t][:, None]
                ys.append((hs * Cm[t][:, None]).sum(0) + p["d_par"][blk, 0] * xc[t])
            y = jnp.stack(ys, axis=0) * (z * jax.nn.sigmoid(z))
            h = h + y @ p["outp_w"][blk]
        pooled = h.mean(axis=0)
        outs.append(pooled @ p["fc_w"] + p["fc_b"][0])
    return jnp.stack(outs, axis=0)


# ------------------------------------ main ------------------------------------
if __name__ == "__main__":
    key = jax.random.PRNGKey(0)
    kx, kp = jax.random.split(key)
    x = jax.random.normal(kx, (B, L, F), jnp.float32)
    params = init_params(kp)

    fwd = jax.jit(mamba_net_forward)
    out = jax.block_until_ready(fwd(x, params))
    ref = jax.block_until_ready(reference_forward(x, params))

    assert out.shape == (B, OUT), f"bad output shape {out.shape}"
    if not np.allclose(np.asarray(out), np.asarray(ref), rtol=3e-2, atol=3e-2):
        raise AssertionError(
            f"Pallas kernel mismatch vs JAX reference:\n{out}\nvs\n{ref}")
    print("KERNEL_OK")
</pallas_src>

<mosaic_0001>
module attributes {stable_mosaic.version = 11 : i64} {
  func.func @mamba_net_kernel(%arg0: i32, %arg1: memref<32x2xf32, #tpu.memory_space<vmem>>, %arg2: memref<2x32xf32, #tpu.memory_space<vmem>>, %arg3: memref<1x32xf32, #tpu.memory_space<vmem>>, %arg4: memref<96x32xf32, #tpu.memory_space<vmem>>, %arg5: memref<1x32xf32, #tpu.memory_space<vmem>>, %arg6: memref<2x1x32xf32, #tpu.memory_space<vmem>>, %arg7: memref<2x1x32xf32, #tpu.memory_space<vmem>>, %arg8: memref<2x32x64xf32, #tpu.memory_space<vmem>>, %arg9: memref<2x32x64xf32, #tpu.memory_space<vmem>>, %arg10: memref<2x2x1x64xf32, #tpu.memory_space<vmem>>, %arg11: memref<2x1x64xf32, #tpu.memory_space<vmem>>, %arg12: memref<2x64x64xf32, #tpu.memory_space<vmem>>, %arg13: memref<2x1x64xf32, #tpu.memory_space<vmem>>, %arg14: memref<2x64x16xf32, #tpu.memory_space<vmem>>, %arg15: memref<2x64x16xf32, #tpu.memory_space<vmem>>, %arg16: memref<2x16x64xf32, #tpu.memory_space<vmem>>, %arg17: memref<2x1x64xf32, #tpu.memory_space<vmem>>, %arg18: memref<2x64x32xf32, #tpu.memory_space<vmem>>, %arg19: memref<32x3xf32, #tpu.memory_space<vmem>>, %arg20: memref<1x3xf32, #tpu.memory_space<vmem>>, %arg21: memref<512x32xf32, #tpu.memory_space<vmem>>, %arg22: memref<32x512xf32, #tpu.memory_space<vmem>>, %arg23: memref<512x16xf32, #tpu.memory_space<vmem>>, %arg24: memref<2x3xf32, #tpu.memory_space<vmem>>, %arg25: memref<512x64xf32, #tpu.memory_space<vmem>>) attributes {dimension_semantics = [#tpu.dimension_semantics<arbitrary>], iteration_bounds = array<i64: 1>, scalar_prefetch = 0 : i64, scratch_operands = 1 : i64, tpu.core_type = #tpu.core_type<tc>, window_params = [{pipeline_mode = #tpu.pipeline_mode<synchronous>, transform_indices = @transform_0, window_bounds = array<i64: 32, 2>}, {pipeline_mode = #tpu.pipeline_mode<synchronous>, transform_indices = @transform_1, window_bounds = array<i64: 2, 32>}, {pipeline_mode = #tpu.pipeline_mode<synchronous>, transform_indices = @transform_2, window_bounds = array<i64: 1, 32>}, {pipeline_mode = #tpu.pipeline_mode<synchronous>, transform_indices = @transform_3, window_bounds = array<i64: 96, 32>}, {pipeline_mode = #tpu.pipeline_mode<synchronous>, transform_indices = @transform_4, window_bounds = array<i64: 1, 32>}, {pipeline_mode = #tpu.pipeline_mode<synchronous>, transform_indices = @transform_5, window_bounds = array<i64: 2, 1, 32>}, {pipeline_mode = #tpu.pipeline_mode<synchronous>, transform_indices = @transform_6, window_bounds = array<i64: 2, 1, 32>}, {pipeline_mode = #tpu.pipeline_mode<synchronous>, transform_indices = @transform_7, window_bounds = array<i64: 2, 32, 64>}, {pipeline_mode = #tpu.pipeline_mode<synchronous>, transform_indices = @transform_8, window_bounds = array<i64: 2, 32, 64>}, {pipeline_mode = #tpu.pipeline_mode<synchronous>, transform_indices = @transform_9, window_bounds = array<i64: 2, 2, 1, 64>}, {pipeline_mode = #tpu.pipeline_mode<synchronous>, transform_indices = @transform_10, window_bounds = array<i64: 2, 1, 64>}, {pipeline_mode = #tpu.pipeline_mode<synchronous>, transform_indices = @transform_11, window_bounds = array<i64: 2, 64, 64>}, {pipeline_mode = #tpu.pipeline_mode<synchronous>, transform_indices = @transform_12, window_bounds = array<i64: 2, 1, 64>}, {pipeline_mode = #tpu.pipeline_mode<synchronous>, transform_indices = @transform_13, window_bounds = array<i64: 2, 64, 16>}, {pipeline_mode = #tpu.pipeline_mode<synchronous>, transform_indices = @transform_14, window_bounds = array<i64: 2, 64, 16>}, {pipeline_mode = #tpu.pipeline_mode<synchronous>, transform_indices = @transform_15, window_bounds = array<i64: 2, 16, 64>}, {pipeline_mode = #tpu.pipeline_mode<synchronous>, transform_indices = @transform_16, window_bounds = array<i64: 2, 1, 64>}, {pipeline_mode = #tpu.pipeline_mode<synchronous>, transform_indices = @transform_17, window_bounds = array<i64: 2, 64, 32>}, {pipeline_mode = #tpu.pipeline_mode<synchronous>, transform_indices = @transform_18, window_bounds = array<i64: 32, 3>}, {pipeline_mode = #tpu.pipeline_mode<synchronous>, transform_indices = @transform_19, window_bounds = array<i64: 1, 3>}, {pipeline_mode = #tpu.pipeline_mode<synchronous>, transform_indices = @transform_20, window_bounds = array<i64: 512, 32>}, {pipeline_mode = #tpu.pipeline_mode<synchronous>, transform_indices = @transform_21, window_bounds = array<i64: 32, 512>}, {pipeline_mode = #tpu.pipeline_mode<synchronous>, transform_indices = @transform_22, window_bounds = array<i64: 512, 16>}, {pipeline_mode = #tpu.pipeline_mode<synchronous>, transform_indices = @transform_23, window_bounds = array<i64: 2, 3>}]} {
    %c0 = arith.constant 0 : index
    %c0_0 = arith.constant 0 : index
    %0 = vector.load %arg1[%c0, %c0_0] : memref<32x2xf32, #tpu.memory_space<vmem>>, vector<32x2xf32>
    %c0_1 = arith.constant 0 : index
    %c0_2 = arith.constant 0 : index
    %1 = vector.load %arg21[%c0_1, %c0_2] : memref<512x32xf32, #tpu.memory_space<vmem>>, vector<512x32xf32>
    %c0_3 = arith.constant 0 : index
    %c0_4 = arith.constant 0 : index
    %2 = vector.load %arg22[%c0_3, %c0_4] : memref<32x512xf32, #tpu.memory_space<vmem>>, vector<32x512xf32>
    %c0_5 = arith.constant 0 : index
    %c0_6 = arith.constant 0 : index
    %3 = vector.load %arg23[%c0_5, %c0_6] : memref<512x16xf32, #tpu.memory_space<vmem>>, vector<512x16xf32>
    %c0_7 = arith.constant 0 : index
    %c0_8 = arith.constant 0 : index
    %4 = vector.load %arg2[%c0_7, %c0_8] : memref<2x32xf32, #tpu.memory_space<vmem>>, vector<2x32xf32>
    %cst = arith.constant dense<0.000000e+00> : vector<32x32xf32>
    %5 = tpu.matmul %0, %4, %cst {dimension_numbers = #tpu.dot_dimension_numbers<[1], [0], [0], [1], [0, 0, 1, 1], [], []>} : vector<32x2xf32>, vector<2x32xf32>, vector<32x32xf32> -> vector<32x32xf32>
    %c0_9 = arith.constant 0 : index
    %c0_10 = arith.constant 0 : index
    %6 = vector.load %arg3[%c0_9, %c0_10] : memref<1x32xf32, #tpu.memory_space<vmem>>, vector<1x32xf32>
    %7 = vector.broadcast %6 : vector<1x32xf32> to vector<32x32xf32>
    %8 = arith.addf %5, %7 : vector<32x32xf32>
    %9 = vector.extract_strided_slice %8 {offsets = [15, 0], sizes = [1, 32], strides = [1, 1]} : vector<32x32xf32> to vector<1x32xf32>
    %10 = vector.extract_strided_slice %8 {offsets = [0, 0], sizes = [15, 32], strides = [1, 1]} : vector<32x32xf32> to vector<15x32xf32>
    %11 = vector.extract_strided_slice %8 {offsets = [31, 0], sizes = [1, 32], strides = [1, 1]} : vector<32x32xf32> to vector<1x32xf32>
    %12 = vector.extract_strided_slice %8 {offsets = [16, 0], sizes = [15, 32], strides = [1, 1]} : vector<32x32xf32> to vector<15x32xf32>
    %13 = tpu.concatenate %9, %10, %11, %12 in 0 : vector<1x32xf32>, vector<15x32xf32>, vector<1x32xf32>, vector<15x32xf32> -> vector<32x32xf32>
    %14 = vector.extract_strided_slice %8 {offsets = [1, 0], sizes = [15, 32], strides = [1, 1]} : vector<32x32xf32> to vector<15x32xf32>
    %15 = vector.extract_strided_slice %8 {offsets = [0, 0], sizes = [1, 32], strides = [1, 1]} : vector<32x32xf32> to vector<1x32xf32>
    %16 = vector.extract_strided_slice %8 {offsets = [17, 0], sizes = [15, 32], strides = [1, 1]} : vector<32x32xf32> to vector<15x32xf32>
    %17 = vector.extract_strided_slice %8 {offsets = [16, 0], sizes = [1, 32], strides = [1, 1]} : vector<32x32xf32> to vector<1x32xf32>
    %18 = tpu.concatenate %14, %15, %16, %17 in 0 : vector<15x32xf32>, vector<1x32xf32>, vector<15x32xf32>, vector<1x32xf32> -> vector<32x32xf32>
    %19 = tpu.concatenate %13, %8, %18 in 1 : vector<32x32xf32>, vector<32x32xf32>, vector<32x32xf32> -> vector<32x96xf32>
    %c0_11 = arith.constant 0 : index
    %c0_12 = arith.constant 0 : index
    %20 = vector.load %arg4[%c0_11, %c0_12] : memref<96x32xf32, #tpu.memory_space<vmem>>, vector<96x32xf32>
    %cst_13 = arith.constant dense<0.000000e+00> : vector<32x32xf32>
    %21 = tpu.matmul %19, %20, %cst_13 {dimension_numbers = #tpu.dot_dimension_numbers<[1], [0], [0], [1], [0, 0, 1, 1], [], []>} : vector<32x96xf32>, vector<96x32xf32>, vector<32x32xf32> -> vector<32x32xf32>
    %c0_14 = arith.constant 0 : index
    %c0_15 = arith.constant 0 : index
    %22 = vector.load %arg5[%c0_14, %c0_15] : memref<1x32xf32, #tpu.memory_space<vmem>>, vector<1x32xf32>
    %23 = vector.broadcast %22 : vector<1x32xf32> to vector<32x32xf32>
    %24 = arith.addf %21, %23 : vector<32x32xf32>
    %cst_16 = arith.constant dense<0.000000e+00> : vector<32xf32>
    %25 = vector.multi_reduction <add>, %24, %cst_16 [1] : vector<32x32xf32> to vector<32xf32>
    %26 = vector.shape_cast %25 : vector<32xf32> to vector<32x1xf32>
    %cst_17 = arith.constant 3.200000e+01 : f32
    %27 = vector.broadcast %cst_17 : f32 to vector<32x1xf32>
    %28 = arith.divf %26, %27 : vector<32x1xf32>
    %29 = vector.broadcast %28 : vector<32x1xf32> to vector<32x32xf32>
    %30 = arith.subf %24, %29 : vector<32x32xf32>
    %31 = arith.mulf %30, %30 : vector<32x32xf32>
    %cst_18 = arith.constant dense<0.000000e+00> : vector<32xf32>
    %32 = vector.multi_reduction <add>, %31, %cst_18 [1] : vector<32x32xf32> to vector<32xf32>
    %33 = vector.shape_cast %32 : vector<32xf32> to vector<32x1xf32>
    %cst_19 = arith.constant 3.200000e+01 : f32
    %34 = vector.broadcast %cst_19 : f32 to vector<32x1xf32>
    %35 = arith.divf %33, %34 : vector<32x1xf32>
    %36 = vector.broadcast %28 : vector<32x1xf32> to vector<32x32xf32>
    %37 = arith.subf %24, %36 : vector<32x32xf32>
    %cst_20 = arith.constant 9.99999974E-6 : f32
    %38 = vector.broadcast %cst_20 : f32 to vector<32x1xf32>
    %39 = arith.addf %35, %38 : vector<32x1xf32>
    %40 = math.rsqrt %39 : vector<32x1xf32>
    %41 = vector.broadcast %40 : vector<32x1xf32> to vector<32x32xf32>
    %42 = arith.mulf %37, %41 : vector<32x32xf32>
    %c0_21 = arith.constant 0 : index
    %c0_22 = arith.constant 0 : index
    %c0_23 = arith.constant 0 : index
    %43 = vector.load %arg6[%c0_21, %c0_22, %c0_23] : memref<2x1x32xf32, #tpu.memory_space<vmem>>, vector<1x1x32xf32>
    %44 = vector.shape_cast %43 : vector<1x1x32xf32> to vector<1x32xf32>
    %45 = vector.broadcast %44 : vector<1x32xf32> to vector<32x32xf32>
    %46 = arith.mulf %42, %45 : vector<32x32xf32>
    %c0_24 = arith.constant 0 : index
    %c0_25 = arith.constant 0 : index
    %c0_26 = arith.constant 0 : index
    %47 = vector.load %arg7[%c0_24, %c0_25, %c0_26] : memref<2x1x32xf32, #tpu.memory_space<vmem>>, vector<1x1x32xf32>
    %48 = vector.shape_cast %47 : vector<1x1x32xf32> to vector<1x32xf32>
    %49 = vector.broadcast %48 : vector<1x32xf32> to vector<32x32xf32>
    %50 = arith.addf %46, %49 : vector<32x32xf32>
    %c0_27 = arith.constant 0 : index
    %c0_28 = arith.constant 0 : index
    %c0_29 = arith.constant 0 : index
    %51 = vector.load %arg8[%c0_27, %c0_28, %c0_29] : memref<2x32x64xf32, #tpu.memory_space<vmem>>, vector<1x32x64xf32>
    %52 = vector.shape_cast %51 : vector<1x32x64xf32> to vector<32x64xf32>
    %cst_30 = arith.constant dense<0.000000e+00> : vector<32x64xf32>
    %53 = tpu.matmul %50, %52, %cst_30 {dimension_numbers = #tpu.dot_dimension_numbers<[1], [0], [0], [1], [0, 0, 1, 1], [], []>} : vector<32x32xf32>, vector<32x64xf32>, vector<32x64xf32> -> vector<32x64xf32>
    %c0_31 = arith.constant 0 : index
    %c0_32 = arith.constant 0 : index
    %c0_33 = arith.constant 0 : index
    %54 = vector.load %arg9[%c0_31, %c0_32, %c0_33] : memref<2x32x64xf32, #tpu.memory_space<vmem>>, vector<1x32x64xf32>
    %55 = vector.shape_cast %54 : vector<1x32x64xf32> to vector<32x64xf32>
    %cst_34 = arith.constant dense<0.000000e+00> : vector<32x64xf32>
    %56 = tpu.matmul %50, %55, %cst_34 {dimension_numbers = #tpu.dot_dimension_numbers<[1], [0], [0], [1], [0, 0, 1, 1], [], []>} : vector<32x32xf32>, vector<32x64xf32>, vector<32x64xf32> -> vector<32x64xf32>
    %c0_35 = arith.constant 0 : index
    %c0_36 = arith.constant 0 : index
    %c0_37 = arith.constant 0 : index
    %57 = vector.load %arg11[%c0_35, %c0_36, %c0_37] : memref<2x1x64xf32, #tpu.memory_space<vmem>>, vector<1x1x64xf32>
    %58 = vector.shape_cast %57 : vector<1x1x64xf32> to vector<1x64xf32>
    %c0_38 = arith.constant 0 : index
    %c1 = arith.constant 1 : index
    %c0_39 = arith.constant 0 : index
    %c0_40 = arith.constant 0 : index
    %59 = vector.load %arg10[%c0_38, %c1, %c0_39, %c0_40] : memref<2x2x1x64xf32, #tpu.memory_space<vmem>>, vector<1x1x1x64xf32>
    %60 = vector.shape_cast %59 : vector<1x1x1x64xf32> to vector<1x64xf32>
    %61 = vector.broadcast %60 : vector<1x64xf32> to vector<32x64xf32>
    %62 = arith.mulf %53, %61 : vector<32x64xf32>
    %63 = vector.broadcast %58 : vector<1x64xf32> to vector<32x64xf32>
    %64 = arith.addf %63, %62 : vector<32x64xf32>
    %cst_41 = arith.constant 0.000000e+00 : f32
    %65 = vector.broadcast %cst_41 : f32 to vector<1x64xf32>
    %66 = vector.extract_strided_slice %53 {offsets = [0, 0], sizes = [15, 64], strides = [1, 1]} : vector<32x64xf32> to vector<15x64xf32>
    %67 = vector.extract_strided_slice %53 {offsets = [16, 0], sizes = [15, 64], strides = [1, 1]} : vector<32x64xf32> to vector<15x64xf32>
    %68 = tpu.concatenate %65, %66, %65, %67 in 0 : vector<1x64xf32>, vector<15x64xf32>, vector<1x64xf32>, vector<15x64xf32> -> vector<32x64xf32>
    %c0_42 = arith.constant 0 : index
    %c0_43 = arith.constant 0 : index
    %c0_44 = arith.constant 0 : index
    %c0_45 = arith.constant 0 : index
    %69 = vector.load %arg10[%c0_42, %c0_43, %c0_44, %c0_45] : memref<2x2x1x64xf32, #tpu.memory_space<vmem>>, vector<1x1x1x64xf32>
    %70 = vector.shape_cast %69 : vector<1x1x1x64xf32> to vector<1x64xf32>
    %71 = vector.broadcast %70 : vector<1x64xf32> to vector<32x64xf32>
    %72 = arith.mulf %68, %71 : vector<32x64xf32>
    %73 = arith.addf %64, %72 : vector<32x64xf32>
    %74 = arith.negf %73 : vector<32x64xf32>
    %75 = math.exp %74 : vector<32x64xf32>
    %cst_46 = arith.constant 1.000000e+00 : f32
    %76 = vector.broadcast %cst_46 : f32 to vector<32x64xf32>
    %77 = arith.addf %76, %75 : vector<32x64xf32>
    %78 = arith.divf %76, %77 : vector<32x64xf32>
    %79 = arith.mulf %73, %78 : vector<32x64xf32>
    %c0_47 = arith.constant 0 : index
    %c0_48 = arith.constant 0 : index
    %c0_49 = arith.constant 0 : index
    %80 = vector.load %arg12[%c0_47, %c0_48, %c0_49] : memref<2x64x64xf32, #tpu.memory_space<vmem>>, vector<1x64x64xf32>
    %81 = vector.shape_cast %80 : vector<1x64x64xf32> to vector<64x64xf32>
    %cst_50 = arith.constant dense<0.000000e+00> : vector<32x64xf32>
    %82 = tpu.matmul %79, %81, %cst_50 {dimension_numbers = #tpu.dot_dimension_numbers<[1], [0], [0], [1], [0, 0, 1, 1], [], []>} : vector<32x64xf32>, vector<64x64xf32>, vector<32x64xf32> -> vector<32x64xf32>
    %c0_51 = arith.constant 0 : index
    %c0_52 = arith.constant 0 : index
    %c0_53 = arith.constant 0 : index
    %83 = vector.load %arg13[%c0_51, %c0_52, %c0_53] : memref<2x1x64xf32, #tpu.memory_space<vmem>>, vector<1x1x64xf32>
    %84 = vector.shape_cast %83 : vector<1x1x64xf32> to vector<1x64xf32>
    %85 = vector.broadcast %84 : vector<1x64xf32> to vector<32x64xf32>
    %86 = arith.addf %82, %85 : vector<32x64xf32>
    %cst_54 = arith.constant 2.000000e+01 : f32
    %87 = vector.broadcast %cst_54 : f32 to vector<32x64xf32>
    %88 = arith.cmpf ogt, %86, %87 : vector<32x64xf32>
    %cst_55 = arith.constant 2.000000e+01 : f32
    %89 = vector.broadcast %cst_55 : f32 to vector<32x64xf32>
    %90 = arith.minimumf %86, %89 : vector<32x64xf32>
    %91 = math.exp %90 : vector<32x64xf32>
    %92 = math.log1p %91 : vector<32x64xf32>
    %93 = arith.select %88, %86, %92 : vector<32x64xi1>, vector<32x64xf32>
    %c0_56 = arith.constant 0 : index
    %c0_57 = arith.constant 0 : index
    %c0_58 = arith.constant 0 : index
    %94 = vector.load %arg14[%c0_56, %c0_57, %c0_58] : memref<2x64x16xf32, #tpu.memory_space<vmem>>, vector<1x64x16xf32>
    %95 = vector.shape_cast %94 : vector<1x64x16xf32> to vector<64x16xf32>
    %cst_59 = arith.constant dense<0.000000e+00> : vector<32x16xf32>
    %96 = tpu.matmul %79, %95, %cst_59 {dimension_numbers = #tpu.dot_dimension_numbers<[1], [0], [0], [1], [0, 0, 1, 1], [], []>} : vector<32x64xf32>, vector<64x16xf32>, vector<32x16xf32> -> vector<32x16xf32>
    %c0_60 = arith.constant 0 : index
    %c0_61 = arith.constant 0 : index
    %c0_62 = arith.constant 0 : index
    %97 = vector.load %arg15[%c0_60, %c0_61, %c0_62] : memref<2x64x16xf32, #tpu.memory_space<vmem>>, vector<1x64x16xf32>
    %98 = vector.shape_cast %97 : vector<1x64x16xf32> to vector<64x16xf32>
    %cst_63 = arith.constant dense<0.000000e+00> : vector<32x16xf32>
    %99 = tpu.matmul %79, %98, %cst_63 {dimension_numbers = #tpu.dot_dimension_numbers<[1], [0], [0], [1], [0, 0, 1, 1], [], []>} : vector<32x64xf32>, vector<64x16xf32>, vector<32x16xf32> -> vector<32x16xf32>
    %cst_64 = arith.constant dense<0.000000e+00> : vector<512x64xf32>
    %100 = tpu.matmul %1, %79, %cst_64 {dimension_numbers = #tpu.dot_dimension_numbers<[1], [0], [0], [1], [0, 0, 1, 1], [], []>} : vector<512x32xf32>, vector<32x64xf32>, vector<512x64xf32> -> vector<512x64xf32>
    %cst_65 = arith.constant dense<0.000000e+00> : vector<512x64xf32>
    %101 = tpu.matmul %1, %93, %cst_65 {dimension_numbers = #tpu.dot_dimension_numbers<[1], [0], [0], [1], [0, 0, 1, 1], [], []>} : vector<512x32xf32>, vector<32x64xf32>, vector<512x64xf32> -> vector<512x64xf32>
    %cst_66 = arith.constant dense<0.000000e+00> : vector<512x16xf32>
    %102 = tpu.matmul %1, %96, %cst_66 {dimension_numbers = #tpu.dot_dimension_numbers<[1], [0], [0], [1], [0, 0, 1, 1], [], []>} : vector<512x32xf32>, vector<32x16xf32>, vector<512x16xf32> -> vector<512x16xf32>
    %103 = arith.mulf %102, %3 : vector<512x16xf32>
    %cst_67 = arith.constant dense<0.000000e+00> : vector<512xf32>
    %104 = vector.multi_reduction <add>, %103, %cst_67 [1] : vector<512x16xf32> to vector<512xf32>
    %105 = vector.shape_cast %104 : vector<512xf32> to vector<512x1xf32>
    %cst_68 = arith.constant dense<0.000000e+00> : vector<512x16xf32>
    %106 = tpu.matmul %1, %99, %cst_68 {dimension_numbers = #tpu.dot_dimension_numbers<[1], [0], [0], [1], [0, 0, 1, 1], [], []>} : vector<512x32xf32>, vector<32x16xf32>, vector<512x16xf32> -> vector<512x16xf32>
    %107 = arith.mulf %106, %3 : vector<512x16xf32>
    %cst_69 = arith.constant dense<0.000000e+00> : vector<512xf32>
    %108 = vector.multi_reduction <add>, %107, %cst_69 [1] : vector<512x16xf32> to vector<512xf32>
    %109 = vector.shape_cast %108 : vector<512xf32> to vector<512x1xf32>
    %c0_70 = arith.constant 0 : index
    %c0_71 = arith.constant 0 : index
    %c0_72 = arith.constant 0 : index
    %110 = vector.load %arg16[%c0_70, %c0_71, %c0_72] : memref<2x16x64xf32, #tpu.memory_space<vmem>>, vector<1x16x64xf32>
    %111 = vector.shape_cast %110 : vector<1x16x64xf32> to vector<16x64xf32>
    %cst_73 = arith.constant dense<0.000000e+00> : vector<512x64xf32>
    %112 = tpu.matmul %3, %111, %cst_73 {dimension_numbers = #tpu.dot_dimension_numbers<[1], [0], [0], [1], [0, 0, 1, 1], [], []>} : vector<512x16xf32>, vector<16x64xf32>, vector<512x64xf32> -> vector<512x64xf32>
    %113 = arith.mulf %101, %112 : vector<512x64xf32>
    %114 = math.exp %113 : vector<512x64xf32>
    %115 = arith.mulf %101, %100 : vector<512x64xf32>
    %116 = vector.broadcast %105 : vector<512x1xf32> to vector<512x64xf32>
    %117 = arith.mulf %115, %116 : vector<512x64xf32>
    %cst_74 = arith.constant 0.000000e+00 : f32
    %118 = vector.broadcast %cst_74 : f32 to vector<32x64xf32>
    %119 = vector.extract_strided_slice %114 {offsets = [0, 0], sizes = [32, 64], strides = [1, 1]} : vector<512x64xf32> to vector<32x64xf32>
    %120 = arith.mulf %119, %118 : vector<32x64xf32>
    %121 = vector.extract_strided_slice %117 {offsets = [0, 0], sizes = [32, 64], strides = [1, 1]} : vector<512x64xf32> to vector<32x64xf32>
    %122 = arith.addf %120, %121 : vector<32x64xf32>
    %c0_75 = arith.constant 0 : index
    %c0_76 = arith.constant 0 : index
    %123 = vector.load %arg25[%c0_75, %c0_76] : memref<512x64xf32, #tpu.memory_space<vmem>>, vector<32x64xf32>
    tpu.vector_store %arg25[%c0_75, %c0_76], %122 {strides = array<i32>} : memref<512x64xf32, #tpu.memory_space<vmem>>, vector<32x64xf32>,
    %124 = vector.extract_strided_slice %114 {offsets = [32, 0], sizes = [32, 64], strides = [1, 1]} : vector<512x64xf32> to vector<32x64xf32>
    %125 = arith.mulf %124, %122 : vector<32x64xf32>
    %126 = vector.extract_strided_slice %117 {offsets = [32, 0], sizes = [32, 64], strides = [1, 1]} : vector<512x64xf32> to vector<32x64xf32>
    %127 = arith.addf %125, %126 : vector<32x64xf32>
    %c32 = arith.constant 32 : index
    %c0_77 = arith.constant 0 : index
    %128 = vector.load %arg25[%c32, %c0_77] : memref<512x64xf32, #tpu.memory_space<vmem>>, vector<32x64xf32>
    tpu.vector_store %arg25[%c32, %c0_77], %127 {strides = array<i32>} : memref<512x64xf32, #tpu.memory_space<vmem>>, vector<32x64xf32>,
    %129 = vector.extract_strided_slice %114 {offsets = [64, 0], sizes = [32, 64], strides = [1, 1]} : vector<512x64xf32> to vector<32x64xf32>
    %130 = arith.mulf %129, %127 : vector<32x64xf32>
    %131 = vector.extract_strided_slice %117 {offsets = [64, 0], sizes = [32, 64], strides = [1, 1]} : vector<512x64xf32> to vector<32x64xf32>
    %132 = arith.addf %130, %131 : vector<32x64xf32>
    %c64 = arith.constant 64 : index
    %c0_78 = arith.constant 0 : index
    %133 = vector.load %arg25[%c64, %c0_78] : memref<512x64xf32, #tpu.memory_space<vmem>>, vector<32x64xf32>
    tpu.vector_store %arg25[%c64, %c0_78], %132 {strides = array<i32>} : memref<512x64xf32, #tpu.memory_space<vmem>>, vector<32x64xf32>,
    %134 = vector.extract_strided_slice %114 {offsets = [96, 0], sizes = [32, 64], strides = [1, 1]} : vector<512x64xf32> to vector<32x64xf32>
    %135 = arith.mulf %134, %132 : vector<32x64xf32>
    %136 = vector.extract_strided_slice %117 {offsets = [96, 0], sizes = [32, 64], strides = [1, 1]} : vector<512x64xf32> to vector<32x64xf32>
    %137 = arith.addf %135, %136 : vector<32x64xf32>
    %c96 = arith.constant 96 : index
    %c0_79 = arith.constant 0 : index
    %138 = vector.load %arg25[%c96, %c0_79] : memref<512x64xf32, #tpu.memory_space<vmem>>, vector<32x64xf32>
    tpu.vector_store %arg25[%c96, %c0_79], %137 {strides = array<i32>} : memref<512x64xf32, #tpu.memory_space<vmem>>, vector<32x64xf32>,
    %139 = vector.extract_strided_slice %114 {offsets = [128, 0], sizes = [32, 64], strides = [1, 1]} : vector<512x64xf32> to vector<32x64xf32>
    %140 = arith.mulf %139, %137 : vector<32x64xf32>
    %141 = vector.extract_strided_slice %117 {offsets = [128, 0], sizes = [32, 64], strides = [1, 1]} : vector<512x64xf32> to vector<32x64xf32>
    %142 = arith.addf %140, %141 : vector<32x64xf32>
    %c128 = arith.constant 128 : index
    %c0_80 = arith.constant 0 : index
    %143 = vector.load %arg25[%c128, %c0_80] : memref<512x64xf32, #tpu.memory_space<vmem>>, vector<32x64xf32>
    tpu.vector_store %arg25[%c128, %c0_80], %142 {strides = array<i32>} : memref<512x64xf32, #tpu.memory_space<vmem>>, vector<32x64xf32>,
    %144 = vector.extract_strided_slice %114 {offsets = [160, 0], sizes = [32, 64], strides = [1, 1]} : vector<512x64xf32> to vector<32x64xf32>
    %145 = arith.mulf %144, %142 : vector<32x64xf32>
    %146 = vector.extract_strided_slice %117 {offsets = [160, 0], sizes = [32, 64], strides = [1, 1]} : vector<512x64xf32> to vector<32x64xf32>
    %147 = arith.addf %145, %146 : vector<32x64xf32>
    %c160 = arith.constant 160 : index
    %c0_81 = arith.constant 0 : index
    %148 = vector.load %arg25[%c160, %c0_81] : memref<512x64xf32, #tpu.memory_space<vmem>>, vector<32x64xf32>
    tpu.vector_store %arg25[%c160, %c0_81], %147 {strides = array<i32>} : memref<512x64xf32, #tpu.memory_space<vmem>>, vector<32x64xf32>,
    %149 = vector.extract_strided_slice %114 {offsets = [192, 0], sizes = [32, 64], strides = [1, 1]} : vector<512x64xf32> to vector<32x64xf32>
    %150 = arith.mulf %149, %147 : vector<32x64xf32>
    %151 = vector.extract_strided_slice %117 {offsets = [192, 0], sizes = [32, 64], strides = [1, 1]} : vector<512x64xf32> to vector<32x64xf32>
    %152 = arith.addf %150, %151 : vector<32x64xf32>
    %c192 = arith.constant 192 : index
    %c0_82 = arith.constant 0 : index
    %153 = vector.load %arg25[%c192, %c0_82] : memref<512x64xf32, #tpu.memory_space<vmem>>, vector<32x64xf32>
    tpu.vector_store %arg25[%c192, %c0_82], %152 {strides = array<i32>} : memref<512x64xf32, #tpu.memory_space<vmem>>, vector<32x64xf32>,
    %154 = vector.extract_strided_slice %114 {offsets = [224, 0], sizes = [32, 64], strides = [1, 1]} : vector<512x64xf32> to vector<32x64xf32>
    %155 = arith.mulf %154, %152 : vector<32x64xf32>
    %156 = vector.extract_strided_slice %117 {offsets = [224, 0], sizes = [32, 64], strides = [1, 1]} : vector<512x64xf32> to vector<32x64xf32>
    %157 = arith.addf %155, %156 : vector<32x64xf32>
    %c224 = arith.constant 224 : index
    %c0_83 = arith.constant 0 : index
    %158 = vector.load %arg25[%c224, %c0_83] : memref<512x64xf32, #tpu.memory_space<vmem>>, vector<32x64xf32>
    tpu.vector_store %arg25[%c224, %c0_83], %157 {strides = array<i32>} : memref<512x64xf32, #tpu.memory_space<vmem>>, vector<32x64xf32>,
    %159 = vector.extract_strided_slice %114 {offsets = [256, 0], sizes = [32, 64], strides = [1, 1]} : vector<512x64xf32> to vector<32x64xf32>
    %160 = arith.mulf %159, %157 : vector<32x64xf32>
    %161 = vector.extract_strided_slice %117 {offsets = [256, 0], sizes = [32, 64], strides = [1, 1]} : vector<512x64xf32> to vector<32x64xf32>
    %162 = arith.addf %160, %161 : vector<32x64xf32>
    %c256 = arith.constant 256 : index
    %c0_84 = arith.constant 0 : index
    %163 = vector.load %arg25[%c256, %c0_84] : memref<512x64xf32, #tpu.memory_space<vmem>>, vector<32x64xf32>
    tpu.vector_store %arg25[%c256, %c0_84], %162 {strides = array<i32>} : memref<512x64xf32, #tpu.memory_space<vmem>>, vector<32x64xf32>,
    %164 = vector.extract_strided_slice %114 {offsets = [288, 0], sizes = [32, 64], strides = [1, 1]} : vector<512x64xf32> to vector<32x64xf32>
    %165 = arith.mulf %164, %162 : vector<32x64xf32>
    %166 = vector.extract_strided_slice %117 {offsets = [288, 0], sizes = [32, 64], strides = [1, 1]} : vector<512x64xf32> to vector<32x64xf32>
    %167 = arith.addf %165, %166 : vector<32x64xf32>
    %c288 = arith.constant 288 : index
    %c0_85 = arith.constant 0 : index
    %168 = vector.load %arg25[%c288, %c0_85] : memref<512x64xf32, #tpu.memory_space<vmem>>, vector<32x64xf32>
    tpu.vector_store %arg25[%c288, %c0_85], %167 {strides = array<i32>} : memref<512x64xf32, #tpu.memory_space<vmem>>, vector<32x64xf32>,
    %169 = vector.extract_strided_slice %114 {offsets = [320, 0], sizes = [32, 64], strides = [1, 1]} : vector<512x64xf32> to vector<32x64xf32>
    %170 = arith.mulf %169, %167 : vector<32x64xf32>
    %171 = vector.extract_strided_slice %117 {offsets = [320, 0], sizes = [32, 64], strides = [1, 1]} : vector<512x64xf32> to vector<32x64xf32>
    %172 = arith.addf %170, %171 : vector<32x64xf32>
    %c320 = arith.constant 320 : index
    %c0_86 = arith.constant 0 : index
    %173 = vector.load %arg25[%c320, %c0_86] : memref<512x64xf32, #tpu.memory_space<vmem>>, vector<32x64xf32>
    tpu.vector_store %arg25[%c320, %c0_86], %172 {strides = array<i32>} : memref<512x64xf32, #tpu.memory_space<vmem>>, vector<32x64xf32>,
    %174 = vector.extract_strided_slice %114 {offsets = [352, 0], sizes = [32, 64], strides = [1, 1]} : vector<512x64xf32> to vector<32x64xf32>
    %175 = arith.mulf %174, %172 : vector<32x64xf32>
    %176 = vector.extract_strided_slice %117 {offsets = [352, 0], sizes = [32, 64], strides = [1, 1]} : vector<512x64xf32> to vector<32x64xf32>
    %177 = arith.addf %175, %176 : vector<32x64xf32>
    %c352 = arith.constant 352 : index
    %c0_87 = arith.constant 0 : index
    %178 = vector.load %arg25[%c352, %c0_87] : memref<512x64xf32, #tpu.memory_space<vmem>>, vector<32x64xf32>
    tpu.vector_store %arg25[%c352, %c0_87], %177 {strides = array<i32>} : memref<512x64xf32, #tpu.memory_space<vmem>>, vector<32x64xf32>,
    %179 = vector.extract_strided_slice %114 {offsets = [384, 0], sizes = [32, 64], strides = [1, 1]} : vector<512x64xf32> to vector<32x64xf32>
    %180 = arith.mulf %179, %177 : vector<32x64xf32>
    %181 = vector.extract_strided_slice %117 {offsets = [384, 0], sizes = [32, 64], strides = [1, 1]} : vector<512x64xf32> to vector<32x64xf32>
    %182 = arith.addf %180, %181 : vector<32x64xf32>
    %c384 = arith.constant 384 : index
    %c0_88 = arith.constant 0 : index
    %183 = vector.load %arg25[%c384, %c0_88] : memref<512x64xf32, #tpu.memory_space<vmem>>, vector<32x64xf32>
    tpu.vector_store %arg25[%c384, %c0_88], %182 {strides = array<i32>} : memref<512x64xf32, #tpu.memory_space<vmem>>, vector<32x64xf32>,
    %184 = vector.extract_strided_slice %114 {offsets = [416, 0], sizes = [32, 64], strides = [1, 1]} : vector<512x64xf32> to vector<32x64xf32>
    %185 = arith.mulf %184, %182 : vector<32x64xf32>
    %186 = vector.extract_strided_slice %117 {offsets = [416, 0], sizes = [32, 64], strides = [1, 1]} : vector<512x64xf32> to vector<32x64xf32>
    %187 = arith.addf %185, %186 : vector<32x64xf32>
    %c416 = arith.constant 416 : index
    %c0_89 = arith.constant 0 : index
    %188 = vector.load %arg25[%c416, %c0_89] : memref<512x64xf32, #tpu.memory_space<vmem>>, vector<32x64xf32>
    tpu.vector_store %arg25[%c416, %c0_89], %187 {strides = array<i32>} : memref<512x64xf32, #tpu.memory_space<vmem>>, vector<32x64xf32>,
    %189 = vector.extract_strided_slice %114 {offsets = [448, 0], sizes = [32, 64], strides = [1, 1]} : vector<512x64xf32> to vector<32x64xf32>
    %190 = arith.mulf %189, %187 : vector<32x64xf32>
    %191 = vector.extract_strided_slice %117 {offsets = [448, 0], sizes = [32, 64], strides = [1, 1]} : vector<512x64xf32> to vector<32x64xf32>
    %192 = arith.addf %190, %191 : vector<32x64xf32>
    %c448 = arith.constant 448 : index
    %c0_90 = arith.constant 0 : index
    %193 = vector.load %arg25[%c448, %c0_90] : memref<512x64xf32, #tpu.memory_space<vmem>>, vector<32x64xf32>
    tpu.vector_store %arg25[%c448, %c0_90], %192 {strides = array<i32>} : memref<512x64xf32, #tpu.memory_space<vmem>>, vector<32x64xf32>,
    %194 = vector.extract_strided_slice %114 {offsets = [480, 0], sizes = [32, 64], strides = [1, 1]} : vector<512x64xf32> to vector<32x64xf32>
    %195 = arith.mulf %194, %192 : vector<32x64xf32>
    %196 = vector.extract_strided_slice %117 {offsets = [480, 0], sizes = [32, 64], strides = [1, 1]} : vector<512x64xf32> to vector<32x64xf32>
    %197 = arith.addf %195, %196 : vector<32x64xf32>
    %c480 = arith.constant 480 : index
    %c0_91 = arith.constant 0 : index
    %198 = vector.load %arg25[%c480, %c0_91] : memref<512x64xf32, #tpu.memory_space<vmem>>, vector<32x64xf32>
    tpu.vector_store %arg25[%c480, %c0_91], %197 {strides = array<i32>} : memref<512x64xf32, #tpu.memory_space<vmem>>, vector<32x64xf32>,
    %c0_92 = arith.constant 0 : index
    %c0_93 = arith.constant 0 : index
    %199 = vector.load %arg25[%c0_92, %c0_93] : memref<512x64xf32, #tpu.memory_space<vmem>>, vector<512x64xf32>
    %200 = vector.broadcast %109 : vector<512x1xf32> to vector<512x64xf32>
    %201 = arith.mulf %199, %200 : vector<512x64xf32>
    %cst_94 = arith.constant dense<0.000000e+00> : vector<32x64xf32>
    %202 = tpu.matmul %2, %201, %cst_94 {dimension_numbers = #tpu.dot_dimension_numbers<[1], [0], [0], [1], [0, 0, 1, 1], [], []>} : vector<32x512xf32>, vector<512x64xf32>, vector<32x64xf32> -> vector<32x64xf32>
    %c0_95 = arith.constant 0 : index
    %c0_96 = arith.constant 0 : index
    %c0_97 = arith.constant 0 : index
    %203 = vector.load %arg17[%c0_95, %c0_96, %c0_97] : memref<2x1x64xf32, #tpu.memory_space<vmem>>, vector<1x1x64xf32>
    %204 = vector.shape_cast %203 : vector<1x1x64xf32> to vector<1x64xf32>
    %205 = vector.broadcast %204 : vector<1x64xf32> to vector<32x64xf32>
    %206 = arith.mulf %79, %205 : vector<32x64xf32>
    %207 = arith.addf %202, %206 : vector<32x64xf32>
    %208 = arith.negf %56 : vector<32x64xf32>
    %209 = math.exp %208 : vector<32x64xf32>
    %cst_98 = arith.constant 1.000000e+00 : f32
    %210 = vector.broadcast %cst_98 : f32 to vector<32x64xf32>
    %211 = arith.addf %210, %209 : vector<32x64xf32>
    %212 = arith.divf %210, %211 : vector<32x64xf32>
    %213 = arith.mulf %56, %212 : vector<32x64xf32>
    %214 = arith.mulf %207, %213 : vector<32x64xf32>
    %c0_99 = arith.constant 0 : index
    %c0_100 = arith.constant 0 : index
    %c0_101 = arith.constant 0 : index
    %215 = vector.load %arg18[%c0_99, %c0_100, %c0_101] : memref<2x64x32xf32, #tpu.memory_space<vmem>>, vector<1x64x32xf32>
    %216 = vector.shape_cast %215 : vector<1x64x32xf32> to vector<64x32xf32>
    %cst_102 = arith.constant dense<0.000000e+00> : vector<32x32xf32>
    %217 = tpu.matmul %214, %216, %cst_102 {dimension_numbers = #tpu.dot_dimension_numbers<[1], [0], [0], [1], [0, 0, 1, 1], [], []>} : vector<32x64xf32>, vector<64x32xf32>, vector<32x32xf32> -> vector<32x32xf32>
    %218 = arith.addf %24, %217 : vector<32x32xf32>
    %cst_103 = arith.constant dense<0.000000e+00> : vector<32xf32>
    %219 = vector.multi_reduction <add>, %218, %cst_103 [1] : vector<32x32xf32> to vector<32xf32>
    %220 = vector.shape_cast %219 : vector<32xf32> to vector<32x1xf32>
    %cst_104 = arith.constant 3.200000e+01 : f32
    %221 = vector.broadcast %cst_104 : f32 to vector<32x1xf32>
    %222 = arith.divf %220, %221 : vector<32x1xf32>
    %223 = vector.broadcast %222 : vector<32x1xf32> to vector<32x32xf32>
    %224 = arith.subf %218, %223 : vector<32x32xf32>
    %225 = arith.mulf %224, %224 : vector<32x32xf32>
    %cst_105 = arith.constant dense<0.000000e+00> : vector<32xf32>
    %226 = vector.multi_reduction <add>, %225, %cst_105 [1] : vector<32x32xf32> to vector<32xf32>
    %227 = vector.shape_cast %226 : vector<32xf32> to vector<32x1xf32>
    %cst_106 = arith.constant 3.200000e+01 : f32
    %228 = vector.broadcast %cst_106 : f32 to vector<32x1xf32>
    %229 = arith.divf %227, %228 : vector<32x1xf32>
    %230 = vector.broadcast %222 : vector<32x1xf32> to vector<32x32xf32>
    %231 = arith.subf %218, %230 : vector<32x32xf32>
    %cst_107 = arith.constant 9.99999974E-6 : f32
    %232 = vector.broadcast %cst_107 : f32 to vector<32x1xf32>
    %233 = arith.addf %229, %232 : vector<32x1xf32>
    %234 = math.rsqrt %233 : vector<32x1xf32>
    %235 = vector.broadcast %234 : vector<32x1xf32> to vector<32x32xf32>
    %236 = arith.mulf %231, %235 : vector<32x32xf32>
    %c1_108 = arith.constant 1 : index
    %c0_109 = arith.constant 0 : index
    %c0_110 = arith.constant 0 : index
    %237 = vector.load %arg6[%c1_108, %c0_109, %c0_110] : memref<2x1x32xf32, #tpu.memory_space<vmem>>, vector<1x1x32xf32>
    %238 = vector.shape_cast %237 : vector<1x1x32xf32> to vector<1x32xf32>
    %239 = vector.broadcast %238 : vector<1x32xf32> to vector<32x32xf32>
    %240 = arith.mulf %236, %239 : vector<32x32xf32>
    %c1_111 = arith.constant 1 : index
    %c0_112 = arith.constant 0 : index
    %c0_113 = arith.constant 0 : index
    %241 = vector.load %arg7[%c1_111, %c0_112, %c0_113] : memref<2x1x32xf32, #tpu.memory_space<vmem>>, vector<1x1x32xf32>
    %242 = vector.shape_cast %241 : vector<1x1x32xf32> to vector<1x32xf32>
    %243 = vector.broadcast %242 : vector<1x32xf32> to vector<32x32xf32>
    %244 = arith.addf %240, %243 : vector<32x32xf32>
    %c1_114 = arith.constant 1 : index
    %c0_115 = arith.constant 0 : index
    %c0_116 = arith.constant 0 : index
    %245 = vector.load %arg8[%c1_114, %c0_115, %c0_116] : memref<2x32x64xf32, #tpu.memory_space<vmem>>, vector<1x32x64xf32>
    %246 = vector.shape_cast %245 : vector<1x32x64xf32> to vector<32x64xf32>
    %cst_117 = arith.constant dense<0.000000e+00> : vector<32x64xf32>
    %247 = tpu.matmul %244, %246, %cst_117 {dimension_numbers = #tpu.dot_dimension_numbers<[1], [0], [0], [1], [0, 0, 1, 1], [], []>} : vector<32x32xf32>, vector<32x64xf32>, vector<32x64xf32> -> vector<32x64xf32>
    %c1_118 = arith.constant 1 : index
    %c0_119 = arith.constant 0 : index
    %c0_120 = arith.constant 0 : index
    %248 = vector.load %arg9[%c1_118, %c0_119, %c0_120] : memref<2x32x64xf32, #tpu.memory_space<vmem>>, vector<1x32x64xf32>
    %249 = vector.shape_cast %248 : vector<1x32x64xf32> to vector<32x64xf32>
    %cst_121 = arith.constant dense<0.000000e+00> : vector<32x64xf32>
    %250 = tpu.matmul %244, %249, %cst_121 {dimension_numbers = #tpu.dot_dimension_numbers<[1], [0], [0], [1], [0, 0, 1, 1], [], []>} : vector<32x32xf32>, vector<32x64xf32>, vector<32x64xf32> -> vector<32x64xf32>
    %c1_122 = arith.constant 1 : index
    %c0_123 = arith.constant 0 : index
    %c0_124 = arith.constant 0 : index
    %251 = vector.load %arg11[%c1_122, %c0_123, %c0_124] : memref<2x1x64xf32, #tpu.memory_space<vmem>>, vector<1x1x64xf32>
    %252 = vector.shape_cast %251 : vector<1x1x64xf32> to vector<1x64xf32>
    %c1_125 = arith.constant 1 : index
    %c1_126 = arith.constant 1 : index
    %c0_127 = arith.constant 0 : index
    %c0_128 = arith.constant 0 : index
    %253 = vector.load %arg10[%c1_125, %c1_126, %c0_127, %c0_128] : memref<2x2x1x64xf32, #tpu.memory_space<vmem>>, vector<1x1x1x64xf32>
    %254 = vector.shape_cast %253 : vector<1x1x1x64xf32> to vector<1x64xf32>
    %255 = vector.broadcast %254 : vector<1x64xf32> to vector<32x64xf32>
    %256 = arith.mulf %247, %255 : vector<32x64xf32>
    %257 = vector.broadcast %252 : vector<1x64xf32> to vector<32x64xf32>
    %258 = arith.addf %257, %256 : vector<32x64xf32>
    %cst_129 = arith.constant 0.000000e+00 : f32
    %259 = vector.broadcast %cst_129 : f32 to vector<1x64xf32>
    %260 = vector.extract_strided_slice %247 {offsets = [0, 0], sizes = [15, 64], strides = [1, 1]} : vector<32x64xf32> to vector<15x64xf32>
    %261 = vector.extract_strided_slice %247 {offsets = [16, 0], sizes = [15, 64], strides = [1, 1]} : vector<32x64xf32> to vector<15x64xf32>
    %262 = tpu.concatenate %259, %260, %259, %261 in 0 : vector<1x64xf32>, vector<15x64xf32>, vector<1x64xf32>, vector<15x64xf32> -> vector<32x64xf32>
    %c1_130 = arith.constant 1 : index
    %c0_131 = arith.constant 0 : index
    %c0_132 = arith.constant 0 : index
    %c0_133 = arith.constant 0 : index
    %263 = vector.load %arg10[%c1_130, %c0_131, %c0_132, %c0_133] : memref<2x2x1x64xf32, #tpu.memory_space<vmem>>, vector<1x1x1x64xf32>
    %264 = vector.shape_cast %263 : vector<1x1x1x64xf32> to vector<1x64xf32>
    %265 = vector.broadcast %264 : vector<1x64xf32> to vector<32x64xf32>
    %266 = arith.mulf %262, %265 : vector<32x64xf32>
    %267 = arith.addf %258, %266 : vector<32x64xf32>
    %268 = arith.negf %267 : vector<32x64xf32>
    %269 = math.exp %268 : vector<32x64xf32>
    %cst_134 = arith.constant 1.000000e+00 : f32
    %270 = vector.broadcast %cst_134 : f32 to vector<32x64xf32>
    %271 = arith.addf %270, %269 : vector<32x64xf32>
    %272 = arith.divf %270, %271 : vector<32x64xf32>
    %273 = arith.mulf %267, %272 : vector<32x64xf32>
    %c1_135 = arith.constant 1 : index
    %c0_136 = arith.constant 0 : index
    %c0_137 = arith.constant 0 : index
    %274 = vector.load %arg12[%c1_135, %c0_136, %c0_137] : memref<2x64x64xf32, #tpu.memory_space<vmem>>, vector<1x64x64xf32>
    %275 = vector.shape_cast %274 : vector<1x64x64xf32> to vector<64x64xf32>
    %cst_138 = arith.constant dense<0.000000e+00> : vector<32x64xf32>
    %276 = tpu.matmul %273, %275, %cst_138 {dimension_numbers = #tpu.dot_dimension_numbers<[1], [0], [0], [1], [0, 0, 1, 1], [], []>} : vector<32x64xf32>, vector<64x64xf32>, vector<32x64xf32> -> vector<32x64xf32>
    %c1_139 = arith.constant 1 : index
    %c0_140 = arith.constant 0 : index
    %c0_141 = arith.constant 0 : index
    %277 = vector.load %arg13[%c1_139, %c0_140, %c0_141] : memref<2x1x64xf32, #tpu.memory_space<vmem>>, vector<1x1x64xf32>
    %278 = vector.shape_cast %277 : vector<1x1x64xf32> to vector<1x64xf32>
    %279 = vector.broadcast %278 : vector<1x64xf32> to vector<32x64xf32>
    %280 = arith.addf %276, %279 : vector<32x64xf32>
    %cst_142 = arith.constant 2.000000e+01 : f32
    %281 = vector.broadcast %cst_142 : f32 to vector<32x64xf32>
    %282 = arith.cmpf ogt, %280, %281 : vector<32x64xf32>
    %cst_143 = arith.constant 2.000000e+01 : f32
    %283 = vector.broadcast %cst_143 : f32 to vector<32x64xf32>
    %284 = arith.minimumf %280, %283 : vector<32x64xf32>
    %285 = math.exp %284 : vector<32x64xf32>
    %286 = math.log1p %285 : vector<32x64xf32>
    %287 = arith.select %282, %280, %286 : vector<32x64xi1>, vector<32x64xf32>
    %c1_144 = arith.constant 1 : index
    %c0_145 = arith.constant 0 : index
    %c0_146 = arith.constant 0 : index
    %288 = vector.load %arg14[%c1_144, %c0_145, %c0_146] : memref<2x64x16xf32, #tpu.memory_space<vmem>>, vector<1x64x16xf32>
    %289 = vector.shape_cast %288 : vector<1x64x16xf32> to vector<64x16xf32>
    %cst_147 = arith.constant dense<0.000000e+00> : vector<32x16xf32>
    %290 = tpu.matmul %273, %289, %cst_147 {dimension_numbers = #tpu.dot_dimension_numbers<[1], [0], [0], [1], [0, 0, 1, 1], [], []>} : vector<32x64xf32>, vector<64x16xf32>, vector<32x16xf32> -> vector<32x16xf32>
    %c1_148 = arith.constant 1 : index
    %c0_149 = arith.constant 0 : index
    %c0_150 = arith.constant 0 : index
    %291 = vector.load %arg15[%c1_148, %c0_149, %c0_150] : memref<2x64x16xf32, #tpu.memory_space<vmem>>, vector<1x64x16xf32>
    %292 = vector.shape_cast %291 : vector<1x64x16xf32> to vector<64x16xf32>
    %cst_151 = arith.constant dense<0.000000e+00> : vector<32x16xf32>
    %293 = tpu.matmul %273, %292, %cst_151 {dimension_numbers = #tpu.dot_dimension_numbers<[1], [0], [0], [1], [0, 0, 1, 1], [], []>} : vector<32x64xf32>, vector<64x16xf32>, vector<32x16xf32> -> vector<32x16xf32>
    %cst_152 = arith.constant dense<0.000000e+00> : vector<512x64xf32>
    %294 = tpu.matmul %1, %273, %cst_152 {dimension_numbers = #tpu.dot_dimension_numbers<[1], [0], [0], [1], [0, 0, 1, 1], [], []>} : vector<512x32xf32>, vector<32x64xf32>, vector<512x64xf32> -> vector<512x64xf32>
    %cst_153 = arith.constant dense<0.000000e+00> : vector<512x64xf32>
    %295 = tpu.matmul %1, %287, %cst_153 {dimension_numbers = #tpu.dot_dimension_numbers<[1], [0], [0], [1], [0, 0, 1, 1], [], []>} : vector<512x32xf32>, vector<32x64xf32>, vector<512x64xf32> -> vector<512x64xf32>
    %cst_154 = arith.constant dense<0.000000e+00> : vector<512x16xf32>
    %296 = tpu.matmul %1, %290, %cst_154 {dimension_numbers = #tpu.dot_dimension_numbers<[1], [0], [0], [1], [0, 0, 1, 1], [], []>} : vector<512x32xf32>, vector<32x16xf32>, vector<512x16xf32> -> vector<512x16xf32>
    %297 = arith.mulf %296, %3 : vector<512x16xf32>
    %cst_155 = arith.constant dense<0.000000e+00> : vector<512xf32>
    %298 = vector.multi_reduction <add>, %297, %cst_155 [1] : vector<512x16xf32> to vector<512xf32>
    %299 = vector.shape_cast %298 : vector<512xf32> to vector<512x1xf32>
    %cst_156 = arith.constant dense<0.000000e+00> : vector<512x16xf32>
    %300 = tpu.matmul %1, %293, %cst_156 {dimension_numbers = #tpu.dot_dimension_numbers<[1], [0], [0], [1], [0, 0, 1, 1], [], []>} : vector<512x32xf32>, vector<32x16xf32>, vector<512x16xf32> -> vector<512x16xf32>
    %301 = arith.mulf %300, %3 : vector<512x16xf32>
    %cst_157 = arith.constant dense<0.000000e+00> : vector<512xf32>
    %302 = vector.multi_reduction <add>, %301, %cst_157 [1] : vector<512x16xf32> to vector<512xf32>
    %303 = vector.shape_cast %302 : vector<512xf32> to vector<512x1xf32>
    %c1_158 = arith.constant 1 : index
    %c0_159 = arith.constant 0 : index
    %c0_160 = arith.constant 0 : index
    %304 = vector.load %arg16[%c1_158, %c0_159, %c0_160] : memref<2x16x64xf32, #tpu.memory_space<vmem>>, vector<1x16x64xf32>
    %305 = vector.shape_cast %304 : vector<1x16x64xf32> to vector<16x64xf32>
    %cst_161 = arith.constant dense<0.000000e+00> : vector<512x64xf32>
    %306 = tpu.matmul %3, %305, %cst_161 {dimension_numbers = #tpu.dot_dimension_numbers<[1], [0], [0], [1], [0, 0, 1, 1], [], []>} : vector<512x16xf32>, vector<16x64xf32>, vector<512x64xf32> -> vector<512x64xf32>
    %307 = arith.mulf %295, %306 : vector<512x64xf32>
    %308 = math.exp %307 : vector<512x64xf32>
    %309 = arith.mulf %295, %294 : vector<512x64xf32>
    %310 = vector.broadcast %299 : vector<512x1xf32> to vector<512x64xf32>
    %311 = arith.mulf %309, %310 : vector<512x64xf32>
    %cst_162 = arith.constant 0.000000e+00 : f32
    %312 = vector.broadcast %cst_162 : f32 to vector<32x64xf32>
    %313 = vector.extract_strided_slice %308 {offsets = [0, 0], sizes = [32, 64], strides = [1, 1]} : vector<512x64xf32> to vector<32x64xf32>
    %314 = arith.mulf %313, %312 : vector<32x64xf32>
    %315 = vector.extract_strided_slice %311 {offsets = [0, 0], sizes = [32, 64], strides = [1, 1]} : vector<512x64xf32> to vector<32x64xf32>
    %316 = arith.addf %314, %315 : vector<32x64xf32>
    %c0_163 = arith.constant 0 : index
    %c0_164 = arith.constant 0 : index
    %317 = vector.load %arg25[%c0_163, %c0_164] : memref<512x64xf32, #tpu.memory_space<vmem>>, vector<32x64xf32>
    tpu.vector_store %arg25[%c0_163, %c0_164], %316 {strides = array<i32>} : memref<512x64xf32, #tpu.memory_space<vmem>>, vector<32x64xf32>,
    %318 = vector.extract_strided_slice %308 {offsets = [32, 0], sizes = [32, 64], strides = [1, 1]} : vector<512x64xf32> to vector<32x64xf32>
    %319 = arith.mulf %318, %316 : vector<32x64xf32>
    %320 = vector.extract_strided_slice %311 {offsets = [32, 0], sizes = [32, 64], strides = [1, 1]} : vector<512x64xf32> to vector<32x64xf32>
    %321 = arith.addf %319, %320 : vector<32x64xf32>
    %c32_165 = arith.constant 32 : index
    %c0_166 = arith.constant 0 : index
    %322 = vector.load %arg25[%c32_165, %c0_166] : memref<512x64xf32, #tpu.memory_space<vmem>>, vector<32x64xf32>
    tpu.vector_store %arg25[%c32_165, %c0_166], %321 {strides = array<i32>} : memref<512x64xf32, #tpu.memory_space<vmem>>, vector<32x64xf32>,
    %323 = vector.extract_strided_slice %308 {offsets = [64, 0], sizes = [32, 64], strides = [1, 1]} : vector<512x64xf32> to vector<32x64xf32>
    %324 = arith.mulf %323, %321 : vector<32x64xf32>
    %325 = vector.extract_strided_slice %311 {offsets = [64, 0], sizes = [32, 64], strides = [1, 1]} : vector<512x64xf32> to vector<32x64xf32>
    %326 = arith.addf %324, %325 : vector<32x64xf32>
    %c64_167 = arith.constant 64 : index
    %c0_168 = arith.constant 0 : index
    %327 = vector.load %arg25[%c64_167, %c0_168] : memref<512x64xf32, #tpu.memory_space<vmem>>, vector<32x64xf32>
    tpu.vector_store %arg25[%c64_167, %c0_168], %326 {strides = array<i32>} : memref<512x64xf32, #tpu.memory_space<vmem>>, vector<32x64xf32>,
    %328 = vector.extract_strided_slice %308 {offsets = [96, 0], sizes = [32, 64], strides = [1, 1]} : vector<512x64xf32> to vector<32x64xf32>
    %329 = arith.mulf %328, %326 : vector<32x64xf32>
    %330 = vector.extract_strided_slice %311 {offsets = [96, 0], sizes = [32, 64], strides = [1, 1]} : vector<512x64xf32> to vector<32x64xf32>
    %331 = arith.addf %329, %330 : vector<32x64xf32>
    %c96_169 = arith.constant 96 : index
    %c0_170 = arith.constant 0 : index
    %332 = vector.load %arg25[%c96_169, %c0_170] : memref<512x64xf32, #tpu.memory_space<vmem>>, vector<32x64xf32>
    tpu.vector_store %arg25[%c96_169, %c0_170], %331 {strides = array<i32>} : memref<512x64xf32, #tpu.memory_space<vmem>>, vector<32x64xf32>,
    %333 = vector.extract_strided_slice %308 {offsets = [128, 0], sizes = [32, 64], strides = [1, 1]} : vector<512x64xf32> to vector<32x64xf32>
    %334 = arith.mulf %333, %331 : vector<32x64xf32>
    %335 = vector.extract_strided_slice %311 {offsets = [128, 0], sizes = [32, 64], strides = [1, 1]} : vector<512x64xf32> to vector<32x64xf32>
    %336 = arith.addf %334, %335 : vector<32x64xf32>
    %c128_171 = arith.constant 128 : index
    %c0_172 = arith.constant 0 : index
    %337 = vector.load %arg25[%c128_171, %c0_172] : memref<512x64xf32, #tpu.memory_space<vmem>>, vector<32x64xf32>
    tpu.vector_store %arg25[%c128_171, %c0_172], %336 {strides = array<i32>} : memref<512x64xf32, #tpu.memory_space<vmem>>, vector<32x64xf32>,
    %338 = vector.extract_strided_slice %308 {offsets = [160, 0], sizes = [32, 64], strides = [1, 1]} : vector<512x64xf32> to vector<32x64xf32>
    %339 = arith.mulf %338, %336 : vector<32x64xf32>
    %340 = vector.extract_strided_slice %311 {offsets = [160, 0], sizes = [32, 64], strides = [1, 1]} : vector<512x64xf32> to vector<32x64xf32>
    %341 = arith.addf %339, %340 : vector<32x64xf32>
    %c160_173 = arith.constant 160 : index
    %c0_174 = arith.constant 0 : index
    %342 = vector.load %arg25[%c160_173, %c0_174] : memref<512x64xf32, #tpu.memory_space<vmem>>, vector<32x64xf32>
    tpu.vector_store %arg25[%c160_173, %c0_174], %341 {strides = array<i32>} : memref<512x64xf32, #tpu.memory_space<vmem>>, vector<32x64xf32>,
    %343 = vector.extract_strided_slice %308 {offsets = [192, 0], sizes = [32, 64], strides = [1, 1]} : vector<512x64xf32> to vector<32x64xf32>
    %344 = arith.mulf %343, %341 : vector<32x64xf32>
    %345 = vector.extract_strided_slice %311 {offsets = [192, 0], sizes = [32, 64], strides = [1, 1]} : vector<512x64xf32> to vector<32x64xf32>
    %346 = arith.addf %344, %345 : vector<32x64xf32>
    %c192_175 = arith.constant 192 : index
    %c0_176 = arith.constant 0 : index
    %347 = vector.load %arg25[%c192_175, %c0_176] : memref<512x64xf32, #tpu.memory_space<vmem>>, vector<32x64xf32>
    tpu.vector_store %arg25[%c192_175, %c0_176], %346 {strides = array<i32>} : memref<512x64xf32, #tpu.memory_space<vmem>>, vector<32x64xf32>,
    %348 = vector.extract_strided_slice %308 {offsets = [224, 0], sizes = [32, 64], strides = [1, 1]} : vector<512x64xf32> to vector<32x64xf32>
    %349 = arith.mulf %348, %346 : vector<32x64xf32>
    %350 = vector.extract_strided_slice %311 {offsets = [224, 0], sizes = [32, 64], strides = [1, 1]} : vector<512x64xf32> to vector<32x64xf32>
    %351 = arith.addf %349, %350 : vector<32x64xf32>
    %c224_177 = arith.constant 224 : index
    %c0_178 = arith.constant 0 : index
    %352 = vector.load %arg25[%c224_177, %c0_178] : memref<512x64xf32, #tpu.memory_space<vmem>>, vector<32x64xf32>
    tpu.vector_store %arg25[%c224_177, %c0_178], %351 {strides = array<i32>} : memref<512x64xf32, #tpu.memory_space<vmem>>, vector<32x64xf32>,
    %353 = vector.extract_strided_slice %308 {offsets = [256, 0], sizes = [32, 64], strides = [1, 1]} : vector<512x64xf32> to vector<32x64xf32>
    %354 = arith.mulf %353, %351 : vector<32x64xf32>
    %355 = vector.extract_strided_slice %311 {offsets = [256, 0], sizes = [32, 64], strides = [1, 1]} : vector<512x64xf32> to vector<32x64xf32>
    %356 = arith.addf %354, %355 : vector<32x64xf32>
    %c256_179 = arith.constant 256 : index
    %c0_180 = arith.constant 0 : index
    %357 = vector.load %arg25[%c256_179, %c0_180] : memref<512x64xf32, #tpu.memory_space<vmem>>, vector<32x64xf32>
    tpu.vector_store %arg25[%c256_179, %c0_180], %356 {strides = array<i32>} : memref<512x64xf32, #tpu.memory_space<vmem>>, vector<32x64xf32>,
    %358 = vector.extract_strided_slice %308 {offsets = [288, 0], sizes = [32, 64], strides = [1, 1]} : vector<512x64xf32> to vector<32x64xf32>
    %359 = arith.mulf %358, %356 : vector<32x64xf32>
    %360 = vector.extract_strided_slice %311 {offsets = [288, 0], sizes = [32, 64], strides = [1, 1]} : vector<512x64xf32> to vector<32x64xf32>
    %361 = arith.addf %359, %360 : vector<32x64xf32>
    %c288_181 = arith.constant 288 : index
    %c0_182 = arith.constant 0 : index
    %362 = vector.load %arg25[%c288_181, %c0_182] : memref<512x64xf32, #tpu.memory_space<vmem>>, vector<32x64xf32>
    tpu.vector_store %arg25[%c288_181, %c0_182], %361 {strides = array<i32>} : memref<512x64xf32, #tpu.memory_space<vmem>>, vector<32x64xf32>,
    %363 = vector.extract_strided_slice %308 {offsets = [320, 0], sizes = [32, 64], strides = [1, 1]} : vector<512x64xf32> to vector<32x64xf32>
    %364 = arith.mulf %363, %361 : vector<32x64xf32>
    %365 = vector.extract_strided_slice %311 {offsets = [320, 0], sizes = [32, 64], strides = [1, 1]} : vector<512x64xf32> to vector<32x64xf32>
    %366 = arith.addf %364, %365 : vector<32x64xf32>
    %c320_183 = arith.constant 320 : index
    %c0_184 = arith.constant 0 : index
    %367 = vector.load %arg25[%c320_183, %c0_184] : memref<512x64xf32, #tpu.memory_space<vmem>>, vector<32x64xf32>
    tpu.vector_store %arg25[%c320_183, %c0_184], %366 {strides = array<i32>} : memref<512x64xf32, #tpu.memory_space<vmem>>, vector<32x64xf32>,
    %368 = vector.extract_strided_slice %308 {offsets = [352, 0], sizes = [32, 64], strides = [1, 1]} : vector<512x64xf32> to vector<32x64xf32>
    %369 = arith.mulf %368, %366 : vector<32x64xf32>
    %370 = vector.extract_strided_slice %311 {offsets = [352, 0], sizes = [32, 64], strides = [1, 1]} : vector<512x64xf32> to vector<32x64xf32>
    %371 = arith.addf %369, %370 : vector<32x64xf32>
    %c352_185 = arith.constant 352 : index
    %c0_186 = arith.constant 0 : index
    %372 = vector.load %arg25[%c352_185, %c0_186] : memref<512x64xf32, #tpu.memory_space<vmem>>, vector<32x64xf32>
    tpu.vector_store %arg25[%c352_185, %c0_186], %371 {strides = array<i32>} : memref<512x64xf32, #tpu.memory_space<vmem>>, vector<32x64xf32>,
    %373 = vector.extract_strided_slice %308 {offsets = [384, 0], sizes = [32, 64], strides = [1, 1]} : vector<512x64xf32> to vector<32x64xf32>
    %374 = arith.mulf %373, %371 : vector<32x64xf32>
    %375 = vector.extract_strided_slice %311 {offsets = [384, 0], sizes = [32, 64], strides = [1, 1]} : vector<512x64xf32> to vector<32x64xf32>
    %376 = arith.addf %374, %375 : vector<32x64xf32>
    %c384_187 = arith.constant 384 : index
    %c0_188 = arith.constant 0 : index
    %377 = vector.load %arg25[%c384_187, %c0_188] : memref<512x64xf32, #tpu.memory_space<vmem>>, vector<32x64xf32>
    tpu.vector_store %arg25[%c384_187, %c0_188], %376 {strides = array<i32>} : memref<512x64xf32, #tpu.memory_space<vmem>>, vector<32x64xf32>,
    %378 = vector.extract_strided_slice %308 {offsets = [416, 0], sizes = [32, 64], strides = [1, 1]} : vector<512x64xf32> to vector<32x64xf32>
    %379 = arith.mulf %378, %376 : vector<32x64xf32>
    %380 = vector.extract_strided_slice %311 {offsets = [416, 0], sizes = [32, 64], strides = [1, 1]} : vector<512x64xf32> to vector<32x64xf32>
    %381 = arith.addf %379, %380 : vector<32x64xf32>
    %c416_189 = arith.constant 416 : index
    %c0_190 = arith.constant 0 : index
    %382 = vector.load %arg25[%c416_189, %c0_190] : memref<512x64xf32, #tpu.memory_space<vmem>>, vector<32x64xf32>
    tpu.vector_store %arg25[%c416_189, %c0_190], %381 {strides = array<i32>} : memref<512x64xf32, #tpu.memory_space<vmem>>, vector<32x64xf32>,
    %383 = vector.extract_strided_slice %308 {offsets = [448, 0], sizes = [32, 64], strides = [1, 1]} : vector<512x64xf32> to vector<32x64xf32>
    %384 = arith.mulf %383, %381 : vector<32x64xf32>
    %385 = vector.extract_strided_slice %311 {offsets = [448, 0], sizes = [32, 64], strides = [1, 1]} : vector<512x64xf32> to vector<32x64xf32>
    %386 = arith.addf %384, %385 : vector<32x64xf32>
    %c448_191 = arith.constant 448 : index
    %c0_192 = arith.constant 0 : index
    %387 = vector.load %arg25[%c448_191, %c0_192] : memref<512x64xf32, #tpu.memory_space<vmem>>, vector<32x64xf32>
    tpu.vector_store %arg25[%c448_191, %c0_192], %386 {strides = array<i32>} : memref<512x64xf32, #tpu.memory_space<vmem>>, vector<32x64xf32>,
    %388 = vector.extract_strided_slice %308 {offsets = [480, 0], sizes = [32, 64], strides = [1, 1]} : vector<512x64xf32> to vector<32x64xf32>
    %389 = arith.mulf %388, %386 : vector<32x64xf32>
    %390 = vector.extract_strided_slice %311 {offsets = [480, 0], sizes = [32, 64], strides = [1, 1]} : vector<512x64xf32> to vector<32x64xf32>
    %391 = arith.addf %389, %390 : vector<32x64xf32>
    %c480_193 = arith.constant 480 : index
    %c0_194 = arith.constant 0 : index
    %392 = vector.load %arg25[%c480_193, %c0_194] : memref<512x64xf32, #tpu.memory_space<vmem>>, vector<32x64xf32>
    tpu.vector_store %arg25[%c480_193, %c0_194], %391 {strides = array<i32>} : memref<512x64xf32, #tpu.memory_space<vmem>>, vector<32x64xf32>,
    %c0_195 = arith.constant 0 : index
    %c0_196 = arith.constant 0 : index
    %393 = vector.load %arg25[%c0_195, %c0_196] : memref<512x64xf32, #tpu.memory_space<vmem>>, vector<512x64xf32>
    %394 = vector.broadcast %303 : vector<512x1xf32> to vector<512x64xf32>
    %395 = arith.mulf %393, %394 : vector<512x64xf32>
    %cst_197 = arith.constant dense<0.000000e+00> : vector<32x64xf32>
    %396 = tpu.matmul %2, %395, %cst_197 {dimension_numbers = #tpu.dot_dimension_numbers<[1], [0], [0], [1], [0, 0, 1, 1], [], []>} : vector<32x512xf32>, vector<512x64xf32>, vector<32x64xf32> -> vector<32x64xf32>
    %c1_198 = arith.constant 1 : index
    %c0_199 = arith.constant 0 : index
    %c0_200 = arith.constant 0 : index
    %397 = vector.load %arg17[%c1_198, %c0_199, %c0_200] : memref<2x1x64xf32, #tpu.memory_space<vmem>>, vector<1x1x64xf32>
    %398 = vector.shape_cast %397 : vector<1x1x64xf32> to vector<1x64xf32>
    %399 = vector.broadcast %398 : vector<1x64xf32> to vector<32x64xf32>
    %400 = arith.mulf %273, %399 : vector<32x64xf32>
    %401 = arith.addf %396, %400 : vector<32x64xf32>
    %402 = arith.negf %250 : vector<32x64xf32>
    %403 = math.exp %402 : vector<32x64xf32>
    %cst_201 = arith.constant 1.000000e+00 : f32
    %404 = vector.broadcast %cst_201 : f32 to vector<32x64xf32>
    %405 = arith.addf %404, %403 : vector<32x64xf32>
    %406 = arith.divf %404, %405 : vector<32x64xf32>
    %407 = arith.mulf %250, %406 : vector<32x64xf32>
    %408 = arith.mulf %401, %407 : vector<32x64xf32>
    %c1_202 = arith.constant 1 : index
    %c0_203 = arith.constant 0 : index
    %c0_204 = arith.constant 0 : index
    %409 = vector.load %arg18[%c1_202, %c0_203, %c0_204] : memref<2x64x32xf32, #tpu.memory_space<vmem>>, vector<1x64x32xf32>
    %410 = vector.shape_cast %409 : vector<1x64x32xf32> to vector<64x32xf32>
    %cst_205 = arith.constant dense<0.000000e+00> : vector<32x32xf32>
    %411 = tpu.matmul %408, %410, %cst_205 {dimension_numbers = #tpu.dot_dimension_numbers<[1], [0], [0], [1], [0, 0, 1, 1], [], []>} : vector<32x64xf32>, vector<64x32xf32>, vector<32x32xf32> -> vector<32x32xf32>
    %412 = arith.addf %218, %411 : vector<32x32xf32>
    %413 = vector.extract_strided_slice %412 {offsets = [0, 0], sizes = [16, 32], strides = [1, 1]} : vector<32x32xf32> to vector<16x32xf32>
    %cst_206 = arith.constant dense<0.000000e+00> : vector<32xf32>
    %414 = vector.multi_reduction <add>, %413, %cst_206 [0] : vector<16x32xf32> to vector<32xf32>
    %415 = vector.shape_cast %414 : vector<32xf32> to vector<1x32xf32>
    %cst_207 = arith.constant 1.600000e+01 : f32
    %416 = vector.broadcast %cst_207 : f32 to vector<1x32xf32>
    %417 = arith.divf %415, %416 : vector<1x32xf32>
    %418 = vector.extract_strided_slice %412 {offsets = [16, 0], sizes = [16, 32], strides = [1, 1]} : vector<32x32xf32> to vector<16x32xf32>
    %cst_208 = arith.constant dense<0.000000e+00> : vector<32xf32>
    %419 = vector.multi_reduction <add>, %418, %cst_208 [0] : vector<16x32xf32> to vector<32xf32>
    %420 = vector.shape_cast %419 : vector<32xf32> to vector<1x32xf32>
    %cst_209 = arith.constant 1.600000e+01 : f32
    %421 = vector.broadcast %cst_209 : f32 to vector<1x32xf32>
    %422 = arith.divf %420, %421 : vector<1x32xf32>
    %423 = tpu.concatenate %417, %422 in 0 : vector<1x32xf32>, vector<1x32xf32> -> vector<2x32xf32>
    %c0_210 = arith.constant 0 : index
    %c0_211 = arith.constant 0 : index
    %424 = vector.load %arg19[%c0_210, %c0_211] : memref<32x3xf32, #tpu.memory_space<vmem>>, vector<32x3xf32>
    %cst_212 = arith.constant dense<0.000000e+00> : vector<2x3xf32>
    %425 = tpu.matmul %423, %424, %cst_212 {dimension_numbers = #tpu.dot_dimension_numbers<[1], [0], [0], [1], [0, 0, 1, 1], [], []>} : vector<2x32xf32>, vector<32x3xf32>, vector<2x3xf32> -> vector<2x3xf32>
    %c0_213 = arith.constant 0 : index
    %c0_214 = arith.constant 0 : index
    %426 = vector.load %arg20[%c0_213, %c0_214] : memref<1x3xf32, #tpu.memory_space<vmem>>, vector<1x3xf32>
    %427 = vector.broadcast %426 : vector<1x3xf32> to vector<2x3xf32>
    %428 = arith.addf %425, %427 : vector<2x3xf32>
    %c0_215 = arith.constant 0 : index
    %c0_216 = arith.constant 0 : index
    %429 = vector.load %arg24[%c0_215, %c0_216] : memref<2x3xf32, #tpu.memory_space<vmem>>, vector<2x3xf32>
    tpu.vector_store %arg24[%c0_215, %c0_216], %428 {strides = array<i32>} : memref<2x3xf32, #tpu.memory_space<vmem>>, vector<2x3xf32>,
    return
  }
  func.func @transform_0(%arg0: i32) -> (i32, i32) {
    %c0_i32 = arith.constant 0 : i32
    %c0_i32_0 = arith.constant 0 : i32
    %c0_i32_1 = arith.constant 0 : i32
    return %c0_i32, %c0_i32_0 : i32, i32
  }
  func.func @transform_1(%arg0: i32) -> (i32, i32) {
    %c0_i32 = arith.constant 0 : i32
    %c0_i32_0 = arith.constant 0 : i32
    %c0_i32_1 = arith.constant 0 : i32
    return %c0_i32, %c0_i32_0 : i32, i32
  }
  func.func @transform_2(%arg0: i32) -> (i32, i32) {
    %c0_i32 = arith.constant 0 : i32
    %c0_i32_0 = arith.constant 0 : i32
    %c0_i32_1 = arith.constant 0 : i32
    return %c0_i32, %c0_i32_0 : i32, i32
  }
  func.func @transform_3(%arg0: i32) -> (i32, i32) {
    %c0_i32 = arith.constant 0 : i32
    %c0_i32_0 = arith.constant 0 : i32
    %c0_i32_1 = arith.constant 0 : i32
    return %c0_i32, %c0_i32_0 : i32, i32
  }
  func.func @transform_4(%arg0: i32) -> (i32, i32) {
    %c0_i32 = arith.constant 0 : i32
    %c0_i32_0 = arith.constant 0 : i32
    %c0_i32_1 = arith.constant 0 : i32
    return %c0_i32, %c0_i32_0 : i32, i32
  }
  func.func @transform_5(%arg0: i32) -> (i32, i32, i32) {
    %c0_i32 = arith.constant 0 : i32
    %c0_i32_0 = arith.constant 0 : i32
    %c0_i32_1 = arith.constant 0 : i32
    %c0_i32_2 = arith.constant 0 : i32
    return %c0_i32, %c0_i32_0, %c0_i32_1 : i32, i32, i32
  }
  func.func @transform_6(%arg0: i32) -> (i32, i32, i32) {
    %c0_i32 = arith.constant 0 : i32
    %c0_i32_0 = arith.constant 0 : i32
    %c0_i32_1 = arith.constant 0 : i32
    %c0_i32_2 = arith.constant 0 : i32
    return %c0_i32, %c0_i32_0, %c0_i32_1 : i32, i32, i32
  }
  func.func @transform_7(%arg0: i32) -> (i32, i32, i32) {
    %c0_i32 = arith.constant 0 : i32
    %c0_i32_0 = arith.constant 0 : i32
    %c0_i32_1 = arith.constant 0 : i32
    %c0_i32_2 = arith.constant 0 : i32
    return %c0_i32, %c0_i32_0, %c0_i32_1 : i32, i32, i32
  }
  func.func @transform_8(%arg0: i32) -> (i32, i32, i32) {
    %c0_i32 = arith.constant 0 : i32
    %c0_i32_0 = arith.constant 0 : i32
    %c0_i32_1 = arith.constant 0 : i32
    %c0_i32_2 = arith.constant 0 : i32
    return %c0_i32, %c0_i32_0, %c0_i32_1 : i32, i32, i32
  }
  func.func @transform_9(%arg0: i32) -> (i32, i32, i32, i32) {
    %c0_i32 = arith.constant 0 : i32
    %c0_i32_0 = arith.constant 0 : i32
    %c0_i32_1 = arith.constant 0 : i32
    %c0_i32_2 = arith.constant 0 : i32
    %c0_i32_3 = arith.constant 0 : i32
    return %c0_i32, %c0_i32_0, %c0_i32_1, %c0_i32_2 : i32, i32, i32, i32
  }
  func.func @transform_10(%arg0: i32) -> (i32, i32, i32) {
    %c0_i32 = arith.constant 0 : i32
    %c0_i32_0 = arith.constant 0 : i32
    %c0_i32_1 = arith.constant 0 : i32
    %c0_i32_2 = arith.constant 0 : i32
    return %c0_i32, %c0_i32_0, %c0_i32_1 : i32, i32, i32
  }
  func.func @transform_11(%arg0: i32) -> (i32, i32, i32) {
    %c0_i32 = arith.constant 0 : i32
    %c0_i32_0 = arith.constant 0 : i32
    %c0_i32_1 = arith.constant 0 : i32
    %c0_i32_2 = arith.constant 0 : i32
    return %c0_i32, %c0_i32_0, %c0_i32_1 : i32, i32, i32
  }
  func.func @transform_12(%arg0: i32) -> (i32, i32, i32) {
    %c0_i32 = arith.constant 0 : i32
    %c0_i32_0 = arith.constant 0 : i32
    %c0_i32_1 = arith.constant 0 : i32
    %c0_i32_2 = arith.constant 0 : i32
    return %c0_i32, %c0_i32_0, %c0_i32_1 : i32, i32, i32
  }
  func.func @transform_13(%arg0: i32) -> (i32, i32, i32) {
    %c0_i32 = arith.constant 0 : i32
    %c0_i32_0 = arith.constant 0 : i32
    %c0_i32_1 = arith.constant 0 : i32
    %c0_i32_2 = arith.constant 0 : i32
    return %c0_i32, %c0_i32_0, %c0_i32_1 : i32, i32, i32
  }
  func.func @transform_14(%arg0: i32) -> (i32, i32, i32) {
    %c0_i32 = arith.constant 0 : i32
    %c0_i32_0 = arith.constant 0 : i32
    %c0_i32_1 = arith.constant 0 : i32
    %c0_i32_2 = arith.constant 0 : i32
    return %c0_i32, %c0_i32_0, %c0_i32_1 : i32, i32, i32
  }
  func.func @transform_15(%arg0: i32) -> (i32, i32, i32) {
    %c0_i32 = arith.constant 0 : i32
    %c0_i32_0 = arith.constant 0 : i32
    %c0_i32_1 = arith.constant 0 : i32
    %c0_i32_2 = arith.constant 0 : i32
    return %c0_i32, %c0_i32_0, %c0_i32_1 : i32, i32, i32
  }
  func.func @transform_16(%arg0: i32) -> (i32, i32, i32) {
    %c0_i32 = arith.constant 0 : i32
    %c0_i32_0 = arith.constant 0 : i32
    %c0_i32_1 = arith.constant 0 : i32
    %c0_i32_2 = arith.constant 0 : i32
    return %c0_i32, %c0_i32_0, %c0_i32_1 : i32, i32, i32
  }
  func.func @transform_17(%arg0: i32) -> (i32, i32, i32) {
    %c0_i32 = arith.constant 0 : i32
    %c0_i32_0 = arith.constant 0 : i32
    %c0_i32_1 = arith.constant 0 : i32
    %c0_i32_2 = arith.constant 0 : i32
    return %c0_i32, %c0_i32_0, %c0_i32_1 : i32, i32, i32
  }
  func.func @transform_18(%arg0: i32) -> (i32, i32) {
    %c0_i32 = arith.constant 0 : i32
    %c0_i32_0 = arith.constant 0 : i32
    %c0_i32_1 = arith.constant 0 : i32
    return %c0_i32, %c0_i32_0 : i32, i32
  }
  func.func @transform_19(%arg0: i32) -> (i32, i32) {
    %c0_i32 = arith.constant 0 : i32
    %c0_i32_0 = arith.constant 0 : i32
    %c0_i32_1 = arith.constant 0 : i32
    return %c0_i32, %c0_i32_0 : i32, i32
  }
  func.func @transform_20(%arg0: i32) -> (i32, i32) {
    %c0_i32 = arith.constant 0 : i32
    %c0_i32_0 = arith.constant 0 : i32
    %c0_i32_1 = arith.constant 0 : i32
    return %c0_i32, %c0_i32_0 : i32, i32
  }
  func.func @transform_21(%arg0: i32) -> (i32, i32) {
    %c0_i32 = arith.constant 0 : i32
    %c0_i32_0 = arith.constant 0 : i32
    %c0_i32_1 = arith.constant 0 : i32
    return %c0_i32, %c0_i32_0 : i32, i32
  }
  func.func @transform_22(%arg0: i32) -> (i32, i32) {
    %c0_i32 = arith.constant 0 : i32
    %c0_i32_0 = arith.constant 0 : i32
    %c0_i32_1 = arith.constant 0 : i32
    return %c0_i32, %c0_i32_0 : i32, i32
  }
  func.func @transform_23(%arg0: i32) -> (i32, i32) {
    %c0_i32 = arith.constant 0 : i32
    %c0_i32_0 = arith.constant 0 : i32
    %c0_i32_1 = arith.constant 0 : i32
    return %c0_i32, %c0_i32_0 : i32, i32
  }
}

</mosaic_0001>

<llo_original>
// kernel: mamba_net_forward.1
$region0: #{mamba_net_forward.1}
  #allocation0 [shape = 'u32[]', space=smem, size = 0x4, offset = 0x4, fixed_abs, tag = 'smem constant byte address 0x4 - core index']
  #allocation1 [shape = 'u32[144,128]{1,0:T(1,128)}', space=vmem, size = 0x12000, scoped, tag = 'internal scratch']
  #allocation2 [shape = 'f32[512,64]{1,0:T(8,128)}', space=vmem, size = 0x40000, scoped, tag = 'scratch operand']
  %s0 = inlined_call_operand.vmem [shape: f32[32,2], index: 0, kind: input, shape index: {}]
  %s1 = inlined_call_operand.hbm [shape: f32[2,32], index: 1, kind: input, shape index: {}]
  %s2 = inlined_call_operand.vmem [shape: f32[1,32], index: 2, kind: input, shape index: {}]
  %s3 = inlined_call_operand.hbm [shape: f32[96,32], index: 3, kind: input, shape index: {}]
  %s4 = inlined_call_operand.vmem [shape: f32[1,32], index: 4, kind: input, shape index: {}]
  %s5 = inlined_call_operand.vmem [shape: f32[2,1,32], index: 5, kind: input, shape index: {}]
  %s6 = inlined_call_operand.vmem [shape: f32[2,1,32], index: 6, kind: input, shape index: {}]
  %s7 = inlined_call_operand.vmem [shape: f32[2,32,64], index: 7, kind: input, shape index: {}]
  %s8 = inlined_call_operand.vmem [shape: f32[2,32,64], index: 8, kind: input, shape index: {}]
  %s9 = inlined_call_operand.hbm [shape: f32[2,2,1,64], index: 9, kind: input, shape index: {}]
  %s10 = inlined_call_operand.hbm [shape: f32[2,1,64], index: 10, kind: input, shape index: {}]
  %s11 = inlined_call_operand.vmem [shape: f32[2,64,64], index: 11, kind: input, shape index: {}]
  %s12 = inlined_call_operand.hbm [shape: f32[2,1,64], index: 12, kind: input, shape index: {}]
  %s13 = inlined_call_operand.vmem [shape: f32[2,64,16], index: 13, kind: input, shape index: {}]
  %s14 = inlined_call_operand.vmem [shape: f32[2,64,16], index: 14, kind: input, shape index: {}]
  %s15 = inlined_call_operand.vmem [shape: f32[2,16,64], index: 15, kind: input, shape index: {}]
  %s16 = inlined_call_operand.hbm [shape: f32[2,1,64], index: 16, kind: input, shape index: {}]
  %s17 = inlined_call_operand.vmem [shape: f32[2,64,32], index: 17, kind: input, shape index: {}]
  %s18 = inlined_call_operand.vmem [shape: f32[32,3], index: 18, kind: input, shape index: {}]
  %s19 = inlined_call_operand.vmem [shape: f32[1,3], index: 19, kind: input, shape index: {}]
  %s20 = inlined_call_operand.vmem [shape: f32[512,32], index: 20, kind: input, shape index: {}]
  %s21 = inlined_call_operand.vmem [shape: f32[32,512], index: 21, kind: input, shape index: {}]
  %s22 = inlined_call_operand.vmem [shape: f32[512,16], index: 22, kind: input, shape index: {}]
  %s23 = inlined_call_operand.hbm [shape: f32[2,3], index: 23, kind: output, shape index: {}]
  %s24 = sld [smem:[#allocation0]]
  $region126: #{mamba_net_forward.1} parent=0
    _
  %s26 = ssub.s32 1, %s24
  %s27 = scalar_select 0, %s26, %s24
  $region1: #{mamba_net_forward.1} parent=0
    #allocation3 [shape = 'u8[1024]{0}', space=vmem, size = 0x400, scoped, tag = 'input window, operand 1, single buffered']
    #allocation4 [shape = 's32[1]{0}', space=sflag, size = 0x4, scoped, tag = 'scoped memory for mamba_net_forward.1']
    #allocation5 [shape = 's32[1]{0}', space=sflag, size = 0x4, scoped, tag = 'scoped memory for mamba_net_forward.1']
    #allocation6 [shape = 'u8[49152]{0}', space=vmem, size = 0xc000, scoped, tag = 'input window, operand 3, single buffered']
    #allocation7 [shape = 's32[1]{0}', space=sflag, size = 0x4, scoped, tag = 'scoped memory for mamba_net_forward.1']
    #allocation8 [shape = 'u8[2048]{0}', space=vmem, size = 0x800, scoped, tag = 'input window, operand 9, single buffered']
    #allocation9 [shape = 'u8[1024]{0}', space=vmem, size = 0x400, scoped, tag = 'input window, operand 10, single buffered']
    #allocation10 [shape = 's32[1]{0}', space=sflag, size = 0x4, scoped, tag = 'scoped memory for mamba_net_forward.1']
    #allocation11 [shape = 'u8[1024]{0}', space=vmem, size = 0x400, scoped, tag = 'input window, operand 12, single buffered']
    #allocation12 [shape = 'u8[1024]{0}', space=vmem, size = 0x400, scoped, tag = 'input window, operand 16, single buffered']
    #allocation13 [shape = 's32[1]{0}', space=sflag, size = 0x4, scoped, tag = 'scoped memory for mamba_net_forward.1']
    #allocation14 [shape = 'u8[1024]{0}', space=vmem, size = 0x400, scoped, tag = 'output window, operand 0, single buffered']
    %28 = vsyncpa [#allocation4], 0
    %29 = vsyncpa [#allocation7], 0
    %30 = vsyncpa [#allocation10], 0
    %31 = vsyncpa [#allocation13], 0
    %32 = vsyncpa [#allocation5], 0
    // Predicated region
    $region2: #{mamba_net_forward.1} parent=1 // pred_check
      _
    $region3: #{mamba_net_forward.1} parent=1 // pred_check_branch
      %34 = sbr.rel (0) target = $region5
    $region4: #{mamba_net_forward.1} parent=1 // pred_region
      _
    $region5: #{mamba_net_forward.1} parent=1 // pred_fallthru
      _
    // Predicated region
    $region6: #{mamba_net_forward.1} parent=1 // pred_check
      _
    $region7: #{mamba_net_forward.1} parent=1 // pred_check_branch
      %36 = sbr.rel (0) target = $region9
    $region8: #{mamba_net_forward.1} parent=1 // pred_region
      %s38 = ssub.s32 32, 32
      %39 = vsyncadd [#allocation4], %s38
      %s41 = sshll.u32 [#allocation3], 4
      %s42 = int_to_ptr.vmem [resolvable:$true] %s41
      %44 = dma.hbm_to_vmem [thread:$0]  %s1, 32, %s42, [#allocation4]
    $region9: #{mamba_net_forward.1} parent=1 // pred_fallthru
      _
    // Predicated region
    $region10: #{mamba_net_forward.1} parent=1 // pred_check
      _
    $region11: #{mamba_net_forward.1} parent=1 // pred_check_branch
      %46 = sbr.rel (0) target = $region13
    $region12: #{mamba_net_forward.1} parent=1 // pred_region
      _
    $region13: #{mamba_net_forward.1} parent=1 // pred_fallthru
      _
    // Predicated region
    $region14: #{mamba_net_forward.1} parent=1 // pred_check
      _
    $region15: #{mamba_net_forward.1} parent=1 // pred_check_branch
      %48 = sbr.rel (0) target = $region17
    $region16: #{mamba_net_forward.1} parent=1 // pred_region
      %s50 = ssub.s32 1536, 1536
      %51 = vsyncadd [#allocation7], %s50
      %s52 = sshll.u32 [#allocation6], 4
      %s53 = int_to_ptr.vmem [resolvable:$true] %s52
      %58 = dma.hbm_to_vmem [thread:$0]  %s3, 1536, %s53, [#allocation7], 128, 128, 8
    $region17: #{mamba_net_forward.1} parent=1 // pred_fallthru
      _
    // Predicated region
    $region18: #{mamba_net_forward.1} parent=1 // pred_check
      _
    $region19: #{mamba_net_forward.1} parent=1 // pred_check_branch
      %60 = sbr.rel (0) target = $region21
    $region20: #{mamba_net_forward.1} parent=1 // pred_region
      _
    $region21: #{mamba_net_forward.1} parent=1 // pred_fallthru
      _
    // Predicated region
    $region22: #{mamba_net_forward.1} parent=1 // pred_check
      _
    $region23: #{mamba_net_forward.1} parent=1 // pred_check_branch
      %62 = sbr.rel (0) target = $region25
    $region24: #{mamba_net_forward.1} parent=1 // pred_region
      _
    $region25: #{mamba_net_forward.1} parent=1 // pred_fallthru
      _
    // Predicated region
    $region26: #{mamba_net_forward.1} parent=1 // pred_check
      _
    $region27: #{mamba_net_forward.1} parent=1 // pred_check_branch
      %64 = sbr.rel (0) target = $region29
    $region28: #{mamba_net_forward.1} parent=1 // pred_region
      _
    $region29: #{mamba_net_forward.1} parent=1 // pred_fallthru
      _
    // Predicated region
    $region30: #{mamba_net_forward.1} parent=1 // pred_check
      _
    $region31: #{mamba_net_forward.1} parent=1 // pred_check_branch
      %66 = sbr.rel (0) target = $region33
    $region32: #{mamba_net_forward.1} parent=1 // pred_region
      _
    $region33: #{mamba_net_forward.1} parent=1 // pred_fallthru
      _
    // Predicated region
    $region34: #{mamba_net_forward.1} parent=1 // pred_check
      _
    $region35: #{mamba_net_forward.1} parent=1 // pred_check_branch
      %68 = sbr.rel (0) target = $region37
    $region36: #{mamba_net_forward.1} parent=1 // pred_region
      _
    $region37: #{mamba_net_forward.1} parent=1 // pred_fallthru
      _
    // Predicated region
    $region38: #{mamba_net_forward.1} parent=1 // pred_check
      _
    $region39: #{mamba_net_forward.1} parent=1 // pred_check_branch
      %70 = sbr.rel (0) target = $region41
    $region40: #{mamba_net_forward.1} parent=1 // pred_region
      %s72 = ssub.s32 64, 64
      %73 = vsyncadd [#allocation7], %s72
      %s74 = sshll.u32 [#allocation8], 4
      %s75 = int_to_ptr.vmem [resolvable:$true] %s74
      %80 = dma.hbm_to_vmem [thread:$0]  %s9, 64, %s75, [#allocation7], 16, 16, 1
    $region41: #{mamba_net_forward.1} parent=1 // pred_fallthru
      _
    // Predicated region
    $region42: #{mamba_net_forward.1} parent=1 // pred_check
      _
    $region43: #{mamba_net_forward.1} parent=1 // pred_check_branch
      %82 = sbr.rel (0) target = $region45
    $region44: #{mamba_net_forward.1} parent=1 // pred_region
      %s84 = ssub.s32 32, 32
      %85 = vsyncadd [#allocation10], %s84
      %s86 = sshll.u32 [#allocation9], 4
      %s87 = int_to_ptr.vmem [resolvable:$true] %s86
      %92 = dma.hbm_to_vmem [thread:$0]  %s10, 32, %s87, [#allocation10], 16, 16, 1
    $region45: #{mamba_net_forward.1} parent=1 // pred_fallthru
      _
    // Predicated region
    $region46: #{mamba_net_forward.1} parent=1 // pred_check
      _
    $region47: #{mamba_net_forward.1} parent=1 // pred_check_branch
      %94 = sbr.rel (0) target = $region49
    $region48: #{mamba_net_forward.1} parent=1 // pred_region
      _
    $region49: #{mamba_net_forward.1} parent=1 // pred_fallthru
      _
    // Predicated region
    $region50: #{mamba_net_forward.1} parent=1 // pred_check
      _
    $region51: #{mamba_net_forward.1} parent=1 // pred_check_branch
      %96 = sbr.rel (0) target = $region53
    $region52: #{mamba_net_forward.1} parent=1 // pred_region
      %s98 = ssub.s32 32, 32
      %99 = vsyncadd [#allocation10], %s98
      %s100 = sshll.u32 [#allocation11], 4
      %s101 = int_to_ptr.vmem [resolvable:$true] %s100
      %106 = dma.hbm_to_vmem [thread:$0]  %s12, 32, %s101, [#allocation10], 16, 16, 1
    $region53: #{mamba_net_forward.1} parent=1 // pred_fallthru
      _
    // Predicated region
    $region54: #{mamba_net_forward.1} parent=1 // pred_check
      _
    $region55: #{mamba_net_forward.1} parent=1 // pred_check_branch
      %108 = sbr.rel (0) target = $region57
    $region56: #{mamba_net_forward.1} parent=1 // pred_region
      _
    $region57: #{mamba_net_forward.1} parent=1 // pred_fallthru
      _
    // Predicated region
    $region58: #{mamba_net_forward.1} parent=1 // pred_check
      _
    $region59: #{mamba_net_forward.1} parent=1 // pred_check_branch
      %110 = sbr.rel (0) target = $region61
    $region60: #{mamba_net_forward.1} parent=1 // pred_region
      _
    $region61: #{mamba_net_forward.1} parent=1 // pred_fallthru
      _
    // Predicated region
    $region62: #{mamba_net_forward.1} parent=1 // pred_check
      _
    $region63: #{mamba_net_forward.1} parent=1 // pred_check_branch
      %112 = sbr.rel (0) target = $region65
    $region64: #{mamba_net_forward.1} parent=1 // pred_region
      _
    $region65: #{mamba_net_forward.1} parent=1 // pred_fallthru
      _
    // Predicated region
    $region66: #{mamba_net_forward.1} parent=1 // pred_check
      _
    $region67: #{mamba_net_forward.1} parent=1 // pred_check_branch
      %114 = sbr.rel (0) target = $region69
    $region68: #{mamba_net_forward.1} parent=1 // pred_region
      %s116 = ssub.s32 32, 32
      %117 = vsyncadd [#allocation13], %s116
      %s118 = sshll.u32 [#allocation12], 4
      %s119 = int_to_ptr.vmem [resolvable:$true] %s118
      %124 = dma.hbm_to_vmem [thread:$0]  %s16, 32, %s119, [#allocation13], 16, 16, 1
    $region69: #{mamba_net_forward.1} parent=1 // pred_fallthru
      _
    // Predicated region
    $region70: #{mamba_net_forward.1} parent=1 // pred_check
      _
    $region71: #{mamba_net_forward.1} parent=1 // pred_check_branch
      %126 = sbr.rel (0) target = $region73
    $region72: #{mamba_net_forward.1} parent=1 // pred_region
      _
    $region73: #{mamba_net_forward.1} parent=1 // pred_fallthru
      _
    // Predicated region
    $region74: #{mamba_net_forward.1} parent=1 // pred_check
      _
    $region75: #{mamba_net_forward.1} parent=1 // pred_check_branch
      %128 = sbr.rel (0) target = $region77
    $region76: #{mamba_net_forward.1} parent=1 // pred_region
      _
    $region77: #{mamba_net_forward.1} parent=1 // pred_fallthru
      _
    // Predicated region
    $region78: #{mamba_net_forward.1} parent=1 // pred_check
      _
    $region79: #{mamba_net_forward.1} parent=1 // pred_check_branch
      %130 = sbr.rel (0) target = $region81
    $region80: #{mamba_net_forward.1} parent=1 // pred_region
      _
    $region81: #{mamba_net_forward.1} parent=1 // pred_fallthru
      _
    // Predicated region
    $region82: #{mamba_net_forward.1} parent=1 // pred_check
      _
    $region83: #{mamba_net_forward.1} parent=1 // pred_check_branch
      %132 = sbr.rel (0) target = $region85
    $region84: #{mamba_net_forward.1} parent=1 // pred_region
      _
    $region85: #{mamba_net_forward.1} parent=1 // pred_fallthru
      _
    // Predicated region
    $region86: #{mamba_net_forward.1} parent=1 // pred_check
      _
    $region87: #{mamba_net_forward.1} parent=1 // pred_check_branch
      %134 = sbr.rel (0) target = $region89
    $region88: #{mamba_net_forward.1} parent=1 // pred_region
      _
    $region89: #{mamba_net_forward.1} parent=1 // pred_fallthru
      _
    // Predicated region
    $region90: #{mamba_net_forward.1} parent=1 // pred_check
      _
    $region91: #{mamba_net_forward.1} parent=1 // pred_check_branch
      %136 = sbr.rel (0) target = $region93
    $region92: #{mamba_net_forward.1} parent=1 // pred_region
      _
    $region93: #{mamba_net_forward.1} parent=1 // pred_fallthru
      _
    // Predicated region
    $region94: #{mamba_net_forward.1} parent=1 // pred_check
      _
    $region95: #{mamba_net_forward.1} parent=1 // pred_check_branch
      %138 = sbr.rel (0) target = $region97
    $region96: #{mamba_net_forward.1} parent=1 // pred_region
      %139 = dma.done [#allocation4], 32
    $region97: #{mamba_net_forward.1} parent=1 // pred_fallthru
      _
    // Predicated region
    $region98: #{mamba_net_forward.1} parent=1 // pred_check
      _
    $region99: #{mamba_net_forward.1} parent=1 // pred_check_branch
      %141 = sbr.rel (0) target = $region101
    $region100: #{mamba_net_forward.1} parent=1 // pred_region
      %142 = dma.done [#allocation7], 1536
    $region101: #{mamba_net_forward.1} parent=1 // pred_fallthru
      _
    // Predicated region
    $region102: #{mamba_net_forward.1} parent=1 // pred_check
      _
    $region103: #{mamba_net_forward.1} parent=1 // pred_check_branch
      %144 = sbr.rel (0) target = $region105
    $region104: #{mamba_net_forward.1} parent=1 // pred_region
      %145 = dma.done [#allocation7], 64
    $region105: #{mamba_net_forward.1} parent=1 // pred_fallthru
      _
    // Predicated region
    $region106: #{mamba_net_forward.1} parent=1 // pred_check
      _
    $region107: #{mamba_net_forward.1} parent=1 // pred_check_branch
      %147 = sbr.rel (0) target = $region109
    $region108: #{mamba_net_forward.1} parent=1 // pred_region
      %148 = dma.done [#allocation10], 32
    $region109: #{mamba_net_forward.1} parent=1 // pred_fallthru
      _
    // Predicated region
    $region110: #{mamba_net_forward.1} parent=1 // pred_check
      _
    $region111: #{mamba_net_forward.1} parent=1 // pred_check_branch
      %150 = sbr.rel (0) target = $region113
    $region112: #{mamba_net_forward.1} parent=1 // pred_region
      %151 = dma.done [#allocation10], 32
    $region113: #{mamba_net_forward.1} parent=1 // pred_fallthru
      _
    // Predicated region
    $region114: #{mamba_net_forward.1} parent=1 // pred_check
      _
    $region115: #{mamba_net_forward.1} parent=1 // pred_check_branch
      %153 = sbr.rel (0) target = $region117
    $region116: #{mamba_net_forward.1} parent=1 // pred_region
      %154 = dma.done [#allocation13], 32
    $region117: #{mamba_net_forward.1} parent=1 // pred_fallthru
      _
    %v155 = vld [vmem:[%s0] sm:$0xff]
    %v156 = vld [vmem:[%s0 + $0x8] sm:$0xff]
    %v157 = vld [vmem:[%s0 + $0x10] sm:$0xff]
    %v158 = vld [vmem:[%s0 + $0x18] sm:$0xff]
    %v159 = vld [vmem:[%s20] sm:$0xff]
    %v160 = vld [vmem:[%s20 + $0x8] sm:$0xff]
    %v161 = vld [vmem:[%s20 + $0x10] sm:$0xff]
    %v162 = vld [vmem:[%s20 + $0x18] sm:$0xff]
    %v163 = vld [vmem:[%s20 + $0x20] sm:$0xff]
    %v164 = vld [vmem:[%s20 + $0x28] sm:$0xff]
    %v165 = vld [vmem:[%s20 + $0x30] sm:$0xff]
    %v166 = vld [vmem:[%s20 + $0x38] sm:$0xff]
    %v167 = vld [vmem:[%s20 + $0x40] sm:$0xff]
    %v168 = vld [vmem:[%s20 + $0x48] sm:$0xff]
    %v169 = vld [vmem:[%s20 + $0x50] sm:$0xff]
    %v170 = vld [vmem:[%s20 + $0x58] sm:$0xff]
    %v171 = vld [vmem:[%s20 + $0x60] sm:$0xff]
    %v172 = vld [vmem:[%s20 + $0x68] sm:$0xff]
    %v173 = vld [vmem:[%s20 + $0x70] sm:$0xff]
    %v174 = vld [vmem:[%s20 + $0x78] sm:$0xff]
    %v175 = vld [vmem:[%s20 + $0x80] sm:$0xff]
    %v176 = vld [vmem:[%s20 + $0x88] sm:$0xff]
    %v177 = vld [vmem:[%s20 + $0x90] sm:$0xff]
    %v178 = vld [vmem:[%s20 + $0x98] sm:$0xff]
    %v179 = vld [vmem:[%s20 + $0xa0] sm:$0xff]
    %v180 = vld [vmem:[%s20 + $0xa8] sm:$0xff]
    %v181 = vld [vmem:[%s20 + $0xb0] sm:$0xff]
    %v182 = vld [vmem:[%s20 + $0xb8] sm:$0xff]
    %v183 = vld [vmem:[%s20 + $0xc0] sm:$0xff]
    %v184 = vld [vmem:[%s20 + $0xc8] sm:$0xff]
    %v185 = vld [vmem:[%s20 + $0xd0] sm:$0xff]
    %v186 = vld [vmem:[%s20 + $0xd8] sm:$0xff]
    %v187 = vld [vmem:[%s20 + $0xe0] sm:$0xff]
    %v188 = vld [vmem:[%s20 + $0xe8] sm:$0xff]
    %v189 = vld [vmem:[%s20 + $0xf0] sm:$0xff]
    %v190 = vld [vmem:[%s20 + $0xf8] sm:$0xff]
    %v191 = vld [vmem:[%s20 + $0x100] sm:$0xff]
    %v192 = vld [vmem:[%s20 + $0x108] sm:$0xff]
    %v193 = vld [vmem:[%s20 + $0x110] sm:$0xff]
    %v194 = vld [vmem:[%s20 + $0x118] sm:$0xff]
    %v195 = vld [vmem:[%s20 + $0x120] sm:$0xff]
    %v196 = vld [vmem:[%s20 + $0x128] sm:$0xff]
    %v197 = vld [vmem:[%s20 + $0x130] sm:$0xff]
    %v198 = vld [vmem:[%s20 + $0x138] sm:$0xff]
    %v199 = vld [vmem:[%s20 + $0x140] sm:$0xff]
    %v200 = vld [vmem:[%s20 + $0x148] sm:$0xff]
    %v201 = vld [vmem:[%s20 + $0x150] sm:$0xff]
    %v202 = vld [vmem:[%s20 + $0x158] sm:$0xff]
    %v203 = vld [vmem:[%s20 + $0x160] sm:$0xff]
    %v204 = vld [vmem:[%s20 + $0x168] sm:$0xff]
    %v205 = vld [vmem:[%s20 + $0x170] sm:$0xff]
    %v206 = vld [vmem:[%s20 + $0x178] sm:$0xff]
    %v207 = vld [vmem:[%s20 + $0x180] sm:$0xff]
    %v208 = vld [vmem:[%s20 + $0x188] sm:$0xff]
    %v209 = vld [vmem:[%s20 + $0x190] sm:$0xff]
    %v210 = vld [vmem:[%s20 + $0x198] sm:$0xff]
    %v211 = vld [vmem:[%s20 + $0x1a0] sm:$0xff]
    %v212 = vld [vmem:[%s20 + $0x1a8] sm:$0xff]
    %v213 = vld [vmem:[%s20 + $0x1b0] sm:$0xff]
    %v214 = vld [vmem:[%s20 + $0x1b8] sm:$0xff]
    %v215 = vld [vmem:[%s20 + $0x1c0] sm:$0xff]
    %v216 = vld [vmem:[%s20 + $0x1c8] sm:$0xff]
    %v217 = vld [vmem:[%s20 + $0x1d0] sm:$0xff]
    %v218 = vld [vmem:[%s20 + $0x1d8] sm:$0xff]
    %v219 = vld [vmem:[%s20 + $0x1e0] sm:$0xff]
    %v220 = vld [vmem:[%s20 + $0x1e8] sm:$0xff]
    %v221 = vld [vmem:[%s20 + $0x1f0] sm:$0xff]
    %v222 = vld [vmem:[%s20 + $0x1f8] sm:$0xff]
    %v223 = vld [vmem:[%s21] sm:$0xff]
    %v224 = vld [vmem:[%s21 + $0x8] sm:$0xff]
    %v225 = vld [vmem:[%s21 + $0x10] sm:$0xff]
    %v226 = vld [vmem:[%s21 + $0x18] sm:$0xff]
    %v227 = vld [vmem:[%s21 + $0x20] sm:$0xff]
    %v228 = vld [vmem:[%s21 + $0x28] sm:$0xff]
    %v229 = vld [vmem:[%s21 + $0x30] sm:$0xff]
    %v230 = vld [vmem:[%s21 + $0x38] sm:$0xff]
    %v231 = vld [vmem:[%s21 + $0x40] sm:$0xff]
    %v232 = vld [vmem:[%s21 + $0x48] sm:$0xff]
    %v233 = vld [vmem:[%s21 + $0x50] sm:$0xff]
    %v234 = vld [vmem:[%s21 + $0x58] sm:$0xff]
    %v235 = vld [vmem:[%s21 + $0x60] sm:$0xff]
    %v236 = vld [vmem:[%s21 + $0x68] sm:$0xff]
    %v237 = vld [vmem:[%s21 + $0x70] sm:$0xff]
    %v238 = vld [vmem:[%s21 + $0x78] sm:$0xff]
    %v239 = vld [vmem:[%s22] sm:$0xff]
    %v240 = vld [vmem:[%s22 + $0x8] sm:$0xff]
    %v241 = vld [vmem:[%s22 + $0x10] sm:$0xff]
    %v242 = vld [vmem:[%s22 + $0x18] sm:$0xff]
    %v243 = vld [vmem:[%s22 + $0x20] sm:$0xff]
    %v244 = vld [vmem:[%s22 + $0x28] sm:$0xff]
    %v245 = vld [vmem:[%s22 + $0x30] sm:$0xff]
    %v246 = vld [vmem:[%s22 + $0x38] sm:$0xff]
    %v247 = vld [vmem:[%s22 + $0x40] sm:$0xff]
    %v248 = vld [vmem:[%s22 + $0x48] sm:$0xff]
    %v249 = vld [vmem:[%s22 + $0x50] sm:$0xff]
    %v250 = vld [vmem:[%s22 + $0x58] sm:$0xff]
    %v251 = vld [vmem:[%s22 + $0x60] sm:$0xff]
    %v252 = vld [vmem:[%s22 + $0x68] sm:$0xff]
    %v253 = vld [vmem:[%s22 + $0x70] sm:$0xff]
    %v254 = vld [vmem:[%s22 + $0x78] sm:$0xff]
    %v255 = vld [vmem:[%s22 + $0x80] sm:$0xff]
    %v256 = vld [vmem:[%s22 + $0x88] sm:$0xff]
    %v257 = vld [vmem:[%s22 + $0x90] sm:$0xff]
    %v258 = vld [vmem:[%s22 + $0x98] sm:$0xff]
    %v259 = vld [vmem:[%s22 + $0xa0] sm:$0xff]
    %v260 = vld [vmem:[%s22 + $0xa8] sm:$0xff]
    %v261 = vld [vmem:[%s22 + $0xb0] sm:$0xff]
    %v262 = vld [vmem:[%s22 + $0xb8] sm:$0xff]
    %v263 = vld [vmem:[%s22 + $0xc0] sm:$0xff]
    %v264 = vld [vmem:[%s22 + $0xc8] sm:$0xff]
    %v265 = vld [vmem:[%s22 + $0xd0] sm:$0xff]
    %v266 = vld [vmem:[%s22 + $0xd8] sm:$0xff]
    %v267 = vld [vmem:[%s22 + $0xe0] sm:$0xff]
    %v268 = vld [vmem:[%s22 + $0xe8] sm:$0xff]
    %v269 = vld [vmem:[%s22 + $0xf0] sm:$0xff]
    %v270 = vld [vmem:[%s22 + $0xf8] sm:$0xff]
    %v271 = vld [vmem:[%s22 + $0x100] sm:$0xff]
    %v272 = vld [vmem:[%s22 + $0x108] sm:$0xff]
    %v273 = vld [vmem:[%s22 + $0x110] sm:$0xff]
    %v274 = vld [vmem:[%s22 + $0x118] sm:$0xff]
    %v275 = vld [vmem:[%s22 + $0x120] sm:$0xff]
    %v276 = vld [vmem:[%s22 + $0x128] sm:$0xff]
    %v277 = vld [vmem:[%s22 + $0x130] sm:$0xff]
    %v278 = vld [vmem:[%s22 + $0x138] sm:$0xff]
    %v279 = vld [vmem:[%s22 + $0x140] sm:$0xff]
    %v280 = vld [vmem:[%s22 + $0x148] sm:$0xff]
    %v281 = vld [vmem:[%s22 + $0x150] sm:$0xff]
    %v282 = vld [vmem:[%s22 + $0x158] sm:$0xff]
    %v283 = vld [vmem:[%s22 + $0x160] sm:$0xff]
    %v284 = vld [vmem:[%s22 + $0x168] sm:$0xff]
    %v285 = vld [vmem:[%s22 + $0x170] sm:$0xff]
    %v286 = vld [vmem:[%s22 + $0x178] sm:$0xff]
    %v287 = vld [vmem:[%s22 + $0x180] sm:$0xff]
    %v288 = vld [vmem:[%s22 + $0x188] sm:$0xff]
    %v289 = vld [vmem:[%s22 + $0x190] sm:$0xff]
    %v290 = vld [vmem:[%s22 + $0x198] sm:$0xff]
    %v291 = vld [vmem:[%s22 + $0x1a0] sm:$0xff]
    %v292 = vld [vmem:[%s22 + $0x1a8] sm:$0xff]
    %v293 = vld [vmem:[%s22 + $0x1b0] sm:$0xff]
    %v294 = vld [vmem:[%s22 + $0x1b8] sm:$0xff]
    %v295 = vld [vmem:[%s22 + $0x1c0] sm:$0xff]
    %v296 = vld [vmem:[%s22 + $0x1c8] sm:$0xff]
    %v297 = vld [vmem:[%s22 + $0x1d0] sm:$0xff]
    %v298 = vld [vmem:[%s22 + $0x1d8] sm:$0xff]
    %v299 = vld [vmem:[%s22 + $0x1e0] sm:$0xff]
    %v300 = vld [vmem:[%s22 + $0x1e8] sm:$0xff]
    %v301 = vld [vmem:[%s22 + $0x1f0] sm:$0xff]
    %v302 = vld [vmem:[%s22 + $0x1f8] sm:$0xff]
    %v303 = vld [vmem:[#allocation3] sm:$0x3]
    %v304 = vld [vmem:[%s2] sm:$0x1]
    %v306 = vlaneseq
    %v307 = vshrl.u32 %v306, 7
    %v308 = vsub.s32 0, %v307
    %v309 = vrot.slane %v304, %v308
    %vm311 = vcmask 15360
    %v313 = vsel %vm311, %v155, 0
    %v316 = vsel %vm311, %v156, 0
    %v319 = vsel %vm311, %v157, 0
    %v322 = vsel %vm311, %v158, 0
    %vm324 = vcmask 1041408
    %v326 = vsel %vm324, %v303, 0
    %328 = vmatprep.subr.mxu0 0.0
    %329 = vmatpush1.msra.mxu0 %v326
    %330 = vmatprep.subr.mxu0 0.0
    %331 = vmatpush1.msra.mxu0 0.0
    %332 = vmatprep.subr.mxu0 0.0
    %333 = vmatpush1.msra.mxu0 0.0
    %334 = vmatprep.subr.mxu0 0.0
    %335 = vmatpush1.msra.mxu0 0.0
    %336 = vmatprep.subr.mxu0 0.0
    %337 = vmatpush1.msra.mxu0 0.0
    %338 = vmatprep.subr.mxu0 0.0
    %339 = vmatpush1.msra.mxu0 0.0
    %340 = vmatprep.subr.mxu0 0.0
    %341 = vmatpush1.msra.mxu0 0.0
    %342 = vmatprep.subr.mxu0 0.0
    %343 = vmatpush1.msra.mxu0 0.0
    %344 = vmatprep.subr.mxu0 0.0
    %345 = vmatpush1.msra.mxu0 0.0
    %346 = vmatprep.subr.mxu0 0.0
    %347 = vmatpush1.msra.mxu0 0.0
    %348 = vmatprep.subr.mxu0 0.0
    %349 = vmatpush1.msra.mxu0 0.0
    %350 = vmatprep.subr.mxu0 0.0
    %351 = vmatpush1.msra.mxu0 0.0
    %352 = vmatprep.subr.mxu0 0.0
    %353 = vmatpush1.msra.mxu0 0.0
    %354 = vmatprep.subr.mxu0 0.0
    %355 = vmatpush1.msra.mxu0 0.0
    %356 = vmatprep.subr.mxu0 0.0
    %357 = vmatpush1.msra.mxu0 0.0
    %358 = vmatprep.subr.mxu0 0.0
    %359 = vmatpush1.msra.mxu0 0.0
    %360 = vmatprep.subr.mxu0 0.0
    %361 = vmatpush1.msra.mxu0 0.0
    %362 = vmatprep.subr.mxu0 0.0
    %363 = vmatpush1.msra.mxu0 0.0
    %364 = vmatprep.subr.mxu0 0.0
    %365 = vmatpush1.msra.mxu0 0.0
    %366 = vmatprep.subr.mxu0 0.0
    %367 = vmatpush1.msra.mxu0 0.0
    %368 = vmatprep.subr.mxu0 0.0
    %369 = vmatpush1.msra.mxu0 0.0
    %370 = vmatprep.subr.mxu0 0.0
    %371 = vmatpush1.msra.mxu0 0.0
    %372 = vmatprep.subr.mxu0 0.0
    %373 = vmatpush1.msra.mxu0 0.0
    %374 = vmatprep.subr.mxu0 0.0
    %375 = vmatpush1.msra.mxu0 0.0
    %376 = vmatprep.subr.mxu0 0.0
    %377 = vmatpush1.msra.mxu0 0.0
    %378 = vmatprep.subr.mxu0 0.0
    %379 = vmatpush1.msra.mxu0 0.0
    %380 = vmatprep.subr.mxu0 0.0
    %381 = vmatpush1.msra.mxu0 0.0
    %382 = vmatprep.subr.mxu0 0.0
    %383 = vmatpush1.msra.mxu0 0.0
    %384 = vmatprep.subr.mxu0 0.0
    %385 = vmatpush1.msra.mxu0 0.0
    %386 = vmatprep.subr.mxu0 0.0
    %387 = vmatpush1.msra.mxu0 0.0
    %388 = vmatprep.subr.mxu0 0.0
    %389 = vmatpush1.msra.mxu0 0.0
    %390 = vmatprep.subr.mxu0 0.0
    %391 = vmatpush1.msra.mxu0 0.0
    %392 = vmatprep.mubr.f32.mxu0 0.0
    %393 = vmatmul.mubr.f32.gmra.mrb[0].mxu0 %v313
    %v394 = vpop.f32.mrb[0].mxu0
    %v395 = vadd.f32 %v309, %v394
    %v396 = vpop.f32.mrb[0].mxu0
    %397 = vmatprep.mubr.f32.mxu0 0.0
    %398 = vmatmul.mubr.f32.gmra.mrb[0].mxu0 %v316
    %v399 = vpop.f32.mrb[0].mxu0
    %v400 = vadd.f32 %v309, %v399
    %v401 = vpop.f32.mrb[0].mxu0
    %402 = vmatprep.mubr.f32.mxu0 0.0
    %403 = vmatmul.mubr.f32.gmra.mrb[0].mxu0 %v319
    %v404 = vpop.f32.mrb[0].mxu0
    %v405 = vadd.f32 %v309, %v404
    %v406 = vpop.f32.mrb[0].mxu0
    %407 = vmatprep.mubr.f32.mxu0 0.0
    %408 = vmatmul.mubr.f32.gmra.mrb[0].mxu0 %v322
    %v409 = vpop.f32.mrb[0].mxu0
    %v410 = vadd.f32 %v309, %v409
    %v411 = vpop.f32.mrb[0].mxu0
    %412 = vdwg.mxu0
    %v414 = vrot.slane %v400, 7
    %vm417 = vcmask 1040384
    %v418 = vrot.slane %v395, 7
    %v419 = vsel %vm417, %v418, %v414
    %v423 = vrot.slane %v410, 7
    %v426 = vrot.slane %v405, 7
    %v427 = vsel %vm417, %v426, %v423
    %v430 = vsel %vm417, %v414, %v418
    %v431 = vsel %vm417, %v423, %v426
    %vm432 = vcmask 1046528
    %v433 = vrot.slane %v395, 1
    %v434 = vrot.slane %v400, 1
    %v435 = vsel %vm432, %v433, %v434
    %v438 = vrot.slane %v405, 1
    %v439 = vrot.slane %v410, 1
    %v440 = vsel %vm432, %v438, %v439
    %v443 = vsel %vm432, %v434, %v433
    %v444 = vsel %vm432, %v439, %v438
    %445 = vrot.lane.b32.xlu0 %v395, 32
    %v446 = vpop.permute.xlu0 %445
    %447 = vrot.lane.b32.xlu0 %v400, 32
    %v448 = vpop.permute.xlu0 %447
    %449 = vrot.lane.b32.xlu0 %v405, 32
    %v450 = vpop.permute.xlu0 %449
    %451 = vrot.lane.b32.xlu0 %v410, 32
    %v452 = vpop.permute.xlu0 %451
    %459 = vrot.lane.b32.xlu0 %v435, 64
    %v460 = vpop.permute.xlu0 %459
    %461 = vrot.lane.b32.xlu0 %v443, 64
    %v462 = vpop.permute.xlu0 %461
    %463 = vrot.lane.b32.xlu0 %v440, 64
    %v464 = vpop.permute.xlu0 %463
    %465 = vrot.lane.b32.xlu0 %v444, 64
    %v466 = vpop.permute.xlu0 %465
    %vm471 = vcmask 261120
    %v472 = vsel %vm471, %v430, %v446
    %v473 = vsel %vm471, %v419, %v448
    %v474 = vsel %vm471, %v431, %v450
    %v475 = vsel %vm471, %v427, %v452
    %vm476 = vcmask 523264
    %v477 = vsel %vm476, %v472, %v460
    %v478 = vsel %vm476, %v473, %v462
    %v479 = vsel %vm476, %v474, %v464
    %v480 = vsel %vm476, %v475, %v466
    %v481 = vld [vmem:[#allocation6] sm:$0xff]
    %v482 = vld [vmem:[#allocation6 + $0x8] sm:$0xff]
    %v483 = vld [vmem:[#allocation6 + $0x10] sm:$0xff]
    %v484 = vld [vmem:[#allocation6 + $0x18] sm:$0xff]
    %v485 = vld [vmem:[#allocation6 + $0x20] sm:$0xff]
    %v486 = vld [vmem:[#allocation6 + $0x28] sm:$0xff]
    %v487 = vld [vmem:[#allocation6 + $0x30] sm:$0xff]
    %v488 = vld [vmem:[#allocation6 + $0x38] sm:$0xff]
    %v489 = vld [vmem:[#allocation6 + $0x40] sm:$0xff]
    %v490 = vld [vmem:[#allocation6 + $0x48] sm:$0xff]
    %v491 = vld [vmem:[#allocation6 + $0x50] sm:$0xff]
    %v492 = vld [vmem:[#allocation6 + $0x58] sm:$0xff]
    %v493 = vld [vmem:[%s4] sm:$0x1]
    %v495 = vlaneseq
    %v496 = vshrl.u32 %v495, 7
    %v497 = vsub.s32 0, %v496
    %v498 = vrot.slane %v493, %v497
    %vm500 = vcmask 785408
    %v502 = vsel %vm500, %v477, 0
    %v505 = vsel %vm500, %v478, 0
    %v508 = vsel %vm500, %v479, 0
    %v511 = vsel %vm500, %v480, 0
    %513 = vmatprep.subr.mxu0 0.0
    %514 = vmatpush1.msra.mxu0 %v481
    %515 = vmatprep.subr.mxu0 0.0
    %516 = vmatpush1.msra.mxu0 %v482
    %517 = vmatprep.subr.mxu0 0.0
    %518 = vmatpush1.msra.mxu0 %v483
    %519 = vmatprep.subr.mxu0 0.0
    %520 = vmatpush1.msra.mxu0 %v484
    %521 = vmatprep.subr.mxu0 0.0
    %522 = vmatpush1.msra.mxu0 %v485
    %523 = vmatprep.subr.mxu0 0.0
    %524 = vmatpush1.msra.mxu0 %v486
    %525 = vmatprep.subr.mxu0 0.0
    %526 = vmatpush1.msra.mxu0 %v487
    %527 = vmatprep.subr.mxu0 0.0
    %528 = vmatpush1.msra.mxu0 %v488
    %529 = vmatprep.subr.mxu0 0.0
    %530 = vmatpush1.msra.mxu0 %v489
    %531 = vmatprep.subr.mxu0 0.0
    %532 = vmatpush1.msra.mxu0 %v490
    %533 = vmatprep.subr.mxu0 0.0
    %534 = vmatpush1.msra.mxu0 %v491
    %535 = vmatprep.subr.mxu0 0.0
    %536 = vmatpush1.msra.mxu0 %v492
    %537 = vmatprep.subr.mxu0 0.0
    %538 = vmatpush1.msra.mxu0 0.0
    %539 = vmatprep.subr.mxu0 0.0
    %540 = vmatpush1.msra.mxu0 0.0
    %541 = vmatprep.subr.mxu0 0.0
    %542 = vmatpush1.msra.mxu0 0.0
    %543 = vmatprep.subr.mxu0 0.0
    %544 = vmatpush1.msra.mxu0 0.0
    %545 = vmatprep.subr.mxu0 0.0
    %546 = vmatpush1.msra.mxu0 0.0
    %547 = vmatprep.subr.mxu0 0.0
    %548 = vmatpush1.msra.mxu0 0.0
    %549 = vmatprep.subr.mxu0 0.0
    %550 = vmatpush1.msra.mxu0 0.0
    %551 = vmatprep.subr.mxu0 0.0
    %552 = vmatpush1.msra.mxu0 0.0
    %553 = vmatprep.subr.mxu0 0.0
    %554 = vmatpush1.msra.mxu0 0.0
    %555 = vmatprep.subr.mxu0 0.0
    %556 = vmatpush1.msra.mxu0 0.0
    %557 = vmatprep.subr.mxu0 0.0
    %558 = vmatpush1.msra.mxu0 0.0
    %559 = vmatprep.subr.mxu0 0.0
    %560 = vmatpush1.msra.mxu0 0.0
    %561 = vmatprep.subr.mxu0 0.0
    %562 = vmatpush1.msra.mxu0 0.0
    %563 = vmatprep.subr.mxu0 0.0
    %564 = vmatpush1.msra.mxu0 0.0
    %565 = vmatprep.subr.mxu0 0.0
    %566 = vmatpush1.msra.mxu0 0.0
    %567 = vmatprep.subr.mxu0 0.0
    %568 = vmatpush1.msra.mxu0 0.0
    %569 = vmatprep.subr.mxu0 0.0
    %570 = vmatpush1.msra.mxu0 0.0
    %571 = vmatprep.subr.mxu0 0.0
    %572 = vmatpush1.msra.mxu0 0.0
    %573 = vmatprep.subr.mxu0 0.0
    %574 = vmatpush1.msra.mxu0 0.0
    %575 = vmatprep.subr.mxu0 0.0
    %576 = vmatpush1.msra.mxu0 0.0
    %577 = vmatprep.mubr.f32.mxu0 0.0
    %578 = vmatmul.mubr.f32.gmra.mrb[0].mxu0 %v502
    %v579 = vpop.f32.mrb[0].mxu0
    %v580 = vadd.f32 %v498, %v579
    %v581 = vpop.f32.mrb[0].mxu0
    %582 = vmatprep.mubr.f32.mxu0 0.0
    %583 = vmatmul.mubr.f32.gmra.mrb[0].mxu0 %v505
    %v584 = vpop.f32.mrb[0].mxu0
    %v585 = vadd.f32 %v498, %v584
    %v586 = vpop.f32.mrb[0].mxu0
    %587 = vmatprep.mubr.f32.mxu0 0.0
    %588 = vmatmul.mubr.f32.gmra.mrb[0].mxu0 %v508
    %v589 = vpop.f32.mrb[0].mxu0
    %v590 = vadd.f32 %v498, %v589
    %v591 = vpop.f32.mrb[0].mxu0
    %592 = vmatprep.mubr.f32.mxu0 0.0
    %593 = vmatmul.mubr.f32.gmra.mrb[0].mxu0 %v511
    %v594 = vpop.f32.mrb[0].mxu0
    %v595 = vadd.f32 %v498, %v594
    %v596 = vpop.f32.mrb[0].mxu0
    %597 = vdwg.mxu0
    %v598 = vsel %vm471, %v580, 0.0
    %599 = vadd.xlane.f32.xlu0 %v598
    %v600 = vpop.xlane.xlu0 %599
    %v601 = vsel %vm471, %v585, 0.0
    %602 = vadd.xlane.f32.xlu0 %v601
    %v603 = vpop.xlane.xlu0 %602
    %v604 = vsel %vm471, %v590, 0.0
    %605 = vadd.xlane.f32.xlu0 %v604
    %v606 = vpop.xlane.xlu0 %605
    %v607 = vsel %vm471, %v595, 0.0
    %608 = vadd.xlane.f32.xlu0 %v607
    %v609 = vpop.xlane.xlu0 %608
    %v610 = vrcp.pop 32.0
    %v611 = vmul.f32 %v600, %v610
    %v612 = vmul.f32 %v603, %v610
    %v613 = vmul.f32 %v606, %v610
    %v614 = vmul.f32 %v609, %v610
    %v615 = vsub.f32 %v580, %v611
    %v616 = vsub.f32 %v585, %v612
    %v617 = vsub.f32 %v590, %v613
    %v618 = vsub.f32 %v595, %v614
    %v619 = vmul.f32 %v615, %v615
    %v620 = vmul.f32 %v616, %v616
    %v621 = vmul.f32 %v617, %v617
    %v622 = vmul.f32 %v618, %v618
    %v623 = vsel %vm471, %v619, 0.0
    %624 = vadd.xlane.f32.xlu0 %v623
    %v625 = vpop.xlane.xlu0 %624
    %v626 = vsel %vm471, %v620, 0.0
    %627 = vadd.xlane.f32.xlu0 %v626
    %v628 = vpop.xlane.xlu0 %627
    %v629 = vsel %vm471, %v621, 0.0
    %630 = vadd.xlane.f32.xlu0 %v629
    %v631 = vpop.xlane.xlu0 %630
    %v632 = vsel %vm471, %v622, 0.0
    %633 = vadd.xlane.f32.xlu0 %v632
    %v634 = vpop.xlane.xlu0 %633
    %v635 = vmul.f32 %v625, %v610
    %v636 = vmul.f32 %v628, %v610
    %v637 = vmul.f32 %v631, %v610
    %v638 = vmul.f32 %v634, %v610
    %v639 = vadd.f32 %v635, 1e-05
    %v640 = vadd.f32 %v636, 1e-05
    %v641 = vadd.f32 %v637, 1e-05
    %v642 = vadd.f32 %v638, 1e-05
    %v643 = vrsqrt.pop %v639
    %v644 = vrsqrt.pop %v640
    %v645 = vrsqrt.pop %v641
    %v646 = vrsqrt.pop %v642
    %v647 = vmul.f32 %v615, %v643
    %v648 = vmul.f32 %v616, %v644
    %v649 = vmul.f32 %v617, %v645
    %v650 = vmul.f32 %v618, %v646
    %v651 = vld [vmem:[%s5] sm:$0x1]
    %v653 = vlaneseq
    %v654 = vshrl.u32 %v653, 7
    %v655 = vsub.s32 0, %v654
    %v656 = vrot.slane %v651, %v655
    %v658 = vmul.f32 %v647, %v656
    %v659 = vmul.f32 %v648, %v656
    %v660 = vmul.f32 %v649, %v656
    %v661 = vmul.f32 %v650, %v656
    %v662 = vld [vmem:[%s6] sm:$0x1]
    %v664 = vlaneseq
    %v665 = vshrl.u32 %v664, 7
    %v666 = vsub.s32 0, %v665
    %v667 = vrot.slane %v662, %v666
    %v669 = vadd.f32 %v658, %v667
    %v670 = vadd.f32 %v659, %v667
    %v671 = vadd.f32 %v660, %v667
    %v672 = vadd.f32 %v661, %v667
    %v673 = vld [vmem:[%s7] sm:$0xff]
    %v674 = vld [vmem:[%s7 + $0x8] sm:$0xff]
    %v675 = vld [vmem:[%s7 + $0x10] sm:$0xff]
    %v676 = vld [vmem:[%s7 + $0x18] sm:$0xff]
    %v678 = vsel %vm471, %v669, 0
    %v681 = vsel %vm471, %v670, 0
    %v684 = vsel %vm471, %v671, 0
    %v687 = vsel %vm471, %v672, 0
    %689 = vmatprep.subr.mxu0 0.0
    %690 = vmatpush1.msra.mxu0 %v673
    %691 = vmatprep.subr.mxu0 0.0
    %692 = vmatpush1.msra.mxu0 %v674
    %693 = vmatprep.subr.mxu0 0.0
    %694 = vmatpush1.msra.mxu0 %v675
    %695 = vmatprep.subr.mxu0 0.0
    %696 = vmatpush1.msra.mxu0 %v676
    %697 = vmatprep.subr.mxu0 0.0
    %698 = vmatpush1.msra.mxu0 0.0
    %699 = vmatprep.subr.mxu0 0.0
    %700 = vmatpush1.msra.mxu0 0.0
    %701 = vmatprep.subr.mxu0 0.0
    %702 = vmatpush1.msra.mxu0 0.0
    %703 = vmatprep.subr.mxu0 0.0
    %704 = vmatpush1.msra.mxu0 0.0
    %705 = vmatprep.subr.mxu0 0.0
    %706 = vmatpush1.msra.mxu0 0.0
    %707 = vmatprep.subr.mxu0 0.0
    %708 = vmatpush1.msra.mxu0 0.0
    %709 = vmatprep.subr.mxu0 0.0
    %710 = vmatpush1.msra.mxu0 0.0
    %711 = vmatprep.subr.mxu0 0.0
    %712 = vmatpush1.msra.mxu0 0.0
    %713 = vmatprep.subr.mxu0 0.0
    %714 = vmatpush1.msra.mxu0 0.0
    %715 = vmatprep.subr.mxu0 0.0
    %716 = vmatpush1.msra.mxu0 0.0
    %717 = vmatprep.subr.mxu0 0.0
    %718 = vmatpush1.msra.mxu0 0.0
    %719 = vmatprep.subr.mxu0 0.0
    %720 = vmatpush1.msra.mxu0 0.0
    %721 = vmatprep.subr.mxu0 0.0
    %722 = vmatpush1.msra.mxu0 0.0
    %723 = vmatprep.subr.mxu0 0.0
    %724 = vmatpush1.msra.mxu0 0.0
    %725 = vmatprep.subr.mxu0 0.0
    %726 = vmatpush1.msra.mxu0 0.0
    %727 = vmatprep.subr.mxu0 0.0
    %728 = vmatpush1.msra.mxu0 0.0
    %729 = vmatprep.subr.mxu0 0.0
    %730 = vmatpush1.msra.mxu0 0.0
    %731 = vmatprep.subr.mxu0 0.0
    %732 = vmatpush1.msra.mxu0 0.0
    %733 = vmatprep.subr.mxu0 0.0
    %734 = vmatpush1.msra.mxu0 0.0
    %735 = vmatprep.subr.mxu0 0.0
    %736 = vmatpush1.msra.mxu0 0.0
    %737 = vmatprep.subr.mxu0 0.0
    %738 = vmatpush1.msra.mxu0 0.0
    %739 = vmatprep.subr.mxu0 0.0
    %740 = vmatpush1.msra.mxu0 0.0
    %741 = vmatprep.subr.mxu0 0.0
    %742 = vmatpush1.msra.mxu0 0.0
    %743 = vmatprep.subr.mxu0 0.0
    %744 = vmatpush1.msra.mxu0 0.0
    %745 = vmatprep.subr.mxu0 0.0
    %746 = vmatpush1.msra.mxu0 0.0
    %747 = vmatprep.subr.mxu0 0.0
    %748 = vmatpush1.msra.mxu0 0.0
    %749 = vmatprep.subr.mxu0 0.0
    %750 = vmatpush1.msra.mxu0 0.0
    %751 = vmatprep.subr.mxu0 0.0
    %752 = vmatpush1.msra.mxu0 0.0
    %753 = vmatprep.mubr.f32.mxu0 0.0
    %754 = vmatmul.mubr.f32.gmra.mrb[0].mxu0 %v678
    %v755 = vpop.f32.mrb[0].mxu0
    %v756 = vadd.f32 0.0, %v755
    %v757 = vpop.f32.mrb[0].mxu0
    %758 = vmatprep.mubr.f32.mxu0 0.0
    %759 = vmatmul.mubr.f32.gmra.mrb[0].mxu0 %v681
    %v760 = vpop.f32.mrb[0].mxu0
    %v761 = vadd.f32 0.0, %v760
    %v762 = vpop.f32.mrb[0].mxu0
    %763 = vmatprep.mubr.f32.mxu0 0.0
    %764 = vmatmul.mubr.f32.gmra.mrb[0].mxu0 %v684
    %v765 = vpop.f32.mrb[0].mxu0
    %v766 = vadd.f32 0.0, %v765
    %v767 = vpop.f32.mrb[0].mxu0
    %768 = vmatprep.mubr.f32.mxu0 0.0
    %769 = vmatmul.mubr.f32.gmra.mrb[0].mxu0 %v687
    %v770 = vpop.f32.mrb[0].mxu0
    %v771 = vadd.f32 0.0, %v770
    %v772 = vpop.f32.mrb[0].mxu0
    %773 = vdwg.mxu0
    %v774 = vld [vmem:[%s8] sm:$0xff]
    %v775 = vld [vmem:[%s8 + $0x8] sm:$0xff]
    %v776 = vld [vmem:[%s8 + $0x10] sm:$0xff]
    %v777 = vld [vmem:[%s8 + $0x18] sm:$0xff]
    %778 = vmatprep.subr.mxu0 0.0
    %779 = vmatpush1.msra.mxu0 %v774
    %780 = vmatprep.subr.mxu0 0.0
    %781 = vmatpush1.msra.mxu0 %v775
    %782 = vmatprep.subr.mxu0 0.0
    %783 = vmatpush1.msra.mxu0 %v776
    %784 = vmatprep.subr.mxu0 0.0
    %785 = vmatpush1.msra.mxu0 %v777
    %786 = vmatprep.subr.mxu0 0.0
    %787 = vmatpush1.msra.mxu0 0.0
    %788 = vmatprep.subr.mxu0 0.0
    %789 = vmatpush1.msra.mxu0 0.0
    %790 = vmatprep.subr.mxu0 0.0
    %791 = vmatpush1.msra.mxu0 0.0
    %792 = vmatprep.subr.mxu0 0.0
    %793 = vmatpush1.msra.mxu0 0.0
    %794 = vmatprep.subr.mxu0 0.0
    %795 = vmatpush1.msra.mxu0 0.0
    %796 = vmatprep.subr.mxu0 0.0
    %797 = vmatpush1.msra.mxu0 0.0
    %798 = vmatprep.subr.mxu0 0.0
    %799 = vmatpush1.msra.mxu0 0.0
    %800 = vmatprep.subr.mxu0 0.0
    %801 = vmatpush1.msra.mxu0 0.0
    %802 = vmatprep.subr.mxu0 0.0
    %803 = vmatpush1.msra.mxu0 0.0
    %804 = vmatprep.subr.mxu0 0.0
    %805 = vmatpush1.msra.mxu0 0.0
    %806 = vmatprep.subr.mxu0 0.0
    %807 = vmatpush1.msra.mxu0 0.0
    %808 = vmatprep.subr.mxu0 0.0
    %809 = vmatpush1.msra.mxu0 0.0
    %810 = vmatprep.subr.mxu0 0.0
    %811 = vmatpush1.msra.mxu0 0.0
    %812 = vmatprep.subr.mxu0 0.0
    %813 = vmatpush1.msra.mxu0 0.0
    %814 = vmatprep.subr.mxu0 0.0
    %815 = vmatpush1.msra.mxu0 0.0
    %816 = vmatprep.subr.mxu0 0.0
    %817 = vmatpush1.msra.mxu0 0.0
    %818 = vmatprep.subr.mxu0 0.0
    %819 = vmatpush1.msra.mxu0 0.0
    %820 = vmatprep.subr.mxu0 0.0
    %821 = vmatpush1.msra.mxu0 0.0
    %822 = vmatprep.subr.mxu0 0.0
    %823 = vmatpush1.msra.mxu0 0.0
    %824 = vmatprep.subr.mxu0 0.0
    %825 = vmatpush1.msra.mxu0 0.0
    %826 = vmatprep.subr.mxu0 0.0
    %827 = vmatpush1.msra.mxu0 0.0
    %828 = vmatprep.subr.mxu0 0.0
    %829 = vmatpush1.msra.mxu0 0.0
    %830 = vmatprep.subr.mxu0 0.0
    %831 = vmatpush1.msra.mxu0 0.0
    %832 = vmatprep.subr.mxu0 0.0
    %833 = vmatpush1.msra.mxu0 0.0
    %834 = vmatprep.subr.mxu0 0.0
    %835 = vmatpush1.msra.mxu0 0.0
    %836 = vmatprep.subr.mxu0 0.0
    %837 = vmatpush1.msra.mxu0 0.0
    %838 = vmatprep.subr.mxu0 0.0
    %839 = vmatpush1.msra.mxu0 0.0
    %840 = vmatprep.subr.mxu0 0.0
    %841 = vmatpush1.msra.mxu0 0.0
    %842 = vmatprep.mubr.f32.mxu0 0.0
    %843 = vmatmul.mubr.f32.gmra.mrb[0].mxu0 %v678
    %v844 = vpop.f32.mrb[0].mxu0
    %v845 = vadd.f32 0.0, %v844
    %v846 = vpop.f32.mrb[0].mxu0
    %847 = vmatprep.mubr.f32.mxu0 0.0
    %848 = vmatmul.mubr.f32.gmra.mrb[0].mxu0 %v681
    %v849 = vpop.f32.mrb[0].mxu0
    %v850 = vadd.f32 0.0, %v849
    %v851 = vpop.f32.mrb[0].mxu0
    %852 = vmatprep.mubr.f32.mxu0 0.0
    %853 = vmatmul.mubr.f32.gmra.mrb[0].mxu0 %v684
    %v854 = vpop.f32.mrb[0].mxu0
    %v855 = vadd.f32 0.0, %v854
    %v856 = vpop.f32.mrb[0].mxu0
    %857 = vmatprep.mubr.f32.mxu0 0.0
    %858 = vmatmul.mubr.f32.gmra.mrb[0].mxu0 %v687
    %v859 = vpop.f32.mrb[0].mxu0
    %v860 = vadd.f32 0.0, %v859
    %v861 = vpop.f32.mrb[0].mxu0
    %862 = vdwg.mxu0
    %v863 = vld [vmem:[#allocation9] sm:$0x1]
    %s864 = scalar_lea.vmem [#allocation8], 1
    %v865 = vld [vmem:[%s864] sm:$0x1]
    %v867 = vlaneseq
    %v868 = vshrl.u32 %v867, 7
    %v869 = vsub.s32 0, %v868
    %v870 = vrot.slane %v865, %v869
    %v872 = vmul.f32 %v756, %v870
    %v873 = vmul.f32 %v761, %v870
    %v874 = vmul.f32 %v766, %v870
    %v875 = vmul.f32 %v771, %v870
    %v877 = vlaneseq
    %v878 = vshrl.u32 %v877, 7
    %v879 = vsub.s32 0, %v878
    %v880 = vrot.slane %v863, %v879
    %v882 = vadd.f32 %v880, %v872
    %v883 = vadd.f32 %v880, %v873
    %v884 = vadd.f32 %v880, %v874
    %v885 = vadd.f32 %v880, %v875
    %v888 = vrot.slane %v756, 7
    %v889 = vrot.slane %v761, 7
    %v890 = vsel %vm417, %v888, %v889
    %v895 = vrot.slane %v766, 7
    %v896 = vrot.slane %v771, 7
    %v897 = vsel %vm417, %v895, %v896
    %v900 = vsel %vm417, 0.0, %v888
    %v901 = vsel %vm417, 0.0, %v895
    %v902 = vld [vmem:[#allocation8] sm:$0x1]
    %v904 = vlaneseq
    %v905 = vshrl.u32 %v904, 7
    %v906 = vsub.s32 0, %v905
    %v907 = vrot.slane %v902, %v906
    %v909 = vmul.f32 %v900, %v907
    %v910 = vmul.f32 %v890, %v907
    %v911 = vmul.f32 %v901, %v907
    %v912 = vmul.f32 %v897, %v907
    %v913 = vadd.f32 %v882, %v909
    %v914 = vadd.f32 %v883, %v910
    %v915 = vadd.f32 %v884, %v911
    %v916 = vadd.f32 %v885, %v912
    %v917 = vxor.u32 %v913, 2147483648
    %v918 = vxor.u32 %v914, 2147483648
    %v919 = vxor.u32 %v915, 2147483648
    %v920 = vxor.u32 %v916, 2147483648
    %v921 = vmul.f32 %v917, 1.442695
    %v922 = vpow.pop %v921
    %v923 = vmul.f32 %v918, 1.442695
    %v924 = vpow.pop %v923
    %v925 = vmul.f32 %v919, 1.442695
    %v926 = vpow.pop %v925
    %v927 = vmul.f32 %v920, 1.442695
    %v928 = vpow.pop %v927
    %v929 = vadd.f32 %v922, 1.0
    %v930 = vadd.f32 %v924, 1.0
    %v931 = vadd.f32 %v926, 1.0
    %v932 = vadd.f32 %v928, 1.0
    %v933 = vrcp.pop %v929
    %v934 = vmul.f32 1.0, %v933
    %v935 = vrcp.pop %v930
    %v936 = vmul.f32 1.0, %v935
    %v937 = vrcp.pop %v931
    %v938 = vmul.f32 1.0, %v937
    %v939 = vrcp.pop %v932
    %v940 = vmul.f32 1.0, %v939
    %v941 = vmul.f32 %v913, %v934
    %v942 = vmul.f32 %v914, %v936
    %v943 = vmul.f32 %v915, %v938
    %v944 = vmul.f32 %v916, %v940
    %v945 = vld [vmem:[%s11] sm:$0xff]
    %v946 = vld [vmem:[%s11 + $0x8] sm:$0xff]
    %v947 = vld [vmem:[%s11 + $0x10] sm:$0xff]
    %v948 = vld [vmem:[%s11 + $0x18] sm:$0xff]
    %v949 = vld [vmem:[%s11 + $0x20] sm:$0xff]
    %v950 = vld [vmem:[%s11 + $0x28] sm:$0xff]
    %v951 = vld [vmem:[%s11 + $0x30] sm:$0xff]
    %v952 = vld [vmem:[%s11 + $0x38] sm:$0xff]
    %v953 = vld [vmem:[#allocation11] sm:$0x1]
    %v955 = vlaneseq
    %v956 = vshrl.u32 %v955, 7
    %v957 = vsub.s32 0, %v956
    %v958 = vrot.slane %v953, %v957
    %v961 = vsel %vm476, %v941, 0
    %v964 = vsel %vm476, %v942, 0
    %v967 = vsel %vm476, %v943, 0
    %v970 = vsel %vm476, %v944, 0
    %972 = vmatprep.subr.mxu0 0.0
    %973 = vmatpush1.msra.mxu0 %v945
    %974 = vmatprep.subr.mxu0 0.0
    %975 = vmatpush1.msra.mxu0 %v946
    %976 = vmatprep.subr.mxu0 0.0
    %977 = vmatpush1.msra.mxu0 %v947
    %978 = vmatprep.subr.mxu0 0.0
    %979 = vmatpush1.msra.mxu0 %v948
    %980 = vmatprep.subr.mxu0 0.0
    %981 = vmatpush1.msra.mxu0 %v949
    %982 = vmatprep.subr.mxu0 0.0
    %983 = vmatpush1.msra.mxu0 %v950
    %984 = vmatprep.subr.mxu0 0.0
    %985 = vmatpush1.msra.mxu0 %v951
    %986 = vmatprep.subr.mxu0 0.0
    %987 = vmatpush1.msra.mxu0 %v952
    %988 = vmatprep.subr.mxu0 0.0
    %989 = vmatpush1.msra.mxu0 0.0
    %990 = vmatprep.subr.mxu0 0.0
    %991 = vmatpush1.msra.mxu0 0.0
    %992 = vmatprep.subr.mxu0 0.0
    %993 = vmatpush1.msra.mxu0 0.0
    %994 = vmatprep.subr.mxu0 0.0
    %995 = vmatpush1.msra.mxu0 0.0
    %996 = vmatprep.subr.mxu0 0.0
    %997 = vmatpush1.msra.mxu0 0.0
    %998 = vmatprep.subr.mxu0 0.0
    %999 = vmatpush1.msra.mxu0 0.0
    %1000 = vmatprep.subr.mxu0 0.0
    %1001 = vmatpush1.msra.mxu0 0.0
    %1002 = vmatprep.subr.mxu0 0.0
    %1003 = vmatpush1.msra.mxu0 0.0
    %1004 = vmatprep.subr.mxu0 0.0
    %1005 = vmatpush1.msra.mxu0 0.0
    %1006 = vmatprep.subr.mxu0 0.0
    %1007 = vmatpush1.msra.mxu0 0.0
    %1008 = vmatprep.subr.mxu0 0.0
    %1009 = vmatpush1.msra.mxu0 0.0
    %1010 = vmatprep.subr.mxu0 0.0
    %1011 = vmatpush1.msra.mxu0 0.0
    %1012 = vmatprep.subr.mxu0 0.0
    %1013 = vmatpush1.msra.mxu0 0.0
    %1014 = vmatprep.subr.mxu0 0.0
    %1015 = vmatpush1.msra.mxu0 0.0
    %1016 = vmatprep.subr.mxu0 0.0
    %1017 = vmatpush1.msra.mxu0 0.0
    %1018 = vmatprep.subr.mxu0 0.0
    %1019 = vmatpush1.msra.mxu0 0.0
    %1020 = vmatprep.subr.mxu0 0.0
    %1021 = vmatpush1.msra.mxu0 0.0
    %1022 = vmatprep.subr.mxu0 0.0
    %1023 = vmatpush1.msra.mxu0 0.0
    %1024 = vmatprep.subr.mxu0 0.0
    %1025 = vmatpush1.msra.mxu0 0.0
    %1026 = vmatprep.subr.mxu0 0.0
    %1027 = vmatpush1.msra.mxu0 0.0
    %1028 = vmatprep.subr.mxu0 0.0
    %1029 = vmatpush1.msra.mxu0 0.0
    %1030 = vmatprep.subr.mxu0 0.0
    %1031 = vmatpush1.msra.mxu0 0.0
    %1032 = vmatprep.subr.mxu0 0.0
    %1033 = vmatpush1.msra.mxu0 0.0
    %1034 = vmatprep.subr.mxu0 0.0
    %1035 = vmatpush1.msra.mxu0 0.0
    %1036 = vmatprep.mubr.f32.mxu0 0.0
    %1037 = vmatmul.mubr.f32.gmra.mrb[0].mxu0 %v961
    %v1038 = vpop.f32.mrb[0].mxu0
    %v1039 = vadd.f32 %v958, %v1038
    %v1040 = vpop.f32.mrb[0].mxu0
    %1041 = vmatprep.mubr.f32.mxu0 0.0
    %1042 = vmatmul.mubr.f32.gmra.mrb[0].mxu0 %v964
    %v1043 = vpop.f32.mrb[0].mxu0
    %v1044 = vadd.f32 %v958, %v1043
    %v1045 = vpop.f32.mrb[0].mxu0
    %1046 = vmatprep.mubr.f32.mxu0 0.0
    %1047 = vmatmul.mubr.f32.gmra.mrb[0].mxu0 %v967
    %v1048 = vpop.f32.mrb[0].mxu0
    %v1049 = vadd.f32 %v958, %v1048
    %v1050 = vpop.f32.mrb[0].mxu0
    %1051 = vmatprep.mubr.f32.mxu0 0.0
    %1052 = vmatmul.mubr.f32.gmra.mrb[0].mxu0 %v970
    %v1053 = vpop.f32.mrb[0].mxu0
    %v1054 = vadd.f32 %v958, %v1053
    %v1055 = vpop.f32.mrb[0].mxu0
    %1056 = vdwg.mxu0
    %vm1057 = vcmp.gt.f32.partialorder %v1039, 20.0
    %vm1058 = vcmp.gt.f32.partialorder %v1044, 20.0
    %vm1059 = vcmp.gt.f32.partialorder %v1049, 20.0
    %vm1060 = vcmp.gt.f32.partialorder %v1054, 20.0
    %v1061 = vmin.f32 %v1039, 20.0
    %v1062 = vmin.f32 %v1044, 20.0
    %v1063 = vmin.f32 %v1049, 20.0
    %v1064 = vmin.f32 %v1054, 20.0
    %v1065 = vmul.f32 %v1061, 1.442695
    %v1066 = vpow.pop %v1065
    %v1067 = vmul.f32 %v1062, 1.442695
    %v1068 = vpow.pop %v1067
    %v1069 = vmul.f32 %v1063, 1.442695
    %v1070 = vpow.pop %v1069
    %v1071 = vmul.f32 %v1064, 1.442695
    %v1072 = vpow.pop %v1071
    %v1073 = vadd.f32 %v1066, 1.0
    %v1074 = vlog2.pop %v1073
    %v1075 = vmul.f32 %v1074, 0.6931472
    %v1076 = vmul.f32 -0.5, %v1066
    %v1077 = vadd.f32 %v1076, 1.0
    %v1078 = vmul.f32 %v1077, %v1066
    %v1079 = vand.u32 2147483647, %v1066
    %vm1080 = vcmp.lt.f32.partialorder %v1079, 0.0004427343
    %v1081 = vsel %vm1080, %v1078, %v1075
    %v1082 = vadd.f32 %v1068, 1.0
    %v1083 = vlog2.pop %v1082
    %v1084 = vmul.f32 %v1083, 0.6931472
    %v1085 = vmul.f32 -0.5, %v1068
    %v1086 = vadd.f32 %v1085, 1.0
    %v1087 = vmul.f32 %v1086, %v1068
    %v1088 = vand.u32 2147483647, %v1068
    %vm1089 = vcmp.lt.f32.partialorder %v1088, 0.0004427343
    %v1090 = vsel %vm1089, %v1087, %v1084
    %v1091 = vadd.f32 %v1070, 1.0
    %v1092 = vlog2.pop %v1091
    %v1093 = vmul.f32 %v1092, 0.6931472
    %v1094 = vmul.f32 -0.5, %v1070
    %v1095 = vadd.f32 %v1094, 1.0
    %v1096 = vmul.f32 %v1095, %v1070
    %v1097 = vand.u32 2147483647, %v1070
    %vm1098 = vcmp.lt.f32.partialorder %v1097, 0.0004427343
    %v1099 = vsel %vm1098, %v1096, %v1093
    %v1100 = vadd.f32 %v1072, 1.0
    %v1101 = vlog2.pop %v1100
    %v1102 = vmul.f32 %v1101, 0.6931472
    %v1103 = vmul.f32 -0.5, %v1072
    %v1104 = vadd.f32 %v1103, 1.0
    %v1105 = vmul.f32 %v1104, %v1072
    %v1106 = vand.u32 2147483647, %v1072
    %vm1107 = vcmp.lt.f32.partialorder %v1106, 0.0004427343
    %v1108 = vsel %vm1107, %v1105, %v1102
    %v1109 = vsel %vm1057, %v1039, %v1081
    %v1110 = vsel %vm1058, %v1044, %v1090
    %v1111 = vsel %vm1059, %v1049, %v1099
    %v1112 = vsel %vm1060, %v1054, %v1108
    %v1113 = vld [vmem:[%s13] sm:$0xff]
    %v1114 = vld [vmem:[%s13 + $0x8] sm:$0xff]
    %v1115 = vld [vmem:[%s13 + $0x10] sm:$0xff]
    %v1116 = vld [vmem:[%s13 + $0x18] sm:$0xff]
    %v1117 = vld [vmem:[%s13 + $0x20] sm:$0xff]
    %v1118 = vld [vmem:[%s13 + $0x28] sm:$0xff]
    %v1119 = vld [vmem:[%s13 + $0x30] sm:$0xff]
    %v1120 = vld [vmem:[%s13 + $0x38] sm:$0xff]
    %1121 = vmatprep.subr.mxu0 0.0
    %1122 = vmatpush1.msra.mxu0 %v1113
    %1123 = vmatprep.subr.mxu0 0.0
    %1124 = vmatpush1.msra.mxu0 %v1114
    %1125 = vmatprep.subr.mxu0 0.0
    %1126 = vmatpush1.msra.mxu0 %v1115
    %1127 = vmatprep.subr.mxu0 0.0
    %1128 = vmatpush1.msra.mxu0 %v1116
    %1129 = vmatprep.subr.mxu0 0.0
    %1130 = vmatpush1.msra.mxu0 %v1117
    %1131 = vmatprep.subr.mxu0 0.0
    %1132 = vmatpush1.msra.mxu0 %v1118
    %1133 = vmatprep.subr.mxu0 0.0
    %1134 = vmatpush1.msra.mxu0 %v1119
    %1135 = vmatprep.subr.mxu0 0.0
    %1136 = vmatpush1.msra.mxu0 %v1120
    %1137 = vmatprep.subr.mxu0 0.0
    %1138 = vmatpush1.msra.mxu0 0.0
    %1139 = vmatprep.subr.mxu0 0.0
    %1140 = vmatpush1.msra.mxu0 0.0
    %1141 = vmatprep.subr.mxu0 0.0
    %1142 = vmatpush1.msra.mxu0 0.0
    %1143 = vmatprep.subr.mxu0 0.0
    %1144 = vmatpush1.msra.mxu0 0.0
    %1145 = vmatprep.subr.mxu0 0.0
    %1146 = vmatpush1.msra.mxu0 0.0
    %1147 = vmatprep.subr.mxu0 0.0
    %1148 = vmatpush1.msra.mxu0 0.0
    %1149 = vmatprep.subr.mxu0 0.0
    %1150 = vmatpush1.msra.mxu0 0.0
    %1151 = vmatprep.subr.mxu0 0.0
    %1152 = vmatpush1.msra.mxu0 0.0
    %1153 = vmatprep.subr.mxu0 0.0
    %1154 = vmatpush1.msra.mxu0 0.0
    %1155 = vmatprep.subr.mxu0 0.0
    %1156 = vmatpush1.msra.mxu0 0.0
    %1157 = vmatprep.subr.mxu0 0.0
    %1158 = vmatpush1.msra.mxu0 0.0
    %1159 = vmatprep.subr.mxu0 0.0
    %1160 = vmatpush1.msra.mxu0 0.0
    %1161 = vmatprep.subr.mxu0 0.0
    %1162 = vmatpush1.msra.mxu0 0.0
    %1163 = vmatprep.subr.mxu0 0.0
    %1164 = vmatpush1.msra.mxu0 0.0
    %1165 = vmatprep.subr.mxu0 0.0
    %1166 = vmatpush1.msra.mxu0 0.0
    %1167 = vmatprep.subr.mxu0 0.0
    %1168 = vmatpush1.msra.mxu0 0.0
    %1169 = vmatprep.subr.mxu0 0.0
    %1170 = vmatpush1.msra.mxu0 0.0
    %1171 = vmatprep.subr.mxu0 0.0
    %1172 = vmatpush1.msra.mxu0 0.0
    %1173 = vmatprep.subr.mxu0 0.0
    %1174 = vmatpush1.msra.mxu0 0.0
    %1175 = vmatprep.subr.mxu0 0.0
    %1176 = vmatpush1.msra.mxu0 0.0
    %1177 = vmatprep.subr.mxu0 0.0
    %1178 = vmatpush1.msra.mxu0 0.0
    %1179 = vmatprep.subr.mxu0 0.0
    %1180 = vmatpush1.msra.mxu0 0.0
    %1181 = vmatprep.subr.mxu0 0.0
    %1182 = vmatpush1.msra.mxu0 0.0
    %1183 = vmatprep.subr.mxu0 0.0
    %1184 = vmatpush1.msra.mxu0 0.0
    %1185 = vmatprep.mubr.f32.mxu0 0.0
    %1186 = vmatmul.mubr.f32.gmra.mrb[0].mxu0 %v961
    %v1187 = vpop.f32.mrb[0].mxu0
    %v1188 = vadd.f32 0.0, %v1187
    %v1189 = vpop.f32.mrb[0].mxu0
    %1190 = vmatprep.mubr.f32.mxu0 0.0
    %1191 = vmatmul.mubr.f32.gmra.mrb[0].mxu0 %v964
    %v1192 = vpop.f32.mrb[0].mxu0
    %v1193 = vadd.f32 0.0, %v1192
    %v1194 = vpop.f32.mrb[0].mxu0
    %1195 = vmatprep.mubr.f32.mxu0 0.0
    %1196 = vmatmul.mubr.f32.gmra.mrb[0].mxu0 %v967
    %v1197 = vpop.f32.mrb[0].mxu0
    %v1198 = vadd.f32 0.0, %v1197
    %v1199 = vpop.f32.mrb[0].mxu0
    %1200 = vmatprep.mubr.f32.mxu0 0.0
    %1201 = vmatmul.mubr.f32.gmra.mrb[0].mxu0 %v970
    %v1202 = vpop.f32.mrb[0].mxu0
    %v1203 = vadd.f32 0.0, %v1202
    %v1204 = vpop.f32.mrb[0].mxu0
    %1205 = vdwg.mxu0
    %v1206 = vld [vmem:[%s14] sm:$0xff]
    %v1207 = vld [vmem:[%s14 + $0x8] sm:$0xff]
    %v1208 = vld [vmem:[%s14 + $0x10] sm:$0xff]
    %v1209 = vld [vmem:[%s14 + $0x18] sm:$0xff]
    %v1210 = vld [vmem:[%s14 + $0x20] sm:$0xff]
    %v1211 = vld [vmem:[%s14 + $0x28] sm:$0xff]
    %v1212 = vld [vmem:[%s14 + $0x30] sm:$0xff]
    %v1213 = vld [vmem:[%s14 + $0x38] sm:$0xff]
    %1214 = vmatprep.subr.mxu0 0.0
    %1215 = vmatpush1.msra.mxu0 %v1206
    %1216 = vmatprep.subr.mxu0 0.0
    %1217 = vmatpush1.msra.mxu0 %v1207
    %1218 = vmatprep.subr.mxu0 0.0
    %1219 = vmatpush1.msra.mxu0 %v1208
    %1220 = vmatprep.subr.mxu0 0.0
    %1221 = vmatpush1.msra.mxu0 %v1209
    %1222 = vmatprep.subr.mxu0 0.0
    %1223 = vmatpush1.msra.mxu0 %v1210
    %1224 = vmatprep.subr.mxu0 0.0
    %1225 = vmatpush1.msra.mxu0 %v1211
    %1226 = vmatprep.subr.mxu0 0.0
    %1227 = vmatpush1.msra.mxu0 %v1212
    %1228 = vmatprep.subr.mxu0 0.0
    %1229 = vmatpush1.msra.mxu0 %v1213
    %1230 = vmatprep.subr.mxu0 0.0
    %1231 = vmatpush1.msra.mxu0 0.0
    %1232 = vmatprep.subr.mxu0 0.0
    %1233 = vmatpush1.msra.mxu0 0.0
    %1234 = vmatprep.subr.mxu0 0.0
    %1235 = vmatpush1.msra.mxu0 0.0
    %1236 = vmatprep.subr.mxu0 0.0
    %1237 = vmatpush1.msra.mxu0 0.0
    %1238 = vmatprep.subr.mxu0 0.0
    %1239 = vmatpush1.msra.mxu0 0.0
    %1240 = vmatprep.subr.mxu0 0.0
    %1241 = vmatpush1.msra.mxu0 0.0
    %1242 = vmatprep.subr.mxu0 0.0
    %1243 = vmatpush1.msra.mxu0 0.0
    %1244 = vmatprep.subr.mxu0 0.0
    %1245 = vmatpush1.msra.mxu0 0.0
    %1246 = vmatprep.subr.mxu0 0.0
    %1247 = vmatpush1.msra.mxu0 0.0
    %1248 = vmatprep.subr.mxu0 0.0
    %1249 = vmatpush1.msra.mxu0 0.0
    %1250 = vmatprep.subr.mxu0 0.0
    %1251 = vmatpush1.msra.mxu0 0.0
    %1252 = vmatprep.subr.mxu0 0.0
    %1253 = vmatpush1.msra.mxu0 0.0
    %1254 = vmatprep.subr.mxu0 0.0
    %1255 = vmatpush1.msra.mxu0 0.0
    %1256 = vmatprep.subr.mxu0 0.0
    %1257 = vmatpush1.msra.mxu0 0.0
    %1258 = vmatprep.subr.mxu0 0.0
    %1259 = vmatpush1.msra.mxu0 0.0
    %1260 = vmatprep.subr.mxu0 0.0
    %1261 = vmatpush1.msra.mxu0 0.0
    %1262 = vmatprep.subr.mxu0 0.0
    %1263 = vmatpush1.msra.mxu0 0.0
    %1264 = vmatprep.subr.mxu0 0.0
    %1265 = vmatpush1.msra.mxu0 0.0
    %1266 = vmatprep.subr.mxu0 0.0
    %1267 = vmatpush1.msra.mxu0 0.0
    %1268 = vmatprep.subr.mxu0 0.0
    %1269 = vmatpush1.msra.mxu0 0.0
    %1270 = vmatprep.subr.mxu0 0.0
    %1271 = vmatpush1.msra.mxu0 0.0
    %1272 = vmatprep.subr.mxu0 0.0
    %1273 = vmatpush1.msra.mxu0 0.0
    %1274 = vmatprep.subr.mxu0 0.0
    %1275 = vmatpush1.msra.mxu0 0.0
    %1276 = vmatprep.subr.mxu0 0.0
    %1277 = vmatpush1.msra.mxu0 0.0
    %1278 = vmatprep.mubr.f32.mxu0 0.0
    %1279 = vmatmul.mubr.f32.gmra.mrb[0].mxu0 %v961
    %v1280 = vpop.f32.mrb[0].mxu0
    %v1281 = vadd.f32 0.0, %v1280
    %v1282 = vpop.f32.mrb[0].mxu0
    %1283 = vmatprep.mubr.f32.mxu0 0.0
    %1284 = vmatmul.mubr.f32.gmra.mrb[0].mxu0 %v964
    %v1285 = vpop.f32.mrb[0].mxu0
    %v1286 = vadd.f32 0.0, %v1285
    %v1287 = vpop.f32.mrb[0].mxu0
    %1288 = vmatprep.mubr.f32.mxu0 0.0
    %1289 = vmatmul.mubr.f32.gmra.mrb[0].mxu0 %v967
    %v1290 = vpop.f32.mrb[0].mxu0
    %v1291 = vadd.f32 0.0, %v1290
    %v1292 = vpop.f32.mrb[0].mxu0
    %1293 = vmatprep.mubr.f32.mxu0 0.0
    %1294 = vmatmul.mubr.f32.gmra.mrb[0].mxu0 %v970
    %v1295 = vpop.f32.mrb[0].mxu0
    %v1296 = vadd.f32 0.0, %v1295
    %v1297 = vpop.f32.mrb[0].mxu0
    %1298 = vdwg.mxu0
    %v1300 = vsel %vm471, %v159, 0
    %v1303 = vsel %vm471, %v160, 0
    %v1306 = vsel %vm471, %v161, 0
    %v1309 = vsel %vm471, %v162, 0
    %v1312 = vsel %vm471, %v163, 0
    %v1315 = vsel %vm471, %v164, 0
    %v1318 = vsel %vm471, %v165, 0
    %v1321 = vsel %vm471, %v166, 0
    %v1324 = vsel %vm471, %v167, 0
    %v1327 = vsel %vm471, %v168, 0
    %v1330 = vsel %vm471, %v169, 0
    %v1333 = vsel %vm471, %v170, 0
    %v1336 = vsel %vm471, %v171, 0
    %v1339 = vsel %vm471, %v172, 0
    %v1342 = vsel %vm471, %v173, 0
    %v1345 = vsel %vm471, %v174, 0
    %v1348 = vsel %vm471, %v175, 0
    %v1351 = vsel %vm471, %v176, 0
    %v1354 = vsel %vm471, %v177, 0
    %v1357 = vsel %vm471, %v178, 0
    %v1360 = vsel %vm471, %v179, 0
    %v1363 = vsel %vm471, %v180, 0
    %v1366 = vsel %vm471, %v181, 0
    %v1369 = vsel %vm471, %v182, 0
    %v1372 = vsel %vm471, %v183, 0
    %v1375 = vsel %vm471, %v184, 0
    %v1378 = vsel %vm471, %v185, 0
    %v1381 = vsel %vm471, %v186, 0
    %v1384 = vsel %vm471, %v187, 0
    %v1387 = vsel %vm471, %v188, 0
    %v1390 = vsel %vm471, %v189, 0
    %v1393 = vsel %vm471, %v190, 0
    %v1396 = vsel %vm471, %v191, 0
    %v1399 = vsel %vm471, %v192, 0
    %v1402 = vsel %vm471, %v193, 0
    %v1405 = vsel %vm471, %v194, 0
    %v1408 = vsel %vm471, %v195, 0
    %v1411 = vsel %vm471, %v196, 0
    %v1414 = vsel %vm471, %v197, 0
    %v1417 = vsel %vm471, %v198, 0
    %v1420 = vsel %vm471, %v199, 0
    %v1423 = vsel %vm471, %v200, 0
    %v1426 = vsel %vm471, %v201, 0
    %v1429 = vsel %vm471, %v202, 0
    %v1432 = vsel %vm471, %v203, 0
    %v1435 = vsel %vm471, %v204, 0
    %v1438 = vsel %vm471, %v205, 0
    %v1441 = vsel %vm471, %v206, 0
    %v1444 = vsel %vm471, %v207, 0
    %v1447 = vsel %vm471, %v208, 0
    %v1450 = vsel %vm471, %v209, 0
    %v1453 = vsel %vm471, %v210, 0
    %v1456 = vsel %vm471, %v211, 0
    %v1459 = vsel %vm471, %v212, 0
    %v1462 = vsel %vm471, %v213, 0
    %v1465 = vsel %vm471, %v214, 0
    %v1468 = vsel %vm471, %v215, 0
    %v1471 = vsel %vm471, %v216, 0
    %v1474 = vsel %vm471, %v217, 0
    %v1477 = vsel %vm471, %v218, 0
    %v1480 = vsel %vm471, %v219, 0
    %v1483 = vsel %vm471, %v220, 0
    %v1486 = vsel %vm471, %v221, 0
    %v1489 = vsel %vm471, %v222, 0
    %1491 = vmatprep.subr.mxu0 0.0
    %1492 = vmatpush1.msra.mxu0 %v941
    %1493 = vmatprep.subr.mxu0 0.0
    %1494 = vmatpush1.msra.mxu0 %v942
    %1495 = vmatprep.subr.mxu0 0.0
    %1496 = vmatpush1.msra.mxu0 %v943
    %1497 = vmatprep.subr.mxu0 0.0
    %1498 = vmatpush1.msra.mxu0 %v944
    %1499 = vmatprep.subr.mxu0 0.0
    %1500 = vmatpush1.msra.mxu0 0.0
    %1501 = vmatprep.subr.mxu0 0.0
    %1502 = vmatpush1.msra.mxu0 0.0
    %1503 = vmatprep.subr.mxu0 0.0
    %1504 = vmatpush1.msra.mxu0 0.0
    %1505 = vmatprep.subr.mxu0 0.0
    %1506 = vmatpush1.msra.mxu0 0.0
    %1507 = vmatprep.subr.mxu0 0.0
    %1508 = vmatpush1.msra.mxu0 0.0
    %1509 = vmatprep.subr.mxu0 0.0
    %1510 = vmatpush1.msra.mxu0 0.0
    %1511 = vmatprep.subr.mxu0 0.0
    %1512 = vmatpush1.msra.mxu0 0.0
    %1513 = vmatprep.subr.mxu0 0.0
    %1514 = vmatpush1.msra.mxu0 0.0
    %1515 = vmatprep.subr.mxu0 0.0
    %1516 = vmatpush1.msra.mxu0 0.0
    %1517 = vmatprep.subr.mxu0 0.0
    %1518 = vmatpush1.msra.mxu0 0.0
    %1519 = vmatprep.subr.mxu0 0.0
    %1520 = vmatpush1.msra.mxu0 0.0
    %1521 = vmatprep.subr.mxu0 0.0
    %1522 = vmatpush1.msra.mxu0 0.0
    %1523 = vmatprep.subr.mxu0 0.0
    %1524 = vmatpush1.msra.mxu0 0.0
    %1525 = vmatprep.subr.mxu0 0.0
    %1526 = vmatpush1.msra.mxu0 0.0
    %1527 = vmatprep.subr.mxu0 0.0
    %1528 = vmatpush1.msra.mxu0 0.0
    %1529 = vmatprep.subr.mxu0 0.0
    %1530 = vmatpush1.msra.mxu0 0.0
    %1531 = vmatprep.subr.mxu0 0.0
    %1532 = vmatpush1.msra.mxu0 0.0
    %1533 = vmatprep.subr.mxu0 0.0
    %1534 = vmatpush1.msra.mxu0 0.0
    %1535 = vmatprep.subr.mxu0 0.0
    %1536 = vmatpush1.msra.mxu0 0.0
    %1537 = vmatprep.subr.mxu0 0.0
    %1538 = vmatpush1.msra.mxu0 0.0
    %1539 = vmatprep.subr.mxu0 0.0
    %1540 = vmatpush1.msra.mxu0 0.0
    %1541 = vmatprep.subr.mxu0 0.0
    %1542 = vmatpush1.msra.mxu0 0.0
    %1543 = vmatprep.subr.mxu0 0.0
    %1544 = vmatpush1.msra.mxu0 0.0
    %1545 = vmatprep.subr.mxu0 0.0
    %1546 = vmatpush1.msra.mxu0 0.0
    %1547 = vmatprep.subr.mxu0 0.0
    %1548 = vmatpush1.msra.mxu0 0.0
    %1549 = vmatprep.subr.mxu0 0.0
    %1550 = vmatpush1.msra.mxu0 0.0
    %1551 = vmatprep.subr.mxu0 0.0
    %1552 = vmatpush1.msra.mxu0 0.0
    %1553 = vmatprep.subr.mxu0 0.0
    %1554 = vmatpush1.msra.mxu0 0.0
    %1555 = vmatprep.mubr.f32.mxu0 0.0
    %1556 = vmatmul.mubr.f32.gmra.mrb[0].mxu0 %v1300
    %v1557 = vpop.f32.mrb[0].mxu0
    %v1558 = vadd.f32 0.0, %v1557
    %v1559 = vpop.f32.mrb[0].mxu0
    %1560 = vmatprep.mubr.f32.mxu0 0.0
    %1561 = vmatmul.mubr.f32.gmra.mrb[0].mxu0 %v1303
    %v1562 = vpop.f32.mrb[0].mxu0
    %v1563 = vadd.f32 0.0, %v1562
    %v1564 = vpop.f32.mrb[0].mxu0
    %1565 = vmatprep.mubr.f32.mxu0 0.0
    %1566 = vmatmul.mubr.f32.gmra.mrb[0].mxu0 %v1306
    %v1567 = vpop.f32.mrb[0].mxu0
    %v1568 = vadd.f32 0.0, %v1567
    %v1569 = vpop.f32.mrb[0].mxu0
    %1570 = vmatprep.mubr.f32.mxu0 0.0
    %1571 = vmatmul.mubr.f32.gmra.mrb[0].mxu0 %v1309
    %v1572 = vpop.f32.mrb[0].mxu0
    %v1573 = vadd.f32 0.0, %v1572
    %v1574 = vpop.f32.mrb[0].mxu0
    %1575 = vmatprep.mubr.f32.mxu0 0.0
    %1576 = vmatmul.mubr.f32.gmra.mrb[0].mxu0 %v1312
    %v1577 = vpop.f32.mrb[0].mxu0
    %v1578 = vadd.f32 0.0, %v1577
    %v1579 = vpop.f32.mrb[0].mxu0
    %1580 = vmatprep.mubr.f32.mxu0 0.0
    %1581 = vmatmul.mubr.f32.gmra.mrb[0].mxu0 %v1315
    %v1582 = vpop.f32.mrb[0].mxu0
    %v1583 = vadd.f32 0.0, %v1582
    %v1584 = vpop.f32.mrb[0].mxu0
    %1585 = vmatprep.mubr.f32.mxu0 0.0
    %1586 = vmatmul.mubr.f32.gmra.mrb[0].mxu0 %v1318
    %v1587 = vpop.f32.mrb[0].mxu0
    %v1588 = vadd.f32 0.0, %v1587
    %v1589 = vpop.f32.mrb[0].mxu0
    %1590 = vmatprep.mubr.f32.mxu0 0.0
    %1591 = vmatmul.mubr.f32.gmra.mrb[0].mxu0 %v1321
    %v1592 = vpop.f32.mrb[0].mxu0
    %v1593 = vadd.f32 0.0, %v1592
    %v1594 = vpop.f32.mrb[0].mxu0
    %1595 = vmatprep.mubr.f32.mxu0 0.0
    %1596 = vmatmul.mubr.f32.gmra.mrb[0].mxu0 %v1324
    %v1597 = vpop.f32.mrb[0].mxu0
    %v1598 = vadd.f32 0.0, %v1597
    %v1599 = vpop.f32.mrb[0].mxu0
    %1600 = vmatprep.mubr.f32.mxu0 0.0
    %1601 = vmatmul.mubr.f32.gmra.mrb[0].mxu0 %v1327
    %v1602 = vpop.f32.mrb[0].mxu0
    %v1603 = vadd.f32 0.0, %v1602
    %v1604 = vpop.f32.mrb[0].mxu0
    %1605 = vmatprep.mubr.f32.mxu0 0.0
    %1606 = vmatmul.mubr.f32.gmra.mrb[0].mxu0 %v1330
    %v1607 = vpop.f32.mrb[0].mxu0
    %v1608 = vadd.f32 0.0, %v1607
    %v1609 = vpop.f32.mrb[0].mxu0
    %1610 = vmatprep.mubr.f32.mxu0 0.0
    %1611 = vmatmul.mubr.f32.gmra.mrb[0].mxu0 %v1333
    %v1612 = vpop.f32.mrb[0].mxu0
    %v1613 = vadd.f32 0.0, %v1612
    %v1614 = vpop.f32.mrb[0].mxu0
    %1615 = vmatprep.mubr.f32.mxu0 0.0
    %1616 = vmatmul.mubr.f32.gmra.mrb[0].mxu0 %v1336
    %v1617 = vpop.f32.mrb[0].mxu0
    %v1618 = vadd.f32 0.0, %v1617
    %v1619 = vpop.f32.mrb[0].mxu0
    %1620 = vmatprep.mubr.f32.mxu0 0.0
    %1621 = vmatmul.mubr.f32.gmra.mrb[0].mxu0 %v1339
    %v1622 = vpop.f32.mrb[0].mxu0
    %v1623 = vadd.f32 0.0, %v1622
    %v1624 = vpop.f32.mrb[0].mxu0
    %1625 = vmatprep.mubr.f32.mxu0 0.0
    %1626 = vmatmul.mubr.f32.gmra.mrb[0].mxu0 %v1342
    %v1627 = vpop.f32.mrb[0].mxu0
    %v1628 = vadd.f32 0.0, %v1627
    %v1629 = vpop.f32.mrb[0].mxu0
    %1630 = vmatprep.mubr.f32.mxu0 0.0
    %1631 = vmatmul.mubr.f32.gmra.mrb[0].mxu0 %v1345
    %v1632 = vpop.f32.mrb[0].mxu0
    %v1633 = vadd.f32 0.0, %v1632
    %v1634 = vpop.f32.mrb[0].mxu0
    %1635 = vmatprep.mubr.f32.mxu0 0.0
    %1636 = vmatmul.mubr.f32.gmra.mrb[0].mxu0 %v1348
    %v1637 = vpop.f32.mrb[0].mxu0
    %v1638 = vadd.f32 0.0, %v1637
    %v1639 = vpop.f32.mrb[0].mxu0
    %1640 = vmatprep.mubr.f32.mxu0 0.0
    %1641 = vmatmul.mubr.f32.gmra.mrb[0].mxu0 %v1351
    %v1642 = vpop.f32.mrb[0].mxu0
    %v1643 = vadd.f32 0.0, %v1642
    %v1644 = vpop.f32.mrb[0].mxu0
    %1645 = vmatprep.mubr.f32.mxu0 0.0
    %1646 = vmatmul.mubr.f32.gmra.mrb[0].mxu0 %v1354
    %v1647 = vpop.f32.mrb[0].mxu0
    %v1648 = vadd.f32 0.0, %v1647
    %v1649 = vpop.f32.mrb[0].mxu0
    %1650 = vmatprep.mubr.f32.mxu0 0.0
    %1651 = vmatmul.mubr.f32.gmra.mrb[0].mxu0 %v1357
    %v1652 = vpop.f32.mrb[0].mxu0
    %v1653 = vadd.f32 0.0, %v1652
    %v1654 = vpop.f32.mrb[0].mxu0
    %1655 = vmatprep.mubr.f32.mxu0 0.0
    %1656 = vmatmul.mubr.f32.gmra.mrb[0].mxu0 %v1360
    %v1657 = vpop.f32.mrb[0].mxu0
    %v1658 = vadd.f32 0.0, %v1657
    %v1659 = vpop.f32.mrb[0].mxu0
    %1660 = vmatprep.mubr.f32.mxu0 0.0
    %1661 = vmatmul.mubr.f32.gmra.mrb[0].mxu0 %v1363
    %v1662 = vpop.f32.mrb[0].mxu0
    %v1663 = vadd.f32 0.0, %v1662
    %v1664 = vpop.f32.mrb[0].mxu0
    %1665 = vmatprep.mubr.f32.mxu0 0.0
    %1666 = vmatmul.mubr.f32.gmra.mrb[0].mxu0 %v1366
    %v1667 = vpop.f32.mrb[0].mxu0
    %v1668 = vadd.f32 0.0, %v1667
    %v1669 = vpop.f32.mrb[0].mxu0
    %1670 = vmatprep.mubr.f32.mxu0 0.0
    %1671 = vmatmul.mubr.f32.gmra.mrb[0].mxu0 %v1369
    %v1672 = vpop.f32.mrb[0].mxu0
    %v1673 = vadd.f32 0.0, %v1672
    %v1674 = vpop.f32.mrb[0].mxu0
    %1675 = vmatprep.mubr.f32.mxu0 0.0
    %1676 = vmatmul.mubr.f32.gmra.mrb[0].mxu0 %v1372
    %v1677 = vpop.f32.mrb[0].mxu0
    %v1678 = vadd.f32 0.0, %v1677
    %v1679 = vpop.f32.mrb[0].mxu0
    %1680 = vmatprep.mubr.f32.mxu0 0.0
    %1681 = vmatmul.mubr.f32.gmra.mrb[0].mxu0 %v1375
    %v1682 = vpop.f32.mrb[0].mxu0
    %v1683 = vadd.f32 0.0, %v1682
    %v1684 = vpop.f32.mrb[0].mxu0
    %1685 = vmatprep.mubr.f32.mxu0 0.0
    %1686 = vmatmul.mubr.f32.gmra.mrb[0].mxu0 %v1378
    %v1687 = vpop.f32.mrb[0].mxu0
    %v1688 = vadd.f32 0.0, %v1687
    %v1689 = vpop.f32.mrb[0].mxu0
    %1690 = vmatprep.mubr.f32.mxu0 0.0
    %1691 = vmatmul.mubr.f32.gmra.mrb[0].mxu0 %v1381
    %v1692 = vpop.f32.mrb[0].mxu0
    %v1693 = vadd.f32 0.0, %v1692
    %v1694 = vpop.f32.mrb[0].mxu0
    %1695 = vmatprep.mubr.f32.mxu0 0.0
    %1696 = vmatmul.mubr.f32.gmra.mrb[0].mxu0 %v1384
    %v1697 = vpop.f32.mrb[0].mxu0
    %v1698 = vadd.f32 0.0, %v1697
    %v1699 = vpop.f32.mrb[0].mxu0
    %1700 = vmatprep.mubr.f32.mxu0 0.0
    %1701 = vmatmul.mubr.f32.gmra.mrb[0].mxu0 %v1387
    %v1702 = vpop.f32.mrb[0].mxu0
    %v1703 = vadd.f32 0.0, %v1702
    %v1704 = vpop.f32.mrb[0].mxu0
    %1705 = vmatprep.mubr.f32.mxu0 0.0
    %1706 = vmatmul.mubr.f32.gmra.mrb[0].mxu0 %v1390
    %v1707 = vpop.f32.mrb[0].mxu0
    %v1708 = vadd.f32 0.0, %v1707
    %v1709 = vpop.f32.mrb[0].mxu0
    %1710 = vmatprep.mubr.f32.mxu0 0.0
    %1711 = vmatmul.mubr.f32.gmra.mrb[0].mxu0 %v1393
    %v1712 = vpop.f32.mrb[0].mxu0
    %v1713 = vadd.f32 0.0, %v1712
    %v1714 = vpop.f32.mrb[0].mxu0
    %1715 = vmatprep.mubr.f32.mxu0 0.0
    %1716 = vmatmul.mubr.f32.gmra.mrb[0].mxu0 %v1396
    %v1717 = vpop.f32.mrb[0].mxu0
    %v1718 = vadd.f32 0.0, %v1717
    %v1719 = vpop.f32.mrb[0].mxu0
    %1720 = vmatprep.mubr.f32.mxu0 0.0
    %1721 = vmatmul.mubr.f32.gmra.mrb[0].mxu0 %v1399
    %v1722 = vpop.f32.mrb[0].mxu0
    %v1723 = vadd.f32 0.0, %v1722
    %v1724 = vpop.f32.mrb[0].mxu0
    %1725 = vmatprep.mubr.f32.mxu0 0.0
    %1726 = vmatmul.mubr.f32.gmra.mrb[0].mxu0 %v1402
    %v1727 = vpop.f32.mrb[0].mxu0
    %v1728 = vadd.f32 0.0, %v1727
    %v1729 = vpop.f32.mrb[0].mxu0
    %1730 = vmatprep.mubr.f32.mxu0 0.0
    %1731 = vmatmul.mubr.f32.gmra.mrb[0].mxu0 %v1405
    %v1732 = vpop.f32.mrb[0].mxu0
    %v1733 = vadd.f32 0.0, %v1732
    %v1734 = vpop.f32.mrb[0].mxu0
    %1735 = vmatprep.mubr.f32.mxu0 0.0
    %1736 = vmatmul.mubr.f32.gmra.mrb[0].mxu0 %v1408
    %v1737 = vpop.f32.mrb[0].mxu0
    %v1738 = vadd.f32 0.0, %v1737
    %v1739 = vpop.f32.mrb[0].mxu0
    %1740 = vmatprep.mubr.f32.mxu0 0.0
    %1741 = vmatmul.mubr.f32.gmra.mrb[0].mxu0 %v1411
    %v1742 = vpop.f32.mrb[0].mxu0
    %v1743 = vadd.f32 0.0, %v1742
    %v1744 = vpop.f32.mrb[0].mxu0
    %1745 = vmatprep.mubr.f32.mxu0 0.0
    %1746 = vmatmul.mubr.f32.gmra.mrb[0].mxu0 %v1414
    %v1747 = vpop.f32.mrb[0].mxu0
    %v1748 = vadd.f32 0.0, %v1747
    %v1749 = vpop.f32.mrb[0].mxu0
    %1750 = vmatprep.mubr.f32.mxu0 0.0
    %1751 = vmatmul.mubr.f32.gmra.mrb[0].mxu0 %v1417
    %v1752 = vpop.f32.mrb[0].mxu0
    %v1753 = vadd.f32 0.0, %v1752
    %v1754 = vpop.f32.mrb[0].mxu0
    %1755 = vmatprep.mubr.f32.mxu0 0.0
    %1756 = vmatmul.mubr.f32.gmra.mrb[0].mxu0 %v1420
    %v1757 = vpop.f32.mrb[0].mxu0
    %v1758 = vadd.f32 0.0, %v1757
    %v1759 = vpop.f32.mrb[0].mxu0
    %1760 = vmatprep.mubr.f32.mxu0 0.0
    %1761 = vmatmul.mubr.f32.gmra.mrb[0].mxu0 %v1423
    %v1762 = vpop.f32.mrb[0].mxu0
    %v1763 = vadd.f32 0.0, %v1762
    %v1764 = vpop.f32.mrb[0].mxu0
    %1765 = vmatprep.mubr.f32.mxu0 0.0
    %1766 = vmatmul.mubr.f32.gmra.mrb[0].mxu0 %v1426
    %v1767 = vpop.f32.mrb[0].mxu0
    %v1768 = vadd.f32 0.0, %v1767
    %v1769 = vpop.f32.mrb[0].mxu0
    %1770 = vmatprep.mubr.f32.mxu0 0.0
    %1771 = vmatmul.mubr.f32.gmra.mrb[0].mxu0 %v1429
    %v1772 = vpop.f32.mrb[0].mxu0
    %v1773 = vadd.f32 0.0, %v1772
    %v1774 = vpop.f32.mrb[0].mxu0
    %1775 = vmatprep.mubr.f32.mxu0 0.0
    %1776 = vmatmul.mubr.f32.gmra.mrb[0].mxu0 %v1432
    %v1777 = vpop.f32.mrb[0].mxu0
    %v1778 = vadd.f32 0.0, %v1777
    %v1779 = vpop.f32.mrb[0].mxu0
    %1780 = vmatprep.mubr.f32.mxu0 0.0
    %1781 = vmatmul.mubr.f32.gmra.mrb[0].mxu0 %v1435
    %v1782 = vpop.f32.mrb[0].mxu0
    %v1783 = vadd.f32 0.0, %v1782
    %v1784 = vpop.f32.mrb[0].mxu0
    %1785 = vmatprep.mubr.f32.mxu0 0.0
    %1786 = vmatmul.mubr.f32.gmra.mrb[0].mxu0 %v1438
    %v1787 = vpop.f32.mrb[0].mxu0
    %v1788 = vadd.f32 0.0, %v1787
    %v1789 = vpop.f32.mrb[0].mxu0
    %1790 = vmatprep.mubr.f32.mxu0 0.0
    %1791 = vmatmul.mubr.f32.gmra.mrb[0].mxu0 %v1441
    %v1792 = vpop.f32.mrb[0].mxu0
    %v1793 = vadd.f32 0.0, %v1792
    %v1794 = vpop.f32.mrb[0].mxu0
    %1795 = vmatprep.mubr.f32.mxu0 0.0
    %1796 = vmatmul.mubr.f32.gmra.mrb[0].mxu0 %v1444
    %v1797 = vpop.f32.mrb[0].mxu0
    %v1798 = vadd.f32 0.0, %v1797
    %v1799 = vpop.f32.mrb[0].mxu0
    %1800 = vmatprep.mubr.f32.mxu0 0.0
    %1801 = vmatmul.mubr.f32.gmra.mrb[0].mxu0 %v1447
    %v1802 = vpop.f32.mrb[0].mxu0
    %v1803 = vadd.f32 0.0, %v1802
    %v1804 = vpop.f32.mrb[0].mxu0
    %1805 = vmatprep.mubr.f32.mxu0 0.0
    %1806 = vmatmul.mubr.f32.gmra.mrb[0].mxu0 %v1450
    %v1807 = vpop.f32.mrb[0].mxu0
    %v1808 = vadd.f32 0.0, %v1807
    %v1809 = vpop.f32.mrb[0].mxu0
    %1810 = vmatprep.mubr.f32.mxu0 0.0
    %1811 = vmatmul.mubr.f32.gmra.mrb[0].mxu0 %v1453
    %v1812 = vpop.f32.mrb[0].mxu0
    %v1813 = vadd.f32 0.0, %v1812
    %v1814 = vpop.f32.mrb[0].mxu0
    %1815 = vmatprep.mubr.f32.mxu0 0.0
    %1816 = vmatmul.mubr.f32.gmra.mrb[0].mxu0 %v1456
    %v1817 = vpop.f32.mrb[0].mxu0
    %v1818 = vadd.f32 0.0, %v1817
    %v1819 = vpop.f32.mrb[0].mxu0
    %1820 = vmatprep.mubr.f32.mxu0 0.0
    %1821 = vmatmul.mubr.f32.gmra.mrb[0].mxu0 %v1459
    %v1822 = vpop.f32.mrb[0].mxu0
    %v1823 = vadd.f32 0.0, %v1822
    %v1824 = vpop.f32.mrb[0].mxu0
    %1825 = vmatprep.mubr.f32.mxu0 0.0
    %1826 = vmatmul.mubr.f32.gmra.mrb[0].mxu0 %v1462
    %v1827 = vpop.f32.mrb[0].mxu0
    %v1828 = vadd.f32 0.0, %v1827
    %v1829 = vpop.f32.mrb[0].mxu0
    %1830 = vmatprep.mubr.f32.mxu0 0.0
    %1831 = vmatmul.mubr.f32.gmra.mrb[0].mxu0 %v1465
    %v1832 = vpop.f32.mrb[0].mxu0
    %v1833 = vadd.f32 0.0, %v1832
    %v1834 = vpop.f32.mrb[0].mxu0
    %1835 = vmatprep.mubr.f32.mxu0 0.0
    %1836 = vmatmul.mubr.f32.gmra.mrb[0].mxu0 %v1468
    %v1837 = vpop.f32.mrb[0].mxu0
    %v1838 = vadd.f32 0.0, %v1837
    %v1839 = vpop.f32.mrb[0].mxu0
    %1840 = vmatprep.mubr.f32.mxu0 0.0
    %1841 = vmatmul.mubr.f32.gmra.mrb[0].mxu0 %v1471
    %v1842 = vpop.f32.mrb[0].mxu0
    %v1843 = vadd.f32 0.0, %v1842
    %v1844 = vpop.f32.mrb[0].mxu0
    %1845 = vmatprep.mubr.f32.mxu0 0.0
    %1846 = vmatmul.mubr.f32.gmra.mrb[0].mxu0 %v1474
    %v1847 = vpop.f32.mrb[0].mxu0
    %v1848 = vadd.f32 0.0, %v1847
    %v1849 = vpop.f32.mrb[0].mxu0
    %1850 = vmatprep.mubr.f32.mxu0 0.0
    %1851 = vmatmul.mubr.f32.gmra.mrb[0].mxu0 %v1477
    %v1852 = vpop.f32.mrb[0].mxu0
    %v1853 = vadd.f32 0.0, %v1852
    %v1854 = vpop.f32.mrb[0].mxu0
    %1855 = vmatprep.mubr.f32.mxu0 0.0
    %1856 = vmatmul.mubr.f32.gmra.mrb[0].mxu0 %v1480
    %v1857 = vpop.f32.mrb[0].mxu0
    %v1858 = vadd.f32 0.0, %v1857
    %v1859 = vpop.f32.mrb[0].mxu0
    %1860 = vmatprep.mubr.f32.mxu0 0.0
    %1861 = vmatmul.mubr.f32.gmra.mrb[0].mxu0 %v1483
    %v1862 = vpop.f32.mrb[0].mxu0
    %v1863 = vadd.f32 0.0, %v1862
    %v1864 = vpop.f32.mrb[0].mxu0
    %1865 = vmatprep.mubr.f32.mxu0 0.0
    %1866 = vmatmul.mubr.f32.gmra.mrb[0].mxu0 %v1486
    %v1867 = vpop.f32.mrb[0].mxu0
    %v1868 = vadd.f32 0.0, %v1867
    %v1869 = vpop.f32.mrb[0].mxu0
    %1870 = vmatprep.mubr.f32.mxu0 0.0
    %1871 = vmatmul.mubr.f32.gmra.mrb[0].mxu0 %v1489
    %v1872 = vpop.f32.mrb[0].mxu0
    %v1873 = vadd.f32 0.0, %v1872
    %v1874 = vpop.f32.mrb[0].mxu0
    %1875 = vdwg.mxu0
    %1876 = vmatprep.subr.mxu0 0.0
    %1877 = vmatpush1.msra.mxu0 %v1109
    %1878 = vmatprep.subr.mxu0 0.0
    %1879 = vmatpush1.msra.mxu0 %v1110
    %1880 = vmatprep.subr.mxu0 0.0
    %1881 = vmatpush1.msra.mxu0 %v1111
    %1882 = vmatprep.subr.mxu0 0.0
    %1883 = vmatpush1.msra.mxu0 %v1112
    %1884 = vmatprep.subr.mxu0 0.0
    %1885 = vmatpush1.msra.mxu0 0.0
    %1886 = vmatprep.subr.mxu0 0.0
    %1887 = vmatpush1.msra.mxu0 0.0
    %1888 = vmatprep.subr.mxu0 0.0
    %1889 = vmatpush1.msra.mxu0 0.0
    %1890 = vmatprep.subr.mxu0 0.0
    %1891 = vmatpush1.msra.mxu0 0.0
    %1892 = vmatprep.subr.mxu0 0.0
    %1893 = vmatpush1.msra.mxu0 0.0
    %1894 = vmatprep.subr.mxu0 0.0
    %1895 = vmatpush1.msra.mxu0 0.0
    %1896 = vmatprep.subr.mxu0 0.0
    %1897 = vmatpush1.msra.mxu0 0.0
    %1898 = vmatprep.subr.mxu0 0.0
    %1899 = vmatpush1.msra.mxu0 0.0
    %1900 = vmatprep.subr.mxu0 0.0
    %1901 = vmatpush1.msra.mxu0 0.0
    %1902 = vmatprep.subr.mxu0 0.0
    %1903 = vmatpush1.msra.mxu0 0.0
    %1904 = vmatprep.subr.mxu0 0.0
    %1905 = vmatpush1.msra.mxu0 0.0
    %1906 = vmatprep.subr.mxu0 0.0
    %1907 = vmatpush1.msra.mxu0 0.0
    %1908 = vmatprep.subr.mxu0 0.0
    %1909 = vmatpush1.msra.mxu0 0.0
    %1910 = vmatprep.subr.mxu0 0.0
    %1911 = vmatpush1.msra.mxu0 0.0
    %1912 = vmatprep.subr.mxu0 0.0
    %1913 = vmatpush1.msra.mxu0 0.0
    %1914 = vmatprep.subr.mxu0 0.0
    %1915 = vmatpush1.msra.mxu0 0.0
    %1916 = vmatprep.subr.mxu0 0.0
    %1917 = vmatpush1.msra.mxu0 0.0
    %1918 = vmatprep.subr.mxu0 0.0
    %1919 = vmatpush1.msra.mxu0 0.0
    %1920 = vmatprep.subr.mxu0 0.0
    %1921 = vmatpush1.msra.mxu0 0.0
    %1922 = vmatprep.subr.mxu0 0.0
    %1923 = vmatpush1.msra.mxu0 0.0
    %1924 = vmatprep.subr.mxu0 0.0
    %1925 = vmatpush1.msra.mxu0 0.0
    %1926 = vmatprep.subr.mxu0 0.0
    %1927 = vmatpush1.msra.mxu0 0.0
    %1928 = vmatprep.subr.mxu0 0.0
    %1929 = vmatpush1.msra.mxu0 0.0
    %1930 = vmatprep.subr.mxu0 0.0
    %1931 = vmatpush1.msra.mxu0 0.0
    %1932 = vmatprep.subr.mxu0 0.0
    %1933 = vmatpush1.msra.mxu0 0.0
    %1934 = vmatprep.subr.mxu0 0.0
    %1935 = vmatpush1.msra.mxu0 0.0
    %1936 = vmatprep.subr.mxu0 0.0
    %1937 = vmatpush1.msra.mxu0 0.0
    %1938 = vmatprep.subr.mxu0 0.0
    %1939 = vmatpush1.msra.mxu0 0.0
    %1940 = vmatprep.mubr.f32.mxu0 0.0
    %1941 = vmatmul.mubr.f32.gmra.mrb[0].mxu0 %v1300
    %v1942 = vpop.f32.mrb[0].mxu0
    %v1943 = vadd.f32 0.0, %v1942
    %v1944 = vpop.f32.mrb[0].mxu0
    %1945 = vmatprep.mubr.f32.mxu0 0.0
    %1946 = vmatmul.mubr.f32.gmra.mrb[0].mxu0 %v1303
    %v1947 = vpop.f32.mrb[0].mxu0
    %v1948 = vadd.f32 0.0, %v1947
    %v1949 = vpop.f32.mrb[0].mxu0
    %1950 = vmatprep.mubr.f32.mxu0 0.0
    %1951 = vmatmul.mubr.f32.gmra.mrb[0].mxu0 %v1306
    %v1952 = vpop.f32.mrb[0].mxu0
    %v1953 = vadd.f32 0.0, %v1952
    %v1954 = vpop.f32.mrb[0].mxu0
    %1955 = vmatprep.mubr.f32.mxu0 0.0
    %1956 = vmatmul.mubr.f32.gmra.mrb[0].mxu0 %v1309
    %v1957 = vpop.f32.mrb[0].mxu0
    %v1958 = vadd.f32 0.0, %v1957
    %v1959 = vpop.f32.mrb[0].mxu0
    %1960 = vmatprep.mubr.f32.mxu0 0.0
    %1961 = vmatmul.mubr.f32.gmra.mrb[0].mxu0 %v1312
    %v1962 = vpop.f32.mrb[0].mxu0
    %v1963 = vadd.f32 0.0, %v1962
    %v1964 = vpop.f32.mrb[0].mxu0
    %1965 = vmatprep.mubr.f32.mxu0 0.0
    %1966 = vmatmul.mubr.f32.gmra.mrb[0].mxu0 %v1315
    %v1967 = vpop.f32.mrb[0].mxu0
    %v1968 = vadd.f32 0.0, %v1967
    %v1969 = vpop.f32.mrb[0].mxu0
    %1970 = vmatprep.mubr.f32.mxu0 0.0
    %1971 = vmatmul.mubr.f32.gmra.mrb[0].mxu0 %v1318
    %v1972 = vpop.f32.mrb[0].mxu0
    %v1973 = vadd.f32 0.0, %v1972
    %v1974 = vpop.f32.mrb[0].mxu0
    %1975 = vmatprep.mubr.f32.mxu0 0.0
    %1976 = vmatmul.mubr.f32.gmra.mrb[0].mxu0 %v1321
    %v1977 = vpop.f32.mrb[0].mxu0
    %v1978 = vadd.f32 0.0, %v1977
    %v1979 = vpop.f32.mrb[0].mxu0
    %1980 = vmatprep.mubr.f32.mxu0 0.0
    %1981 = vmatmul.mubr.f32.gmra.mrb[0].mxu0 %v1324
    %v1982 = vpop.f32.mrb[0].mxu0
    %v1983 = vadd.f32 0.0, %v1982
    %v1984 = vpop.f32.mrb[0].mxu0
    %1985 = vmatprep.mubr.f32.mxu0 0.0
    %1986 = vmatmul.mubr.f32.gmra.mrb[0].mxu0 %v1327
    %v1987 = vpop.f32.mrb[0].mxu0
    %v1988 = vadd.f32 0.0, %v1987
    %v1989 = vpop.f32.mrb[0].mxu0
    %1990 = vmatprep.mubr.f32.mxu0 0.0
    %1991 = vmatmul.mubr.f32.gmra.mrb[0].mxu0 %v1330
    %v1992 = vpop.f32.mrb[0].mxu0
    %v1993 = vadd.f32 0.0, %v1992
    %v1994 = vpop.f32.mrb[0].mxu0
    %1995 = vmatprep.mubr.f32.mxu0 0.0
    %1996 = vmatmul.mubr.f32.gmra.mrb[0].mxu0 %v1333
    %v1997 = vpop.f32.mrb[0].mxu0
    %v1998 = vadd.f32 0.0, %v1997
    %v1999 = vpop.f32.mrb[0].mxu0
    %2000 = vmatprep.mubr.f32.mxu0 0.0
    %2001 = vmatmul.mubr.f32.gmra.mrb[0].mxu0 %v1336
    %v2002 = vpop.f32.mrb[0].mxu0
    %v2003 = vadd.f32 0.0, %v2002
    %v2004 = vpop.f32.mrb[0].mxu0
    %2005 = vmatprep.mubr.f32.mxu0 0.0
    %2006 = vmatmul.mubr.f32.gmra.mrb[0].mxu0 %v1339
    %v2007 = vpop.f32.mrb[0].mxu0
    %v2008 = vadd.f32 0.0, %v2007
    %v2009 = vpop.f32.mrb[0].mxu0
    %2010 = vmatprep.mubr.f32.mxu0 0.0
    %2011 = vmatmul.mubr.f32.gmra.mrb[0].mxu0 %v1342
    %v2012 = vpop.f32.mrb[0].mxu0
    %v2013 = vadd.f32 0.0, %v2012
    %v2014 = vpop.f32.mrb[0].mxu0
    %2015 = vmatprep.mubr.f32.mxu0 0.0
    %2016 = vmatmul.mubr.f32.gmra.mrb[0].mxu0 %v1345
    %v2017 = vpop.f32.mrb[0].mxu0
    %v2018 = vadd.f32 0.0, %v2017
    %v2019 = vpop.f32.mrb[0].mxu0
    %2020 = vmatprep.mubr.f32.mxu0 0.0
    %2021 = vmatmul.mubr.f32.gmra.mrb[0].mxu0 %v1348
    %v2022 = vpop.f32.mrb[0].mxu0
    %v2023 = vadd.f32 0.0, %v2022
    %v2024 = vpop.f32.mrb[0].mxu0
    %2025 = vmatprep.mubr.f32.mxu0 0.0
    %2026 = vmatmul.mubr.f32.gmra.mrb[0].mxu0 %v1351
    %v2027 = vpop.f32.mrb[0].mxu0
    %v2028 = vadd.f32 0.0, %v2027
    %v2029 = vpop.f32.mrb[0].mxu0
    %2030 = vmatprep.mubr.f32.mxu0 0.0
    %2031 = vmatmul.mubr.f32.gmra.mrb[0].mxu0 %v1354
    %v2032 = vpop.f32.mrb[0].mxu0
    %v2033 = vadd.f32 0.0, %v2032
    %v2034 = vpop.f32.mrb[0].mxu0
    %2035 = vmatprep.mubr.f32.mxu0 0.0
    %2036 = vmatmul.mubr.f32.gmra.mrb[0].mxu0 %v1357
    %v2037 = vpop.f32.mrb[0].mxu0
    %v2038 = vadd.f32 0.0, %v2037
    %v2039 = vpop.f32.mrb[0].mxu0
    %2040 = vmatprep.mubr.f32.mxu0 0.0
    %2041 = vmatmul.mubr.f32.gmra.mrb[0].mxu0 %v1360
    %v2042 = vpop.f32.mrb[0].mxu0
    %v2043 = vadd.f32 0.0, %v2042
    %v2044 = vpop.f32.mrb[0].mxu0
    %2045 = vmatprep.mubr.f32.mxu0 0.0
    %2046 = vmatmul.mubr.f32.gmra.mrb[0].mxu0 %v1363
    %v2047 = vpop.f32.mrb[0].mxu0
    %v2048 = vadd.f32 0.0, %v2047
    %v2049 = vpop.f32.mrb[0].mxu0
    %2050 = vmatprep.mubr.f32.mxu0 0.0
    %2051 = vmatmul.mubr.f32.gmra.mrb[0].mxu0 %v1366
    %v2052 = vpop.f32.mrb[0].mxu0
    %v2053 = vadd.f32 0.0, %v2052
    %v2054 = vpop.f32.mrb[0].mxu0
    %2055 = vmatprep.mubr.f32.mxu0 0.0
    %2056 = vmatmul.mubr.f32.gmra.mrb[0].mxu0 %v1369
    %v2057 = vpop.f32.mrb[0].mxu0
    %v2058 = vadd.f32 0.0, %v2057
    %v2059 = vpop.f32.mrb[0].mxu0
    %2060 = vmatprep.mubr.f32.mxu0 0.0
    %2061 = vmatmul.mubr.f32.gmra.mrb[0].mxu0 %v1372
    %v2062 = vpop.f32.mrb[0].mxu0
    %v2063 = vadd.f32 0.0, %v2062
    %v2064 = vpop.f32.mrb[0].mxu0
    %2065 = vmatprep.mubr.f32.mxu0 0.0
    %2066 = vmatmul.mubr.f32.gmra.mrb[0].mxu0 %v1375
    %v2067 = vpop.f32.mrb[0].mxu0
    %v2068 = vadd.f32 0.0, %v2067
    %v2069 = vpop.f32.mrb[0].mxu0
    %2070 = vmatprep.mubr.f32.mxu0 0.0
    %2071 = vmatmul.mubr.f32.gmra.mrb[0].mxu0 %v1378
    %v2072 = vpop.f32.mrb[0].mxu0
    %v2073 = vadd.f32 0.0, %v2072
    %v2074 = vpop.f32.mrb[0].mxu0
    %2075 = vmatprep.mubr.f32.mxu0 0.0
    %2076 = vmatmul.mubr.f32.gmra.mrb[0].mxu0 %v1381
    %v2077 = vpop.f32.mrb[0].mxu0
    %v2078 = vadd.f32 0.0, %v2077
    %v2079 = vpop.f32.mrb[0].mxu0
    %2080 = vmatprep.mubr.f32.mxu0 0.0
    %2081 = vmatmul.mubr.f32.gmra.mrb[0].mxu0 %v1384
    %v2082 = vpop.f32.mrb[0].mxu0
    %v2083 = vadd.f32 0.0, %v2082
    %v2084 = vpop.f32.mrb[0].mxu0
    %2085 = vmatprep.mubr.f32.mxu0 0.0
    %2086 = vmatmul.mubr.f32.gmra.mrb[0].mxu0 %v1387
    %v2087 = vpop.f32.mrb[0].mxu0
    %v2088 = vadd.f32 0.0, %v2087
    %v2089 = vpop.f32.mrb[0].mxu0
    %2090 = vmatprep.mubr.f32.mxu0 0.0
    %2091 = vmatmul.mubr.f32.gmra.mrb[0].mxu0 %v1390
    %v2092 = vpop.f32.mrb[0].mxu0
    %v2093 = vadd.f32 0.0, %v2092
    %v2094 = vpop.f32.mrb[0].mxu0
    %2095 = vmatprep.mubr.f32.mxu0 0.0
    %2096 = vmatmul.mubr.f32.gmra.mrb[0].mxu0 %v1393
    %v2097 = vpop.f32.mrb[0].mxu0
    %v2098 = vadd.f32 0.0, %v2097
    %v2099 = vpop.f32.mrb[0].mxu0
    %2100 = vmatprep.mubr.f32.mxu0 0.0
    %2101 = vmatmul.mubr.f32.gmra.mrb[0].mxu0 %v1396
    %v2102 = vpop.f32.mrb[0].mxu0
    %v2103 = vadd.f32 0.0, %v2102
    %v2104 = vpop.f32.mrb[0].mxu0
    %2105 = vmatprep.mubr.f32.mxu0 0.0
    %2106 = vmatmul.mubr.f32.gmra.mrb[0].mxu0 %v1399
    %v2107 = vpop.f32.mrb[0].mxu0
    %v2108 = vadd.f32 0.0, %v2107
    %v2109 = vpop.f32.mrb[0].mxu0
    %2110 = vmatprep.mubr.f32.mxu0 0.0
    %2111 = vmatmul.mubr.f32.gmra.mrb[0].mxu0 %v1402
    %v2112 = vpop.f32.mrb[0].mxu0
    %v2113 = vadd.f32 0.0, %v2112
    %v2114 = vpop.f32.mrb[0].mxu0
    %2115 = vmatprep.mubr.f32.mxu0 0.0
    %2116 = vmatmul.mubr.f32.gmra.mrb[0].mxu0 %v1405
    %v2117 = vpop.f32.mrb[0].mxu0
    %v2118 = vadd.f32 0.0, %v2117
    %v2119 = vpop.f32.mrb[0].mxu0
    %2120 = vmatprep.mubr.f32.mxu0 0.0
    %2121 = vmatmul.mubr.f32.gmra.mrb[0].mxu0 %v1408
    %v2122 = vpop.f32.mrb[0].mxu0
    %v2123 = vadd.f32 0.0, %v2122
    %v2124 = vpop.f32.mrb[0].mxu0
    %2125 = vmatprep.mubr.f32.mxu0 0.0
    %2126 = vmatmul.mubr.f32.gmra.mrb[0].mxu0 %v1411
    %v2127 = vpop.f32.mrb[0].mxu0
    %v2128 = vadd.f32 0.0, %v2127
    %v2129 = vpop.f32.mrb[0].mxu0
    %2130 = vmatprep.mubr.f32.mxu0 0.0
    %2131 = vmatmul.mubr.f32.gmra.mrb[0].mxu0 %v1414
    %v2132 = vpop.f32.mrb[0].mxu0
    %v2133 = vadd.f32 0.0, %v2132
    %v2134 = vpop.f32.mrb[0].mxu0
    %2135 = vmatprep.mubr.f32.mxu0 0.0
    %2136 = vmatmul.mubr.f32.gmra.mrb[0].mxu0 %v1417
    %v2137 = vpop.f32.mrb[0].mxu0
    %v2138 = vadd.f32 0.0, %v2137
    %v2139 = vpop.f32.mrb[0].mxu0
    %2140 = vmatprep.mubr.f32.mxu0 0.0
    %2141 = vmatmul.mubr.f32.gmra.mrb[0].mxu0 %v1420
    %v2142 = vpop.f32.mrb[0].mxu0
    %v2143 = vadd.f32 0.0, %v2142
    %v2144 = vpop.f32.mrb[0].mxu0
    %2145 = vmatprep.mubr.f32.mxu0 0.0
    %2146 = vmatmul.mubr.f32.gmra.mrb[0].mxu0 %v1423
    %v2147 = vpop.f32.mrb[0].mxu0
    %v2148 = vadd.f32 0.0, %v2147
    %v2149 = vpop.f32.mrb[0].mxu0
    %2150 = vmatprep.mubr.f32.mxu0 0.0
    %2151 = vmatmul.mubr.f32.gmra.mrb[0].mxu0 %v1426
    %v2152 = vpop.f32.mrb[0].mxu0
    %v2153 = vadd.f32 0.0, %v2152
    %v2154 = vpop.f32.mrb[0].mxu0
    %2155 = vmatprep.mubr.f32.mxu0 0.0
    %2156 = vmatmul.mubr.f32.gmra.mrb[0].mxu0 %v1429
    %v2157 = vpop.f32.mrb[0].mxu0
    %v2158 = vadd.f32 0.0, %v2157
    %v2159 = vpop.f32.mrb[0].mxu0
    %2160 = vmatprep.mubr.f32.mxu0 0.0
    %2161 = vmatmul.mubr.f32.gmra.mrb[0].mxu0 %v1432
    %v2162 = vpop.f32.mrb[0].mxu0
    %v2163 = vadd.f32 0.0, %v2162
    %v2164 = vpop.f32.mrb[0].mxu0
    %2165 = vmatprep.mubr.f32.mxu0 0.0
    %2166 = vmatmul.mubr.f32.gmra.mrb[0].mxu0 %v1435
    %v2167 = vpop.f32.mrb[0].mxu0
    %v2168 = vadd.f32 0.0, %v2167
    %v2169 = vpop.f32.mrb[0].mxu0
    %2170 = vmatprep.mubr.f32.mxu0 0.0
    %2171 = vmatmul.mubr.f32.gmra.mrb[0].mxu0 %v1438
    %v2172 = vpop.f32.mrb[0].mxu0
    %v2173 = vadd.f32 0.0, %v2172
    %v2174 = vpop.f32.mrb[0].mxu0
    %2175 = vmatprep.mubr.f32.mxu0 0.0
    %2176 = vmatmul.mubr.f32.gmra.mrb[0].mxu0 %v1441
    %v2177 = vpop.f32.mrb[0].mxu0
    %v2178 = vadd.f32 0.0, %v2177
    %v2179 = vpop.f32.mrb[0].mxu0
    %2180 = vmatprep.mubr.f32.mxu0 0.0
    %2181 = vmatmul.mubr.f32.gmra.mrb[0].mxu0 %v1444
    %v2182 = vpop.f32.mrb[0].mxu0
    %v2183 = vadd.f32 0.0, %v2182
    %v2184 = vpop.f32.mrb[0].mxu0
    %2185 = vmatprep.mubr.f32.mxu0 0.0
    %2186 = vmatmul.mubr.f32.gmra.mrb[0].mxu0 %v1447
    %v2187 = vpop.f32.mrb[0].mxu0
    %v2188 = vadd.f32 0.0, %v2187
    %v2189 = vpop.f32.mrb[0].mxu0
    %2190 = vmatprep.mubr.f32.mxu0 0.0
    %2191 = vmatmul.mubr.f32.gmra.mrb[0].mxu0 %v1450
    %v2192 = vpop.f32.mrb[0].mxu0
    %v2193 = vadd.f32 0.0, %v2192
    %v2194 = vpop.f32.mrb[0].mxu0
    %2195 = vmatprep.mubr.f32.mxu0 0.0
    %2196 = vmatmul.mubr.f32.gmra.mrb[0].mxu0 %v1453
    %v2197 = vpop.f32.mrb[0].mxu0
    %v2198 = vadd.f32 0.0, %v2197
    %v2199 = vpop.f32.mrb[0].mxu0
    %2200 = vmatprep.mubr.f32.mxu0 0.0
    %2201 = vmatmul.mubr.f32.gmra.mrb[0].mxu0 %v1456
    %v2202 = vpop.f32.mrb[0].mxu0
    %v2203 = vadd.f32 0.0, %v2202
    %v2204 = vpop.f32.mrb[0].mxu0
    %2205 = vmatprep.mubr.f32.mxu0 0.0
    %2206 = vmatmul.mubr.f32.gmra.mrb[0].mxu0 %v1459
    %v2207 = vpop.f32.mrb[0].mxu0
    %v2208 = vadd.f32 0.0, %v2207
    %v2209 = vpop.f32.mrb[0].mxu0
    %2210 = vmatprep.mubr.f32.mxu0 0.0
    %2211 = vmatmul.mubr.f32.gmra.mrb[0].mxu0 %v1462
    %v2212 = vpop.f32.mrb[0].mxu0
    %v2213 = vadd.f32 0.0, %v2212
    %v2214 = vpop.f32.mrb[0].mxu0
    %2215 = vmatprep.mubr.f32.mxu0 0.0
    %2216 = vmatmul.mubr.f32.gmra.mrb[0].mxu0 %v1465
    %v2217 = vpop.f32.mrb[0].mxu0
    %v2218 = vadd.f32 0.0, %v2217
    %v2219 = vpop.f32.mrb[0].mxu0
    %2220 = vmatprep.mubr.f32.mxu0 0.0
    %2221 = vmatmul.mubr.f32.gmra.mrb[0].mxu0 %v1468
    %v2222 = vpop.f32.mrb[0].mxu0
    %v2223 = vadd.f32 0.0, %v2222
    %v2224 = vpop.f32.mrb[0].mxu0
    %2225 = vmatprep.mubr.f32.mxu0 0.0
    %2226 = vmatmul.mubr.f32.gmra.mrb[0].mxu0 %v1471
    %v2227 = vpop.f32.mrb[0].mxu0
    %v2228 = vadd.f32 0.0, %v2227
    %v2229 = vpop.f32.mrb[0].mxu0
    %2230 = vmatprep.mubr.f32.mxu0 0.0
    %2231 = vmatmul.mubr.f32.gmra.mrb[0].mxu0 %v1474
    %v2232 = vpop.f32.mrb[0].mxu0
    %v2233 = vadd.f32 0.0, %v2232
    %v2234 = vpop.f32.mrb[0].mxu0
    %2235 = vmatprep.mubr.f32.mxu0 0.0
    %2236 = vmatmul.mubr.f32.gmra.mrb[0].mxu0 %v1477
    %v2237 = vpop.f32.mrb[0].mxu0
    %v2238 = vadd.f32 0.0, %v2237
    %v2239 = vpop.f32.mrb[0].mxu0
    %2240 = vmatprep.mubr.f32.mxu0 0.0
    %2241 = vmatmul.mubr.f32.gmra.mrb[0].mxu0 %v1480
    %v2242 = vpop.f32.mrb[0].mxu0
    %v2243 = vadd.f32 0.0, %v2242
    %v2244 = vpop.f32.mrb[0].mxu0
    %2245 = vmatprep.mubr.f32.mxu0 0.0
    %2246 = vmatmul.mubr.f32.gmra.mrb[0].mxu0 %v1483
    %v2247 = vpop.f32.mrb[0].mxu0
    %v2248 = vadd.f32 0.0, %v2247
    %v2249 = vpop.f32.mrb[0].mxu0
    %2250 = vmatprep.mubr.f32.mxu0 0.0
    %2251 = vmatmul.mubr.f32.gmra.mrb[0].mxu0 %v1486
    %v2252 = vpop.f32.mrb[0].mxu0
    %v2253 = vadd.f32 0.0, %v2252
    %v2254 = vpop.f32.mrb[0].mxu0
    %2255 = vmatprep.mubr.f32.mxu0 0.0
    %2256 = vmatmul.mubr.f32.gmra.mrb[0].mxu0 %v1489
    %v2257 = vpop.f32.mrb[0].mxu0
    %v2258 = vadd.f32 0.0, %v2257
    %v2259 = vpop.f32.mrb[0].mxu0
    %2260 = vdwg.mxu0
    %2261 = vmatprep.subr.mxu0 0.0
    %2262 = vmatpush1.msra.mxu0 %v1188
    %2263 = vmatprep.subr.mxu0 0.0
    %2264 = vmatpush1.msra.mxu0 %v1193
    %2265 = vmatprep.subr.mxu0 0.0
    %2266 = vmatpush1.msra.mxu0 %v1198
    %2267 = vmatprep.subr.mxu0 0.0
    %2268 = vmatpush1.msra.mxu0 %v1203
    %2269 = vmatprep.subr.mxu0 0.0
    %2270 = vmatpush1.msra.mxu0 0.0
    %2271 = vmatprep.subr.mxu0 0.0
    %2272 = vmatpush1.msra.mxu0 0.0
    %2273 = vmatprep.subr.mxu0 0.0
    %2274 = vmatpush1.msra.mxu0 0.0
    %2275 = vmatprep.subr.mxu0 0.0
    %2276 = vmatpush1.msra.mxu0 0.0
    %2277 = vmatprep.subr.mxu0 0.0
    %2278 = vmatpush1.msra.mxu0 0.0
    %2279 = vmatprep.subr.mxu0 0.0
    %2280 = vmatpush1.msra.mxu0 0.0
    %2281 = vmatprep.subr.mxu0 0.0
    %2282 = vmatpush1.msra.mxu0 0.0
    %2283 = vmatprep.subr.mxu0 0.0
    %2284 = vmatpush1.msra.mxu0 0.0
    %2285 = vmatprep.subr.mxu0 0.0
    %2286 = vmatpush1.msra.mxu0 0.0
    %2287 = vmatprep.subr.mxu0 0.0
    %2288 = vmatpush1.msra.mxu0 0.0
    %2289 = vmatprep.subr.mxu0 0.0
    %2290 = vmatpush1.msra.mxu0 0.0
    %2291 = vmatprep.subr.mxu0 0.0
    %2292 = vmatpush1.msra.mxu0 0.0
    %2293 = vmatprep.subr.mxu0 0.0
    %2294 = vmatpush1.msra.mxu0 0.0
    %2295 = vmatprep.subr.mxu0 0.0
    %2296 = vmatpush1.msra.mxu0 0.0
    %2297 = vmatprep.subr.mxu0 0.0
    %2298 = vmatpush1.msra.mxu0 0.0
    %2299 = vmatprep.subr.mxu0 0.0
    %2300 = vmatpush1.msra.mxu0 0.0
    %2301 = vmatprep.subr.mxu0 0.0
    %2302 = vmatpush1.msra.mxu0 0.0
    %2303 = vmatprep.subr.mxu0 0.0
    %2304 = vmatpush1.msra.mxu0 0.0
    %2305 = vmatprep.subr.mxu0 0.0
    %2306 = vmatpush1.msra.mxu0 0.0
    %2307 = vmatprep.subr.mxu0 0.0
    %2308 = vmatpush1.msra.mxu0 0.0
    %2309 = vmatprep.subr.mxu0 0.0
    %2310 = vmatpush1.msra.mxu0 0.0
    %2311 = vmatprep.subr.mxu0 0.0
    %2312 = vmatpush1.msra.mxu0 0.0
    %2313 = vmatprep.subr.mxu0 0.0
    %2314 = vmatpush1.msra.mxu0 0.0
    %2315 = vmatprep.subr.mxu0 0.0
    %2316 = vmatpush1.msra.mxu0 0.0
    %2317 = vmatprep.subr.mxu0 0.0
    %2318 = vmatpush1.msra.mxu0 0.0
    %2319 = vmatprep.subr.mxu0 0.0
    %2320 = vmatpush1.msra.mxu0 0.0
    %2321 = vmatprep.subr.mxu0 0.0
    %2322 = vmatpush1.msra.mxu0 0.0
    %2323 = vmatprep.subr.mxu0 0.0
    %2324 = vmatpush1.msra.mxu0 0.0
    %2325 = vmatprep.mubr.f32.mxu0 0.0
    %2326 = vmatmul.mubr.f32.gmra.mrb[0].mxu0 %v1300
    %v2327 = vpop.f32.mrb[0].mxu0
    %v2328 = vadd.f32 0.0, %v2327
    %v2329 = vpop.f32.mrb[0].mxu0
    %2330 = vmatprep.mubr.f32.mxu0 0.0
    %2331 = vmatmul.mubr.f32.gmra.mrb[0].mxu0 %v1303
    %v2332 = vpop.f32.mrb[0].mxu0
    %v2333 = vadd.f32 0.0, %v2332
    %v2334 = vpop.f32.mrb[0].mxu0
    %2335 = vmatprep.mubr.f32.mxu0 0.0
    %2336 = vmatmul.mubr.f32.gmra.mrb[0].mxu0 %v1306
    %v2337 = vpop.f32.mrb[0].mxu0
    %v2338 = vadd.f32 0.0, %v2337
    %v2339 = vpop.f32.mrb[0].mxu0
    %2340 = vmatprep.mubr.f32.mxu0 0.0
    %2341 = vmatmul.mubr.f32.gmra.mrb[0].mxu0 %v1309
    %v2342 = vpop.f32.mrb[0].mxu0
    %v2343 = vadd.f32 0.0, %v2342
    %v2344 = vpop.f32.mrb[0].mxu0
    %2345 = vmatprep.mubr.f32.mxu0 0.0
    %2346 = vmatmul.mubr.f32.gmra.mrb[0].mxu0 %v1312
    %v2347 = vpop.f32.mrb[0].mxu0
    %v2348 = vadd.f32 0.0, %v2347
    %v2349 = vpop.f32.mrb[0].mxu0
    %2350 = vmatprep.mubr.f32.mxu0 0.0
    %2351 = vmatmul.mubr.f32.gmra.mrb[0].mxu0 %v1315
    %v2352 = vpop.f32.mrb[0].mxu0
    %v2353 = vadd.f32 0.0, %v2352
    %v2354 = vpop.f32.mrb[0].mxu0
    %2355 = vmatprep.mubr.f32.mxu0 0.0
    %2356 = vmatmul.mubr.f32.gmra.mrb[0].mxu0 %v1318
    %v2357 = vpop.f32.mrb[0].mxu0
    %v2358 = vadd.f32 0.0, %v2357
    %v2359 = vpop.f32.mrb[0].mxu0
    %2360 = vmatprep.mubr.f32.mxu0 0.0
    %2361 = vmatmul.mubr.f32.gmra.mrb[0].mxu0 %v1321
    %v2362 = vpop.f32.mrb[0].mxu0
    %v2363 = vadd.f32 0.0, %v2362
    %v2364 = vpop.f32.mrb[0].mxu0
    %2365 = vmatprep.mubr.f32.mxu0 0.0
    %2366 = vmatmul.mubr.f32.gmra.mrb[0].mxu0 %v1324
    %v2367 = vpop.f32.mrb[0].mxu0
    %v2368 = vadd.f32 0.0, %v2367
    %v2369 = vpop.f32.mrb[0].mxu0
    %2370 = vmatprep.mubr.f32.mxu0 0.0
    %2371 = vmatmul.mubr.f32.gmra.mrb[0].mxu0 %v1327
    %v2372 = vpop.f32.mrb[0].mxu0
    %v2373 = vadd.f32 0.0, %v2372
    %v2374 = vpop.f32.mrb[0].mxu0
    %2375 = vmatprep.mubr.f32.mxu0 0.0
    %2376 = vmatmul.mubr.f32.gmra.mrb[0].mxu0 %v1330
    %v2377 = vpop.f32.mrb[0].mxu0
    %v2378 = vadd.f32 0.0, %v2377
    %v2379 = vpop.f32.mrb[0].mxu0
    %2380 = vmatprep.mubr.f32.mxu0 0.0
    %2381 = vmatmul.mubr.f32.gmra.mrb[0].mxu0 %v1333
    %v2382 = vpop.f32.mrb[0].mxu0
    %v2383 = vadd.f32 0.0, %v2382
    %v2384 = vpop.f32.mrb[0].mxu0
    %2385 = vmatprep.mubr.f32.mxu0 0.0
    %2386 = vmatmul.mubr.f32.gmra.mrb[0].mxu0 %v1336
    %v2387 = vpop.f32.mrb[0].mxu0
    %v2388 = vadd.f32 0.0, %v2387
    %v2389 = vpop.f32.mrb[0].mxu0
    %2390 = vmatprep.mubr.f32.mxu0 0.0
    %2391 = vmatmul.mubr.f32.gmra.mrb[0].mxu0 %v1339
    %v2392 = vpop.f32.mrb[0].mxu0
    %v2393 = vadd.f32 0.0, %v2392
    %v2394 = vpop.f32.mrb[0].mxu0
    %2395 = vmatprep.mubr.f32.mxu0 0.0
    %2396 = vmatmul.mubr.f32.gmra.mrb[0].mxu0 %v1342
    %v2397 = vpop.f32.mrb[0].mxu0
    %v2398 = vadd.f32 0.0, %v2397
    %v2399 = vpop.f32.mrb[0].mxu0
    %2400 = vmatprep.mubr.f32.mxu0 0.0
    %2401 = vmatmul.mubr.f32.gmra.mrb[0].mxu0 %v1345
    %v2402 = vpop.f32.mrb[0].mxu0
    %v2403 = vadd.f32 0.0, %v2402
    %v2404 = vpop.f32.mrb[0].mxu0
    %2405 = vmatprep.mubr.f32.mxu0 0.0
    %2406 = vmatmul.mubr.f32.gmra.mrb[0].mxu0 %v1348
    %v2407 = vpop.f32.mrb[0].mxu0
    %v2408 = vadd.f32 0.0, %v2407
    %v2409 = vpop.f32.mrb[0].mxu0
    %2410 = vmatprep.mubr.f32.mxu0 0.0
    %2411 = vmatmul.mubr.f32.gmra.mrb[0].mxu0 %v1351
    %v2412 = vpop.f32.mrb[0].mxu0
    %v2413 = vadd.f32 0.0, %v2412
    %v2414 = vpop.f32.mrb[0].mxu0
    %2415 = vmatprep.mubr.f32.mxu0 0.0
    %2416 = vmatmul.mubr.f32.gmra.mrb[0].mxu0 %v1354
    %v2417 = vpop.f32.mrb[0].mxu0
    %v2418 = vadd.f32 0.0, %v2417
    %v2419 = vpop.f32.mrb[0].mxu0
    %2420 = vmatprep.mubr.f32.mxu0 0.0
    %2421 = vmatmul.mubr.f32.gmra.mrb[0].mxu0 %v1357
    %v2422 = vpop.f32.mrb[0].mxu0
    %v2423 = vadd.f32 0.0, %v2422
    %v2424 = vpop.f32.mrb[0].mxu0
    %2425 = vmatprep.mubr.f32.mxu0 0.0
    %2426 = vmatmul.mubr.f32.gmra.mrb[0].mxu0 %v1360
    %v2427 = vpop.f32.mrb[0].mxu0
    %v2428 = vadd.f32 0.0, %v2427
    %v2429 = vpop.f32.mrb[0].mxu0
    %2430 = vmatprep.mubr.f32.mxu0 0.0
    %2431 = vmatmul.mubr.f32.gmra.mrb[0].mxu0 %v1363
    %v2432 = vpop.f32.mrb[0].mxu0
    %v2433 = vadd.f32 0.0, %v2432
    %v2434 = vpop.f32.mrb[0].mxu0
    %2435 = vmatprep.mubr.f32.mxu0 0.0
    %2436 = vmatmul.mubr.f32.gmra.mrb[0].mxu0 %v1366
    %v2437 = vpop.f32.mrb[0].mxu0
    %v2438 = vadd.f32 0.0, %v2437
    %v2439 = vpop.f32.mrb[0].mxu0
    %2440 = vmatprep.mubr.f32.mxu0 0.0
    %2441 = vmatmul.mubr.f32.gmra.mrb[0].mxu0 %v1369
    %v2442 = vpop.f32.mrb[0].mxu0
    %v2443 = vadd.f32 0.0, %v2442
    %v2444 = vpop.f32.mrb[0].mxu0
    %2445 = vmatprep.mubr.f32.mxu0 0.0
    %2446 = vmatmul.mubr.f32.gmra.mrb[0].mxu0 %v1372
    %v2447 = vpop.f32.mrb[0].mxu0
    %v2448 = vadd.f32 0.0, %v2447
    %v2449 = vpop.f32.mrb[0].mxu0
    %2450 = vmatprep.mubr.f32.mxu0 0.0
    %2451 = vmatmul.mubr.f32.gmra.mrb[0].mxu0 %v1375
    %v2452 = vpop.f32.mrb[0].mxu0
    %v2453 = vadd.f32 0.0, %v2452
    %v2454 = vpop.f32.mrb[0].mxu0
    %2455 = vmatprep.mubr.f32.mxu0 0.0
    %2456 = vmatmul.mubr.f32.gmra.mrb[0].mxu0 %v1378
    %v2457 = vpop.f32.mrb[0].mxu0
    %v2458 = vadd.f32 0.0, %v2457
    %v2459 = vpop.f32.mrb[0].mxu0
    %2460 = vmatprep.mubr.f32.mxu0 0.0
    %2461 = vmatmul.mubr.f32.gmra.mrb[0].mxu0 %v1381
    %v2462 = vpop.f32.mrb[0].mxu0
    %v2463 = vadd.f32 0.0, %v2462
    %v2464 = vpop.f32.mrb[0].mxu0
    %2465 = vmatprep.mubr.f32.mxu0 0.0
    %2466 = vmatmul.mubr.f32.gmra.mrb[0].mxu0 %v1384
    %v2467 = vpop.f32.mrb[0].mxu0
    %v2468 = vadd.f32 0.0, %v2467
    %v2469 = vpop.f32.mrb[0].mxu0
    %2470 = vmatprep.mubr.f32.mxu0 0.0
    %2471 = vmatmul.mubr.f32.gmra.mrb[0].mxu0 %v1387
    %v2472 = vpop.f32.mrb[0].mxu0
    %v2473 = vadd.f32 0.0, %v2472
    %v2474 = vpop.f32.mrb[0].mxu0
    %2475 = vmatprep.mubr.f32.mxu0 0.0
    %2476 = vmatmul.mubr.f32.gmra.mrb[0].mxu0 %v1390
    %v2477 = vpop.f32.mrb[0].mxu0
    %v2478 = vadd.f32 0.0, %v2477
    %v2479 = vpop.f32.mrb[0].mxu0
    %2480 = vmatprep.mubr.f32.mxu0 0.0
    %2481 = vmatmul.mubr.f32.gmra.mrb[0].mxu0 %v1393
    %v2482 = vpop.f32.mrb[0].mxu0
    %v2483 = vadd.f32 0.0, %v2482
    %v2484 = vpop.f32.mrb[0].mxu0
    %2485 = vmatprep.mubr.f32.mxu0 0.0
    %2486 = vmatmul.mubr.f32.gmra.mrb[0].mxu0 %v1396
    %v2487 = vpop.f32.mrb[0].mxu0
    %v2488 = vadd.f32 0.0, %v2487
    %v2489 = vpop.f32.mrb[0].mxu0
    %2490 = vmatprep.mubr.f32.mxu0 0.0
    %2491 = vmatmul.mubr.f32.gmra.mrb[0].mxu0 %v1399
    %v2492 = vpop.f32.mrb[0].mxu0
    %v2493 = vadd.f32 0.0, %v2492
    %v2494 = vpop.f32.mrb[0].mxu0
    %2495 = vmatprep.mubr.f32.mxu0 0.0
    %2496 = vmatmul.mubr.f32.gmra.mrb[0].mxu0 %v1402
    %v2497 = vpop.f32.mrb[0].mxu0
    %v2498 = vadd.f32 0.0, %v2497
    %v2499 = vpop.f32.mrb[0].mxu0
    %2500 = vmatprep.mubr.f32.mxu0 0.0
    %2501 = vmatmul.mubr.f32.gmra.mrb[0].mxu0 %v1405
    %v2502 = vpop.f32.mrb[0].mxu0
    %v2503 = vadd.f32 0.0, %v2502
    %v2504 = vpop.f32.mrb[0].mxu0
    %2505 = vmatprep.mubr.f32.mxu0 0.0
    %2506 = vmatmul.mubr.f32.gmra.mrb[0].mxu0 %v1408
    %v2507 = vpop.f32.mrb[0].mxu0
    %v2508 = vadd.f32 0.0, %v2507
    %v2509 = vpop.f32.mrb[0].mxu0
    %2510 = vmatprep.mubr.f32.mxu0 0.0
    %2511 = vmatmul.mubr.f32.gmra.mrb[0].mxu0 %v1411
    %v2512 = vpop.f32.mrb[0].mxu0
    %v2513 = vadd.f32 0.0, %v2512
    %v2514 = vpop.f32.mrb[0].mxu0
    %2515 = vmatprep.mubr.f32.mxu0 0.0
    %2516 = vmatmul.mubr.f32.gmra.mrb[0].mxu0 %v1414
    %v2517 = vpop.f32.mrb[0].mxu0
    %v2518 = vadd.f32 0.0, %v2517
    %v2519 = vpop.f32.mrb[0].mxu0
    %2520 = vmatprep.mubr.f32.mxu0 0.0
    %2521 = vmatmul.mubr.f32.gmra.mrb[0].mxu0 %v1417
    %v2522 = vpop.f32.mrb[0].mxu0
    %v2523 = vadd.f32 0.0, %v2522
    %v2524 = vpop.f32.mrb[0].mxu0
    %2525 = vmatprep.mubr.f32.mxu0 0.0
    %2526 = vmatmul.mubr.f32.gmra.mrb[0].mxu0 %v1420
    %v2527 = vpop.f32.mrb[0].mxu0
    %v2528 = vadd.f32 0.0, %v2527
    %v2529 = vpop.f32.mrb[0].mxu0
    %2530 = vmatprep.mubr.f32.mxu0 0.0
    %2531 = vmatmul.mubr.f32.gmra.mrb[0].mxu0 %v1423
    %v2532 = vpop.f32.mrb[0].mxu0
    %v2533 = vadd.f32 0.0, %v2532
    %v2534 = vpop.f32.mrb[0].mxu0
    %2535 = vmatprep.mubr.f32.mxu0 0.0
    %2536 = vmatmul.mubr.f32.gmra.mrb[0].mxu0 %v1426
    %v2537 = vpop.f32.mrb[0].mxu0
    %v2538 = vadd.f32 0.0, %v2537
    %v2539 = vpop.f32.mrb[0].mxu0
    %2540 = vmatprep.mubr.f32.mxu0 0.0
    %2541 = vmatmul.mubr.f32.gmra.mrb[0].mxu0 %v1429
    %v2542 = vpop.f32.mrb[0].mxu0
    %v2543 = vadd.f32 0.0, %v2542
    %v2544 = vpop.f32.mrb[0].mxu0
    %2545 = vmatprep.mubr.f32.mxu0 0.0
    %2546 = vmatmul.mubr.f32.gmra.mrb[0].mxu0 %v1432
    %v2547 = vpop.f32.mrb[0].mxu0
    %v2548 = vadd.f32 0.0, %v2547
    %v2549 = vpop.f32.mrb[0].mxu0
    %2550 = vmatprep.mubr.f32.mxu0 0.0
    %2551 = vmatmul.mubr.f32.gmra.mrb[0].mxu0 %v1435
    %v2552 = vpop.f32.mrb[0].mxu0
    %v2553 = vadd.f32 0.0, %v2552
    %v2554 = vpop.f32.mrb[0].mxu0
    %2555 = vmatprep.mubr.f32.mxu0 0.0
    %2556 = vmatmul.mubr.f32.gmra.mrb[0].mxu0 %v1438
    %v2557 = vpop.f32.mrb[0].mxu0
    %v2558 = vadd.f32 0.0, %v2557
    %v2559 = vpop.f32.mrb[0].mxu0
    %2560 = vmatprep.mubr.f32.mxu0 0.0
    %2561 = vmatmul.mubr.f32.gmra.mrb[0].mxu0 %v1441
    %v2562 = vpop.f32.mrb[0].mxu0
    %v2563 = vadd.f32 0.0, %v2562
    %v2564 = vpop.f32.mrb[0].mxu0
    %2565 = vmatprep.mubr.f32.mxu0 0.0
    %2566 = vmatmul.mubr.f32.gmra.mrb[0].mxu0 %v1444
    %v2567 = vpop.f32.mrb[0].mxu0
    %v2568 = vadd.f32 0.0, %v2567
    %v2569 = vpop.f32.mrb[0].mxu0
    %2570 = vmatprep.mubr.f32.mxu0 0.0
    %2571 = vmatmul.mubr.f32.gmra.mrb[0].mxu0 %v1447
    %v2572 = vpop.f32.mrb[0].mxu0
    %v2573 = vadd.f32 0.0, %v2572
    %v2574 = vpop.f32.mrb[0].mxu0
    %2575 = vmatprep.mubr.f32.mxu0 0.0
    %2576 = vmatmul.mubr.f32.gmra.mrb[0].mxu0 %v1450
    %v2577 = vpop.f32.mrb[0].mxu0
    %v2578 = vadd.f32 0.0, %v2577
    %v2579 = vpop.f32.mrb[0].mxu0
    %2580 = vmatprep.mubr.f32.mxu0 0.0
    %2581 = vmatmul.mubr.f32.gmra.mrb[0].mxu0 %v1453
    %v2582 = vpop.f32.mrb[0].mxu0
    %v2583 = vadd.f32 0.0, %v2582
    %v2584 = vpop.f32.mrb[0].mxu0
    %2585 = vmatprep.mubr.f32.mxu0 0.0
    %2586 = vmatmul.mubr.f32.gmra.mrb[0].mxu0 %v1456
    %v2587 = vpop.f32.mrb[0].mxu0
    %v2588 = vadd.f32 0.0, %v2587
    %v2589 = vpop.f32.mrb[0].mxu0
    %2590 = vmatprep.mubr.f32.mxu0 0.0
    %2591 = vmatmul.mubr.f32.gmra.mrb[0].mxu0 %v1459
    %v2592 = vpop.f32.mrb[0].mxu0
    %v2593 = vadd.f32 0.0, %v2592
    %v2594 = vpop.f32.mrb[0].mxu0
    %2595 = vmatprep.mubr.f32.mxu0 0.0
    %2596 = vmatmul.mubr.f32.gmra.mrb[0].mxu0 %v1462
    %v2597 = vpop.f32.mrb[0].mxu0
    %v2598 = vadd.f32 0.0, %v2597
    %v2599 = vpop.f32.mrb[0].mxu0
    %2600 = vmatprep.mubr.f32.mxu0 0.0
    %2601 = vmatmul.mubr.f32.gmra.mrb[0].mxu0 %v1465
    %v2602 = vpop.f32.mrb[0].mxu0
    %v2603 = vadd.f32 0.0, %v2602
    %v2604 = vpop.f32.mrb[0].mxu0
    %2605 = vmatprep.mubr.f32.mxu0 0.0
    %2606 = vmatmul.mubr.f32.gmra.mrb[0].mxu0 %v1468
    %v2607 = vpop.f32.mrb[0].mxu0
    %v2608 = vadd.f32 0.0, %v2607
    %v2609 = vpop.f32.mrb[0].mxu0
    %2610 = vmatprep.mubr.f32.mxu0 0.0
    %2611 = vmatmul.mubr.f32.gmra.mrb[0].mxu0 %v1471
    %v2612 = vpop.f32.mrb[0].mxu0
    %v2613 = vadd.f32 0.0, %v2612
    %v2614 = vpop.f32.mrb[0].mxu0
    %2615 = vmatprep.mubr.f32.mxu0 0.0
    %2616 = vmatmul.mubr.f32.gmra.mrb[0].mxu0 %v1474
    %v2617 = vpop.f32.mrb[0].mxu0
    %v2618 = vadd.f32 0.0, %v2617
    %v2619 = vpop.f32.mrb[0].mxu0
    %2620 = vmatprep.mubr.f32.mxu0 0.0
    %2621 = vmatmul.mubr.f32.gmra.mrb[0].mxu0 %v1477
    %v2622 = vpop.f32.mrb[0].mxu0
    %v2623 = vadd.f32 0.0, %v2622
    %v2624 = vpop.f32.mrb[0].mxu0
    %2625 = vmatprep.mubr.f32.mxu0 0.0
    %2626 = vmatmul.mubr.f32.gmra.mrb[0].mxu0 %v1480
    %v2627 = vpop.f32.mrb[0].mxu0
    %v2628 = vadd.f32 0.0, %v2627
    %v2629 = vpop.f32.mrb[0].mxu0
    %2630 = vmatprep.mubr.f32.mxu0 0.0
    %2631 = vmatmul.mubr.f32.gmra.mrb[0].mxu0 %v1483
    %v2632 = vpop.f32.mrb[0].mxu0
    %v2633 = vadd.f32 0.0, %v2632
    %v2634 = vpop.f32.mrb[0].mxu0
    %2635 = vmatprep.mubr.f32.mxu0 0.0
    %2636 = vmatmul.mubr.f32.gmra.mrb[0].mxu0 %v1486
    %v2637 = vpop.f32.mrb[0].mxu0
    %v2638 = vadd.f32 0.0, %v2637
    %v2639 = vpop.f32.mrb[0].mxu0
    %2640 = vmatprep.mubr.f32.mxu0 0.0
    %2641 = vmatmul.mubr.f32.gmra.mrb[0].mxu0 %v1489
    %v2642 = vpop.f32.mrb[0].mxu0
    %v2643 = vadd.f32 0.0, %v2642
    %v2644 = vpop.f32.mrb[0].mxu0
    %2645 = vdwg.mxu0
    %v2646 = vmul.f32 %v2328, %v239
    %v2647 = vmul.f32 %v2333, %v240
    %v2648 = vmul.f32 %v2338, %v241
    %v2649 = vmul.f32 %v2343, %v242
    %v2650 = vmul.f32 %v2348, %v243
    %v2651 = vmul.f32 %v2353, %v244
    %v2652 = vmul.f32 %v2358, %v245
    %v2653 = vmul.f32 %v2363, %v246
    %v2654 = vmul.f32 %v2368, %v247
    %v2655 = vmul.f32 %v2373, %v248
    %v2656 = vmul.f32 %v2378, %v249
    %v2657 = vmul.f32 %v2383, %v250
    %v2658 = vmul.f32 %v2388, %v251
    %v2659 = vmul.f32 %v2393, %v252
    %v2660 = vmul.f32 %v2398, %v253
    %v2661 = vmul.f32 %v2403, %v254
    %v2662 = vmul.f32 %v2408, %v255
    %v2663 = vmul.f32 %v2413, %v256
    %v2664 = vmul.f32 %v2418, %v257
    %v2665 = vmul.f32 %v2423, %v258
    %v2666 = vmul.f32 %v2428, %v259
    %v2667 = vmul.f32 %v2433, %v260
    %v2668 = vmul.f32 %v2438, %v261
    %v2669 = vmul.f32 %v2443, %v262
    %v2670 = vmul.f32 %v2448, %v263
    %v2671 = vmul.f32 %v2453, %v264
    %v2672 = vmul.f32 %v2458, %v265
    %v2673 = vmul.f32 %v2463, %v266
    %v2674 = vmul.f32 %v2468, %v267
    %v2675 = vmul.f32 %v2473, %v268
    %v2676 = vmul.f32 %v2478, %v269
    %v2677 = vmul.f32 %v2483, %v270
    %v2678 = vmul.f32 %v2488, %v271
    %v2679 = vmul.f32 %v2493, %v272
    %v2680 = vmul.f32 %v2498, %v273
    %v2681 = vmul.f32 %v2503, %v274
    %v2682 = vmul.f32 %v2508, %v275
    %v2683 = vmul.f32 %v2513, %v276
    %v2684 = vmul.f32 %v2518, %v277
    %v2685 = vmul.f32 %v2523, %v278
    %v2686 = vmul.f32 %v2528, %v279
    %v2687 = vmul.f32 %v2533, %v280
    %v2688 = vmul.f32 %v2538, %v281
    %v2689 = vmul.f32 %v2543, %v282
    %v2690 = vmul.f32 %v2548, %v283
    %v2691 = vmul.f32 %v2553, %v284
    %v2692 = vmul.f32 %v2558, %v285
    %v2693 = vmul.f32 %v2563, %v286
    %v2694 = vmul.f32 %v2568, %v287
    %v2695 = vmul.f32 %v2573, %v288
    %v2696 = vmul.f32 %v2578, %v289
    %v2697 = vmul.f32 %v2583, %v290
    %v2698 = vmul.f32 %v2588, %v291
    %v2699 = vmul.f32 %v2593, %v292
    %v2700 = vmul.f32 %v2598, %v293
    %v2701 = vmul.f32 %v2603, %v294
    %v2702 = vmul.f32 %v2608, %v295
    %v2703 = vmul.f32 %v2613, %v296
    %v2704 = vmul.f32 %v2618, %v297
    %v2705 = vmul.f32 %v2623, %v298
    %v2706 = vmul.f32 %v2628, %v299
    %v2707 = vmul.f32 %v2633, %v300
    %v2708 = vmul.f32 %v2638, %v301
    %v2709 = vmul.f32 %v2643, %v302
    %vm2710 = vcmask 130048
    %v2711 = vsel %vm2710, %v2646, 0.0
    %2712 = vadd.xlane.f32.xlu0 %v2711
    %v2713 = vpop.xlane.xlu0 %2712
    %v2714 = vsel %vm2710, %v2647, 0.0
    %2715 = vadd.xlane.f32.xlu0 %v2714
    %v2716 = vpop.xlane.xlu0 %2715
    %v2717 = vsel %vm2710, %v2648, 0.0
    %2718 = vadd.xlane.f32.xlu0 %v2717
    %v2719 = vpop.xlane.xlu0 %2718
    %v2720 = vsel %vm2710, %v2649, 0.0
    %2721 = vadd.xlane.f32.xlu0 %v2720
    %v2722 = vpop.xlane.xlu0 %2721
    %v2723 = vsel %vm2710, %v2650, 0.0
    %2724 = vadd.xlane.f32.xlu0 %v2723
    %v2725 = vpop.xlane.xlu0 %2724
    %v2726 = vsel %vm2710, %v2651, 0.0
    %2727 = vadd.xlane.f32.xlu0 %v2726
    %v2728 = vpop.xlane.xlu0 %2727
    %v2729 = vsel %vm2710, %v2652, 0.0
    %2730 = vadd.xlane.f32.xlu0 %v2729
    %v2731 = vpop.xlane.xlu0 %2730
    %v2732 = vsel %vm2710, %v2653, 0.0
    %2733 = vadd.xlane.f32.xlu0 %v2732
    %v2734 = vpop.xlane.xlu0 %2733
    %v2735 = vsel %vm2710, %v2654, 0.0
    %2736 = vadd.xlane.f32.xlu0 %v2735
    %v2737 = vpop.xlane.xlu0 %2736
    %v2738 = vsel %vm2710, %v2655, 0.0
    %2739 = vadd.xlane.f32.xlu0 %v2738
    %v2740 = vpop.xlane.xlu0 %2739
    %v2741 = vsel %vm2710, %v2656, 0.0
    %2742 = vadd.xlane.f32.xlu0 %v2741
    %v2743 = vpop.xlane.xlu0 %2742
    %v2744 = vsel %vm2710, %v2657, 0.0
    %2745 = vadd.xlane.f32.xlu0 %v2744
    %v2746 = vpop.xlane.xlu0 %2745
    %v2747 = vsel %vm2710, %v2658, 0.0
    %2748 = vadd.xlane.f32.xlu0 %v2747
    %v2749 = vpop.xlane.xlu0 %2748
    %v2750 = vsel %vm2710, %v2659, 0.0
    %2751 = vadd.xlane.f32.xlu0 %v2750
    %v2752 = vpop.xlane.xlu0 %2751
    %v2753 = vsel %vm2710, %v2660, 0.0
    %2754 = vadd.xlane.f32.xlu0 %v2753
    %v2755 = vpop.xlane.xlu0 %2754
    %v2756 = vsel %vm2710, %v2661, 0.0
    %2757 = vadd.xlane.f32.xlu0 %v2756
    %v2758 = vpop.xlane.xlu0 %2757
    %v2759 = vsel %vm2710, %v2662, 0.0
    %2760 = vadd.xlane.f32.xlu0 %v2759
    %v2761 = vpop.xlane.xlu0 %2760
    %v2762 = vsel %vm2710, %v2663, 0.0
    %2763 = vadd.xlane.f32.xlu0 %v2762
    %v2764 = vpop.xlane.xlu0 %2763
    %v2765 = vsel %vm2710, %v2664, 0.0
    %2766 = vadd.xlane.f32.xlu0 %v2765
    %v2767 = vpop.xlane.xlu0 %2766
    %v2768 = vsel %vm2710, %v2665, 0.0
    %2769 = vadd.xlane.f32.xlu0 %v2768
    %v2770 = vpop.xlane.xlu0 %2769
    %v2771 = vsel %vm2710, %v2666, 0.0
    %2772 = vadd.xlane.f32.xlu0 %v2771
    %v2773 = vpop.xlane.xlu0 %2772
    %v2774 = vsel %vm2710, %v2667, 0.0
    %2775 = vadd.xlane.f32.xlu0 %v2774
    %v2776 = vpop.xlane.xlu0 %2775
    %v2777 = vsel %vm2710, %v2668, 0.0
    %2778 = vadd.xlane.f32.xlu0 %v2777
    %v2779 = vpop.xlane.xlu0 %2778
    %v2780 = vsel %vm2710, %v2669, 0.0
    %2781 = vadd.xlane.f32.xlu0 %v2780
    %v2782 = vpop.xlane.xlu0 %2781
    %v2783 = vsel %vm2710, %v2670, 0.0
    %2784 = vadd.xlane.f32.xlu0 %v2783
    %v2785 = vpop.xlane.xlu0 %2784
    %v2786 = vsel %vm2710, %v2671, 0.0
    %2787 = vadd.xlane.f32.xlu0 %v2786
    %v2788 = vpop.xlane.xlu0 %2787
    %v2789 = vsel %vm2710, %v2672, 0.0
    %2790 = vadd.xlane.f32.xlu0 %v2789
    %v2791 = vpop.xlane.xlu0 %2790
    %v2792 = vsel %vm2710, %v2673, 0.0
    %2793 = vadd.xlane.f32.xlu0 %v2792
    %v2794 = vpop.xlane.xlu0 %2793
    %v2795 = vsel %vm2710, %v2674, 0.0
    %2796 = vadd.xlane.f32.xlu0 %v2795
    %v2797 = vpop.xlane.xlu0 %2796
    %v2798 = vsel %vm2710, %v2675, 0.0
    %2799 = vadd.xlane.f32.xlu0 %v2798
    %v2800 = vpop.xlane.xlu0 %2799
    %v2801 = vsel %vm2710, %v2676, 0.0
    %2802 = vadd.xlane.f32.xlu0 %v2801
    %v2803 = vpop.xlane.xlu0 %2802
    %v2804 = vsel %vm2710, %v2677, 0.0
    %2805 = vadd.xlane.f32.xlu0 %v2804
    %v2806 = vpop.xlane.xlu0 %2805
    %v2807 = vsel %vm2710, %v2678, 0.0
    %2808 = vadd.xlane.f32.xlu0 %v2807
    %v2809 = vpop.xlane.xlu0 %2808
    %v2810 = vsel %vm2710, %v2679, 0.0
    %2811 = vadd.xlane.f32.xlu0 %v2810
    %v2812 = vpop.xlane.xlu0 %2811
    %v2813 = vsel %vm2710, %v2680, 0.0
    %2814 = vadd.xlane.f32.xlu0 %v2813
    %v2815 = vpop.xlane.xlu0 %2814
    %v2816 = vsel %vm2710, %v2681, 0.0
    %2817 = vadd.xlane.f32.xlu0 %v2816
    %v2818 = vpop.xlane.xlu0 %2817
    %v2819 = vsel %vm2710, %v2682, 0.0
    %2820 = vadd.xlane.f32.xlu0 %v2819
    %v2821 = vpop.xlane.xlu0 %2820
    %v2822 = vsel %vm2710, %v2683, 0.0
    %2823 = vadd.xlane.f32.xlu0 %v2822
    %v2824 = vpop.xlane.xlu0 %2823
    %v2825 = vsel %vm2710, %v2684, 0.0
    %2826 = vadd.xlane.f32.xlu0 %v2825
    %v2827 = vpop.xlane.xlu0 %2826
    %v2828 = vsel %vm2710, %v2685, 0.0
    %2829 = vadd.xlane.f32.xlu0 %v2828
    %v2830 = vpop.xlane.xlu0 %2829
    %v2831 = vsel %vm2710, %v2686, 0.0
    %2832 = vadd.xlane.f32.xlu0 %v2831
    %v2833 = vpop.xlane.xlu0 %2832
    %v2834 = vsel %vm2710, %v2687, 0.0
    %2835 = vadd.xlane.f32.xlu0 %v2834
    %v2836 = vpop.xlane.xlu0 %2835
    %v2837 = vsel %vm2710, %v2688, 0.0
    %2838 = vadd.xlane.f32.xlu0 %v2837
    %v2839 = vpop.xlane.xlu0 %2838
    %v2840 = vsel %vm2710, %v2689, 0.0
    %2841 = vadd.xlane.f32.xlu0 %v2840
    %v2842 = vpop.xlane.xlu0 %2841
    %v2843 = vsel %vm2710, %v2690, 0.0
    %2844 = vadd.xlane.f32.xlu0 %v2843
    %v2845 = vpop.xlane.xlu0 %2844
    %v2846 = vsel %vm2710, %v2691, 0.0
    %2847 = vadd.xlane.f32.xlu0 %v2846
    %v2848 = vpop.xlane.xlu0 %2847
    %v2849 = vsel %vm2710, %v2692, 0.0
    %2850 = vadd.xlane.f32.xlu0 %v2849
    %v2851 = vpop.xlane.xlu0 %2850
    %v2852 = vsel %vm2710, %v2693, 0.0
    %2853 = vadd.xlane.f32.xlu0 %v2852
    %v2854 = vpop.xlane.xlu0 %2853
    %v2855 = vsel %vm2710, %v2694, 0.0
    %2856 = vadd.xlane.f32.xlu0 %v2855
    %v2857 = vpop.xlane.xlu0 %2856
    %v2858 = vsel %vm2710, %v2695, 0.0
    %2859 = vadd.xlane.f32.xlu0 %v2858
    %v2860 = vpop.xlane.xlu0 %2859
    %v2861 = vsel %vm2710, %v2696, 0.0
    %2862 = vadd.xlane.f32.xlu0 %v2861
    %v2863 = vpop.xlane.xlu0 %2862
    %v2864 = vsel %vm2710, %v2697, 0.0
    %2865 = vadd.xlane.f32.xlu0 %v2864
    %v2866 = vpop.xlane.xlu0 %2865
    %v2867 = vsel %vm2710, %v2698, 0.0
    %2868 = vadd.xlane.f32.xlu0 %v2867
    %v2869 = vpop.xlane.xlu0 %2868
    %v2870 = vsel %vm2710, %v2699, 0.0
    %2871 = vadd.xlane.f32.xlu0 %v2870
    %v2872 = vpop.xlane.xlu0 %2871
    %v2873 = vsel %vm2710, %v2700, 0.0
    %2874 = vadd.xlane.f32.xlu0 %v2873
    %v2875 = vpop.xlane.xlu0 %2874
    %v2876 = vsel %vm2710, %v2701, 0.0
    %2877 = vadd.xlane.f32.xlu0 %v2876
    %v2878 = vpop.xlane.xlu0 %2877
    %v2879 = vsel %vm2710, %v2702, 0.0
    %2880 = vadd.xlane.f32.xlu0 %v2879
    %v2881 = vpop.xlane.xlu0 %2880
    %v2882 = vsel %vm2710, %v2703, 0.0
    %2883 = vadd.xlane.f32.xlu0 %v2882
    %v2884 = vpop.xlane.xlu0 %2883
    %v2885 = vsel %vm2710, %v2704, 0.0
    %2886 = vadd.xlane.f32.xlu0 %v2885
    %v2887 = vpop.xlane.xlu0 %2886
    %v2888 = vsel %vm2710, %v2705, 0.0
    %2889 = vadd.xlane.f32.xlu0 %v2888
    %v2890 = vpop.xlane.xlu0 %2889
    %v2891 = vsel %vm2710, %v2706, 0.0
    %2892 = vadd.xlane.f32.xlu0 %v2891
    %v2893 = vpop.xlane.xlu0 %2892
    %v2894 = vsel %vm2710, %v2707, 0.0
    %2895 = vadd.xlane.f32.xlu0 %v2894
    %v2896 = vpop.xlane.xlu0 %2895
    %v2897 = vsel %vm2710, %v2708, 0.0
    %2898 = vadd.xlane.f32.xlu0 %v2897
    %v2899 = vpop.xlane.xlu0 %2898
    %v2900 = vsel %vm2710, %v2709, 0.0
    %2901 = vadd.xlane.f32.xlu0 %v2900
    %v2902 = vpop.xlane.xlu0 %2901
    %2903 = vmatprep.subr.mxu0 0.0
    %2904 = vmatpush1.msra.mxu0 %v1281
    %2905 = vmatprep.subr.mxu0 0.0
    %2906 = vmatpush1.msra.mxu0 %v1286
    %2907 = vmatprep.subr.mxu0 0.0
    %2908 = vmatpush1.msra.mxu0 %v1291
    %2909 = vmatprep.subr.mxu0 0.0
    %2910 = vmatpush1.msra.mxu0 %v1296
    %2911 = vmatprep.subr.mxu0 0.0
    %2912 = vmatpush1.msra.mxu0 0.0
    %2913 = vmatprep.subr.mxu0 0.0
    %2914 = vmatpush1.msra.mxu0 0.0
    %2915 = vmatprep.subr.mxu0 0.0
    %2916 = vmatpush1.msra.mxu0 0.0
    %2917 = vmatprep.subr.mxu0 0.0
    %2918 = vmatpush1.msra.mxu0 0.0
    %2919 = vmatprep.subr.mxu0 0.0
    %2920 = vmatpush1.msra.mxu0 0.0
    %2921 = vmatprep.subr.mxu0 0.0
    %2922 = vmatpush1.msra.mxu0 0.0
    %2923 = vmatprep.subr.mxu0 0.0
    %2924 = vmatpush1.msra.mxu0 0.0
    %2925 = vmatprep.subr.mxu0 0.0
    %2926 = vmatpush1.msra.mxu0 0.0
    %2927 = vmatprep.subr.mxu0 0.0
    %2928 = vmatpush1.msra.mxu0 0.0
    %2929 = vmatprep.subr.mxu0 0.0
    %2930 = vmatpush1.msra.mxu0 0.0
    %2931 = vmatprep.subr.mxu0 0.0
    %2932 = vmatpush1.msra.mxu0 0.0
    %2933 = vmatprep.subr.mxu0 0.0
    %2934 = vmatpush1.msra.mxu0 0.0
    %2935 = vmatprep.subr.mxu0 0.0
    %2936 = vmatpush1.msra.mxu0 0.0
    %2937 = vmatprep.subr.mxu0 0.0
    %2938 = vmatpush1.msra.mxu0 0.0
    %2939 = vmatprep.subr.mxu0 0.0
    %2940 = vmatpush1.msra.mxu0 0.0
    %2941 = vmatprep.subr.mxu0 0.0
    %2942 = vmatpush1.msra.mxu0 0.0
    %2943 = vmatprep.subr.mxu0 0.0
    %2944 = vmatpush1.msra.mxu0 0.0
    %2945 = vmatprep.subr.mxu0 0.0
    %2946 = vmatpush1.msra.mxu0 0.0
    %2947 = vmatprep.subr.mxu0 0.0
    %2948 = vmatpush1.msra.mxu0 0.0
    %2949 = vmatprep.subr.mxu0 0.0
    %2950 = vmatpush1.msra.mxu0 0.0
    %2951 = vmatprep.subr.mxu0 0.0
    %2952 = vmatpush1.msra.mxu0 0.0
    %2953 = vmatprep.subr.mxu0 0.0
    %2954 = vmatpush1.msra.mxu0 0.0
    %2955 = vmatprep.subr.mxu0 0.0
    %2956 = vmatpush1.msra.mxu0 0.0
    %2957 = vmatprep.subr.mxu0 0.0
    %2958 = vmatpush1.msra.mxu0 0.0
    %2959 = vmatprep.subr.mxu0 0.0
    %2960 = vmatpush1.msra.mxu0 0.0
    %2961 = vmatprep.subr.mxu0 0.0
    %2962 = vmatpush1.msra.mxu0 0.0
    %2963 = vmatprep.subr.mxu0 0.0
    %2964 = vmatpush1.msra.mxu0 0.0
    %2965 = vmatprep.subr.mxu0 0.0
    %2966 = vmatpush1.msra.mxu0 0.0
    %2967 = vmatprep.mubr.f32.mxu0 0.0
    %2968 = vmatmul.mubr.f32.gmra.mrb[0].mxu0 %v1300
    %v2969 = vpop.f32.mrb[0].mxu0
    %v2970 = vadd.f32 0.0, %v2969
    %v2971 = vpop.f32.mrb[0].mxu0
    %2972 = vmatprep.mubr.f32.mxu0 0.0
    %2973 = vmatmul.mubr.f32.gmra.mrb[0].mxu0 %v1303
    %v2974 = vpop.f32.mrb[0].mxu0
    %v2975 = vadd.f32 0.0, %v2974
    %v2976 = vpop.f32.mrb[0].mxu0
    %2977 = vmatprep.mubr.f32.mxu0 0.0
    %2978 = vmatmul.mubr.f32.gmra.mrb[0].mxu0 %v1306
    %v2979 = vpop.f32.mrb[0].mxu0
    %v2980 = vadd.f32 0.0, %v2979
    %v2981 = vpop.f32.mrb[0].mxu0
    %2982 = vmatprep.mubr.f32.mxu0 0.0
    %2983 = vmatmul.mubr.f32.gmra.mrb[0].mxu0 %v1309
    %v2984 = vpop.f32.mrb[0].mxu0
    %v2985 = vadd.f32 0.0, %v2984
    %v2986 = vpop.f32.mrb[0].mxu0
    %2987 = vmatprep.mubr.f32.mxu0 0.0
    %2988 = vmatmul.mubr.f32.gmra.mrb[0].mxu0 %v1312
    %v2989 = vpop.f32.mrb[0].mxu0
    %v2990 = vadd.f32 0.0, %v2989
    %v2991 = vpop.f32.mrb[0].mxu0
    %2992 = vmatprep.mubr.f32.mxu0 0.0
    %2993 = vmatmul.mubr.f32.gmra.mrb[0].mxu0 %v1315
    %v2994 = vpop.f32.mrb[0].mxu0
    %v2995 = vadd.f32 0.0, %v2994
    %v2996 = vpop.f32.mrb[0].mxu0
    %2997 = vmatprep.mubr.f32.mxu0 0.0
    %2998 = vmatmul.mubr.f32.gmra.mrb[0].mxu0 %v1318
    %v2999 = vpop.f32.mrb[0].mxu0
    %v3000 = vadd.f32 0.0, %v2999
    %v3001 = vpop.f32.mrb[0].mxu0
    %3002 = vmatprep.mubr.f32.mxu0 0.0
    %3003 = vmatmul.mubr.f32.gmra.mrb[0].mxu0 %v1321
    %v3004 = vpop.f32.mrb[0].mxu0
    %v3005 = vadd.f32 0.0, %v3004
    %v3006 = vpop.f32.mrb[0].mxu0
    %3007 = vmatprep.mubr.f32.mxu0 0.0
    %3008 = vmatmul.mubr.f32.gmra.mrb[0].mxu0 %v1324
    %v3009 = vpop.f32.mrb[0].mxu0
    %v3010 = vadd.f32 0.0, %v3009
    %v3011 = vpop.f32.mrb[0].mxu0
    %3012 = vmatprep.mubr.f32.mxu0 0.0
    %3013 = vmatmul.mubr.f32.gmra.mrb[0].mxu0 %v1327
    %v3014 = vpop.f32.mrb[0].mxu0
    %v3015 = vadd.f32 0.0, %v3014
    %v3016 = vpop.f32.mrb[0].mxu0
    %3017 = vmatprep.mubr.f32.mxu0 0.0
    %3018 = vmatmul.mubr.f32.gmra.mrb[0].mxu0 %v1330
    %v3019 = vpop.f32.mrb[0].mxu0
    %v3020 = vadd.f32 0.0, %v3019
    %v3021 = vpop.f32.mrb[0].mxu0
    %3022 = vmatprep.mubr.f32.mxu0 0.0
    %3023 = vmatmul.mubr.f32.gmra.mrb[0].mxu0 %v1333
    %v3024 = vpop.f32.mrb[0].mxu0
    %v3025 = vadd.f32 0.0, %v3024
    %v3026 = vpop.f32.mrb[0].mxu0
    %3027 = vmatprep.mubr.f32.mxu0 0.0
    %3028 = vmatmul.mubr.f32.gmra.mrb[0].mxu0 %v1336
    %v3029 = vpop.f32.mrb[0].mxu0
    %v3030 = vadd.f32 0.0, %v3029
    %v3031 = vpop.f32.mrb[0].mxu0
    %3032 = vmatprep.mubr.f32.mxu0 0.0
    %3033 = vmatmul.mubr.f32.gmra.mrb[0].mxu0 %v1339
    %v3034 = vpop.f32.mrb[0].mxu0
    %v3035 = vadd.f32 0.0, %v3034
    %v3036 = vpop.f32.mrb[0].mxu0
    %3037 = vmatprep.mubr.f32.mxu0 0.0
    %3038 = vmatmul.mubr.f32.gmra.mrb[0].mxu0 %v1342
    %v3039 = vpop.f32.mrb[0].mxu0
    %v3040 = vadd.f32 0.0, %v3039
    %v3041 = vpop.f32.mrb[0].mxu0
    %3042 = vmatprep.mubr.f32.mxu0 0.0
    %3043 = vmatmul.mubr.f32.gmra.mrb[0].mxu0 %v1345
    %v3044 = vpop.f32.mrb[0].mxu0
    %v3045 = vadd.f32 0.0, %v3044
    %v3046 = vpop.f32.mrb[0].mxu0
    %3047 = vmatprep.mubr.f32.mxu0 0.0
    %3048 = vmatmul.mubr.f32.gmra.mrb[0].mxu0 %v1348
    %v3049 = vpop.f32.mrb[0].mxu0
    %v3050 = vadd.f32 0.0, %v3049
    %v3051 = vpop.f32.mrb[0].mxu0
    %3052 = vmatprep.mubr.f32.mxu0 0.0
    %3053 = vmatmul.mubr.f32.gmra.mrb[0].mxu0 %v1351
    %v3054 = vpop.f32.mrb[0].mxu0
    %v3055 = vadd.f32 0.0, %v3054
    %v3056 = vpop.f32.mrb[0].mxu0
    %3057 = vmatprep.mubr.f32.mxu0 0.0
    %3058 = vmatmul.mubr.f32.gmra.mrb[0].mxu0 %v1354
    %v3059 = vpop.f32.mrb[0].mxu0
    %v3060 = vadd.f32 0.0, %v3059
    %v3061 = vpop.f32.mrb[0].mxu0
    %3062 = vmatprep.mubr.f32.mxu0 0.0
    %3063 = vmatmul.mubr.f32.gmra.mrb[0].mxu0 %v1357
    %v3064 = vpop.f32.mrb[0].mxu0
    %v3065 = vadd.f32 0.0, %v3064
    %v3066 = vpop.f32.mrb[0].mxu0
    %3067 = vmatprep.mubr.f32.mxu0 0.0
    %3068 = vmatmul.mubr.f32.gmra.mrb[0].mxu0 %v1360
    %v3069 = vpop.f32.mrb[0].mxu0
    %v3070 = vadd.f32 0.0, %v3069
    %v3071 = vpop.f32.mrb[0].mxu0
    %3072 = vmatprep.mubr.f32.mxu0 0.0
    %3073 = vmatmul.mubr.f32.gmra.mrb[0].mxu0 %v1363
    %v3074 = vpop.f32.mrb[0].mxu0
    %v3075 = vadd.f32 0.0, %v3074
    %v3076 = vpop.f32.mrb[0].mxu0
    %3077 = vmatprep.mubr.f32.mxu0 0.0
    %3078 = vmatmul.mubr.f32.gmra.mrb[0].mxu0 %v1366
    %v3079 = vpop.f32.mrb[0].mxu0
    %v3080 = vadd.f32 0.0, %v3079
    %v3081 = vpop.f32.mrb[0].mxu0
    %3082 = vmatprep.mubr.f32.mxu0 0.0
    %3083 = vmatmul.mubr.f32.gmra.mrb[0].mxu0 %v1369
    %v3084 = vpop.f32.mrb[0].mxu0
    %v3085 = vadd.f32 0.0, %v3084
    %v3086 = vpop.f32.mrb[0].mxu0
    %3087 = vmatprep.mubr.f32.mxu0 0.0
    %3088 = vmatmul.mubr.f32.gmra.mrb[0].mxu0 %v1372
    %v3089 = vpop.f32.mrb[0].mxu0
    %v3090 = vadd.f32 0.0, %v3089
    %v3091 = vpop.f32.mrb[0].mxu0
    %3092 = vmatprep.mubr.f32.mxu0 0.0
    %3093 = vmatmul.mubr.f32.gmra.mrb[0].mxu0 %v1375
    %v3094 = vpop.f32.mrb[0].mxu0
    %v3095 = vadd.f32 0.0, %v3094
    %v3096 = vpop.f32.mrb[0].mxu0
    %3097 = vmatprep.mubr.f32.mxu0 0.0
    %3098 = vmatmul.mubr.f32.gmra.mrb[0].mxu0 %v1378
    %v3099 = vpop.f32.mrb[0].mxu0
    %v3100 = vadd.f32 0.0, %v3099
    %v3101 = vpop.f32.mrb[0].mxu0
    %3102 = vmatprep.mubr.f32.mxu0 0.0
    %3103 = vmatmul.mubr.f32.gmra.mrb[0].mxu0 %v1381
    %v3104 = vpop.f32.mrb[0].mxu0
    %v3105 = vadd.f32 0.0, %v3104
    %v3106 = vpop.f32.mrb[0].mxu0
    %3107 = vmatprep.mubr.f32.mxu0 0.0
    %3108 = vmatmul.mubr.f32.gmra.mrb[0].mxu0 %v1384
    %v3109 = vpop.f32.mrb[0].mxu0
    %v3110 = vadd.f32 0.0, %v3109
    %v3111 = vpop.f32.mrb[0].mxu0
    %3112 = vmatprep.mubr.f32.mxu0 0.0
    %3113 = vmatmul.mubr.f32.gmra.mrb[0].mxu0 %v1387
    %v3114 = vpop.f32.mrb[0].mxu0
    %v3115 = vadd.f32 0.0, %v3114
    %v3116 = vpop.f32.mrb[0].mxu0
    %3117 = vmatprep.mubr.f32.mxu0 0.0
    %3118 = vmatmul.mubr.f32.gmra.mrb[0].mxu0 %v1390
    %v3119 = vpop.f32.mrb[0].mxu0
    %v3120 = vadd.f32 0.0, %v3119
    %v3121 = vpop.f32.mrb[0].mxu0
    %3122 = vmatprep.mubr.f32.mxu0 0.0
    %3123 = vmatmul.mubr.f32.gmra.mrb[0].mxu0 %v1393
    %v3124 = vpop.f32.mrb[0].mxu0
    %v3125 = vadd.f32 0.0, %v3124
    %v3126 = vpop.f32.mrb[0].mxu0
    %3127 = vmatprep.mubr.f32.mxu0 0.0
    %3128 = vmatmul.mubr.f32.gmra.mrb[0].mxu0 %v1396
    %v3129 = vpop.f32.mrb[0].mxu0
    %v3130 = vadd.f32 0.0, %v3129
    %v3131 = vpop.f32.mrb[0].mxu0
    %3132 = vmatprep.mubr.f32.mxu0 0.0
    %3133 = vmatmul.mubr.f32.gmra.mrb[0].mxu0 %v1399
    %v3134 = vpop.f32.mrb[0].mxu0
    %v3135 = vadd.f32 0.0, %v3134
    %v3136 = vpop.f32.mrb[0].mxu0
    %3137 = vmatprep.mubr.f32.mxu0 0.0
    %3138 = vmatmul.mubr.f32.gmra.mrb[0].mxu0 %v1402
    %v3139 = vpop.f32.mrb[0].mxu0
    %v3140 = vadd.f32 0.0, %v3139
    %v3141 = vpop.f32.mrb[0].mxu0
    %3142 = vmatprep.mubr.f32.mxu0 0.0
    %3143 = vmatmul.mubr.f32.gmra.mrb[0].mxu0 %v1405
    %v3144 = vpop.f32.mrb[0].mxu0
    %v3145 = vadd.f32 0.0, %v3144
    %v3146 = vpop.f32.mrb[0].mxu0
    %3147 = vmatprep.mubr.f32.mxu0 0.0
    %3148 = vmatmul.mubr.f32.gmra.mrb[0].mxu0 %v1408
    %v3149 = vpop.f32.mrb[0].mxu0
    %v3150 = vadd.f32 0.0, %v3149
    %v3151 = vpop.f32.mrb[0].mxu0
    %3152 = vmatprep.mubr.f32.mxu0 0.0
    %3153 = vmatmul.mubr.f32.gmra.mrb[0].mxu0 %v1411
    %v3154 = vpop.f32.mrb[0].mxu0
    %v3155 = vadd.f32 0.0, %v3154
    %v3156 = vpop.f32.mrb[0].mxu0
    %3157 = vmatprep.mubr.f32.mxu0 0.0
    %3158 = vmatmul.mubr.f32.gmra.mrb[0].mxu0 %v1414
    %v3159 = vpop.f32.mrb[0].mxu0
    %v3160 = vadd.f32 0.0, %v3159
    %v3161 = vpop.f32.mrb[0].mxu0
    %3162 = vmatprep.mubr.f32.mxu0 0.0
    %3163 = vmatmul.mubr.f32.gmra.mrb[0].mxu0 %v1417
    %v3164 = vpop.f32.mrb[0].mxu0
    %v3165 = vadd.f32 0.0, %v3164
    %v3166 = vpop.f32.mrb[0].mxu0
    %3167 = vmatprep.mubr.f32.mxu0 0.0
    %3168 = vmatmul.mubr.f32.gmra.mrb[0].mxu0 %v1420
    %v3169 = vpop.f32.mrb[0].mxu0
    %v3170 = vadd.f32 0.0, %v3169
    %v3171 = vpop.f32.mrb[0].mxu0
    %3172 = vmatprep.mubr.f32.mxu0 0.0
    %3173 = vmatmul.mubr.f32.gmra.mrb[0].mxu0 %v1423
    %v3174 = vpop.f32.mrb[0].mxu0
    %v3175 = vadd.f32 0.0, %v3174
    %v3176 = vpop.f32.mrb[0].mxu0
    %3177 = vmatprep.mubr.f32.mxu0 0.0
    %3178 = vmatmul.mubr.f32.gmra.mrb[0].mxu0 %v1426
    %v3179 = vpop.f32.mrb[0].mxu0
    %v3180 = vadd.f32 0.0, %v3179
    %v3181 = vpop.f32.mrb[0].mxu0
    %3182 = vmatprep.mubr.f32.mxu0 0.0
    %3183 = vmatmul.mubr.f32.gmra.mrb[0].mxu0 %v1429
    %v3184 = vpop.f32.mrb[0].mxu0
    %v3185 = vadd.f32 0.0, %v3184
    %v3186 = vpop.f32.mrb[0].mxu0
    %3187 = vmatprep.mubr.f32.mxu0 0.0
    %3188 = vmatmul.mubr.f32.gmra.mrb[0].mxu0 %v1432
    %v3189 = vpop.f32.mrb[0].mxu0
    %v3190 = vadd.f32 0.0, %v3189
    %v3191 = vpop.f32.mrb[0].mxu0
    %3192 = vmatprep.mubr.f32.mxu0 0.0
    %3193 = vmatmul.mubr.f32.gmra.mrb[0].mxu0 %v1435
    %v3194 = vpop.f32.mrb[0].mxu0
    %v3195 = vadd.f32 0.0, %v3194
    %v3196 = vpop.f32.mrb[0].mxu0
    %3197 = vmatprep.mubr.f32.mxu0 0.0
    %3198 = vmatmul.mubr.f32.gmra.mrb[0].mxu0 %v1438
    %v3199 = vpop.f32.mrb[0].mxu0
    %v3200 = vadd.f32 0.0, %v3199
    %v3201 = vpop.f32.mrb[0].mxu0
    %3202 = vmatprep.mubr.f32.mxu0 0.0
    %3203 = vmatmul.mubr.f32.gmra.mrb[0].mxu0 %v1441
    %v3204 = vpop.f32.mrb[0].mxu0
    %v3205 = vadd.f32 0.0, %v3204
    %v3206 = vpop.f32.mrb[0].mxu0
    %3207 = vmatprep.mubr.f32.mxu0 0.0
    %3208 = vmatmul.mubr.f32.gmra.mrb[0].mxu0 %v1444
    %v3209 = vpop.f32.mrb[0].mxu0
    %v3210 = vadd.f32 0.0, %v3209
    %v3211 = vpop.f32.mrb[0].mxu0
    %3212 = vmatprep.mubr.f32.mxu0 0.0
    %3213 = vmatmul.mubr.f32.gmra.mrb[0].mxu0 %v1447
    %v3214 = vpop.f32.mrb[0].mxu0
    %v3215 = vadd.f32 0.0, %v3214
    %v3216 = vpop.f32.mrb[0].mxu0
    %3217 = vmatprep.mubr.f32.mxu0 0.0
    %3218 = vmatmul.mubr.f32.gmra.mrb[0].mxu0 %v1450
    %v3219 = vpop.f32.mrb[0].mxu0
    %v3220 = vadd.f32 0.0, %v3219
    %v3221 = vpop.f32.mrb[0].mxu0
    %3222 = vmatprep.mubr.f32.mxu0 0.0
    %3223 = vmatmul.mubr.f32.gmra.mrb[0].mxu0 %v1453
    %v3224 = vpop.f32.mrb[0].mxu0
    %v3225 = vadd.f32 0.0, %v3224
    %v3226 = vpop.f32.mrb[0].mxu0
    %3227 = vmatprep.mubr.f32.mxu0 0.0
    %3228 = vmatmul.mubr.f32.gmra.mrb[0].mxu0 %v1456
    %v3229 = vpop.f32.mrb[0].mxu0
    %v3230 = vadd.f32 0.0, %v3229
    %v3231 = vpop.f32.mrb[0].mxu0
    %3232 = vmatprep.mubr.f32.mxu0 0.0
    %3233 = vmatmul.mubr.f32.gmra.mrb[0].mxu0 %v1459
    %v3234 = vpop.f32.mrb[0].mxu0
    %v3235 = vadd.f32 0.0, %v3234
    %v3236 = vpop.f32.mrb[0].mxu0
    %3237 = vmatprep.mubr.f32.mxu0 0.0
    %3238 = vmatmul.mubr.f32.gmra.mrb[0].mxu0 %v1462
    %v3239 = vpop.f32.mrb[0].mxu0
    %v3240 = vadd.f32 0.0, %v3239
    %v3241 = vpop.f32.mrb[0].mxu0
    %3242 = vmatprep.mubr.f32.mxu0 0.0
    %3243 = vmatmul.mubr.f32.gmra.mrb[0].mxu0 %v1465
    %v3244 = vpop.f32.mrb[0].mxu0
    %v3245 = vadd.f32 0.0, %v3244
    %v3246 = vpop.f32.mrb[0].mxu0
    %3247 = vmatprep.mubr.f32.mxu0 0.0
    %3248 = vmatmul.mubr.f32.gmra.mrb[0].mxu0 %v1468
    %v3249 = vpop.f32.mrb[0].mxu0
    %v3250 = vadd.f32 0.0, %v3249
    %v3251 = vpop.f32.mrb[0].mxu0
    %3252 = vmatprep.mubr.f32.mxu0 0.0
    %3253 = vmatmul.mubr.f32.gmra.mrb[0].mxu0 %v1471
    %v3254 = vpop.f32.mrb[0].mxu0
    %v3255 = vadd.f32 0.0, %v3254
    %v3256 = vpop.f32.mrb[0].mxu0
    %3257 = vmatprep.mubr.f32.mxu0 0.0
    %3258 = vmatmul.mubr.f32.gmra.mrb[0].mxu0 %v1474
    %v3259 = vpop.f32.mrb[0].mxu0
    %v3260 = vadd.f32 0.0, %v3259
    %v3261 = vpop.f32.mrb[0].mxu0
    %3262 = vmatprep.mubr.f32.mxu0 0.0
    %3263 = vmatmul.mubr.f32.gmra.mrb[0].mxu0 %v1477
    %v3264 = vpop.f32.mrb[0].mxu0
    %v3265 = vadd.f32 0.0, %v3264
    %v3266 = vpop.f32.mrb[0].mxu0
    %3267 = vmatprep.mubr.f32.mxu0 0.0
    %3268 = vmatmul.mubr.f32.gmra.mrb[0].mxu0 %v1480
    %v3269 = vpop.f32.mrb[0].mxu0
    %v3270 = vadd.f32 0.0, %v3269
    %v3271 = vpop.f32.mrb[0].mxu0
    %3272 = vmatprep.mubr.f32.mxu0 0.0
    %3273 = vmatmul.mubr.f32.gmra.mrb[0].mxu0 %v1483
    %v3274 = vpop.f32.mrb[0].mxu0
    %v3275 = vadd.f32 0.0, %v3274
    %v3276 = vpop.f32.mrb[0].mxu0
    %3277 = vmatprep.mubr.f32.mxu0 0.0
    %3278 = vmatmul.mubr.f32.gmra.mrb[0].mxu0 %v1486
    %v3279 = vpop.f32.mrb[0].mxu0
    %v3280 = vadd.f32 0.0, %v3279
    %v3281 = vpop.f32.mrb[0].mxu0
    %3282 = vmatprep.mubr.f32.mxu0 0.0
    %3283 = vmatmul.mubr.f32.gmra.mrb[0].mxu0 %v1489
    %v3284 = vpop.f32.mrb[0].mxu0
    %v3285 = vadd.f32 0.0, %v3284
    %v3286 = vpop.f32.mrb[0].mxu0
    %3287 = vdwg.mxu0
    %v3288 = vmul.f32 %v2970, %v239
    %v3289 = vmul.f32 %v2975, %v240
    %v3290 = vmul.f32 %v2980, %v241
    %v3291 = vmul.f32 %v2985, %v242
    %v3292 = vmul.f32 %v2990, %v243
    %v3293 = vmul.f32 %v2995, %v244
    %v3294 = vmul.f32 %v3000, %v245
    %v3295 = vmul.f32 %v3005, %v246
    %v3296 = vmul.f32 %v3010, %v247
    %v3297 = vmul.f32 %v3015, %v248
    %v3298 = vmul.f32 %v3020, %v249
    %v3299 = vmul.f32 %v3025, %v250
    %v3300 = vmul.f32 %v3030, %v251
    %v3301 = vmul.f32 %v3035, %v252
    %v3302 = vmul.f32 %v3040, %v253
    %v3303 = vmul.f32 %v3045, %v254
    %v3304 = vmul.f32 %v3050, %v255
    %v3305 = vmul.f32 %v3055, %v256
    %v3306 = vmul.f32 %v3060, %v257
    %v3307 = vmul.f32 %v3065, %v258
    %v3308 = vmul.f32 %v3070, %v259
    %v3309 = vmul.f32 %v3075, %v260
    %v3310 = vmul.f32 %v3080, %v261
    %v3311 = vmul.f32 %v3085, %v262
    %v3312 = vmul.f32 %v3090, %v263
    %v3313 = vmul.f32 %v3095, %v264
    %v3314 = vmul.f32 %v3100, %v265
    %v3315 = vmul.f32 %v3105, %v266
    %v3316 = vmul.f32 %v3110, %v267
    %v3317 = vmul.f32 %v3115, %v268
    %v3318 = vmul.f32 %v3120, %v269
    %v3319 = vmul.f32 %v3125, %v270
    %v3320 = vmul.f32 %v3130, %v271
    %v3321 = vmul.f32 %v3135, %v272
    %v3322 = vmul.f32 %v3140, %v273
    %v3323 = vmul.f32 %v3145, %v274
    %v3324 = vmul.f32 %v3150, %v275
    %v3325 = vmul.f32 %v3155, %v276
    %v3326 = vmul.f32 %v3160, %v277
    %v3327 = vmul.f32 %v3165, %v278
    %v3328 = vmul.f32 %v3170, %v279
    %v3329 = vmul.f32 %v3175, %v280
    %v3330 = vmul.f32 %v3180, %v281
    %v3331 = vmul.f32 %v3185, %v282
    %v3332 = vmul.f32 %v3190, %v283
    %v3333 = vmul.f32 %v3195, %v284
    %v3334 = vmul.f32 %v3200, %v285
    %v3335 = vmul.f32 %v3205, %v286
    %v3336 = vmul.f32 %v3210, %v287
    %v3337 = vmul.f32 %v3215, %v288
    %v3338 = vmul.f32 %v3220, %v289
    %v3339 = vmul.f32 %v3225, %v290
    %v3340 = vmul.f32 %v3230, %v291
    %v3341 = vmul.f32 %v3235, %v292
    %v3342 = vmul.f32 %v3240, %v293
    %v3343 = vmul.f32 %v3245, %v294
    %v3344 = vmul.f32 %v3250, %v295
    %v3345 = vmul.f32 %v3255, %v296
    %v3346 = vmul.f32 %v3260, %v297
    %v3347 = vmul.f32 %v3265, %v298
    %v3348 = vmul.f32 %v3270, %v299
    %v3349 = vmul.f32 %v3275, %v300
    %v3350 = vmul.f32 %v3280, %v301
    %v3351 = vmul.f32 %v3285, %v302
    %v3352 = vsel %vm2710, %v3288, 0.0
    %3353 = vadd.xlane.f32.xlu0 %v3352
    %v3354 = vpop.xlane.xlu0 %3353
    %v3355 = vsel %vm2710, %v3289, 0.0
    %3356 = vadd.xlane.f32.xlu0 %v3355
    %v3357 = vpop.xlane.xlu0 %3356
    %v3358 = vsel %vm2710, %v3290, 0.0
    %3359 = vadd.xlane.f32.xlu0 %v3358
    %v3360 = vpop.xlane.xlu0 %3359
    %v3361 = vsel %vm2710, %v3291, 0.0
    %3362 = vadd.xlane.f32.xlu0 %v3361
    %v3363 = vpop.xlane.xlu0 %3362
    %v3364 = vsel %vm2710, %v3292, 0.0
    %3365 = vadd.xlane.f32.xlu0 %v3364
    %v3366 = vpop.xlane.xlu0 %3365
    %v3367 = vsel %vm2710, %v3293, 0.0
    %3368 = vadd.xlane.f32.xlu0 %v3367
    %v3369 = vpop.xlane.xlu0 %3368
    %v3370 = vsel %vm2710, %v3294, 0.0
    %3371 = vadd.xlane.f32.xlu0 %v3370
    %v3372 = vpop.xlane.xlu0 %3371
    %v3373 = vsel %vm2710, %v3295, 0.0
    %3374 = vadd.xlane.f32.xlu0 %v3373
    %v3375 = vpop.xlane.xlu0 %3374
    %v3376 = vsel %vm2710, %v3296, 0.0
    %3377 = vadd.xlane.f32.xlu0 %v3376
    %v3378 = vpop.xlane.xlu0 %3377
    %v3379 = vsel %vm2710, %v3297, 0.0
    %3380 = vadd.xlane.f32.xlu0 %v3379
    %v3381 = vpop.xlane.xlu0 %3380
    %v3382 = vsel %vm2710, %v3298, 0.0
    %3383 = vadd.xlane.f32.xlu0 %v3382
    %v3384 = vpop.xlane.xlu0 %3383
    %v3385 = vsel %vm2710, %v3299, 0.0
    %3386 = vadd.xlane.f32.xlu0 %v3385
    %v3387 = vpop.xlane.xlu0 %3386
    %v3388 = vsel %vm2710, %v3300, 0.0
    %3389 = vadd.xlane.f32.xlu0 %v3388
    %v3390 = vpop.xlane.xlu0 %3389
    %v3391 = vsel %vm2710, %v3301, 0.0
    %3392 = vadd.xlane.f32.xlu0 %v3391
    %v3393 = vpop.xlane.xlu0 %3392
    %v3394 = vsel %vm2710, %v3302, 0.0
    %3395 = vadd.xlane.f32.xlu0 %v3394
    %v3396 = vpop.xlane.xlu0 %3395
    %v3397 = vsel %vm2710, %v3303, 0.0
    %3398 = vadd.xlane.f32.xlu0 %v3397
    %v3399 = vpop.xlane.xlu0 %3398
    %v3400 = vsel %vm2710, %v3304, 0.0
    %3401 = vadd.xlane.f32.xlu0 %v3400
    %v3402 = vpop.xlane.xlu0 %3401
    %v3403 = vsel %vm2710, %v3305, 0.0
    %3404 = vadd.xlane.f32.xlu0 %v3403
    %v3405 = vpop.xlane.xlu0 %3404
    %v3406 = vsel %vm2710, %v3306, 0.0
    %3407 = vadd.xlane.f32.xlu0 %v3406
    %v3408 = vpop.xlane.xlu0 %3407
    %v3409 = vsel %vm2710, %v3307, 0.0
    %3410 = vadd.xlane.f32.xlu0 %v3409
    %v3411 = vpop.xlane.xlu0 %3410
    %v3412 = vsel %vm2710, %v3308, 0.0
    %3413 = vadd.xlane.f32.xlu0 %v3412
    %v3414 = vpop.xlane.xlu0 %3413
    %v3415 = vsel %vm2710, %v3309, 0.0
    %3416 = vadd.xlane.f32.xlu0 %v3415
    %v3417 = vpop.xlane.xlu0 %3416
    %v3418 = vsel %vm2710, %v3310, 0.0
    %3419 = vadd.xlane.f32.xlu0 %v3418
    %v3420 = vpop.xlane.xlu0 %3419
    %v3421 = vsel %vm2710, %v3311, 0.0
    %3422 = vadd.xlane.f32.xlu0 %v3421
    %v3423 = vpop.xlane.xlu0 %3422
    %v3424 = vsel %vm2710, %v3312, 0.0
    %3425 = vadd.xlane.f32.xlu0 %v3424
    %v3426 = vpop.xlane.xlu0 %3425
    %v3427 = vsel %vm2710, %v3313, 0.0
    %3428 = vadd.xlane.f32.xlu0 %v3427
    %v3429 = vpop.xlane.xlu0 %3428
    %v3430 = vsel %vm2710, %v3314, 0.0
    %3431 = vadd.xlane.f32.xlu0 %v3430
    %v3432 = vpop.xlane.xlu0 %3431
    %v3433 = vsel %vm2710, %v3315, 0.0
    %3434 = vadd.xlane.f32.xlu0 %v3433
    %v3435 = vpop.xlane.xlu0 %3434
    %v3436 = vsel %vm2710, %v3316, 0.0
    %3437 = vadd.xlane.f32.xlu0 %v3436
    %v3438 = vpop.xlane.xlu0 %3437
    %v3439 = vsel %vm2710, %v3317, 0.0
    %3440 = vadd.xlane.f32.xlu0 %v3439
    %v3441 = vpop.xlane.xlu0 %3440
    %v3442 = vsel %vm2710, %v3318, 0.0
    %3443 = vadd.xlane.f32.xlu0 %v3442
    %v3444 = vpop.xlane.xlu0 %3443
    %v3445 = vsel %vm2710, %v3319, 0.0
    %3446 = vadd.xlane.f32.xlu0 %v3445
    %v3447 = vpop.xlane.xlu0 %3446
    %v3448 = vsel %vm2710, %v3320, 0.0
    %3449 = vadd.xlane.f32.xlu0 %v3448
    %v3450 = vpop.xlane.xlu0 %3449
    %v3451 = vsel %vm2710, %v3321, 0.0
    %3452 = vadd.xlane.f32.xlu0 %v3451
    %v3453 = vpop.xlane.xlu0 %3452
    %v3454 = vsel %vm2710, %v3322, 0.0
    %3455 = vadd.xlane.f32.xlu0 %v3454
    %v3456 = vpop.xlane.xlu0 %3455
    %v3457 = vsel %vm2710, %v3323, 0.0
    %3458 = vadd.xlane.f32.xlu0 %v3457
    %v3459 = vpop.xlane.xlu0 %3458
    %v3460 = vsel %vm2710, %v3324, 0.0
    %3461 = vadd.xlane.f32.xlu0 %v3460
    %v3462 = vpop.xlane.xlu0 %3461
    %v3463 = vsel %vm2710, %v3325, 0.0
    %3464 = vadd.xlane.f32.xlu0 %v3463
    %v3465 = vpop.xlane.xlu0 %3464
    %v3466 = vsel %vm2710, %v3326, 0.0
    %3467 = vadd.xlane.f32.xlu0 %v3466
    %v3468 = vpop.xlane.xlu0 %3467
    %v3469 = vsel %vm2710, %v3327, 0.0
    %3470 = vadd.xlane.f32.xlu0 %v3469
    %v3471 = vpop.xlane.xlu0 %3470
    %v3472 = vsel %vm2710, %v3328, 0.0
    %3473 = vadd.xlane.f32.xlu0 %v3472
    %v3474 = vpop.xlane.xlu0 %3473
    %v3475 = vsel %vm2710, %v3329, 0.0
    %3476 = vadd.xlane.f32.xlu0 %v3475
    %v3477 = vpop.xlane.xlu0 %3476
    %v3478 = vsel %vm2710, %v3330, 0.0
    %3479 = vadd.xlane.f32.xlu0 %v3478
    %v3480 = vpop.xlane.xlu0 %3479
    %v3481 = vsel %vm2710, %v3331, 0.0
    %3482 = vadd.xlane.f32.xlu0 %v3481
    %v3483 = vpop.xlane.xlu0 %3482
    %v3484 = vsel %vm2710, %v3332, 0.0
    %3485 = vadd.xlane.f32.xlu0 %v3484
    %v3486 = vpop.xlane.xlu0 %3485
    %v3487 = vsel %vm2710, %v3333, 0.0
    %3488 = vadd.xlane.f32.xlu0 %v3487
    %v3489 = vpop.xlane.xlu0 %3488
    %v3490 = vsel %vm2710, %v3334, 0.0
    %3491 = vadd.xlane.f32.xlu0 %v3490
    %v3492 = vpop.xlane.xlu0 %3491
    %v3493 = vsel %vm2710, %v3335, 0.0
    %3494 = vadd.xlane.f32.xlu0 %v3493
    %v3495 = vpop.xlane.xlu0 %3494
    %v3496 = vsel %vm2710, %v3336, 0.0
    %3497 = vadd.xlane.f32.xlu0 %v3496
    %v3498 = vpop.xlane.xlu0 %3497
    %v3499 = vsel %vm2710, %v3337, 0.0
    %3500 = vadd.xlane.f32.xlu0 %v3499
    %v3501 = vpop.xlane.xlu0 %3500
    %v3502 = vsel %vm2710, %v3338, 0.0
    %3503 = vadd.xlane.f32.xlu0 %v3502
    %v3504 = vpop.xlane.xlu0 %3503
    %v3505 = vsel %vm2710, %v3339, 0.0
    %3506 = vadd.xlane.f32.xlu0 %v3505
    %v3507 = vpop.xlane.xlu0 %3506
    %v3508 = vsel %vm2710, %v3340, 0.0
    %3509 = vadd.xlane.f32.xlu0 %v3508
    %v3510 = vpop.xlane.xlu0 %3509
    %v3511 = vsel %vm2710, %v3341, 0.0
    %3512 = vadd.xlane.f32.xlu0 %v3511
    %v3513 = vpop.xlane.xlu0 %3512
    %v3514 = vsel %vm2710, %v3342, 0.0
    %3515 = vadd.xlane.f32.xlu0 %v3514
    %v3516 = vpop.xlane.xlu0 %3515
    %v3517 = vsel %vm2710, %v3343, 0.0
    %3518 = vadd.xlane.f32.xlu0 %v3517
    %v3519 = vpop.xlane.xlu0 %3518
    %v3520 = vsel %vm2710, %v3344, 0.0
    %3521 = vadd.xlane.f32.xlu0 %v3520
    %v3522 = vpop.xlane.xlu0 %3521
    %v3523 = vsel %vm2710, %v3345, 0.0
    %3524 = vadd.xlane.f32.xlu0 %v3523
    %v3525 = vpop.xlane.xlu0 %3524
    %v3526 = vsel %vm2710, %v3346, 0.0
    %3527 = vadd.xlane.f32.xlu0 %v3526
    %v3528 = vpop.xlane.xlu0 %3527
    %v3529 = vsel %vm2710, %v3347, 0.0
    %3530 = vadd.xlane.f32.xlu0 %v3529
    %v3531 = vpop.xlane.xlu0 %3530
    %v3532 = vsel %vm2710, %v3348, 0.0
    %3533 = vadd.xlane.f32.xlu0 %v3532
    %v3534 = vpop.xlane.xlu0 %3533
    %v3535 = vsel %vm2710, %v3349, 0.0
    %3536 = vadd.xlane.f32.xlu0 %v3535
    %v3537 = vpop.xlane.xlu0 %3536
    %v3538 = vsel %vm2710, %v3350, 0.0
    %3539 = vadd.xlane.f32.xlu0 %v3538
    %v3540 = vpop.xlane.xlu0 %3539
    %v3541 = vsel %vm2710, %v3351, 0.0
    %3542 = vadd.xlane.f32.xlu0 %v3541
    %v3543 = vpop.xlane.xlu0 %3542
    %v3544 = vld [vmem:[%s15] sm:$0xff]
    %v3545 = vld [vmem:[%s15 + $0x8] sm:$0xff]
    %v3547 = vsel %vm2710, %v239, 0
    %v3550 = vsel %vm2710, %v240, 0
    %v3553 = vsel %vm2710, %v241, 0
    %v3556 = vsel %vm2710, %v242, 0
    %v3559 = vsel %vm2710, %v243, 0
    %v3562 = vsel %vm2710, %v244, 0
    %v3565 = vsel %vm2710, %v245, 0
    %v3568 = vsel %vm2710, %v246, 0
    %v3571 = vsel %vm2710, %v247, 0
    %v3574 = vsel %vm2710, %v248, 0
    %v3577 = vsel %vm2710, %v249, 0
    %v3580 = vsel %vm2710, %v250, 0
    %v3583 = vsel %vm2710, %v251, 0
    %v3586 = vsel %vm2710, %v252, 0
    %v3589 = vsel %vm2710, %v253, 0
    %v3592 = vsel %vm2710, %v254, 0
    %v3595 = vsel %vm2710, %v255, 0
    %v3598 = vsel %vm2710, %v256, 0
    %v3601 = vsel %vm2710, %v257, 0
    %v3604 = vsel %vm2710, %v258, 0
    %v3607 = vsel %vm2710, %v259, 0
    %v3610 = vsel %vm2710, %v260, 0
    %v3613 = vsel %vm2710, %v261, 0
    %v3616 = vsel %vm2710, %v262, 0
    %v3619 = vsel %vm2710, %v263, 0
    %v3622 = vsel %vm2710, %v264, 0
    %v3625 = vsel %vm2710, %v265, 0
    %v3628 = vsel %vm2710, %v266, 0
    %v3631 = vsel %vm2710, %v267, 0
    %v3634 = vsel %vm2710, %v268, 0
    %v3637 = vsel %vm2710, %v269, 0
    %v3640 = vsel %vm2710, %v270, 0
    %v3643 = vsel %vm2710, %v271, 0
    %v3646 = vsel %vm2710, %v272, 0
    %v3649 = vsel %vm2710, %v273, 0
    %v3652 = vsel %vm2710, %v274, 0
    %v3655 = vsel %vm2710, %v275, 0
    %v3658 = vsel %vm2710, %v276, 0
    %v3661 = vsel %vm2710, %v277, 0
    %v3664 = vsel %vm2710, %v278, 0
    %v3667 = vsel %vm2710, %v279, 0
    %v3670 = vsel %vm2710, %v280, 0
    %v3673 = vsel %vm2710, %v281, 0
    %v3676 = vsel %vm2710, %v282, 0
    %v3679 = vsel %vm2710, %v283, 0
    %v3682 = vsel %vm2710, %v284, 0
    %v3685 = vsel %vm2710, %v285, 0
    %v3688 = vsel %vm2710, %v286, 0
    %v3691 = vsel %vm2710, %v287, 0
    %v3694 = vsel %vm2710, %v288, 0
    %v3697 = vsel %vm2710, %v289, 0
    %v3700 = vsel %vm2710, %v290, 0
    %v3703 = vsel %vm2710, %v291, 0
    %v3706 = vsel %vm2710, %v292, 0
    %v3709 = vsel %vm2710, %v293, 0
    %v3712 = vsel %vm2710, %v294, 0
    %v3715 = vsel %vm2710, %v295, 0
    %v3718 = vsel %vm2710, %v296, 0
    %v3721 = vsel %vm2710, %v297, 0
    %v3724 = vsel %vm2710, %v298, 0
    %v3727 = vsel %vm2710, %v299, 0
    %v3730 = vsel %vm2710, %v300, 0
    %v3733 = vsel %vm2710, %v301, 0
    %v3736 = vsel %vm2710, %v302, 0
    %3738 = vmatprep.subr.mxu0 0.0
    %3739 = vmatpush1.msra.mxu0 %v3544
    %3740 = vmatprep.subr.mxu0 0.0
    %3741 = vmatpush1.msra.mxu0 %v3545
    %3742 = vmatprep.subr.mxu0 0.0
    %3743 = vmatpush1.msra.mxu0 0.0
    %3744 = vmatprep.subr.mxu0 0.0
    %3745 = vmatpush1.msra.mxu0 0.0
    %3746 = vmatprep.subr.mxu0 0.0
    %3747 = vmatpush1.msra.mxu0 0.0
    %3748 = vmatprep.subr.mxu0 0.0
    %3749 = vmatpush1.msra.mxu0 0.0
    %3750 = vmatprep.subr.mxu0 0.0
    %3751 = vmatpush1.msra.mxu0 0.0
    %3752 = vmatprep.subr.mxu0 0.0
    %3753 = vmatpush1.msra.mxu0 0.0
    %3754 = vmatprep.subr.mxu0 0.0
    %3755 = vmatpush1.msra.mxu0 0.0
    %3756 = vmatprep.subr.mxu0 0.0
    %3757 = vmatpush1.msra.mxu0 0.0
    %3758 = vmatprep.subr.mxu0 0.0
    %3759 = vmatpush1.msra.mxu0 0.0
    %3760 = vmatprep.subr.mxu0 0.0
    %3761 = vmatpush1.msra.mxu0 0.0
    %3762 = vmatprep.subr.mxu0 0.0
    %3763 = vmatpush1.msra.mxu0 0.0
    %3764 = vmatprep.subr.mxu0 0.0
    %3765 = vmatpush1.msra.mxu0 0.0
    %3766 = vmatprep.subr.mxu0 0.0
    %3767 = vmatpush1.msra.mxu0 0.0
    %3768 = vmatprep.subr.mxu0 0.0
    %3769 = vmatpush1.msra.mxu0 0.0
    %3770 = vmatprep.subr.mxu0 0.0
    %3771 = vmatpush1.msra.mxu0 0.0
    %3772 = vmatprep.subr.mxu0 0.0
    %3773 = vmatpush1.msra.mxu0 0.0
    %3774 = vmatprep.subr.mxu0 0.0
    %3775 = vmatpush1.msra.mxu0 0.0
    %3776 = vmatprep.subr.mxu0 0.0
    %3777 = vmatpush1.msra.mxu0 0.0
    %3778 = vmatprep.subr.mxu0 0.0
    %3779 = vmatpush1.msra.mxu0 0.0
    %3780 = vmatprep.subr.mxu0 0.0
    %3781 = vmatpush1.msra.mxu0 0.0
    %3782 = vmatprep.subr.mxu0 0.0
    %3783 = vmatpush1.msra.mxu0 0.0
    %3784 = vmatprep.subr.mxu0 0.0
    %3785 = vmatpush1.msra.mxu0 0.0
    %3786 = vmatprep.subr.mxu0 0.0
    %3787 = vmatpush1.msra.mxu0 0.0
    %3788 = vmatprep.subr.mxu0 0.0
    %3789 = vmatpush1.msra.mxu0 0.0
    %3790 = vmatprep.subr.mxu0 0.0
    %3791 = vmatpush1.msra.mxu0 0.0
    %3792 = vmatprep.subr.mxu0 0.0
    %3793 = vmatpush1.msra.mxu0 0.0
    %3794 = vmatprep.subr.mxu0 0.0
    %3795 = vmatpush1.msra.mxu0 0.0
    %3796 = vmatprep.subr.mxu0 0.0
    %3797 = vmatpush1.msra.mxu0 0.0
    %3798 = vmatprep.subr.mxu0 0.0
    %3799 = vmatpush1.msra.mxu0 0.0
    %3800 = vmatprep.subr.mxu0 0.0
    %3801 = vmatpush1.msra.mxu0 0.0
    %3802 = vmatprep.mubr.f32.mxu0 0.0
    %3803 = vmatmul.mubr.f32.gmra.mrb[0].mxu0 %v3547
    %v3804 = vpop.f32.mrb[0].mxu0
    %v3805 = vadd.f32 0.0, %v3804
    %v3806 = vpop.f32.mrb[0].mxu0
    %3807 = vmatprep.mubr.f32.mxu0 0.0
    %3808 = vmatmul.mubr.f32.gmra.mrb[0].mxu0 %v3550
    %v3809 = vpop.f32.mrb[0].mxu0
    %v3810 = vadd.f32 0.0, %v3809
    %v3811 = vpop.f32.mrb[0].mxu0
    %3812 = vmatprep.mubr.f32.mxu0 0.0
    %3813 = vmatmul.mubr.f32.gmra.mrb[0].mxu0 %v3553
    %v3814 = vpop.f32.mrb[0].mxu0
    %v3815 = vadd.f32 0.0, %v3814
    %v3816 = vpop.f32.mrb[0].mxu0
    %3817 = vmatprep.mubr.f32.mxu0 0.0
    %3818 = vmatmul.mubr.f32.gmra.mrb[0].mxu0 %v3556
    %v3819 = vpop.f32.mrb[0].mxu0
    %v3820 = vadd.f32 0.0, %v3819
    %v3821 = vpop.f32.mrb[0].mxu0
    %3822 = vmatprep.mubr.f32.mxu0 0.0
    %3823 = vmatmul.mubr.f32.gmra.mrb[0].mxu0 %v3559
    %v3824 = vpop.f32.mrb[0].mxu0
    %v3825 = vadd.f32 0.0, %v3824
    %v3826 = vpop.f32.mrb[0].mxu0
    %3827 = vmatprep.mubr.f32.mxu0 0.0
    %3828 = vmatmul.mubr.f32.gmra.mrb[0].mxu0 %v3562
    %v3829 = vpop.f32.mrb[0].mxu0
    %v3830 = vadd.f32 0.0, %v3829
    %v3831 = vpop.f32.mrb[0].mxu0
    %3832 = vmatprep.mubr.f32.mxu0 0.0
    %3833 = vmatmul.mubr.f32.gmra.mrb[0].mxu0 %v3565
    %v3834 = vpop.f32.mrb[0].mxu0
    %v3835 = vadd.f32 0.0, %v3834
    %v3836 = vpop.f32.mrb[0].mxu0
    %3837 = vmatprep.mubr.f32.mxu0 0.0
    %3838 = vmatmul.mubr.f32.gmra.mrb[0].mxu0 %v3568
    %v3839 = vpop.f32.mrb[0].mxu0
    %v3840 = vadd.f32 0.0, %v3839
    %v3841 = vpop.f32.mrb[0].mxu0
    %3842 = vmatprep.mubr.f32.mxu0 0.0
    %3843 = vmatmul.mubr.f32.gmra.mrb[0].mxu0 %v3571
    %v3844 = vpop.f32.mrb[0].mxu0
    %v3845 = vadd.f32 0.0, %v3844
    %v3846 = vpop.f32.mrb[0].mxu0
    %3847 = vmatprep.mubr.f32.mxu0 0.0
    %3848 = vmatmul.mubr.f32.gmra.mrb[0].mxu0 %v3574
    %v3849 = vpop.f32.mrb[0].mxu0
    %v3850 = vadd.f32 0.0, %v3849
    %v3851 = vpop.f32.mrb[0].mxu0
    %3852 = vmatprep.mubr.f32.mxu0 0.0
    %3853 = vmatmul.mubr.f32.gmra.mrb[0].mxu0 %v3577
    %v3854 = vpop.f32.mrb[0].mxu0
    %v3855 = vadd.f32 0.0, %v3854
    %v3856 = vpop.f32.mrb[0].mxu0
    %3857 = vmatprep.mubr.f32.mxu0 0.0
    %3858 = vmatmul.mubr.f32.gmra.mrb[0].mxu0 %v3580
    %v3859 = vpop.f32.mrb[0].mxu0
    %v3860 = vadd.f32 0.0, %v3859
    %v3861 = vpop.f32.mrb[0].mxu0
    %3862 = vmatprep.mubr.f32.mxu0 0.0
    %3863 = vmatmul.mubr.f32.gmra.mrb[0].mxu0 %v3583
    %v3864 = vpop.f32.mrb[0].mxu0
    %v3865 = vadd.f32 0.0, %v3864
    %v3866 = vpop.f32.mrb[0].mxu0
    %3867 = vmatprep.mubr.f32.mxu0 0.0
    %3868 = vmatmul.mubr.f32.gmra.mrb[0].mxu0 %v3586
    %v3869 = vpop.f32.mrb[0].mxu0
    %v3870 = vadd.f32 0.0, %v3869
    %v3871 = vpop.f32.mrb[0].mxu0
    %3872 = vmatprep.mubr.f32.mxu0 0.0
    %3873 = vmatmul.mubr.f32.gmra.mrb[0].mxu0 %v3589
    %v3874 = vpop.f32.mrb[0].mxu0
    %v3875 = vadd.f32 0.0, %v3874
    %v3876 = vpop.f32.mrb[0].mxu0
    %3877 = vmatprep.mubr.f32.mxu0 0.0
    %3878 = vmatmul.mubr.f32.gmra.mrb[0].mxu0 %v3592
    %v3879 = vpop.f32.mrb[0].mxu0
    %v3880 = vadd.f32 0.0, %v3879
    %v3881 = vpop.f32.mrb[0].mxu0
    %3882 = vmatprep.mubr.f32.mxu0 0.0
    %3883 = vmatmul.mubr.f32.gmra.mrb[0].mxu0 %v3595
    %v3884 = vpop.f32.mrb[0].mxu0
    %v3885 = vadd.f32 0.0, %v3884
    %v3886 = vpop.f32.mrb[0].mxu0
    %3887 = vmatprep.mubr.f32.mxu0 0.0
    %3888 = vmatmul.mubr.f32.gmra.mrb[0].mxu0 %v3598
    %v3889 = vpop.f32.mrb[0].mxu0
    %v3890 = vadd.f32 0.0, %v3889
    %v3891 = vpop.f32.mrb[0].mxu0
    %3892 = vmatprep.mubr.f32.mxu0 0.0
    %3893 = vmatmul.mubr.f32.gmra.mrb[0].mxu0 %v3601
    %v3894 = vpop.f32.mrb[0].mxu0
    %v3895 = vadd.f32 0.0, %v3894
    %v3896 = vpop.f32.mrb[0].mxu0
    %3897 = vmatprep.mubr.f32.mxu0 0.0
    %3898 = vmatmul.mubr.f32.gmra.mrb[0].mxu0 %v3604
    %v3899 = vpop.f32.mrb[0].mxu0
    %v3900 = vadd.f32 0.0, %v3899
    %v3901 = vpop.f32.mrb[0].mxu0
    %3902 = vmatprep.mubr.f32.mxu0 0.0
    %3903 = vmatmul.mubr.f32.gmra.mrb[0].mxu0 %v3607
    %v3904 = vpop.f32.mrb[0].mxu0
    %v3905 = vadd.f32 0.0, %v3904
    %v3906 = vpop.f32.mrb[0].mxu0
    %3907 = vmatprep.mubr.f32.mxu0 0.0
    %3908 = vmatmul.mubr.f32.gmra.mrb[0].mxu0 %v3610
    %v3909 = vpop.f32.mrb[0].mxu0
    %v3910 = vadd.f32 0.0, %v3909
    %v3911 = vpop.f32.mrb[0].mxu0
    %3912 = vmatprep.mubr.f32.mxu0 0.0
    %3913 = vmatmul.mubr.f32.gmra.mrb[0].mxu0 %v3613
    %v3914 = vpop.f32.mrb[0].mxu0
    %v3915 = vadd.f32 0.0, %v3914
    %v3916 = vpop.f32.mrb[0].mxu0
    %3917 = vmatprep.mubr.f32.mxu0 0.0
    %3918 = vmatmul.mubr.f32.gmra.mrb[0].mxu0 %v3616
    %v3919 = vpop.f32.mrb[0].mxu0
    %v3920 = vadd.f32 0.0, %v3919
    %v3921 = vpop.f32.mrb[0].mxu0
    %3922 = vmatprep.mubr.f32.mxu0 0.0
    %3923 = vmatmul.mubr.f32.gmra.mrb[0].mxu0 %v3619
    %v3924 = vpop.f32.mrb[0].mxu0
    %v3925 = vadd.f32 0.0, %v3924
    %v3926 = vpop.f32.mrb[0].mxu0
    %3927 = vmatprep.mubr.f32.mxu0 0.0
    %3928 = vmatmul.mubr.f32.gmra.mrb[0].mxu0 %v3622
    %v3929 = vpop.f32.mrb[0].mxu0
    %v3930 = vadd.f32 0.0, %v3929
    %v3931 = vpop.f32.mrb[0].mxu0
    %3932 = vmatprep.mubr.f32.mxu0 0.0
    %3933 = vmatmul.mubr.f32.gmra.mrb[0].mxu0 %v3625
    %v3934 = vpop.f32.mrb[0].mxu0
    %v3935 = vadd.f32 0.0, %v3934
    %v3936 = vpop.f32.mrb[0].mxu0
    %3937 = vmatprep.mubr.f32.mxu0 0.0
    %3938 = vmatmul.mubr.f32.gmra.mrb[0].mxu0 %v3628
    %v3939 = vpop.f32.mrb[0].mxu0
    %v3940 = vadd.f32 0.0, %v3939
    %v3941 = vpop.f32.mrb[0].mxu0
    %3942 = vmatprep.mubr.f32.mxu0 0.0
    %3943 = vmatmul.mubr.f32.gmra.mrb[0].mxu0 %v3631
    %v3944 = vpop.f32.mrb[0].mxu0
    %v3945 = vadd.f32 0.0, %v3944
    %v3946 = vpop.f32.mrb[0].mxu0
    %3947 = vmatprep.mubr.f32.mxu0 0.0
    %3948 = vmatmul.mubr.f32.gmra.mrb[0].mxu0 %v3634
    %v3949 = vpop.f32.mrb[0].mxu0
    %v3950 = vadd.f32 0.0, %v3949
    %v3951 = vpop.f32.mrb[0].mxu0
    %3952 = vmatprep.mubr.f32.mxu0 0.0
    %3953 = vmatmul.mubr.f32.gmra.mrb[0].mxu0 %v3637
    %v3954 = vpop.f32.mrb[0].mxu0
    %v3955 = vadd.f32 0.0, %v3954
    %v3956 = vpop.f32.mrb[0].mxu0
    %3957 = vmatprep.mubr.f32.mxu0 0.0
    %3958 = vmatmul.mubr.f32.gmra.mrb[0].mxu0 %v3640
    %v3959 = vpop.f32.mrb[0].mxu0
    %v3960 = vadd.f32 0.0, %v3959
    %v3961 = vpop.f32.mrb[0].mxu0
    %3962 = vmatprep.mubr.f32.mxu0 0.0
    %3963 = vmatmul.mubr.f32.gmra.mrb[0].mxu0 %v3643
    %v3964 = vpop.f32.mrb[0].mxu0
    %v3965 = vadd.f32 0.0, %v3964
    %v3966 = vpop.f32.mrb[0].mxu0
    %3967 = vmatprep.mubr.f32.mxu0 0.0
    %3968 = vmatmul.mubr.f32.gmra.mrb[0].mxu0 %v3646
    %v3969 = vpop.f32.mrb[0].mxu0
    %v3970 = vadd.f32 0.0, %v3969
    %v3971 = vpop.f32.mrb[0].mxu0
    %3972 = vmatprep.mubr.f32.mxu0 0.0
    %3973 = vmatmul.mubr.f32.gmra.mrb[0].mxu0 %v3649
    %v3974 = vpop.f32.mrb[0].mxu0
    %v3975 = vadd.f32 0.0, %v3974
    %v3976 = vpop.f32.mrb[0].mxu0
    %3977 = vmatprep.mubr.f32.mxu0 0.0
    %3978 = vmatmul.mubr.f32.gmra.mrb[0].mxu0 %v3652
    %v3979 = vpop.f32.mrb[0].mxu0
    %v3980 = vadd.f32 0.0, %v3979
    %v3981 = vpop.f32.mrb[0].mxu0
    %3982 = vmatprep.mubr.f32.mxu0 0.0
    %3983 = vmatmul.mubr.f32.gmra.mrb[0].mxu0 %v3655
    %v3984 = vpop.f32.mrb[0].mxu0
    %v3985 = vadd.f32 0.0, %v3984
    %v3986 = vpop.f32.mrb[0].mxu0
    %3987 = vmatprep.mubr.f32.mxu0 0.0
    %3988 = vmatmul.mubr.f32.gmra.mrb[0].mxu0 %v3658
    %v3989 = vpop.f32.mrb[0].mxu0
    %v3990 = vadd.f32 0.0, %v3989
    %v3991 = vpop.f32.mrb[0].mxu0
    %3992 = vmatprep.mubr.f32.mxu0 0.0
    %3993 = vmatmul.mubr.f32.gmra.mrb[0].mxu0 %v3661
    %v3994 = vpop.f32.mrb[0].mxu0
    %v3995 = vadd.f32 0.0, %v3994
    %v3996 = vpop.f32.mrb[0].mxu0
    %3997 = vmatprep.mubr.f32.mxu0 0.0
    %3998 = vmatmul.mubr.f32.gmra.mrb[0].mxu0 %v3664
    %v3999 = vpop.f32.mrb[0].mxu0
    %v4000 = vadd.f32 0.0, %v3999
    %v4001 = vpop.f32.mrb[0].mxu0
    %4002 = vmatprep.mubr.f32.mxu0 0.0
    %4003 = vmatmul.mubr.f32.gmra.mrb[0].mxu0 %v3667
    %v4004 = vpop.f32.mrb[0].mxu0
    %v4005 = vadd.f32 0.0, %v4004
    %v4006 = vpop.f32.mrb[0].mxu0
    %4007 = vmatprep.mubr.f32.mxu0 0.0
    %4008 = vmatmul.mubr.f32.gmra.mrb[0].mxu0 %v3670
    %v4009 = vpop.f32.mrb[0].mxu0
    %v4010 = vadd.f32 0.0, %v4009
    %v4011 = vpop.f32.mrb[0].mxu0
    %4012 = vmatprep.mubr.f32.mxu0 0.0
    %4013 = vmatmul.mubr.f32.gmra.mrb[0].mxu0 %v3673
    %v4014 = vpop.f32.mrb[0].mxu0
    %v4015 = vadd.f32 0.0, %v4014
    %v4016 = vpop.f32.mrb[0].mxu0
    %4017 = vmatprep.mubr.f32.mxu0 0.0
    %4018 = vmatmul.mubr.f32.gmra.mrb[0].mxu0 %v3676
    %v4019 = vpop.f32.mrb[0].mxu0
    %v4020 = vadd.f32 0.0, %v4019
    %v4021 = vpop.f32.mrb[0].mxu0
    %4022 = vmatprep.mubr.f32.mxu0 0.0
    %4023 = vmatmul.mubr.f32.gmra.mrb[0].mxu0 %v3679
    %v4024 = vpop.f32.mrb[0].mxu0
    %v4025 = vadd.f32 0.0, %v4024
    %v4026 = vpop.f32.mrb[0].mxu0
    %4027 = vmatprep.mubr.f32.mxu0 0.0
    %4028 = vmatmul.mubr.f32.gmra.mrb[0].mxu0 %v3682
    %v4029 = vpop.f32.mrb[0].mxu0
    %v4030 = vadd.f32 0.0, %v4029
    %v4031 = vpop.f32.mrb[0].mxu0
    %4032 = vmatprep.mubr.f32.mxu0 0.0
    %4033 = vmatmul.mubr.f32.gmra.mrb[0].mxu0 %v3685
    %v4034 = vpop.f32.mrb[0].mxu0
    %v4035 = vadd.f32 0.0, %v4034
    %v4036 = vpop.f32.mrb[0].mxu0
    %4037 = vmatprep.mubr.f32.mxu0 0.0
    %4038 = vmatmul.mubr.f32.gmra.mrb[0].mxu0 %v3688
    %v4039 = vpop.f32.mrb[0].mxu0
    %v4040 = vadd.f32 0.0, %v4039
    %v4041 = vpop.f32.mrb[0].mxu0
    %4042 = vmatprep.mubr.f32.mxu0 0.0
    %4043 = vmatmul.mubr.f32.gmra.mrb[0].mxu0 %v3691
    %v4044 = vpop.f32.mrb[0].mxu0
    %v4045 = vadd.f32 0.0, %v4044
    %v4046 = vpop.f32.mrb[0].mxu0
    %4047 = vmatprep.mubr.f32.mxu0 0.0
    %4048 = vmatmul.mubr.f32.gmra.mrb[0].mxu0 %v3694
    %v4049 = vpop.f32.mrb[0].mxu0
    %v4050 = vadd.f32 0.0, %v4049
    %v4051 = vpop.f32.mrb[0].mxu0
    %4052 = vmatprep.mubr.f32.mxu0 0.0
    %4053 = vmatmul.mubr.f32.gmra.mrb[0].mxu0 %v3697
    %v4054 = vpop.f32.mrb[0].mxu0
    %v4055 = vadd.f32 0.0, %v4054
    %v4056 = vpop.f32.mrb[0].mxu0
    %4057 = vmatprep.mubr.f32.mxu0 0.0
    %4058 = vmatmul.mubr.f32.gmra.mrb[0].mxu0 %v3700
    %v4059 = vpop.f32.mrb[0].mxu0
    %v4060 = vadd.f32 0.0, %v4059
    %v4061 = vpop.f32.mrb[0].mxu0
    %4062 = vmatprep.mubr.f32.mxu0 0.0
    %4063 = vmatmul.mubr.f32.gmra.mrb[0].mxu0 %v3703
    %v4064 = vpop.f32.mrb[0].mxu0
    %v4065 = vadd.f32 0.0, %v4064
    %v4066 = vpop.f32.mrb[0].mxu0
    %4067 = vmatprep.mubr.f32.mxu0 0.0
    %4068 = vmatmul.mubr.f32.gmra.mrb[0].mxu0 %v3706
    %v4069 = vpop.f32.mrb[0].mxu0
    %v4070 = vadd.f32 0.0, %v4069
    %v4071 = vpop.f32.mrb[0].mxu0
    %4072 = vmatprep.mubr.f32.mxu0 0.0
    %4073 = vmatmul.mubr.f32.gmra.mrb[0].mxu0 %v3709
    %v4074 = vpop.f32.mrb[0].mxu0
    %v4075 = vadd.f32 0.0, %v4074
    %v4076 = vpop.f32.mrb[0].mxu0
    %4077 = vmatprep.mubr.f32.mxu0 0.0
    %4078 = vmatmul.mubr.f32.gmra.mrb[0].mxu0 %v3712
    %v4079 = vpop.f32.mrb[0].mxu0
    %v4080 = vadd.f32 0.0, %v4079
    %v4081 = vpop.f32.mrb[0].mxu0
    %4082 = vmatprep.mubr.f32.mxu0 0.0
    %4083 = vmatmul.mubr.f32.gmra.mrb[0].mxu0 %v3715
    %v4084 = vpop.f32.mrb[0].mxu0
    %v4085 = vadd.f32 0.0, %v4084
    %v4086 = vpop.f32.mrb[0].mxu0
    %4087 = vmatprep.mubr.f32.mxu0 0.0
    %4088 = vmatmul.mubr.f32.gmra.mrb[0].mxu0 %v3718
    %v4089 = vpop.f32.mrb[0].mxu0
    %v4090 = vadd.f32 0.0, %v4089
    %v4091 = vpop.f32.mrb[0].mxu0
    %4092 = vmatprep.mubr.f32.mxu0 0.0
    %4093 = vmatmul.mubr.f32.gmra.mrb[0].mxu0 %v3721
    %v4094 = vpop.f32.mrb[0].mxu0
    %v4095 = vadd.f32 0.0, %v4094
    %v4096 = vpop.f32.mrb[0].mxu0
    %4097 = vmatprep.mubr.f32.mxu0 0.0
    %4098 = vmatmul.mubr.f32.gmra.mrb[0].mxu0 %v3724
    %v4099 = vpop.f32.mrb[0].mxu0
    %v4100 = vadd.f32 0.0, %v4099
    %v4101 = vpop.f32.mrb[0].mxu0
    %4102 = vmatprep.mubr.f32.mxu0 0.0
    %4103 = vmatmul.mubr.f32.gmra.mrb[0].mxu0 %v3727
    %v4104 = vpop.f32.mrb[0].mxu0
    %v4105 = vadd.f32 0.0, %v4104
    %v4106 = vpop.f32.mrb[0].mxu0
    %4107 = vmatprep.mubr.f32.mxu0 0.0
    %4108 = vmatmul.mubr.f32.gmra.mrb[0].mxu0 %v3730
    %v4109 = vpop.f32.mrb[0].mxu0
    %v4110 = vadd.f32 0.0, %v4109
    %v4111 = vpop.f32.mrb[0].mxu0
    %4112 = vmatprep.mubr.f32.mxu0 0.0
    %4113 = vmatmul.mubr.f32.gmra.mrb[0].mxu0 %v3733
    %v4114 = vpop.f32.mrb[0].mxu0
    %v4115 = vadd.f32 0.0, %v4114
    %v4116 = vpop.f32.mrb[0].mxu0
    %4117 = vmatprep.mubr.f32.mxu0 0.0
    %4118 = vmatmul.mubr.f32.gmra.mrb[0].mxu0 %v3736
    %v4119 = vpop.f32.mrb[0].mxu0
    %v4120 = vadd.f32 0.0, %v4119
    %v4121 = vpop.f32.mrb[0].mxu0
    %4122 = vdwg.mxu0
    %v4123 = vmul.f32 %v1943, %v3805
    %v4124 = vmul.f32 %v1948, %v3810
    %v4125 = vmul.f32 %v1953, %v3815
    %v4126 = vmul.f32 %v1958, %v3820
    %v4127 = vmul.f32 %v1963, %v3825
    %v4128 = vmul.f32 %v1968, %v3830
    %v4129 = vmul.f32 %v1973, %v3835
    %v4130 = vmul.f32 %v1978, %v3840
    %v4131 = vmul.f32 %v1983, %v3845
    %v4132 = vmul.f32 %v1988, %v3850
    %v4133 = vmul.f32 %v1993, %v3855
    %v4134 = vmul.f32 %v1998, %v3860
    %v4135 = vmul.f32 %v2003, %v3865
    %v4136 = vmul.f32 %v2008, %v3870
    %v4137 = vmul.f32 %v2013, %v3875
    %v4138 = vmul.f32 %v2018, %v3880
    %v4139 = vmul.f32 %v2023, %v3885
    %v4140 = vmul.f32 %v2028, %v3890
    %v4141 = vmul.f32 %v2033, %v3895
    %v4142 = vmul.f32 %v2038, %v3900
    %v4143 = vmul.f32 %v2043, %v3905
    %v4144 = vmul.f32 %v2048, %v3910
    %v4145 = vmul.f32 %v2053, %v3915
    %v4146 = vmul.f32 %v2058, %v3920
    %v4147 = vmul.f32 %v2063, %v3925
    %v4148 = vmul.f32 %v2068, %v3930
    %v4149 = vmul.f32 %v2073, %v3935
    %v4150 = vmul.f32 %v2078, %v3940
    %v4151 = vmul.f32 %v2083, %v3945
    %v4152 = vmul.f32 %v2088, %v3950
    %v4153 = vmul.f32 %v2093, %v3955
    %v4154 = vmul.f32 %v2098, %v3960
    %v4155 = vmul.f32 %v2103, %v3965
    %v4156 = vmul.f32 %v2108, %v3970
    %v4157 = vmul.f32 %v2113, %v3975
    %v4158 = vmul.f32 %v2118, %v3980
    %v4159 = vmul.f32 %v2123, %v3985
    %v4160 = vmul.f32 %v2128, %v3990
    %v4161 = vmul.f32 %v2133, %v3995
    %v4162 = vmul.f32 %v2138, %v4000
    %v4163 = vmul.f32 %v2143, %v4005
    %v4164 = vmul.f32 %v2148, %v4010
    %v4165 = vmul.f32 %v2153, %v4015
    %v4166 = vmul.f32 %v2158, %v4020
    %v4167 = vmul.f32 %v2163, %v4025
    %v4168 = vmul.f32 %v2168, %v4030
    %v4169 = vmul.f32 %v2173, %v4035
    %v4170 = vmul.f32 %v2178, %v4040
    %v4171 = vmul.f32 %v2183, %v4045
    %v4172 = vmul.f32 %v2188, %v4050
    %v4173 = vmul.f32 %v2193, %v4055
    %v4174 = vmul.f32 %v2198, %v4060
    %v4175 = vmul.f32 %v2203, %v4065
    %v4176 = vmul.f32 %v2208, %v4070
    %v4177 = vmul.f32 %v2213, %v4075
    %v4178 = vmul.f32 %v2218, %v4080
    %v4179 = vmul.f32 %v2223, %v4085
    %v4180 = vmul.f32 %v2228, %v4090
    %v4181 = vmul.f32 %v2233, %v4095
    %v4182 = vmul.f32 %v2238, %v4100
    %v4183 = vmul.f32 %v2243, %v4105
    %v4184 = vmul.f32 %v2248, %v4110
    %v4185 = vmul.f32 %v2253, %v4115
    %v4186 = vmul.f32 %v2258, %v4120
    %v4187 = vmul.f32 %v4123, 1.442695
    %v4188 = vpow.pop %v4187
    %v4189 = vmul.f32 %v4124, 1.442695
    %v4190 = vpow.pop %v4189
    %v4191 = vmul.f32 %v4125, 1.442695
    %v4192 = vpow.pop %v4191
    %v4193 = vmul.f32 %v4126, 1.442695
    %v4194 = vpow.pop %v4193
    %v4195 = vmul.f32 %v4127, 1.442695
    %v4196 = vpow.pop %v4195
    %v4197 = vmul.f32 %v4128, 1.442695
    %v4198 = vpow.pop %v4197
    %v4199 = vmul.f32 %v4129, 1.442695
    %v4200 = vpow.pop %v4199
    %v4201 = vmul.f32 %v4130, 1.442695
    %v4202 = vpow.pop %v4201
    %v4203 = vmul.f32 %v4131, 1.442695
    %v4204 = vpow.pop %v4203
    %v4205 = vmul.f32 %v4132, 1.442695
    %v4206 = vpow.pop %v4205
    %v4207 = vmul.f32 %v4133, 1.442695
    %v4208 = vpow.pop %v4207
    %v4209 = vmul.f32 %v4134, 1.442695
    %v4210 = vpow.pop %v4209
    %v4211 = vmul.f32 %v4135, 1.442695
    %v4212 = vpow.pop %v4211
    %v4213 = vmul.f32 %v4136, 1.442695
    %v4214 = vpow.pop %v4213
    %v4215 = vmul.f32 %v4137, 1.442695
    %v4216 = vpow.pop %v4215
    %v4217 = vmul.f32 %v4138, 1.442695
    %v4218 = vpow.pop %v4217
    %v4219 = vmul.f32 %v4139, 1.442695
    %v4220 = vpow.pop %v4219
    %v4221 = vmul.f32 %v4140, 1.442695
    %v4222 = vpow.pop %v4221
    %v4223 = vmul.f32 %v4141, 1.442695
    %v4224 = vpow.pop %v4223
    %v4225 = vmul.f32 %v4142, 1.442695
    %v4226 = vpow.pop %v4225
    %v4227 = vmul.f32 %v4143, 1.442695
    %v4228 = vpow.pop %v4227
    %v4229 = vmul.f32 %v4144, 1.442695
    %v4230 = vpow.pop %v4229
    %v4231 = vmul.f32 %v4145, 1.442695
    %v4232 = vpow.pop %v4231
    %v4233 = vmul.f32 %v4146, 1.442695
    %v4234 = vpow.pop %v4233
    %v4235 = vmul.f32 %v4147, 1.442695
    %v4236 = vpow.pop %v4235
    %v4237 = vmul.f32 %v4148, 1.442695
    %v4238 = vpow.pop %v4237
    %v4239 = vmul.f32 %v4149, 1.442695
    %v4240 = vpow.pop %v4239
    %v4241 = vmul.f32 %v4150, 1.442695
    %v4242 = vpow.pop %v4241
    %v4243 = vmul.f32 %v4151, 1.442695
    %v4244 = vpow.pop %v4243
    %v4245 = vmul.f32 %v4152, 1.442695
    %v4246 = vpow.pop %v4245
    %v4247 = vmul.f32 %v4153, 1.442695
    %v4248 = vpow.pop %v4247
    %v4249 = vmul.f32 %v4154, 1.442695
    %v4250 = vpow.pop %v4249
    %v4251 = vmul.f32 %v4155, 1.442695
    %v4252 = vpow.pop %v4251
    %v4253 = vmul.f32 %v4156, 1.442695
    %v4254 = vpow.pop %v4253
    %v4255 = vmul.f32 %v4157, 1.442695
    %v4256 = vpow.pop %v4255
    %v4257 = vmul.f32 %v4158, 1.442695
    %v4258 = vpow.pop %v4257
    %v4259 = vmul.f32 %v4159, 1.442695
    %v4260 = vpow.pop %v4259
    %v4261 = vmul.f32 %v4160, 1.442695
    %v4262 = vpow.pop %v4261
    %v4263 = vmul.f32 %v4161, 1.442695
    %v4264 = vpow.pop %v4263
    %v4265 = vmul.f32 %v4162, 1.442695
    %v4266 = vpow.pop %v4265
    %v4267 = vmul.f32 %v4163, 1.442695
    %v4268 = vpow.pop %v4267
    %v4269 = vmul.f32 %v4164, 1.442695
    %v4270 = vpow.pop %v4269
    %v4271 = vmul.f32 %v4165, 1.442695
    %v4272 = vpow.pop %v4271
    %v4273 = vmul.f32 %v4166, 1.442695
    %v4274 = vpow.pop %v4273
    %v4275 = vmul.f32 %v4167, 1.442695
    %v4276 = vpow.pop %v4275
    %v4277 = vmul.f32 %v4168, 1.442695
    %v4278 = vpow.pop %v4277
    %v4279 = vmul.f32 %v4169, 1.442695
    %v4280 = vpow.pop %v4279
    %v4281 = vmul.f32 %v4170, 1.442695
    %v4282 = vpow.pop %v4281
    %v4283 = vmul.f32 %v4171, 1.442695
    %v4284 = vpow.pop %v4283
    %v4285 = vmul.f32 %v4172, 1.442695
    %v4286 = vpow.pop %v4285
    %v4287 = vmul.f32 %v4173, 1.442695
    %v4288 = vpow.pop %v4287
    %v4289 = vmul.f32 %v4174, 1.442695
    %v4290 = vpow.pop %v4289
    %v4291 = vmul.f32 %v4175, 1.442695
    %v4292 = vpow.pop %v4291
    %v4293 = vmul.f32 %v4176, 1.442695
    %v4294 = vpow.pop %v4293
    %v4295 = vmul.f32 %v4177, 1.442695
    %v4296 = vpow.pop %v4295
    %v4297 = vmul.f32 %v4178, 1.442695
    %v4298 = vpow.pop %v4297
    %v4299 = vmul.f32 %v4179, 1.442695
    %v4300 = vpow.pop %v4299
    %v4301 = vmul.f32 %v4180, 1.442695
    %v4302 = vpow.pop %v4301
    %v4303 = vmul.f32 %v4181, 1.442695
    %v4304 = vpow.pop %v4303
    %v4305 = vmul.f32 %v4182, 1.442695
    %v4306 = vpow.pop %v4305
    %v4307 = vmul.f32 %v4183, 1.442695
    %v4308 = vpow.pop %v4307
    %v4309 = vmul.f32 %v4184, 1.442695
    %v4310 = vpow.pop %v4309
    %v4311 = vmul.f32 %v4185, 1.442695
    %v4312 = vpow.pop %v4311
    %v4313 = vmul.f32 %v4186, 1.442695
    %v4314 = vpow.pop %v4313
    %v4315 = vmul.f32 %v1943, %v1558
    %v4316 = vmul.f32 %v1948, %v1563
    %v4317 = vmul.f32 %v1953, %v1568
    %v4318 = vmul.f32 %v1958, %v1573
    %v4319 = vmul.f32 %v1963, %v1578
    %v4320 = vmul.f32 %v1968, %v1583
    %v4321 = vmul.f32 %v1973, %v1588
    %v4322 = vmul.f32 %v1978, %v1593
    %v4323 = vmul.f32 %v1983, %v1598
    %v4324 = vmul.f32 %v1988, %v1603
    %v4325 = vmul.f32 %v1993, %v1608
    %v4326 = vmul.f32 %v1998, %v1613
    %v4327 = vmul.f32 %v2003, %v1618
    %v4328 = vmul.f32 %v2008, %v1623
    %v4329 = vmul.f32 %v2013, %v1628
    %v4330 = vmul.f32 %v2018, %v1633
    %v4331 = vmul.f32 %v2023, %v1638
    %v4332 = vmul.f32 %v2028, %v1643
    %v4333 = vmul.f32 %v2033, %v1648
    %v4334 = vmul.f32 %v2038, %v1653
    %v4335 = vmul.f32 %v2043, %v1658
    %v4336 = vmul.f32 %v2048, %v1663
    %v4337 = vmul.f32 %v2053, %v1668
    %v4338 = vmul.f32 %v2058, %v1673
    %v4339 = vmul.f32 %v2063, %v1678
    %v4340 = vmul.f32 %v2068, %v1683
    %v4341 = vmul.f32 %v2073, %v1688
    %v4342 = vmul.f32 %v2078, %v1693
    %v4343 = vmul.f32 %v2083, %v1698
    %v4344 = vmul.f32 %v2088, %v1703
    %v4345 = vmul.f32 %v2093, %v1708
    %v4346 = vmul.f32 %v2098, %v1713
    %v4347 = vmul.f32 %v2103, %v1718
    %v4348 = vmul.f32 %v2108, %v1723
    %v4349 = vmul.f32 %v2113, %v1728
    %v4350 = vmul.f32 %v2118, %v1733
    %v4351 = vmul.f32 %v2123, %v1738
    %v4352 = vmul.f32 %v2128, %v1743
    %v4353 = vmul.f32 %v2133, %v1748
    %v4354 = vmul.f32 %v2138, %v1753
    %v4355 = vmul.f32 %v2143, %v1758
    %v4356 = vmul.f32 %v2148, %v1763
    %v4357 = vmul.f32 %v2153, %v1768
    %v4358 = vmul.f32 %v2158, %v1773
    %v4359 = vmul.f32 %v2163, %v1778
    %v4360 = vmul.f32 %v2168, %v1783
    %v4361 = vmul.f32 %v2173, %v1788
    %v4362 = vmul.f32 %v2178, %v1793
    %v4363 = vmul.f32 %v2183, %v1798
    %v4364 = vmul.f32 %v2188, %v1803
    %v4365 = vmul.f32 %v2193, %v1808
    %v4366 = vmul.f32 %v2198, %v1813
    %v4367 = vmul.f32 %v2203, %v1818
    %v4368 = vmul.f32 %v2208, %v1823
    %v4369 = vmul.f32 %v2213, %v1828
    %v4370 = vmul.f32 %v2218, %v1833
    %v4371 = vmul.f32 %v2223, %v1838
    %v4372 = vmul.f32 %v2228, %v1843
    %v4373 = vmul.f32 %v2233, %v1848
    %v4374 = vmul.f32 %v2238, %v1853
    %v4375 = vmul.f32 %v2243, %v1858
    %v4376 = vmul.f32 %v2248, %v1863
    %v4377 = vmul.f32 %v2253, %v1868
    %v4378 = vmul.f32 %v2258, %v1873
    %v4379 = vmul.f32 %v4315, %v2713
    %v4380 = vmul.f32 %v4316, %v2716
    %v4381 = vmul.f32 %v4317, %v2719
    %v4382 = vmul.f32 %v4318, %v2722
    %v4383 = vmul.f32 %v4319, %v2725
    %v4384 = vmul.f32 %v4320, %v2728
    %v4385 = vmul.f32 %v4321, %v2731
    %v4386 = vmul.f32 %v4322, %v2734
    %v4387 = vmul.f32 %v4323, %v2737
    %v4388 = vmul.f32 %v4324, %v2740
    %v4389 = vmul.f32 %v4325, %v2743
    %v4390 = vmul.f32 %v4326, %v2746
    %v4391 = vmul.f32 %v4327, %v2749
    %v4392 = vmul.f32 %v4328, %v2752
    %v4393 = vmul.f32 %v4329, %v2755
    %v4394 = vmul.f32 %v4330, %v2758
    %v4395 = vmul.f32 %v4331, %v2761
    %v4396 = vmul.f32 %v4332, %v2764
    %v4397 = vmul.f32 %v4333, %v2767
    %v4398 = vmul.f32 %v4334, %v2770
    %v4399 = vmul.f32 %v4335, %v2773
    %v4400 = vmul.f32 %v4336, %v2776
    %v4401 = vmul.f32 %v4337, %v2779
    %v4402 = vmul.f32 %v4338, %v2782
    %v4403 = vmul.f32 %v4339, %v2785
    %v4404 = vmul.f32 %v4340, %v2788
    %v4405 = vmul.f32 %v4341, %v2791
    %v4406 = vmul.f32 %v4342, %v2794
    %v4407 = vmul.f32 %v4343, %v2797
    %v4408 = vmul.f32 %v4344, %v2800
    %v4409 = vmul.f32 %v4345, %v2803
    %v4410 = vmul.f32 %v4346, %v2806
    %v4411 = vmul.f32 %v4347, %v2809
    %v4412 = vmul.f32 %v4348, %v2812
    %v4413 = vmul.f32 %v4349, %v2815
    %v4414 = vmul.f32 %v4350, %v2818
    %v4415 = vmul.f32 %v4351, %v2821
    %v4416 = vmul.f32 %v4352, %v2824
    %v4417 = vmul.f32 %v4353, %v2827
    %v4418 = vmul.f32 %v4354, %v2830
    %v4419 = vmul.f32 %v4355, %v2833
    %v4420 = vmul.f32 %v4356, %v2836
    %v4421 = vmul.f32 %v4357, %v2839
    %v4422 = vmul.f32 %v4358, %v2842
    %v4423 = vmul.f32 %v4359, %v2845
    %v4424 = vmul.f32 %v4360, %v2848
    %v4425 = vmul.f32 %v4361, %v2851
    %v4426 = vmul.f32 %v4362, %v2854
    %v4427 = vmul.f32 %v4363, %v2857
    %v4428 = vmul.f32 %v4364, %v2860
    %v4429 = vmul.f32 %v4365, %v2863
    %v4430 = vmul.f32 %v4366, %v2866
    %v4431 = vmul.f32 %v4367, %v2869
    %v4432 = vmul.f32 %v4368, %v2872
    %v4433 = vmul.f32 %v4369, %v2875
    %v4434 = vmul.f32 %v4370, %v2878
    %v4435 = vmul.f32 %v4371, %v2881
    %v4436 = vmul.f32 %v4372, %v2884
    %v4437 = vmul.f32 %v4373, %v2887
    %v4438 = vmul.f32 %v4374, %v2890
    %v4439 = vmul.f32 %v4375, %v2893
    %v4440 = vmul.f32 %v4376, %v2896
    %v4441 = vmul.f32 %v4377, %v2899
    %v4442 = vmul.f32 %v4378, %v2902
    %v4443 = vmul.f32 %v4188, 0.0
    %v4444 = vmul.f32 %v4190, 0.0
    %v4445 = vmul.f32 %v4192, 0.0
    %v4446 = vmul.f32 %v4194, 0.0
    %v4447 = vadd.f32 %v4443, %v4379
    %v4448 = vadd.f32 %v4444, %v4380
    %v4449 = vadd.f32 %v4445, %v4381
    %v4450 = vadd.f32 %v4446, %v4382
    %4451 = vst.msk [vmem:[#allocation2] sm:$0xff] %vm476, %v4447
    %4452 = vst.msk [vmem:[#allocation2 + $0x8] sm:$0xff] %vm476, %v4448
    %4453 = vst.msk [vmem:[#allocation2 + $0x10] sm:$0xff] %vm476, %v4449
    %4454 = vst.msk [vmem:[#allocation2 + $0x18] sm:$0xff] %vm476, %v4450
    %v4455 = vmul.f32 %v4196, %v4447
    %v4456 = vmul.f32 %v4198, %v4448
    %v4457 = vmul.f32 %v4200, %v4449
    %v4458 = vmul.f32 %v4202, %v4450
    %v4459 = vadd.f32 %v4455, %v4383
    %v4460 = vadd.f32 %v4456, %v4384
    %v4461 = vadd.f32 %v4457, %v4385
    %v4462 = vadd.f32 %v4458, %v4386
    %4463 = vst.msk [vmem:[#allocation2 + $0x20] sm:$0xff] %vm476, %v4459
    %4464 = vst.msk [vmem:[#allocation2 + $0x28] sm:$0xff] %vm476, %v4460
    %4465 = vst.msk [vmem:[#allocation2 + $0x30] sm:$0xff] %vm476, %v4461
    %4466 = vst.msk [vmem:[#allocation2 + $0x38] sm:$0xff] %vm476, %v4462
    %v4467 = vmul.f32 %v4204, %v4459
    %v4468 = vmul.f32 %v4206, %v4460
    %v4469 = vmul.f32 %v4208, %v4461
    %v4470 = vmul.f32 %v4210, %v4462
    %v4471 = vadd.f32 %v4467, %v4387
    %v4472 = vadd.f32 %v4468, %v4388
    %v4473 = vadd.f32 %v4469, %v4389
    %v4474 = vadd.f32 %v4470, %v4390
    %4475 = vst.msk [vmem:[#allocation2 + $0x40] sm:$0xff] %vm476, %v4471
    %4476 = vst.msk [vmem:[#allocation2 + $0x48] sm:$0xff] %vm476, %v4472
    %4477 = vst.msk [vmem:[#allocation2 + $0x50] sm:$0xff] %vm476, %v4473
    %4478 = vst.msk [vmem:[#allocation2 + $0x58] sm:$0xff] %vm476, %v4474
    %v4479 = vmul.f32 %v4212, %v4471
    %v4480 = vmul.f32 %v4214, %v4472
    %v4481 = vmul.f32 %v4216, %v4473
    %v4482 = vmul.f32 %v4218, %v4474
    %v4483 = vadd.f32 %v4479, %v4391
    %v4484 = vadd.f32 %v4480, %v4392
    %v4485 = vadd.f32 %v4481, %v4393
    %v4486 = vadd.f32 %v4482, %v4394
    %4487 = vst.msk [vmem:[#allocation2 + $0x60] sm:$0xff] %vm476, %v4483
    %4488 = vst.msk [vmem:[#allocation2 + $0x68] sm:$0xff] %vm476, %v4484
    %4489 = vst.msk [vmem:[#allocation2 + $0x70] sm:$0xff] %vm476, %v4485
    %4490 = vst.msk [vmem:[#allocation2 + $0x78] sm:$0xff] %vm476, %v4486
    %v4491 = vmul.f32 %v4220, %v4483
    %v4492 = vmul.f32 %v4222, %v4484
    %v4493 = vmul.f32 %v4224, %v4485
    %v4494 = vmul.f32 %v4226, %v4486
    %v4495 = vadd.f32 %v4491, %v4395
    %v4496 = vadd.f32 %v4492, %v4396
    %v4497 = vadd.f32 %v4493, %v4397
    %v4498 = vadd.f32 %v4494, %v4398
    %4499 = vst.msk [vmem:[#allocation2 + $0x80] sm:$0xff] %vm476, %v4495
    %4500 = vst.msk [vmem:[#allocation2 + $0x88] sm:$0xff] %vm476, %v4496
    %4501 = vst.msk [vmem:[#allocation2 + $0x90] sm:$0xff] %vm476, %v4497
    %4502 = vst.msk [vmem:[#allocation2 + $0x98] sm:$0xff] %vm476, %v4498
    %v4503 = vmul.f32 %v4228, %v4495
    %v4504 = vmul.f32 %v4230, %v4496
    %v4505 = vmul.f32 %v4232, %v4497
    %v4506 = vmul.f32 %v4234, %v4498
    %v4507 = vadd.f32 %v4503, %v4399
    %v4508 = vadd.f32 %v4504, %v4400
    %v4509 = vadd.f32 %v4505, %v4401
    %v4510 = vadd.f32 %v4506, %v4402
    %4511 = vst.msk [vmem:[#allocation2 + $0xa0] sm:$0xff] %vm476, %v4507
    %4512 = vst.msk [vmem:[#allocation2 + $0xa8] sm:$0xff] %vm476, %v4508
    %4513 = vst.msk [vmem:[#allocation2 + $0xb0] sm:$0xff] %vm476, %v4509
    %4514 = vst.msk [vmem:[#allocation2 + $0xb8] sm:$0xff] %vm476, %v4510
    %v4515 = vmul.f32 %v4236, %v4507
    %v4516 = vmul.f32 %v4238, %v4508
    %v4517 = vmul.f32 %v4240, %v4509
    %v4518 = vmul.f32 %v4242, %v4510
    %v4519 = vadd.f32 %v4515, %v4403
    %v4520 = vadd.f32 %v4516, %v4404
    %v4521 = vadd.f32 %v4517, %v4405
    %v4522 = vadd.f32 %v4518, %v4406
    %4523 = vst.msk [vmem:[#allocation2 + $0xc0] sm:$0xff] %vm476, %v4519
    %4524 = vst.msk [vmem:[#allocation2 + $0xc8] sm:$0xff] %vm476, %v4520
    %4525 = vst.msk [vmem:[#allocation2 + $0xd0] sm:$0xff] %vm476, %v4521
    %4526 = vst.msk [vmem:[#allocation2 + $0xd8] sm:$0xff] %vm476, %v4522
    %v4527 = vmul.f32 %v4244, %v4519
    %v4528 = vmul.f32 %v4246, %v4520
    %v4529 = vmul.f32 %v4248, %v4521
    %v4530 = vmul.f32 %v4250, %v4522
    %v4531 = vadd.f32 %v4527, %v4407
    %v4532 = vadd.f32 %v4528, %v4408
    %v4533 = vadd.f32 %v4529, %v4409
    %v4534 = vadd.f32 %v4530, %v4410
    %4535 = vst.msk [vmem:[#allocation2 + $0xe0] sm:$0xff] %vm476, %v4531
    %4536 = vst.msk [vmem:[#allocation2 + $0xe8] sm:$0xff] %vm476, %v4532
    %4537 = vst.msk [vmem:[#allocation2 + $0xf0] sm:$0xff] %vm476, %v4533
    %4538 = vst.msk [vmem:[#allocation2 + $0xf8] sm:$0xff] %vm476, %v4534
    %v4539 = vmul.f32 %v4252, %v4531
    %v4540 = vmul.f32 %v4254, %v4532
    %v4541 = vmul.f32 %v4256, %v4533
    %v4542 = vmul.f32 %v4258, %v4534
    %v4543 = vadd.f32 %v4539, %v4411
    %v4544 = vadd.f32 %v4540, %v4412
    %v4545 = vadd.f32 %v4541, %v4413
    %v4546 = vadd.f32 %v4542, %v4414
    %4547 = vst.msk [vmem:[#allocation2 + $0x100] sm:$0xff] %vm476, %v4543
    %4548 = vst.msk [vmem:[#allocation2 + $0x108] sm:$0xff] %vm476, %v4544
    %4549 = vst.msk [vmem:[#allocation2 + $0x110] sm:$0xff] %vm476, %v4545
    %4550 = vst.msk [vmem:[#allocation2 + $0x118] sm:$0xff] %vm476, %v4546
    %v4551 = vmul.f32 %v4260, %v4543
    %v4552 = vmul.f32 %v4262, %v4544
    %v4553 = vmul.f32 %v4264, %v4545
    %v4554 = vmul.f32 %v4266, %v4546
    %v4555 = vadd.f32 %v4551, %v4415
    %v4556 = vadd.f32 %v4552, %v4416
    %v4557 = vadd.f32 %v4553, %v4417
    %v4558 = vadd.f32 %v4554, %v4418
    %4559 = vst.msk [vmem:[#allocation2 + $0x120] sm:$0xff] %vm476, %v4555
    %4560 = vst.msk [vmem:[#allocation2 + $0x128] sm:$0xff] %vm476, %v4556
    %4561 = vst.msk [vmem:[#allocation2 + $0x130] sm:$0xff] %vm476, %v4557
    %4562 = vst.msk [vmem:[#allocation2 + $0x138] sm:$0xff] %vm476, %v4558
    %v4563 = vmul.f32 %v4268, %v4555
    %v4564 = vmul.f32 %v4270, %v4556
    %v4565 = vmul.f32 %v4272, %v4557
    %v4566 = vmul.f32 %v4274, %v4558
    %v4567 = vadd.f32 %v4563, %v4419
    %v4568 = vadd.f32 %v4564, %v4420
    %v4569 = vadd.f32 %v4565, %v4421
    %v4570 = vadd.f32 %v4566, %v4422
    %4571 = vst.msk [vmem:[#allocation2 + $0x140] sm:$0xff] %vm476, %v4567
    %4572 = vst.msk [vmem:[#allocation2 + $0x148] sm:$0xff] %vm476, %v4568
    %4573 = vst.msk [vmem:[#allocation2 + $0x150] sm:$0xff] %vm476, %v4569
    %4574 = vst.msk [vmem:[#allocation2 + $0x158] sm:$0xff] %vm476, %v4570
    %v4575 = vmul.f32 %v4276, %v4567
    %v4576 = vmul.f32 %v4278, %v4568
    %v4577 = vmul.f32 %v4280, %v4569
    %v4578 = vmul.f32 %v4282, %v4570
    %v4579 = vadd.f32 %v4575, %v4423
    %v4580 = vadd.f32 %v4576, %v4424
    %v4581 = vadd.f32 %v4577, %v4425
    %v4582 = vadd.f32 %v4578, %v4426
    %4583 = vst.msk [vmem:[#allocation2 + $0x160] sm:$0xff] %vm476, %v4579
    %4584 = vst.msk [vmem:[#allocation2 + $0x168] sm:$0xff] %vm476, %v4580
    %4585 = vst.msk [vmem:[#allocation2 + $0x170] sm:$0xff] %vm476, %v4581
    %4586 = vst.msk [vmem:[#allocation2 + $0x178] sm:$0xff] %vm476, %v4582
    %v4587 = vmul.f32 %v4284, %v4579
    %v4588 = vmul.f32 %v4286, %v4580
    %v4589 = vmul.f32 %v4288, %v4581
    %v4590 = vmul.f32 %v4290, %v4582
    %v4591 = vadd.f32 %v4587, %v4427
    %v4592 = vadd.f32 %v4588, %v4428
    %v4593 = vadd.f32 %v4589, %v4429
    %v4594 = vadd.f32 %v4590, %v4430
    %4595 = vst.msk [vmem:[#allocation2 + $0x180] sm:$0xff] %vm476, %v4591
    %4596 = vst.msk [vmem:[#allocation2 + $0x188] sm:$0xff] %vm476, %v4592
    %4597 = vst.msk [vmem:[#allocation2 + $0x190] sm:$0xff] %vm476, %v4593
    %4598 = vst.msk [vmem:[#allocation2 + $0x198] sm:$0xff] %vm476, %v4594
    %v4599 = vmul.f32 %v4292, %v4591
    %v4600 = vmul.f32 %v4294, %v4592
    %v4601 = vmul.f32 %v4296, %v4593
    %v4602 = vmul.f32 %v4298, %v4594
    %v4603 = vadd.f32 %v4599, %v4431
    %v4604 = vadd.f32 %v4600, %v4432
    %v4605 = vadd.f32 %v4601, %v4433
    %v4606 = vadd.f32 %v4602, %v4434
    %4607 = vst.msk [vmem:[#allocation2 + $0x1a0] sm:$0xff] %vm476, %v4603
    %4608 = vst.msk [vmem:[#allocation2 + $0x1a8] sm:$0xff] %vm476, %v4604
    %4609 = vst.msk [vmem:[#allocation2 + $0x1b0] sm:$0xff] %vm476, %v4605
    %4610 = vst.msk [vmem:[#allocation2 + $0x1b8] sm:$0xff] %vm476, %v4606
    %v4611 = vmul.f32 %v4300, %v4603
    %v4612 = vmul.f32 %v4302, %v4604
    %v4613 = vmul.f32 %v4304, %v4605
    %v4614 = vmul.f32 %v4306, %v4606
    %v4615 = vadd.f32 %v4611, %v4435
    %v4616 = vadd.f32 %v4612, %v4436
    %v4617 = vadd.f32 %v4613, %v4437
    %v4618 = vadd.f32 %v4614, %v4438
    %4619 = vst.msk [vmem:[#allocation2 + $0x1c0] sm:$0xff] %vm476, %v4615
    %4620 = vst.msk [vmem:[#allocation2 + $0x1c8] sm:$0xff] %vm476, %v4616
    %4621 = vst.msk [vmem:[#allocation2 + $0x1d0] sm:$0xff] %vm476, %v4617
    %4622 = vst.msk [vmem:[#allocation2 + $0x1d8] sm:$0xff] %vm476, %v4618
    %v4623 = vmul.f32 %v4308, %v4615
    %v4624 = vmul.f32 %v4310, %v4616
    %v4625 = vmul.f32 %v4312, %v4617
    %v4626 = vmul.f32 %v4314, %v4618
    %v4627 = vadd.f32 %v4623, %v4439
    %v4628 = vadd.f32 %v4624, %v4440
    %v4629 = vadd.f32 %v4625, %v4441
    %v4630 = vadd.f32 %v4626, %v4442
    %4631 = vst.msk [vmem:[#allocation2 + $0x1e0] sm:$0xff] %vm476, %v4627
    %4632 = vst.msk [vmem:[#allocation2 + $0x1e8] sm:$0xff] %vm476, %v4628
    %4633 = vst.msk [vmem:[#allocation2 + $0x1f0] sm:$0xff] %vm476, %v4629
    %4634 = vst.msk [vmem:[#allocation2 + $0x1f8] sm:$0xff] %vm476, %v4630
    %v4635 = vld [vmem:[#allocation2] sm:$0xff]
    %v4636 = vld [vmem:[#allocation2 + $0x8] sm:$0xff]
    %v4637 = vld [vmem:[#allocation2 + $0x10] sm:$0xff]
    %v4638 = vld [vmem:[#allocation2 + $0x18] sm:$0xff]
    %v4639 = vld [vmem:[#allocation2 + $0x20] sm:$0xff]
    %v4640 = vld [vmem:[#allocation2 + $0x28] sm:$0xff]
    %v4641 = vld [vmem:[#allocation2 + $0x30] sm:$0xff]
    %v4642 = vld [vmem:[#allocation2 + $0x38] sm:$0xff]
    %v4643 = vld [vmem:[#allocation2 + $0x40] sm:$0xff]
    %v4644 = vld [vmem:[#allocation2 + $0x48] sm:$0xff]
    %v4645 = vld [vmem:[#allocation2 + $0x50] sm:$0xff]
    %v4646 = vld [vmem:[#allocation2 + $0x58] sm:$0xff]
    %v4647 = vld [vmem:[#allocation2 + $0x60] sm:$0xff]
    %v4648 = vld [vmem:[#allocation2 + $0x68] sm:$0xff]
    %v4649 = vld [vmem:[#allocation2 + $0x70] sm:$0xff]
    %v4650 = vld [vmem:[#allocation2 + $0x78] sm:$0xff]
    %v4651 = vld [vmem:[#allocation2 + $0x80] sm:$0xff]
    %v4652 = vld [vmem:[#allocation2 + $0x88] sm:$0xff]
    %v4653 = vld [vmem:[#allocation2 + $0x90] sm:$0xff]
    %v4654 = vld [vmem:[#allocation2 + $0x98] sm:$0xff]
    %v4655 = vld [vmem:[#allocation2 + $0xa0] sm:$0xff]
    %v4656 = vld [vmem:[#allocation2 + $0xa8] sm:$0xff]
    %v4657 = vld [vmem:[#allocation2 + $0xb0] sm:$0xff]
    %v4658 = vld [vmem:[#allocation2 + $0xb8] sm:$0xff]
    %v4659 = vld [vmem:[#allocation2 + $0xc0] sm:$0xff]
    %v4660 = vld [vmem:[#allocation2 + $0xc8] sm:$0xff]
    %v4661 = vld [vmem:[#allocation2 + $0xd0] sm:$0xff]
    %v4662 = vld [vmem:[#allocation2 + $0xd8] sm:$0xff]
    %v4663 = vld [vmem:[#allocation2 + $0xe0] sm:$0xff]
    %v4664 = vld [vmem:[#allocation2 + $0xe8] sm:$0xff]
    %v4665 = vld [vmem:[#allocation2 + $0xf0] sm:$0xff]
    %v4666 = vld [vmem:[#allocation2 + $0xf8] sm:$0xff]
    %v4667 = vld [vmem:[#allocation2 + $0x100] sm:$0xff]
    %v4668 = vld [vmem:[#allocation2 + $0x108] sm:$0xff]
    %v4669 = vld [vmem:[#allocation2 + $0x110] sm:$0xff]
    %v4670 = vld [vmem:[#allocation2 + $0x118] sm:$0xff]
    %v4671 = vld [vmem:[#allocation2 + $0x120] sm:$0xff]
    %v4672 = vld [vmem:[#allocation2 + $0x128] sm:$0xff]
    %v4673 = vld [vmem:[#allocation2 + $0x130] sm:$0xff]
    %v4674 = vld [vmem:[#allocation2 + $0x138] sm:$0xff]
    %v4675 = vld [vmem:[#allocation2 + $0x140] sm:$0xff]
    %v4676 = vld [vmem:[#allocation2 + $0x148] sm:$0xff]
    %v4677 = vld [vmem:[#allocation2 + $0x150] sm:$0xff]
    %v4678 = vld [vmem:[#allocation2 + $0x158] sm:$0xff]
    %v4679 = vld [vmem:[#allocation2 + $0x160] sm:$0xff]
    %v4680 = vld [vmem:[#allocation2 + $0x168] sm:$0xff]
    %v4681 = vld [vmem:[#allocation2 + $0x170] sm:$0xff]
    %v4682 = vld [vmem:[#allocation2 + $0x178] sm:$0xff]
    %v4683 = vld [vmem:[#allocation2 + $0x180] sm:$0xff]
    %v4684 = vld [vmem:[#allocation2 + $0x188] sm:$0xff]
    %v4685 = vld [vmem:[#allocation2 + $0x190] sm:$0xff]
    %v4686 = vld [vmem:[#allocation2 + $0x198] sm:$0xff]
    %v4687 = vld [vmem:[#allocation2 + $0x1a0] sm:$0xff]
    %v4688 = vld [vmem:[#allocation2 + $0x1a8] sm:$0xff]
    %v4689 = vld [vmem:[#allocation2 + $0x1b0] sm:$0xff]
    %v4690 = vld [vmem:[#allocation2 + $0x1b8] sm:$0xff]
    %v4691 = vld [vmem:[#allocation2 + $0x1c0] sm:$0xff]
    %v4692 = vld [vmem:[#allocation2 + $0x1c8] sm:$0xff]
    %v4693 = vld [vmem:[#allocation2 + $0x1d0] sm:$0xff]
    %v4694 = vld [vmem:[#allocation2 + $0x1d8] sm:$0xff]
    %v4695 = vld [vmem:[#allocation2 + $0x1e0] sm:$0xff]
    %v4696 = vld [vmem:[#allocation2 + $0x1e8] sm:$0xff]
    %v4697 = vld [vmem:[#allocation2 + $0x1f0] sm:$0xff]
    %v4698 = vld [vmem:[#allocation2 + $0x1f8] sm:$0xff]
    %v4699 = vmul.f32 %v4635, %v3354
    %v4700 = vmul.f32 %v4636, %v3357
    %v4701 = vmul.f32 %v4637, %v3360
    %v4702 = vmul.f32 %v4638, %v3363
    %v4703 = vmul.f32 %v4639, %v3366
    %v4704 = vmul.f32 %v4640, %v3369
    %v4705 = vmul.f32 %v4641, %v3372
    %v4706 = vmul.f32 %v4642, %v3375
    %v4707 = vmul.f32 %v4643, %v3378
    %v4708 = vmul.f32 %v4644, %v3381
    %v4709 = vmul.f32 %v4645, %v3384
    %v4710 = vmul.f32 %v4646, %v3387
    %v4711 = vmul.f32 %v4647, %v3390
    %v4712 = vmul.f32 %v4648, %v3393
    %v4713 = vmul.f32 %v4649, %v3396
    %v4714 = vmul.f32 %v4650, %v3399
    %v4715 = vmul.f32 %v4651, %v3402
    %v4716 = vmul.f32 %v4652, %v3405
    %v4717 = vmul.f32 %v4653, %v3408
    %v4718 = vmul.f32 %v4654, %v3411
    %v4719 = vmul.f32 %v4655, %v3414
    %v4720 = vmul.f32 %v4656, %v3417
    %v4721 = vmul.f32 %v4657, %v3420
    %v4722 = vmul.f32 %v4658, %v3423
    %v4723 = vmul.f32 %v4659, %v3426
    %v4724 = vmul.f32 %v4660, %v3429
    %v4725 = vmul.f32 %v4661, %v3432
    %v4726 = vmul.f32 %v4662, %v3435
    %v4727 = vmul.f32 %v4663, %v3438
    %v4728 = vmul.f32 %v4664, %v3441
    %v4729 = vmul.f32 %v4665, %v3444
    %v4730 = vmul.f32 %v4666, %v3447
    %v4731 = vmul.f32 %v4667, %v3450
    %v4732 = vmul.f32 %v4668, %v3453
    %v4733 = vmul.f32 %v4669, %v3456
    %v4734 = vmul.f32 %v4670, %v3459
    %v4735 = vmul.f32 %v4671, %v3462
    %v4736 = vmul.f32 %v4672, %v3465
    %v4737 = vmul.f32 %v4673, %v3468
    %v4738 = vmul.f32 %v4674, %v3471
    %v4739 = vmul.f32 %v4675, %v3474
    %v4740 = vmul.f32 %v4676, %v3477
    %v4741 = vmul.f32 %v4677, %v3480
    %v4742 = vmul.f32 %v4678, %v3483
    %v4743 = vmul.f32 %v4679, %v3486
    %v4744 = vmul.f32 %v4680, %v3489
    %v4745 = vmul.f32 %v4681, %v3492
    %v4746 = vmul.f32 %v4682, %v3495
    %v4747 = vmul.f32 %v4683, %v3498
    %v4748 = vmul.f32 %v4684, %v3501
    %v4749 = vmul.f32 %v4685, %v3504
    %v4750 = vmul.f32 %v4686, %v3507
    %v4751 = vmul.f32 %v4687, %v3510
    %v4752 = vmul.f32 %v4688, %v3513
    %v4753 = vmul.f32 %v4689, %v3516
    %v4754 = vmul.f32 %v4690, %v3519
    %v4755 = vmul.f32 %v4691, %v3522
    %v4756 = vmul.f32 %v4692, %v3525
    %v4757 = vmul.f32 %v4693, %v3528
    %v4758 = vmul.f32 %v4694, %v3531
    %v4759 = vmul.f32 %v4695, %v3534
    %v4760 = vmul.f32 %v4696, %v3537
    %v4761 = vmul.f32 %v4697, %v3540
    %v4762 = vmul.f32 %v4698, %v3543
    %v4763 = vld [vmem:[#allocation12] sm:$0x1]
    %v4765 = vlaneseq
    %v4766 = vshrl.u32 %v4765, 7
    %v4767 = vsub.s32 0, %v4766
    %v4768 = vrot.slane %v4763, %v4767
    %v4770 = vmul.f32 %v941, %v4768
    %v4771 = vmul.f32 %v942, %v4768
    %v4772 = vmul.f32 %v943, %v4768
    %v4773 = vmul.f32 %v944, %v4768
    %4774 = vmatprep.subr.mxu0 0.0
    %4775 = vmatpush1.msra.mxu0 %v4699
    %4776 = vmatprep.subr.mxu0 0.0
    %4777 = vmatpush1.msra.mxu0 %v4700
    %4778 = vmatprep.subr.mxu0 0.0
    %4779 = vmatpush1.msra.mxu0 %v4701
    %4780 = vmatprep.subr.mxu0 0.0
    %4781 = vmatpush1.msra.mxu0 %v4702
    %4782 = vmatprep.subr.mxu0 0.0
    %4783 = vmatpush1.msra.mxu0 %v4703
    %4784 = vmatprep.subr.mxu0 0.0
    %4785 = vmatpush1.msra.mxu0 %v4704
    %4786 = vmatprep.subr.mxu0 0.0
    %4787 = vmatpush1.msra.mxu0 %v4705
    %4788 = vmatprep.subr.mxu0 0.0
    %4789 = vmatpush1.msra.mxu0 %v4706
    %4790 = vmatprep.subr.mxu0 0.0
    %4791 = vmatpush1.msra.mxu0 %v4707
    %4792 = vmatprep.subr.mxu0 0.0
    %4793 = vmatpush1.msra.mxu0 %v4708
    %4794 = vmatprep.subr.mxu0 0.0
    %4795 = vmatpush1.msra.mxu0 %v4709
    %4796 = vmatprep.subr.mxu0 0.0
    %4797 = vmatpush1.msra.mxu0 %v4710
    %4798 = vmatprep.subr.mxu0 0.0
    %4799 = vmatpush1.msra.mxu0 %v4711
    %4800 = vmatprep.subr.mxu0 0.0
    %4801 = vmatpush1.msra.mxu0 %v4712
    %4802 = vmatprep.subr.mxu0 0.0
    %4803 = vmatpush1.msra.mxu0 %v4713
    %4804 = vmatprep.subr.mxu0 0.0
    %4805 = vmatpush1.msra.mxu0 %v4714
    %4806 = vmatprep.subr.mxu0 0.0
    %4807 = vmatpush1.msra.mxu0 %v4715
    %4808 = vmatprep.subr.mxu0 0.0
    %4809 = vmatpush1.msra.mxu0 %v4716
    %4810 = vmatprep.subr.mxu0 0.0
    %4811 = vmatpush1.msra.mxu0 %v4717
    %4812 = vmatprep.subr.mxu0 0.0
    %4813 = vmatpush1.msra.mxu0 %v4718
    %4814 = vmatprep.subr.mxu0 0.0
    %4815 = vmatpush1.msra.mxu0 %v4719
    %4816 = vmatprep.subr.mxu0 0.0
    %4817 = vmatpush1.msra.mxu0 %v4720
    %4818 = vmatprep.subr.mxu0 0.0
    %4819 = vmatpush1.msra.mxu0 %v4721
    %4820 = vmatprep.subr.mxu0 0.0
    %4821 = vmatpush1.msra.mxu0 %v4722
    %4822 = vmatprep.subr.mxu0 0.0
    %4823 = vmatpush1.msra.mxu0 %v4723
    %4824 = vmatprep.subr.mxu0 0.0
    %4825 = vmatpush1.msra.mxu0 %v4724
    %4826 = vmatprep.subr.mxu0 0.0
    %4827 = vmatpush1.msra.mxu0 %v4725
    %4828 = vmatprep.subr.mxu0 0.0
    %4829 = vmatpush1.msra.mxu0 %v4726
    %4830 = vmatprep.subr.mxu0 0.0
    %4831 = vmatpush1.msra.mxu0 %v4727
    %4832 = vmatprep.subr.mxu0 0.0
    %4833 = vmatpush1.msra.mxu0 %v4728
    %4834 = vmatprep.subr.mxu0 0.0
    %4835 = vmatpush1.msra.mxu0 %v4729
    %4836 = vmatprep.subr.mxu0 0.0
    %4837 = vmatpush1.msra.mxu0 %v4730
    %4838 = vmatprep.mubr.f32.mxu0 %v224
    %4839 = vmatmul.mubr.f32.gmra.mrb[0].mxu0 %v223
    %v4840 = vpop.f32.mrb[0].mxu0
    %v4841 = vadd.f32 %v4770, %v4840
    %v4842 = vpop.f32.mrb[0].mxu0
    %4843 = vmatprep.mubr.f32.mxu0 %v228
    %4844 = vmatmul.mubr.f32.gmra.mrb[0].mxu0 %v227
    %v4845 = vpop.f32.mrb[0].mxu0
    %v4846 = vadd.f32 %v4771, %v4845
    %v4847 = vpop.f32.mrb[0].mxu0
    %4848 = vmatprep.mubr.f32.mxu0 %v232
    %4849 = vmatmul.mubr.f32.gmra.mrb[0].mxu0 %v231
    %v4850 = vpop.f32.mrb[0].mxu0
    %v4851 = vadd.f32 %v4772, %v4850
    %v4852 = vpop.f32.mrb[0].mxu0
    %4853 = vmatprep.mubr.f32.mxu0 %v236
    %4854 = vmatmul.mubr.f32.gmra.mrb[0].mxu0 %v235
    %v4855 = vpop.f32.mrb[0].mxu0
    %v4856 = vadd.f32 %v4773, %v4855
    %v4857 = vpop.f32.mrb[0].mxu0
    %4858 = vdwg.mxu0
    %4859 = vmatprep.subr.mxu0 0.0
    %4860 = vmatpush1.msra.mxu0 %v4731
    %4861 = vmatprep.subr.mxu0 0.0
    %4862 = vmatpush1.msra.mxu0 %v4732
    %4863 = vmatprep.subr.mxu0 0.0
    %4864 = vmatpush1.msra.mxu0 %v4733
    %4865 = vmatprep.subr.mxu0 0.0
    %4866 = vmatpush1.msra.mxu0 %v4734
    %4867 = vmatprep.subr.mxu0 0.0
    %4868 = vmatpush1.msra.mxu0 %v4735
    %4869 = vmatprep.subr.mxu0 0.0
    %4870 = vmatpush1.msra.mxu0 %v4736
    %4871 = vmatprep.subr.mxu0 0.0
    %4872 = vmatpush1.msra.mxu0 %v4737
    %4873 = vmatprep.subr.mxu0 0.0
    %4874 = vmatpush1.msra.mxu0 %v4738
    %4875 = vmatprep.subr.mxu0 0.0
    %4876 = vmatpush1.msra.mxu0 %v4739
    %4877 = vmatprep.subr.mxu0 0.0
    %4878 = vmatpush1.msra.mxu0 %v4740
    %4879 = vmatprep.subr.mxu0 0.0
    %4880 = vmatpush1.msra.mxu0 %v4741
    %4881 = vmatprep.subr.mxu0 0.0
    %4882 = vmatpush1.msra.mxu0 %v4742
    %4883 = vmatprep.subr.mxu0 0.0
    %4884 = vmatpush1.msra.mxu0 %v4743
    %4885 = vmatprep.subr.mxu0 0.0
    %4886 = vmatpush1.msra.mxu0 %v4744
    %4887 = vmatprep.subr.mxu0 0.0
    %4888 = vmatpush1.msra.mxu0 %v4745
    %4889 = vmatprep.subr.mxu0 0.0
    %4890 = vmatpush1.msra.mxu0 %v4746
    %4891 = vmatprep.subr.mxu0 0.0
    %4892 = vmatpush1.msra.mxu0 %v4747
    %4893 = vmatprep.subr.mxu0 0.0
    %4894 = vmatpush1.msra.mxu0 %v4748
    %4895 = vmatprep.subr.mxu0 0.0
    %4896 = vmatpush1.msra.mxu0 %v4749
    %4897 = vmatprep.subr.mxu0 0.0
    %4898 = vmatpush1.msra.mxu0 %v4750
    %4899 = vmatprep.subr.mxu0 0.0
    %4900 = vmatpush1.msra.mxu0 %v4751
    %4901 = vmatprep.subr.mxu0 0.0
    %4902 = vmatpush1.msra.mxu0 %v4752
    %4903 = vmatprep.subr.mxu0 0.0
    %4904 = vmatpush1.msra.mxu0 %v4753
    %4905 = vmatprep.subr.mxu0 0.0
    %4906 = vmatpush1.msra.mxu0 %v4754
    %4907 = vmatprep.subr.mxu0 0.0
    %4908 = vmatpush1.msra.mxu0 %v4755
    %4909 = vmatprep.subr.mxu0 0.0
    %4910 = vmatpush1.msra.mxu0 %v4756
    %4911 = vmatprep.subr.mxu0 0.0
    %4912 = vmatpush1.msra.mxu0 %v4757
    %4913 = vmatprep.subr.mxu0 0.0
    %4914 = vmatpush1.msra.mxu0 %v4758
    %4915 = vmatprep.subr.mxu0 0.0
    %4916 = vmatpush1.msra.mxu0 %v4759
    %4917 = vmatprep.subr.mxu0 0.0
    %4918 = vmatpush1.msra.mxu0 %v4760
    %4919 = vmatprep.subr.mxu0 0.0
    %4920 = vmatpush1.msra.mxu0 %v4761
    %4921 = vmatprep.subr.mxu0 0.0
    %4922 = vmatpush1.msra.mxu0 %v4762
    %4923 = vmatprep.mubr.f32.mxu0 %v226
    %4924 = vmatmul.mubr.f32.gmra.mrb[0].mxu0 %v225
    %v4925 = vpop.f32.mrb[0].mxu0
    %v4926 = vadd.f32 %v4841, %v4925
    %v4927 = vpop.f32.mrb[0].mxu0
    %4928 = vmatprep.mubr.f32.mxu0 %v230
    %4929 = vmatmul.mubr.f32.gmra.mrb[0].mxu0 %v229
    %v4930 = vpop.f32.mrb[0].mxu0
    %v4931 = vadd.f32 %v4846, %v4930
    %v4932 = vpop.f32.mrb[0].mxu0
    %4933 = vmatprep.mubr.f32.mxu0 %v234
    %4934 = vmatmul.mubr.f32.gmra.mrb[0].mxu0 %v233
    %v4935 = vpop.f32.mrb[0].mxu0
    %v4936 = vadd.f32 %v4851, %v4935
    %v4937 = vpop.f32.mrb[0].mxu0
    %4938 = vmatprep.mubr.f32.mxu0 %v238
    %4939 = vmatmul.mubr.f32.gmra.mrb[0].mxu0 %v237
    %v4940 = vpop.f32.mrb[0].mxu0
    %v4941 = vadd.f32 %v4856, %v4940
    %v4942 = vpop.f32.mrb[0].mxu0
    %4943 = vdwg.mxu0
    %v4944 = vxor.u32 %v845, 2147483648
    %v4945 = vxor.u32 %v850, 2147483648
    %v4946 = vxor.u32 %v855, 2147483648
    %v4947 = vxor.u32 %v860, 2147483648
    %v4948 = vmul.f32 %v4944, 1.442695
    %v4949 = vpow.pop %v4948
    %v4950 = vmul.f32 %v4945, 1.442695
    %v4951 = vpow.pop %v4950
    %v4952 = vmul.f32 %v4946, 1.442695
    %v4953 = vpow.pop %v4952
    %v4954 = vmul.f32 %v4947, 1.442695
    %v4955 = vpow.pop %v4954
    %v4956 = vadd.f32 %v4949, 1.0
    %v4957 = vadd.f32 %v4951, 1.0
    %v4958 = vadd.f32 %v4953, 1.0
    %v4959 = vadd.f32 %v4955, 1.0
    %v4960 = vrcp.pop %v4956
    %v4961 = vmul.f32 1.0, %v4960
    %v4962 = vrcp.pop %v4957
    %v4963 = vmul.f32 1.0, %v4962
    %v4964 = vrcp.pop %v4958
    %v4965 = vmul.f32 1.0, %v4964
    %v4966 = vrcp.pop %v4959
    %v4967 = vmul.f32 1.0, %v4966
    %v4968 = vmul.f32 %v845, %v4961
    %v4969 = vmul.f32 %v850, %v4963
    %v4970 = vmul.f32 %v855, %v4965
    %v4971 = vmul.f32 %v860, %v4967
    %v4972 = vmul.f32 %v4926, %v4968
    %v4973 = vmul.f32 %v4931, %v4969
    %v4974 = vmul.f32 %v4936, %v4970
    %v4975 = vmul.f32 %v4941, %v4971
    %v4976 = vld [vmem:[%s17] sm:$0xff]
    %v4977 = vld [vmem:[%s17 + $0x8] sm:$0xff]
    %v4978 = vld [vmem:[%s17 + $0x10] sm:$0xff]
    %v4979 = vld [vmem:[%s17 + $0x18] sm:$0xff]
    %v4980 = vld [vmem:[%s17 + $0x20] sm:$0xff]
    %v4981 = vld [vmem:[%s17 + $0x28] sm:$0xff]
    %v4982 = vld [vmem:[%s17 + $0x30] sm:$0xff]
    %v4983 = vld [vmem:[%s17 + $0x38] sm:$0xff]
    %v4985 = vsel %vm476, %v4972, 0
    %v4988 = vsel %vm476, %v4973, 0
    %v4991 = vsel %vm476, %v4974, 0
    %v4994 = vsel %vm476, %v4975, 0
    %4996 = vmatprep.subr.mxu0 0.0
    %4997 = vmatpush1.msra.mxu0 %v4976
    %4998 = vmatprep.subr.mxu0 0.0
    %4999 = vmatpush1.msra.mxu0 %v4977
    %5000 = vmatprep.subr.mxu0 0.0
    %5001 = vmatpush1.msra.mxu0 %v4978
    %5002 = vmatprep.subr.mxu0 0.0
    %5003 = vmatpush1.msra.mxu0 %v4979
    %5004 = vmatprep.subr.mxu0 0.0
    %5005 = vmatpush1.msra.mxu0 %v4980
    %5006 = vmatprep.subr.mxu0 0.0
    %5007 = vmatpush1.msra.mxu0 %v4981
    %5008 = vmatprep.subr.mxu0 0.0
    %5009 = vmatpush1.msra.mxu0 %v4982
    %5010 = vmatprep.subr.mxu0 0.0
    %5011 = vmatpush1.msra.mxu0 %v4983
    %5012 = vmatprep.subr.mxu0 0.0
    %5013 = vmatpush1.msra.mxu0 0.0
    %5014 = vmatprep.subr.mxu0 0.0
    %5015 = vmatpush1.msra.mxu0 0.0
    %5016 = vmatprep.subr.mxu0 0.0
    %5017 = vmatpush1.msra.mxu0 0.0
    %5018 = vmatprep.subr.mxu0 0.0
    %5019 = vmatpush1.msra.mxu0 0.0
    %5020 = vmatprep.subr.mxu0 0.0
    %5021 = vmatpush1.msra.mxu0 0.0
    %5022 = vmatprep.subr.mxu0 0.0
    %5023 = vmatpush1.msra.mxu0 0.0
    %5024 = vmatprep.subr.mxu0 0.0
    %5025 = vmatpush1.msra.mxu0 0.0
    %5026 = vmatprep.subr.mxu0 0.0
    %5027 = vmatpush1.msra.mxu0 0.0
    %5028 = vmatprep.subr.mxu0 0.0
    %5029 = vmatpush1.msra.mxu0 0.0
    %5030 = vmatprep.subr.mxu0 0.0
    %5031 = vmatpush1.msra.mxu0 0.0
    %5032 = vmatprep.subr.mxu0 0.0
    %5033 = vmatpush1.msra.mxu0 0.0
    %5034 = vmatprep.subr.mxu0 0.0
    %5035 = vmatpush1.msra.mxu0 0.0
    %5036 = vmatprep.subr.mxu0 0.0
    %5037 = vmatpush1.msra.mxu0 0.0
    %5038 = vmatprep.subr.mxu0 0.0
    %5039 = vmatpush1.msra.mxu0 0.0
    %5040 = vmatprep.subr.mxu0 0.0
    %5041 = vmatpush1.msra.mxu0 0.0
    %5042 = vmatprep.subr.mxu0 0.0
    %5043 = vmatpush1.msra.mxu0 0.0
    %5044 = vmatprep.subr.mxu0 0.0
    %5045 = vmatpush1.msra.mxu0 0.0
    %5046 = vmatprep.subr.mxu0 0.0
    %5047 = vmatpush1.msra.mxu0 0.0
    %5048 = vmatprep.subr.mxu0 0.0
    %5049 = vmatpush1.msra.mxu0 0.0
    %5050 = vmatprep.subr.mxu0 0.0
    %5051 = vmatpush1.msra.mxu0 0.0
    %5052 = vmatprep.subr.mxu0 0.0
    %5053 = vmatpush1.msra.mxu0 0.0
    %5054 = vmatprep.subr.mxu0 0.0
    %5055 = vmatpush1.msra.mxu0 0.0
    %5056 = vmatprep.subr.mxu0 0.0
    %5057 = vmatpush1.msra.mxu0 0.0
    %5058 = vmatprep.subr.mxu0 0.0
    %5059 = vmatpush1.msra.mxu0 0.0
    %5060 = vmatprep.mubr.f32.mxu0 0.0
    %5061 = vmatmul.mubr.f32.gmra.mrb[0].mxu0 %v4985
    %v5062 = vpop.f32.mrb[0].mxu0
    %v5063 = vadd.f32 0.0, %v5062
    %v5064 = vpop.f32.mrb[0].mxu0
    %5065 = vmatprep.mubr.f32.mxu0 0.0
    %5066 = vmatmul.mubr.f32.gmra.mrb[0].mxu0 %v4988
    %v5067 = vpop.f32.mrb[0].mxu0
    %v5068 = vadd.f32 0.0, %v5067
    %v5069 = vpop.f32.mrb[0].mxu0
    %5070 = vmatprep.mubr.f32.mxu0 0.0
    %5071 = vmatmul.mubr.f32.gmra.mrb[0].mxu0 %v4991
    %v5072 = vpop.f32.mrb[0].mxu0
    %v5073 = vadd.f32 0.0, %v5072
    %v5074 = vpop.f32.mrb[0].mxu0
    %5075 = vmatprep.mubr.f32.mxu0 0.0
    %5076 = vmatmul.mubr.f32.gmra.mrb[0].mxu0 %v4994
    %v5077 = vpop.f32.mrb[0].mxu0
    %v5078 = vadd.f32 0.0, %v5077
    %v5079 = vpop.f32.mrb[0].mxu0
    %5080 = vdwg.mxu0
    %v5081 = vadd.f32 %v580, %v5063
    %v5082 = vadd.f32 %v585, %v5068
    %v5083 = vadd.f32 %v590, %v5073
    %v5084 = vadd.f32 %v595, %v5078
    %v5085 = vsel %vm471, %v5081, 0.0
    %5086 = vadd.xlane.f32.xlu0 %v5085
    %v5087 = vpop.xlane.xlu0 %5086
    %v5088 = vsel %vm471, %v5082, 0.0
    %5089 = vadd.xlane.f32.xlu0 %v5088
    %v5090 = vpop.xlane.xlu0 %5089
    %v5091 = vsel %vm471, %v5083, 0.0
    %5092 = vadd.xlane.f32.xlu0 %v5091
    %v5093 = vpop.xlane.xlu0 %5092
    %v5094 = vsel %vm471, %v5084, 0.0
    %5095 = vadd.xlane.f32.xlu0 %v5094
    %v5096 = vpop.xlane.xlu0 %5095
    %v5097 = vmul.f32 %v5087, %v610
    %v5098 = vmul.f32 %v5090, %v610
    %v5099 = vmul.f32 %v5093, %v610
    %v5100 = vmul.f32 %v5096, %v610
    %v5101 = vsub.f32 %v5081, %v5097
    %v5102 = vsub.f32 %v5082, %v5098
    %v5103 = vsub.f32 %v5083, %v5099
    %v5104 = vsub.f32 %v5084, %v5100
    %v5105 = vmul.f32 %v5101, %v5101
    %v5106 = vmul.f32 %v5102, %v5102
    %v5107 = vmul.f32 %v5103, %v5103
    %v5108 = vmul.f32 %v5104, %v5104
    %v5109 = vsel %vm471, %v5105, 0.0
    %5110 = vadd.xlane.f32.xlu0 %v5109
    %v5111 = vpop.xlane.xlu0 %5110
    %v5112 = vsel %vm471, %v5106, 0.0
    %5113 = vadd.xlane.f32.xlu0 %v5112
    %v5114 = vpop.xlane.xlu0 %5113
    %v5115 = vsel %vm471, %v5107, 0.0
    %5116 = vadd.xlane.f32.xlu0 %v5115
    %v5117 = vpop.xlane.xlu0 %5116
    %v5118 = vsel %vm471, %v5108, 0.0
    %5119 = vadd.xlane.f32.xlu0 %v5118
    %v5120 = vpop.xlane.xlu0 %5119
    %v5121 = vmul.f32 %v5111, %v610
    %v5122 = vmul.f32 %v5114, %v610
    %v5123 = vmul.f32 %v5117, %v610
    %v5124 = vmul.f32 %v5120, %v610
    %v5125 = vadd.f32 %v5121, 1e-05
    %v5126 = vadd.f32 %v5122, 1e-05
    %v5127 = vadd.f32 %v5123, 1e-05
    %v5128 = vadd.f32 %v5124, 1e-05
    %v5129 = vrsqrt.pop %v5125
    %v5130 = vrsqrt.pop %v5126
    %v5131 = vrsqrt.pop %v5127
    %v5132 = vrsqrt.pop %v5128
    %v5133 = vmul.f32 %v5101, %v5129
    %v5134 = vmul.f32 %v5102, %v5130
    %v5135 = vmul.f32 %v5103, %v5131
    %v5136 = vmul.f32 %v5104, %v5132
    %s5137 = scalar_lea.vmem %s5, 1
    %v5138 = vld [vmem:[%s5137] sm:$0x1]
    %v5140 = vlaneseq
    %v5141 = vshrl.u32 %v5140, 7
    %v5142 = vsub.s32 0, %v5141
    %v5143 = vrot.slane %v5138, %v5142
    %v5145 = vmul.f32 %v5133, %v5143
    %v5146 = vmul.f32 %v5134, %v5143
    %v5147 = vmul.f32 %v5135, %v5143
    %v5148 = vmul.f32 %v5136, %v5143
    %s5149 = scalar_lea.vmem %s6, 1
    %v5150 = vld [vmem:[%s5149] sm:$0x1]
    %v5152 = vlaneseq
    %v5153 = vshrl.u32 %v5152, 7
    %v5154 = vsub.s32 0, %v5153
    %v5155 = vrot.slane %v5150, %v5154
    %v5157 = vadd.f32 %v5145, %v5155
    %v5158 = vadd.f32 %v5146, %v5155
    %v5159 = vadd.f32 %v5147, %v5155
    %v5160 = vadd.f32 %v5148, %v5155
    %s5161 = scalar_lea.vmem %s7, 32
    %v5162 = vld [vmem:[%s5161] sm:$0xff]
    %v5163 = vld [vmem:[%s5161 + $0x8] sm:$0xff]
    %v5164 = vld [vmem:[%s5161 + $0x10] sm:$0xff]
    %v5165 = vld [vmem:[%s5161 + $0x18] sm:$0xff]
    %v5167 = vsel %vm471, %v5157, 0
    %v5170 = vsel %vm471, %v5158, 0
    %v5173 = vsel %vm471, %v5159, 0
    %v5176 = vsel %vm471, %v5160, 0
    %5178 = vmatprep.subr.mxu0 0.0
    %5179 = vmatpush1.msra.mxu0 %v5162
    %5180 = vmatprep.subr.mxu0 0.0
    %5181 = vmatpush1.msra.mxu0 %v5163
    %5182 = vmatprep.subr.mxu0 0.0
    %5183 = vmatpush1.msra.mxu0 %v5164
    %5184 = vmatprep.subr.mxu0 0.0
    %5185 = vmatpush1.msra.mxu0 %v5165
    %5186 = vmatprep.subr.mxu0 0.0
    %5187 = vmatpush1.msra.mxu0 0.0
    %5188 = vmatprep.subr.mxu0 0.0
    %5189 = vmatpush1.msra.mxu0 0.0
    %5190 = vmatprep.subr.mxu0 0.0
    %5191 = vmatpush1.msra.mxu0 0.0
    %5192 = vmatprep.subr.mxu0 0.0
    %5193 = vmatpush1.msra.mxu0 0.0
    %5194 = vmatprep.subr.mxu0 0.0
    %5195 = vmatpush1.msra.mxu0 0.0
    %5196 = vmatprep.subr.mxu0 0.0
    %5197 = vmatpush1.msra.mxu0 0.0
    %5198 = vmatprep.subr.mxu0 0.0
    %5199 = vmatpush1.msra.mxu0 0.0
    %5200 = vmatprep.subr.mxu0 0.0
    %5201 = vmatpush1.msra.mxu0 0.0
    %5202 = vmatprep.subr.mxu0 0.0
    %5203 = vmatpush1.msra.mxu0 0.0
    %5204 = vmatprep.subr.mxu0 0.0
    %5205 = vmatpush1.msra.mxu0 0.0
    %5206 = vmatprep.subr.mxu0 0.0
    %5207 = vmatpush1.msra.mxu0 0.0
    %5208 = vmatprep.subr.mxu0 0.0
    %5209 = vmatpush1.msra.mxu0 0.0
    %5210 = vmatprep.subr.mxu0 0.0
    %5211 = vmatpush1.msra.mxu0 0.0
    %5212 = vmatprep.subr.mxu0 0.0
    %5213 = vmatpush1.msra.mxu0 0.0
    %5214 = vmatprep.subr.mxu0 0.0
    %5215 = vmatpush1.msra.mxu0 0.0
    %5216 = vmatprep.subr.mxu0 0.0
    %5217 = vmatpush1.msra.mxu0 0.0
    %5218 = vmatprep.subr.mxu0 0.0
    %5219 = vmatpush1.msra.mxu0 0.0
    %5220 = vmatprep.subr.mxu0 0.0
    %5221 = vmatpush1.msra.mxu0 0.0
    %5222 = vmatprep.subr.mxu0 0.0
    %5223 = vmatpush1.msra.mxu0 0.0
    %5224 = vmatprep.subr.mxu0 0.0
    %5225 = vmatpush1.msra.mxu0 0.0
    %5226 = vmatprep.subr.mxu0 0.0
    %5227 = vmatpush1.msra.mxu0 0.0
    %5228 = vmatprep.subr.mxu0 0.0
    %5229 = vmatpush1.msra.mxu0 0.0
    %5230 = vmatprep.subr.mxu0 0.0
    %5231 = vmatpush1.msra.mxu0 0.0
    %5232 = vmatprep.subr.mxu0 0.0
    %5233 = vmatpush1.msra.mxu0 0.0
    %5234 = vmatprep.subr.mxu0 0.0
    %5235 = vmatpush1.msra.mxu0 0.0
    %5236 = vmatprep.subr.mxu0 0.0
    %5237 = vmatpush1.msra.mxu0 0.0
    %5238 = vmatprep.subr.mxu0 0.0
    %5239 = vmatpush1.msra.mxu0 0.0
    %5240 = vmatprep.subr.mxu0 0.0
    %5241 = vmatpush1.msra.mxu0 0.0
    %5242 = vmatprep.mubr.f32.mxu0 0.0
    %5243 = vmatmul.mubr.f32.gmra.mrb[0].mxu0 %v5167
    %v5244 = vpop.f32.mrb[0].mxu0
    %v5245 = vadd.f32 0.0, %v5244
    %v5246 = vpop.f32.mrb[0].mxu0
    %5247 = vmatprep.mubr.f32.mxu0 0.0
    %5248 = vmatmul.mubr.f32.gmra.mrb[0].mxu0 %v5170
    %v5249 = vpop.f32.mrb[0].mxu0
    %v5250 = vadd.f32 0.0, %v5249
    %v5251 = vpop.f32.mrb[0].mxu0
    %5252 = vmatprep.mubr.f32.mxu0 0.0
    %5253 = vmatmul.mubr.f32.gmra.mrb[0].mxu0 %v5173
    %v5254 = vpop.f32.mrb[0].mxu0
    %v5255 = vadd.f32 0.0, %v5254
    %v5256 = vpop.f32.mrb[0].mxu0
    %5257 = vmatprep.mubr.f32.mxu0 0.0
    %5258 = vmatmul.mubr.f32.gmra.mrb[0].mxu0 %v5176
    %v5259 = vpop.f32.mrb[0].mxu0
    %v5260 = vadd.f32 0.0, %v5259
    %v5261 = vpop.f32.mrb[0].mxu0
    %5262 = vdwg.mxu0
    %s5263 = scalar_lea.vmem %s8, 32
    %v5264 = vld [vmem:[%s5263] sm:$0xff]
    %v5265 = vld [vmem:[%s5263 + $0x8] sm:$0xff]
    %v5266 = vld [vmem:[%s5263 + $0x10] sm:$0xff]
    %v5267 = vld [vmem:[%s5263 + $0x18] sm:$0xff]
    %5268 = vmatprep.subr.mxu0 0.0
    %5269 = vmatpush1.msra.mxu0 %v5264
    %5270 = vmatprep.subr.mxu0 0.0
    %5271 = vmatpush1.msra.mxu0 %v5265
    %5272 = vmatprep.subr.mxu0 0.0
    %5273 = vmatpush1.msra.mxu0 %v5266
    %5274 = vmatprep.subr.mxu0 0.0
    %5275 = vmatpush1.msra.mxu0 %v5267
    %5276 = vmatprep.subr.mxu0 0.0
    %5277 = vmatpush1.msra.mxu0 0.0
    %5278 = vmatprep.subr.mxu0 0.0
    %5279 = vmatpush1.msra.mxu0 0.0
    %5280 = vmatprep.subr.mxu0 0.0
    %5281 = vmatpush1.msra.mxu0 0.0
    %5282 = vmatprep.subr.mxu0 0.0
    %5283 = vmatpush1.msra.mxu0 0.0
    %5284 = vmatprep.subr.mxu0 0.0
    %5285 = vmatpush1.msra.mxu0 0.0
    %5286 = vmatprep.subr.mxu0 0.0
    %5287 = vmatpush1.msra.mxu0 0.0
    %5288 = vmatprep.subr.mxu0 0.0
    %5289 = vmatpush1.msra.mxu0 0.0
    %5290 = vmatprep.subr.mxu0 0.0
    %5291 = vmatpush1.msra.mxu0 0.0
    %5292 = vmatprep.subr.mxu0 0.0
    %5293 = vmatpush1.msra.mxu0 0.0
    %5294 = vmatprep.subr.mxu0 0.0
    %5295 = vmatpush1.msra.mxu0 0.0
    %5296 = vmatprep.subr.mxu0 0.0
    %5297 = vmatpush1.msra.mxu0 0.0
    %5298 = vmatprep.subr.mxu0 0.0
    %5299 = vmatpush1.msra.mxu0 0.0
    %5300 = vmatprep.subr.mxu0 0.0
    %5301 = vmatpush1.msra.mxu0 0.0
    %5302 = vmatprep.subr.mxu0 0.0
    %5303 = vmatpush1.msra.mxu0 0.0
    %5304 = vmatprep.subr.mxu0 0.0
    %5305 = vmatpush1.msra.mxu0 0.0
    %5306 = vmatprep.subr.mxu0 0.0
    %5307 = vmatpush1.msra.mxu0 0.0
    %5308 = vmatprep.subr.mxu0 0.0
    %5309 = vmatpush1.msra.mxu0 0.0
    %5310 = vmatprep.subr.mxu0 0.0
    %5311 = vmatpush1.msra.mxu0 0.0
    %5312 = vmatprep.subr.mxu0 0.0
    %5313 = vmatpush1.msra.mxu0 0.0
    %5314 = vmatprep.subr.mxu0 0.0
    %5315 = vmatpush1.msra.mxu0 0.0
    %5316 = vmatprep.subr.mxu0 0.0
    %5317 = vmatpush1.msra.mxu0 0.0
    %5318 = vmatprep.subr.mxu0 0.0
    %5319 = vmatpush1.msra.mxu0 0.0
    %5320 = vmatprep.subr.mxu0 0.0
    %5321 = vmatpush1.msra.mxu0 0.0
    %5322 = vmatprep.subr.mxu0 0.0
    %5323 = vmatpush1.msra.mxu0 0.0
    %5324 = vmatprep.subr.mxu0 0.0
    %5325 = vmatpush1.msra.mxu0 0.0
    %5326 = vmatprep.subr.mxu0 0.0
    %5327 = vmatpush1.msra.mxu0 0.0
    %5328 = vmatprep.subr.mxu0 0.0
    %5329 = vmatpush1.msra.mxu0 0.0
    %5330 = vmatprep.subr.mxu0 0.0
    %5331 = vmatpush1.msra.mxu0 0.0
    %5332 = vmatprep.mubr.f32.mxu0 0.0
    %5333 = vmatmul.mubr.f32.gmra.mrb[0].mxu0 %v5167
    %v5334 = vpop.f32.mrb[0].mxu0
    %v5335 = vadd.f32 0.0, %v5334
    %v5336 = vpop.f32.mrb[0].mxu0
    %5337 = vmatprep.mubr.f32.mxu0 0.0
    %5338 = vmatmul.mubr.f32.gmra.mrb[0].mxu0 %v5170
    %v5339 = vpop.f32.mrb[0].mxu0
    %v5340 = vadd.f32 0.0, %v5339
    %v5341 = vpop.f32.mrb[0].mxu0
    %5342 = vmatprep.mubr.f32.mxu0 0.0
    %5343 = vmatmul.mubr.f32.gmra.mrb[0].mxu0 %v5173
    %v5344 = vpop.f32.mrb[0].mxu0
    %v5345 = vadd.f32 0.0, %v5344
    %v5346 = vpop.f32.mrb[0].mxu0
    %5347 = vmatprep.mubr.f32.mxu0 0.0
    %5348 = vmatmul.mubr.f32.gmra.mrb[0].mxu0 %v5176
    %v5349 = vpop.f32.mrb[0].mxu0
    %v5350 = vadd.f32 0.0, %v5349
    %v5351 = vpop.f32.mrb[0].mxu0
    %5352 = vdwg.mxu0
    %s5353 = scalar_lea.vmem [#allocation9], 1
    %v5354 = vld [vmem:[%s5353] sm:$0x1]
    %s5355 = scalar_lea.vmem [#allocation8], 3
    %v5356 = vld [vmem:[%s5355] sm:$0x1]
    %v5358 = vlaneseq
    %v5359 = vshrl.u32 %v5358, 7
    %v5360 = vsub.s32 0, %v5359
    %v5361 = vrot.slane %v5356, %v5360
    %v5363 = vmul.f32 %v5245, %v5361
    %v5364 = vmul.f32 %v5250, %v5361
    %v5365 = vmul.f32 %v5255, %v5361
    %v5366 = vmul.f32 %v5260, %v5361
    %v5368 = vlaneseq
    %v5369 = vshrl.u32 %v5368, 7
    %v5370 = vsub.s32 0, %v5369
    %v5371 = vrot.slane %v5354, %v5370
    %v5373 = vadd.f32 %v5371, %v5363
    %v5374 = vadd.f32 %v5371, %v5364
    %v5375 = vadd.f32 %v5371, %v5365
    %v5376 = vadd.f32 %v5371, %v5366
    %v5379 = vrot.slane %v5245, 7
    %v5380 = vrot.slane %v5250, 7
    %v5381 = vsel %vm417, %v5379, %v5380
    %v5386 = vrot.slane %v5255, 7
    %v5387 = vrot.slane %v5260, 7
    %v5388 = vsel %vm417, %v5386, %v5387
    %v5391 = vsel %vm417, 0.0, %v5379
    %v5392 = vsel %vm417, 0.0, %v5386
    %s5393 = scalar_lea.vmem [#allocation8], 2
    %v5394 = vld [vmem:[%s5393] sm:$0x1]
    %v5396 = vlaneseq
    %v5397 = vshrl.u32 %v5396, 7
    %v5398 = vsub.s32 0, %v5397
    %v5399 = vrot.slane %v5394, %v5398
    %v5401 = vmul.f32 %v5391, %v5399
    %v5402 = vmul.f32 %v5381, %v5399
    %v5403 = vmul.f32 %v5392, %v5399
    %v5404 = vmul.f32 %v5388, %v5399
    %v5405 = vadd.f32 %v5373, %v5401
    %v5406 = vadd.f32 %v5374, %v5402
    %v5407 = vadd.f32 %v5375, %v5403
    %v5408 = vadd.f32 %v5376, %v5404
    %v5409 = vxor.u32 %v5405, 2147483648
    %v5410 = vxor.u32 %v5406, 2147483648
    %v5411 = vxor.u32 %v5407, 2147483648
    %v5412 = vxor.u32 %v5408, 2147483648
    %v5413 = vmul.f32 %v5409, 1.442695
    %v5414 = vpow.pop %v5413
    %v5415 = vmul.f32 %v5410, 1.442695
    %v5416 = vpow.pop %v5415
    %v5417 = vmul.f32 %v5411, 1.442695
    %v5418 = vpow.pop %v5417
    %v5419 = vmul.f32 %v5412, 1.442695
    %v5420 = vpow.pop %v5419
    %v5421 = vadd.f32 %v5414, 1.0
    %v5422 = vadd.f32 %v5416, 1.0
    %v5423 = vadd.f32 %v5418, 1.0
    %v5424 = vadd.f32 %v5420, 1.0
    %v5425 = vrcp.pop %v5421
    %v5426 = vmul.f32 1.0, %v5425
    %v5427 = vrcp.pop %v5422
    %v5428 = vmul.f32 1.0, %v5427
    %v5429 = vrcp.pop %v5423
    %v5430 = vmul.f32 1.0, %v5429
    %v5431 = vrcp.pop %v5424
    %v5432 = vmul.f32 1.0, %v5431
    %v5433 = vmul.f32 %v5405, %v5426
    %v5434 = vmul.f32 %v5406, %v5428
    %v5435 = vmul.f32 %v5407, %v5430
    %v5436 = vmul.f32 %v5408, %v5432
    %s5437 = scalar_lea.vmem %s11, 64
    %v5438 = vld [vmem:[%s5437] sm:$0xff]
    %v5439 = vld [vmem:[%s5437 + $0x8] sm:$0xff]
    %v5440 = vld [vmem:[%s5437 + $0x10] sm:$0xff]
    %v5441 = vld [vmem:[%s5437 + $0x18] sm:$0xff]
    %v5442 = vld [vmem:[%s5437 + $0x20] sm:$0xff]
    %v5443 = vld [vmem:[%s5437 + $0x28] sm:$0xff]
    %v5444 = vld [vmem:[%s5437 + $0x30] sm:$0xff]
    %v5445 = vld [vmem:[%s5437 + $0x38] sm:$0xff]
    %s5446 = scalar_lea.vmem [#allocation11], 1
    %v5447 = vld [vmem:[%s5446] sm:$0x1]
    %v5449 = vlaneseq
    %v5450 = vshrl.u32 %v5449, 7
    %v5451 = vsub.s32 0, %v5450
    %v5452 = vrot.slane %v5447, %v5451
    %v5455 = vsel %vm476, %v5433, 0
    %v5458 = vsel %vm476, %v5434, 0
    %v5461 = vsel %vm476, %v5435, 0
    %v5464 = vsel %vm476, %v5436, 0
    %5466 = vmatprep.subr.mxu0 0.0
    %5467 = vmatpush1.msra.mxu0 %v5438
    %5468 = vmatprep.subr.mxu0 0.0
    %5469 = vmatpush1.msra.mxu0 %v5439
    %5470 = vmatprep.subr.mxu0 0.0
    %5471 = vmatpush1.msra.mxu0 %v5440
    %5472 = vmatprep.subr.mxu0 0.0
    %5473 = vmatpush1.msra.mxu0 %v5441
    %5474 = vmatprep.subr.mxu0 0.0
    %5475 = vmatpush1.msra.mxu0 %v5442
    %5476 = vmatprep.subr.mxu0 0.0
    %5477 = vmatpush1.msra.mxu0 %v5443
    %5478 = vmatprep.subr.mxu0 0.0
    %5479 = vmatpush1.msra.mxu0 %v5444
    %5480 = vmatprep.subr.mxu0 0.0
    %5481 = vmatpush1.msra.mxu0 %v5445
    %5482 = vmatprep.subr.mxu0 0.0
    %5483 = vmatpush1.msra.mxu0 0.0
    %5484 = vmatprep.subr.mxu0 0.0
    %5485 = vmatpush1.msra.mxu0 0.0
    %5486 = vmatprep.subr.mxu0 0.0
    %5487 = vmatpush1.msra.mxu0 0.0
    %5488 = vmatprep.subr.mxu0 0.0
    %5489 = vmatpush1.msra.mxu0 0.0
    %5490 = vmatprep.subr.mxu0 0.0
    %5491 = vmatpush1.msra.mxu0 0.0
    %5492 = vmatprep.subr.mxu0 0.0
    %5493 = vmatpush1.msra.mxu0 0.0
    %5494 = vmatprep.subr.mxu0 0.0
    %5495 = vmatpush1.msra.mxu0 0.0
    %5496 = vmatprep.subr.mxu0 0.0
    %5497 = vmatpush1.msra.mxu0 0.0
    %5498 = vmatprep.subr.mxu0 0.0
    %5499 = vmatpush1.msra.mxu0 0.0
    %5500 = vmatprep.subr.mxu0 0.0
    %5501 = vmatpush1.msra.mxu0 0.0
    %5502 = vmatprep.subr.mxu0 0.0
    %5503 = vmatpush1.msra.mxu0 0.0
    %5504 = vmatprep.subr.mxu0 0.0
    %5505 = vmatpush1.msra.mxu0 0.0
    %5506 = vmatprep.subr.mxu0 0.0
    %5507 = vmatpush1.msra.mxu0 0.0
    %5508 = vmatprep.subr.mxu0 0.0
    %5509 = vmatpush1.msra.mxu0 0.0
    %5510 = vmatprep.subr.mxu0 0.0
    %5511 = vmatpush1.msra.mxu0 0.0
    %5512 = vmatprep.subr.mxu0 0.0
    %5513 = vmatpush1.msra.mxu0 0.0
    %5514 = vmatprep.subr.mxu0 0.0
    %5515 = vmatpush1.msra.mxu0 0.0
    %5516 = vmatprep.subr.mxu0 0.0
    %5517 = vmatpush1.msra.mxu0 0.0
    %5518 = vmatprep.subr.mxu0 0.0
    %5519 = vmatpush1.msra.mxu0 0.0
    %5520 = vmatprep.subr.mxu0 0.0
    %5521 = vmatpush1.msra.mxu0 0.0
    %5522 = vmatprep.subr.mxu0 0.0
    %5523 = vmatpush1.msra.mxu0 0.0
    %5524 = vmatprep.subr.mxu0 0.0
    %5525 = vmatpush1.msra.mxu0 0.0
    %5526 = vmatprep.subr.mxu0 0.0
    %5527 = vmatpush1.msra.mxu0 0.0
    %5528 = vmatprep.subr.mxu0 0.0
    %5529 = vmatpush1.msra.mxu0 0.0
    %5530 = vmatprep.mubr.f32.mxu0 0.0
    %5531 = vmatmul.mubr.f32.gmra.mrb[0].mxu0 %v5455
    %v5532 = vpop.f32.mrb[0].mxu0
    %v5533 = vadd.f32 %v5452, %v5532
    %v5534 = vpop.f32.mrb[0].mxu0
    %5535 = vmatprep.mubr.f32.mxu0 0.0
    %5536 = vmatmul.mubr.f32.gmra.mrb[0].mxu0 %v5458
    %v5537 = vpop.f32.mrb[0].mxu0
    %v5538 = vadd.f32 %v5452, %v5537
    %v5539 = vpop.f32.mrb[0].mxu0
    %5540 = vmatprep.mubr.f32.mxu0 0.0
    %5541 = vmatmul.mubr.f32.gmra.mrb[0].mxu0 %v5461
    %v5542 = vpop.f32.mrb[0].mxu0
    %v5543 = vadd.f32 %v5452, %v5542
    %v5544 = vpop.f32.mrb[0].mxu0
    %5545 = vmatprep.mubr.f32.mxu0 0.0
    %5546 = vmatmul.mubr.f32.gmra.mrb[0].mxu0 %v5464
    %v5547 = vpop.f32.mrb[0].mxu0
    %v5548 = vadd.f32 %v5452, %v5547
    %v5549 = vpop.f32.mrb[0].mxu0
    %5550 = vdwg.mxu0
    %vm5551 = vcmp.gt.f32.partialorder %v5533, 20.0
    %vm5552 = vcmp.gt.f32.partialorder %v5538, 20.0
    %vm5553 = vcmp.gt.f32.partialorder %v5543, 20.0
    %vm5554 = vcmp.gt.f32.partialorder %v5548, 20.0
    %v5555 = vmin.f32 %v5533, 20.0
    %v5556 = vmin.f32 %v5538, 20.0
    %v5557 = vmin.f32 %v5543, 20.0
    %v5558 = vmin.f32 %v5548, 20.0
    %v5559 = vmul.f32 %v5555, 1.442695
    %v5560 = vpow.pop %v5559
    %v5561 = vmul.f32 %v5556, 1.442695
    %v5562 = vpow.pop %v5561
    %v5563 = vmul.f32 %v5557, 1.442695
    %v5564 = vpow.pop %v5563
    %v5565 = vmul.f32 %v5558, 1.442695
    %v5566 = vpow.pop %v5565
    %v5567 = vadd.f32 %v5560, 1.0
    %v5568 = vlog2.pop %v5567
    %v5569 = vmul.f32 %v5568, 0.6931472
    %v5570 = vmul.f32 -0.5, %v5560
    %v5571 = vadd.f32 %v5570, 1.0
    %v5572 = vmul.f32 %v5571, %v5560
    %v5573 = vand.u32 2147483647, %v5560
    %vm5574 = vcmp.lt.f32.partialorder %v5573, 0.0004427343
    %v5575 = vsel %vm5574, %v5572, %v5569
    %v5576 = vadd.f32 %v5562, 1.0
    %v5577 = vlog2.pop %v5576
    %v5578 = vmul.f32 %v5577, 0.6931472
    %v5579 = vmul.f32 -0.5, %v5562
    %v5580 = vadd.f32 %v5579, 1.0
    %v5581 = vmul.f32 %v5580, %v5562
    %v5582 = vand.u32 2147483647, %v5562
    %vm5583 = vcmp.lt.f32.partialorder %v5582, 0.0004427343
    %v5584 = vsel %vm5583, %v5581, %v5578
    %v5585 = vadd.f32 %v5564, 1.0
    %v5586 = vlog2.pop %v5585
    %v5587 = vmul.f32 %v5586, 0.6931472
    %v5588 = vmul.f32 -0.5, %v5564
    %v5589 = vadd.f32 %v5588, 1.0
    %v5590 = vmul.f32 %v5589, %v5564
    %v5591 = vand.u32 2147483647, %v5564
    %vm5592 = vcmp.lt.f32.partialorder %v5591, 0.0004427343
    %v5593 = vsel %vm5592, %v5590, %v5587
    %v5594 = vadd.f32 %v5566, 1.0
    %v5595 = vlog2.pop %v5594
    %v5596 = vmul.f32 %v5595, 0.6931472
    %v5597 = vmul.f32 -0.5, %v5566
    %v5598 = vadd.f32 %v5597, 1.0
    %v5599 = vmul.f32 %v5598, %v5566
    %v5600 = vand.u32 2147483647, %v5566
    %vm5601 = vcmp.lt.f32.partialorder %v5600, 0.0004427343
    %v5602 = vsel %vm5601, %v5599, %v5596
    %v5603 = vsel %vm5551, %v5533, %v5575
    %v5604 = vsel %vm5552, %v5538, %v5584
    %v5605 = vsel %vm5553, %v5543, %v5593
    %v5606 = vsel %vm5554, %v5548, %v5602
    %s5607 = scalar_lea.vmem %s13, 64
    %v5608 = vld [vmem:[%s5607] sm:$0xff]
    %v5609 = vld [vmem:[%s5607 + $0x8] sm:$0xff]
    %v5610 = vld [vmem:[%s5607 + $0x10] sm:$0xff]
    %v5611 = vld [vmem:[%s5607 + $0x18] sm:$0xff]
    %v5612 = vld [vmem:[%s5607 + $0x20] sm:$0xff]
    %v5613 = vld [vmem:[%s5607 + $0x28] sm:$0xff]
    %v5614 = vld [vmem:[%s5607 + $0x30] sm:$0xff]
    %v5615 = vld [vmem:[%s5607 + $0x38] sm:$0xff]
    %5616 = vmatprep.subr.mxu0 0.0
    %5617 = vmatpush1.msra.mxu0 %v5608
    %5618 = vmatprep.subr.mxu0 0.0
    %5619 = vmatpush1.msra.mxu0 %v5609
    %5620 = vmatprep.subr.mxu0 0.0
    %5621 = vmatpush1.msra.mxu0 %v5610
    %5622 = vmatprep.subr.mxu0 0.0
    %5623 = vmatpush1.msra.mxu0 %v5611
    %5624 = vmatprep.subr.mxu0 0.0
    %5625 = vmatpush1.msra.mxu0 %v5612
    %5626 = vmatprep.subr.mxu0 0.0
    %5627 = vmatpush1.msra.mxu0 %v5613
    %5628 = vmatprep.subr.mxu0 0.0
    %5629 = vmatpush1.msra.mxu0 %v5614
    %5630 = vmatprep.subr.mxu0 0.0
    %5631 = vmatpush1.msra.mxu0 %v5615
    %5632 = vmatprep.subr.mxu0 0.0
    %5633 = vmatpush1.msra.mxu0 0.0
    %5634 = vmatprep.subr.mxu0 0.0
    %5635 = vmatpush1.msra.mxu0 0.0
    %5636 = vmatprep.subr.mxu0 0.0
    %5637 = vmatpush1.msra.mxu0 0.0
    %5638 = vmatprep.subr.mxu0 0.0
    %5639 = vmatpush1.msra.mxu0 0.0
    %5640 = vmatprep.subr.mxu0 0.0
    %5641 = vmatpush1.msra.mxu0 0.0
    %5642 = vmatprep.subr.mxu0 0.0
    %5643 = vmatpush1.msra.mxu0 0.0
    %5644 = vmatprep.subr.mxu0 0.0
    %5645 = vmatpush1.msra.mxu0 0.0
    %5646 = vmatprep.subr.mxu0 0.0
    %5647 = vmatpush1.msra.mxu0 0.0
    %5648 = vmatprep.subr.mxu0 0.0
    %5649 = vmatpush1.msra.mxu0 0.0
    %5650 = vmatprep.subr.mxu0 0.0
    %5651 = vmatpush1.msra.mxu0 0.0
    %5652 = vmatprep.subr.mxu0 0.0
    %5653 = vmatpush1.msra.mxu0 0.0
    %5654 = vmatprep.subr.mxu0 0.0
    %5655 = vmatpush1.msra.mxu0 0.0
    %5656 = vmatprep.subr.mxu0 0.0
    %5657 = vmatpush1.msra.mxu0 0.0
    %5658 = vmatprep.subr.mxu0 0.0
    %5659 = vmatpush1.msra.mxu0 0.0
    %5660 = vmatprep.subr.mxu0 0.0
    %5661 = vmatpush1.msra.mxu0 0.0
    %5662 = vmatprep.subr.mxu0 0.0
    %5663 = vmatpush1.msra.mxu0 0.0
    %5664 = vmatprep.subr.mxu0 0.0
    %5665 = vmatpush1.msra.mxu0 0.0
    %5666 = vmatprep.subr.mxu0 0.0
    %5667 = vmatpush1.msra.mxu0 0.0
    %5668 = vmatprep.subr.mxu0 0.0
    %5669 = vmatpush1.msra.mxu0 0.0
    %5670 = vmatprep.subr.mxu0 0.0
    %5671 = vmatpush1.msra.mxu0 0.0
    %5672 = vmatprep.subr.mxu0 0.0
    %5673 = vmatpush1.msra.mxu0 0.0
    %5674 = vmatprep.subr.mxu0 0.0
    %5675 = vmatpush1.msra.mxu0 0.0
    %5676 = vmatprep.subr.mxu0 0.0
    %5677 = vmatpush1.msra.mxu0 0.0
    %5678 = vmatprep.subr.mxu0 0.0
    %5679 = vmatpush1.msra.mxu0 0.0
    %5680 = vmatprep.mubr.f32.mxu0 0.0
    %5681 = vmatmul.mubr.f32.gmra.mrb[0].mxu0 %v5455
    %v5682 = vpop.f32.mrb[0].mxu0
    %v5683 = vadd.f32 0.0, %v5682
    %v5684 = vpop.f32.mrb[0].mxu0
    %5685 = vmatprep.mubr.f32.mxu0 0.0
    %5686 = vmatmul.mubr.f32.gmra.mrb[0].mxu0 %v5458
    %v5687 = vpop.f32.mrb[0].mxu0
    %v5688 = vadd.f32 0.0, %v5687
    %v5689 = vpop.f32.mrb[0].mxu0
    %5690 = vmatprep.mubr.f32.mxu0 0.0
    %5691 = vmatmul.mubr.f32.gmra.mrb[0].mxu0 %v5461
    %v5692 = vpop.f32.mrb[0].mxu0
    %v5693 = vadd.f32 0.0, %v5692
    %v5694 = vpop.f32.mrb[0].mxu0
    %5695 = vmatprep.mubr.f32.mxu0 0.0
    %5696 = vmatmul.mubr.f32.gmra.mrb[0].mxu0 %v5464
    %v5697 = vpop.f32.mrb[0].mxu0
    %v5698 = vadd.f32 0.0, %v5697
    %v5699 = vpop.f32.mrb[0].mxu0
    %5700 = vdwg.mxu0
    %s5701 = scalar_lea.vmem %s14, 64
    %v5702 = vld [vmem:[%s5701] sm:$0xff]
    %v5703 = vld [vmem:[%s5701 + $0x8] sm:$0xff]
    %v5704 = vld [vmem:[%s5701 + $0x10] sm:$0xff]
    %v5705 = vld [vmem:[%s5701 + $0x18] sm:$0xff]
    %v5706 = vld [vmem:[%s5701 + $0x20] sm:$0xff]
    %v5707 = vld [vmem:[%s5701 + $0x28] sm:$0xff]
    %v5708 = vld [vmem:[%s5701 + $0x30] sm:$0xff]
    %v5709 = vld [vmem:[%s5701 + $0x38] sm:$0xff]
    %5710 = vmatprep.subr.mxu0 0.0
    %5711 = vmatpush1.msra.mxu0 %v5702
    %5712 = vmatprep.subr.mxu0 0.0
    %5713 = vmatpush1.msra.mxu0 %v5703
    %5714 = vmatprep.subr.mxu0 0.0
    %5715 = vmatpush1.msra.mxu0 %v5704
    %5716 = vmatprep.subr.mxu0 0.0
    %5717 = vmatpush1.msra.mxu0 %v5705
    %5718 = vmatprep.subr.mxu0 0.0
    %5719 = vmatpush1.msra.mxu0 %v5706
    %5720 = vmatprep.subr.mxu0 0.0
    %5721 = vmatpush1.msra.mxu0 %v5707
    %5722 = vmatprep.subr.mxu0 0.0
    %5723 = vmatpush1.msra.mxu0 %v5708
    %5724 = vmatprep.subr.mxu0 0.0
    %5725 = vmatpush1.msra.mxu0 %v5709
    %5726 = vmatprep.subr.mxu0 0.0
    %5727 = vmatpush1.msra.mxu0 0.0
    %5728 = vmatprep.subr.mxu0 0.0
    %5729 = vmatpush1.msra.mxu0 0.0
    %5730 = vmatprep.subr.mxu0 0.0
    %5731 = vmatpush1.msra.mxu0 0.0
    %5732 = vmatprep.subr.mxu0 0.0
    %5733 = vmatpush1.msra.mxu0 0.0
    %5734 = vmatprep.subr.mxu0 0.0
    %5735 = vmatpush1.msra.mxu0 0.0
    %5736 = vmatprep.subr.mxu0 0.0
    %5737 = vmatpush1.msra.mxu0 0.0
    %5738 = vmatprep.subr.mxu0 0.0
    %5739 = vmatpush1.msra.mxu0 0.0
    %5740 = vmatprep.subr.mxu0 0.0
    %5741 = vmatpush1.msra.mxu0 0.0
    %5742 = vmatprep.subr.mxu0 0.0
    %5743 = vmatpush1.msra.mxu0 0.0
    %5744 = vmatprep.subr.mxu0 0.0
    %5745 = vmatpush1.msra.mxu0 0.0
    %5746 = vmatprep.subr.mxu0 0.0
    %5747 = vmatpush1.msra.mxu0 0.0
    %5748 = vmatprep.subr.mxu0 0.0
    %5749 = vmatpush1.msra.mxu0 0.0
    %5750 = vmatprep.subr.mxu0 0.0
    %5751 = vmatpush1.msra.mxu0 0.0
    %5752 = vmatprep.subr.mxu0 0.0
    %5753 = vmatpush1.msra.mxu0 0.0
    %5754 = vmatprep.subr.mxu0 0.0
    %5755 = vmatpush1.msra.mxu0 0.0
    %5756 = vmatprep.subr.mxu0 0.0
    %5757 = vmatpush1.msra.mxu0 0.0
    %5758 = vmatprep.subr.mxu0 0.0
    %5759 = vmatpush1.msra.mxu0 0.0
    %5760 = vmatprep.subr.mxu0 0.0
    %5761 = vmatpush1.msra.mxu0 0.0
    %5762 = vmatprep.subr.mxu0 0.0
    %5763 = vmatpush1.msra.mxu0 0.0
    %5764 = vmatprep.subr.mxu0 0.0
    %5765 = vmatpush1.msra.mxu0 0.0
    %5766 = vmatprep.subr.mxu0 0.0
    %5767 = vmatpush1.msra.mxu0 0.0
    %5768 = vmatprep.subr.mxu0 0.0
    %5769 = vmatpush1.msra.mxu0 0.0
    %5770 = vmatprep.subr.mxu0 0.0
    %5771 = vmatpush1.msra.mxu0 0.0
    %5772 = vmatprep.subr.mxu0 0.0
    %5773 = vmatpush1.msra.mxu0 0.0
    %5774 = vmatprep.mubr.f32.mxu0 0.0
    %5775 = vmatmul.mubr.f32.gmra.mrb[0].mxu0 %v5455
    %v5776 = vpop.f32.mrb[0].mxu0
    %v5777 = vadd.f32 0.0, %v5776
    %v5778 = vpop.f32.mrb[0].mxu0
    %5779 = vmatprep.mubr.f32.mxu0 0.0
    %5780 = vmatmul.mubr.f32.gmra.mrb[0].mxu0 %v5458
    %v5781 = vpop.f32.mrb[0].mxu0
    %v5782 = vadd.f32 0.0, %v5781
    %v5783 = vpop.f32.mrb[0].mxu0
    %5784 = vmatprep.mubr.f32.mxu0 0.0
    %5785 = vmatmul.mubr.f32.gmra.mrb[0].mxu0 %v5461
    %v5786 = vpop.f32.mrb[0].mxu0
    %v5787 = vadd.f32 0.0, %v5786
    %v5788 = vpop.f32.mrb[0].mxu0
    %5789 = vmatprep.mubr.f32.mxu0 0.0
    %5790 = vmatmul.mubr.f32.gmra.mrb[0].mxu0 %v5464
    %v5791 = vpop.f32.mrb[0].mxu0
    %v5792 = vadd.f32 0.0, %v5791
    %v5793 = vpop.f32.mrb[0].mxu0
    %5794 = vdwg.mxu0
    %5795 = vmatprep.subr.mxu0 0.0
    %5796 = vmatpush1.msra.mxu0 %v5433
    %5797 = vmatprep.subr.mxu0 0.0
    %5798 = vmatpush1.msra.mxu0 %v5434
    %5799 = vmatprep.subr.mxu0 0.0
    %5800 = vmatpush1.msra.mxu0 %v5435
    %5801 = vmatprep.subr.mxu0 0.0
    %5802 = vmatpush1.msra.mxu0 %v5436
    %5803 = vmatprep.subr.mxu0 0.0
    %5804 = vmatpush1.msra.mxu0 0.0
    %5805 = vmatprep.subr.mxu0 0.0
    %5806 = vmatpush1.msra.mxu0 0.0
    %5807 = vmatprep.subr.mxu0 0.0
    %5808 = vmatpush1.msra.mxu0 0.0
    %5809 = vmatprep.subr.mxu0 0.0
    %5810 = vmatpush1.msra.mxu0 0.0
    %5811 = vmatprep.subr.mxu0 0.0
    %5812 = vmatpush1.msra.mxu0 0.0
    %5813 = vmatprep.subr.mxu0 0.0
    %5814 = vmatpush1.msra.mxu0 0.0
    %5815 = vmatprep.subr.mxu0 0.0
    %5816 = vmatpush1.msra.mxu0 0.0
    %5817 = vmatprep.subr.mxu0 0.0
    %5818 = vmatpush1.msra.mxu0 0.0
    %5819 = vmatprep.subr.mxu0 0.0
    %5820 = vmatpush1.msra.mxu0 0.0
    %5821 = vmatprep.subr.mxu0 0.0
    %5822 = vmatpush1.msra.mxu0 0.0
    %5823 = vmatprep.subr.mxu0 0.0
    %5824 = vmatpush1.msra.mxu0 0.0
    %5825 = vmatprep.subr.mxu0 0.0
    %5826 = vmatpush1.msra.mxu0 0.0
    %5827 = vmatprep.subr.mxu0 0.0
    %5828 = vmatpush1.msra.mxu0 0.0
    %5829 = vmatprep.subr.mxu0 0.0
    %5830 = vmatpush1.msra.mxu0 0.0
    %5831 = vmatprep.subr.mxu0 0.0
    %5832 = vmatpush1.msra.mxu0 0.0
    %5833 = vmatprep.subr.mxu0 0.0
    %5834 = vmatpush1.msra.mxu0 0.0
    %5835 = vmatprep.subr.mxu0 0.0
    %5836 = vmatpush1.msra.mxu0 0.0
    %5837 = vmatprep.subr.mxu0 0.0
    %5838 = vmatpush1.msra.mxu0 0.0
    %5839 = vmatprep.subr.mxu0 0.0
    %5840 = vmatpush1.msra.mxu0 0.0
    %5841 = vmatprep.subr.mxu0 0.0
    %5842 = vmatpush1.msra.mxu0 0.0
    %5843 = vmatprep.subr.mxu0 0.0
    %5844 = vmatpush1.msra.mxu0 0.0
    %5845 = vmatprep.subr.mxu0 0.0
    %5846 = vmatpush1.msra.mxu0 0.0
    %5847 = vmatprep.subr.mxu0 0.0
    %5848 = vmatpush1.msra.mxu0 0.0
    %5849 = vmatprep.subr.mxu0 0.0
    %5850 = vmatpush1.msra.mxu0 0.0
    %5851 = vmatprep.subr.mxu0 0.0
    %5852 = vmatpush1.msra.mxu0 0.0
    %5853 = vmatprep.subr.mxu0 0.0
    %5854 = vmatpush1.msra.mxu0 0.0
    %5855 = vmatprep.subr.mxu0 0.0
    %5856 = vmatpush1.msra.mxu0 0.0
    %5857 = vmatprep.subr.mxu0 0.0
    %5858 = vmatpush1.msra.mxu0 0.0
    %5859 = vmatprep.mubr.f32.mxu0 0.0
    %5860 = vmatmul.mubr.f32.gmra.mrb[0].mxu0 %v1300
    %v5861 = vpop.f32.mrb[0].mxu0
    %v5862 = vadd.f32 0.0, %v5861
    %v5863 = vpop.f32.mrb[0].mxu0
    %5864 = vmatprep.mubr.f32.mxu0 0.0
    %5865 = vmatmul.mubr.f32.gmra.mrb[0].mxu0 %v1303
    %v5866 = vpop.f32.mrb[0].mxu0
    %v5867 = vadd.f32 0.0, %v5866
    %v5868 = vpop.f32.mrb[0].mxu0
    %5869 = vmatprep.mubr.f32.mxu0 0.0
    %5870 = vmatmul.mubr.f32.gmra.mrb[0].mxu0 %v1306
    %v5871 = vpop.f32.mrb[0].mxu0
    %v5872 = vadd.f32 0.0, %v5871
    %v5873 = vpop.f32.mrb[0].mxu0
    %5874 = vmatprep.mubr.f32.mxu0 0.0
    %5875 = vmatmul.mubr.f32.gmra.mrb[0].mxu0 %v1309
    %v5876 = vpop.f32.mrb[0].mxu0
    %v5877 = vadd.f32 0.0, %v5876
    %v5878 = vpop.f32.mrb[0].mxu0
    %5879 = vmatprep.mubr.f32.mxu0 0.0
    %5880 = vmatmul.mubr.f32.gmra.mrb[0].mxu0 %v1312
    %v5881 = vpop.f32.mrb[0].mxu0
    %v5882 = vadd.f32 0.0, %v5881
    %v5883 = vpop.f32.mrb[0].mxu0
    %5884 = vmatprep.mubr.f32.mxu0 0.0
    %5885 = vmatmul.mubr.f32.gmra.mrb[0].mxu0 %v1315
    %v5886 = vpop.f32.mrb[0].mxu0
    %v5887 = vadd.f32 0.0, %v5886
    %v5888 = vpop.f32.mrb[0].mxu0
    %5889 = vmatprep.mubr.f32.mxu0 0.0
    %5890 = vmatmul.mubr.f32.gmra.mrb[0].mxu0 %v1318
    %v5891 = vpop.f32.mrb[0].mxu0
    %v5892 = vadd.f32 0.0, %v5891
    %v5893 = vpop.f32.mrb[0].mxu0
    %5894 = vmatprep.mubr.f32.mxu0 0.0
    %5895 = vmatmul.mubr.f32.gmra.mrb[0].mxu0 %v1321
    %v5896 = vpop.f32.mrb[0].mxu0
    %v5897 = vadd.f32 0.0, %v5896
    %v5898 = vpop.f32.mrb[0].mxu0
    %5899 = vmatprep.mubr.f32.mxu0 0.0
    %5900 = vmatmul.mubr.f32.gmra.mrb[0].mxu0 %v1324
    %v5901 = vpop.f32.mrb[0].mxu0
    %v5902 = vadd.f32 0.0, %v5901
    %v5903 = vpop.f32.mrb[0].mxu0
    %5904 = vmatprep.mubr.f32.mxu0 0.0
    %5905 = vmatmul.mubr.f32.gmra.mrb[0].mxu0 %v1327
    %v5906 = vpop.f32.mrb[0].mxu0
    %v5907 = vadd.f32 0.0, %v5906
    %v5908 = vpop.f32.mrb[0].mxu0
    %5909 = vmatprep.mubr.f32.mxu0 0.0
    %5910 = vmatmul.mubr.f32.gmra.mrb[0].mxu0 %v1330
    %v5911 = vpop.f32.mrb[0].mxu0
    %v5912 = vadd.f32 0.0, %v5911
    %v5913 = vpop.f32.mrb[0].mxu0
    %5914 = vmatprep.mubr.f32.mxu0 0.0
    %5915 = vmatmul.mubr.f32.gmra.mrb[0].mxu0 %v1333
    %v5916 = vpop.f32.mrb[0].mxu0
    %v5917 = vadd.f32 0.0, %v5916
    %v5918 = vpop.f32.mrb[0].mxu0
    %5919 = vmatprep.mubr.f32.mxu0 0.0
    %5920 = vmatmul.mubr.f32.gmra.mrb[0].mxu0 %v1336
    %v5921 = vpop.f32.mrb[0].mxu0
    %v5922 = vadd.f32 0.0, %v5921
    %v5923 = vpop.f32.mrb[0].mxu0
    %5924 = vmatprep.mubr.f32.mxu0 0.0
    %5925 = vmatmul.mubr.f32.gmra.mrb[0].mxu0 %v1339
    %v5926 = vpop.f32.mrb[0].mxu0
    %v5927 = vadd.f32 0.0, %v5926
    %v5928 = vpop.f32.mrb[0].mxu0
    %5929 = vmatprep.mubr.f32.mxu0 0.0
    %5930 = vmatmul.mubr.f32.gmra.mrb[0].mxu0 %v1342
    %v5931 = vpop.f32.mrb[0].mxu0
    %v5932 = vadd.f32 0.0, %v5931
    %v5933 = vpop.f32.mrb[0].mxu0
    %5934 = vmatprep.mubr.f32.mxu0 0.0
    %5935 = vmatmul.mubr.f32.gmra.mrb[0].mxu0 %v1345
    %v5936 = vpop.f32.mrb[0].mxu0
    %v5937 = vadd.f32 0.0, %v5936
    %v5938 = vpop.f32.mrb[0].mxu0
    %5939 = vmatprep.mubr.f32.mxu0 0.0
    %5940 = vmatmul.mubr.f32.gmra.mrb[0].mxu0 %v1348
    %v5941 = vpop.f32.mrb[0].mxu0
    %v5942 = vadd.f32 0.0, %v5941
    %v5943 = vpop.f32.mrb[0].mxu0
    %5944 = vmatprep.mubr.f32.mxu0 0.0
    %5945 = vmatmul.mubr.f32.gmra.mrb[0].mxu0 %v1351
    %v5946 = vpop.f32.mrb[0].mxu0
    %v5947 = vadd.f32 0.0, %v5946
    %v5948 = vpop.f32.mrb[0].mxu0
    %5949 = vmatprep.mubr.f32.mxu0 0.0
    %5950 = vmatmul.mubr.f32.gmra.mrb[0].mxu0 %v1354
    %v5951 = vpop.f32.mrb[0].mxu0
    %v5952 = vadd.f32 0.0, %v5951
    %v5953 = vpop.f32.mrb[0].mxu0
    %5954 = vmatprep.mubr.f32.mxu0 0.0
    %5955 = vmatmul.mubr.f32.gmra.mrb[0].mxu0 %v1357
    %v5956 = vpop.f32.mrb[0].mxu0
    %v5957 = vadd.f32 0.0, %v5956
    %v5958 = vpop.f32.mrb[0].mxu0
    %5959 = vmatprep.mubr.f32.mxu0 0.0
    %5960 = vmatmul.mubr.f32.gmra.mrb[0].mxu0 %v1360
    %v5961 = vpop.f32.mrb[0].mxu0
    %v5962 = vadd.f32 0.0, %v5961
    %v5963 = vpop.f32.mrb[0].mxu0
    %5964 = vmatprep.mubr.f32.mxu0 0.0
    %5965 = vmatmul.mubr.f32.gmra.mrb[0].mxu0 %v1363
    %v5966 = vpop.f32.mrb[0].mxu0
    %v5967 = vadd.f32 0.0, %v5966
    %v5968 = vpop.f32.mrb[0].mxu0
    %5969 = vmatprep.mubr.f32.mxu0 0.0
    %5970 = vmatmul.mubr.f32.gmra.mrb[0].mxu0 %v1366
    %v5971 = vpop.f32.mrb[0].mxu0
    %v5972 = vadd.f32 0.0, %v5971
    %v5973 = vpop.f32.mrb[0].mxu0
    %5974 = vmatprep.mubr.f32.mxu0 0.0
    %5975 = vmatmul.mubr.f32.gmra.mrb[0].mxu0 %v1369
    %v5976 = vpop.f32.mrb[0].mxu0
    %v5977 = vadd.f32 0.0, %v5976
    %v5978 = vpop.f32.mrb[0].mxu0
    %5979 = vmatprep.mubr.f32.mxu0 0.0
    %5980 = vmatmul.mubr.f32.gmra.mrb[0].mxu0 %v1372
    %v5981 = vpop.f32.mrb[0].mxu0
    %v5982 = vadd.f32 0.0, %v5981
    %v5983 = vpop.f32.mrb[0].mxu0
    %5984 = vmatprep.mubr.f32.mxu0 0.0
    %5985 = vmatmul.mubr.f32.gmra.mrb[0].mxu0 %v1375
    %v5986 = vpop.f32.mrb[0].mxu0
    %v5987 = vadd.f32 0.0, %v5986
    %v5988 = vpop.f32.mrb[0].mxu0
    %5989 = vmatprep.mubr.f32.mxu0 0.0
    %5990 = vmatmul.mubr.f32.gmra.mrb[0].mxu0 %v1378
    %v5991 = vpop.f32.mrb[0].mxu0
    %v5992 = vadd.f32 0.0, %v5991
    %v5993 = vpop.f32.mrb[0].mxu0
    %5994 = vmatprep.mubr.f32.mxu0 0.0
    %5995 = vmatmul.mubr.f32.gmra.mrb[0].mxu0 %v1381
    %v5996 = vpop.f32.mrb[0].mxu0
    %v5997 = vadd.f32 0.0, %v5996
    %v5998 = vpop.f32.mrb[0].mxu0
    %5999 = vmatprep.mubr.f32.mxu0 0.0
    %6000 = vmatmul.mubr.f32.gmra.mrb[0].mxu0 %v1384
    %v6001 = vpop.f32.mrb[0].mxu0
    %v6002 = vadd.f32 0.0, %v6001
    %v6003 = vpop.f32.mrb[0].mxu0
    %6004 = vmatprep.mubr.f32.mxu0 0.0
    %6005 = vmatmul.mubr.f32.gmra.mrb[0].mxu0 %v1387
    %v6006 = vpop.f32.mrb[0].mxu0
    %v6007 = vadd.f32 0.0, %v6006
    %v6008 = vpop.f32.mrb[0].mxu0
    %6009 = vmatprep.mubr.f32.mxu0 0.0
    %6010 = vmatmul.mubr.f32.gmra.mrb[0].mxu0 %v1390
    %v6011 = vpop.f32.mrb[0].mxu0
    %v6012 = vadd.f32 0.0, %v6011
    %v6013 = vpop.f32.mrb[0].mxu0
    %6014 = vmatprep.mubr.f32.mxu0 0.0
    %6015 = vmatmul.mubr.f32.gmra.mrb[0].mxu0 %v1393
    %v6016 = vpop.f32.mrb[0].mxu0
    %v6017 = vadd.f32 0.0, %v6016
    %v6018 = vpop.f32.mrb[0].mxu0
    %6019 = vmatprep.mubr.f32.mxu0 0.0
    %6020 = vmatmul.mubr.f32.gmra.mrb[0].mxu0 %v1396
    %v6021 = vpop.f32.mrb[0].mxu0
    %v6022 = vadd.f32 0.0, %v6021
    %v6023 = vpop.f32.mrb[0].mxu0
    %6024 = vmatprep.mubr.f32.mxu0 0.0
    %6025 = vmatmul.mubr.f32.gmra.mrb[0].mxu0 %v1399
    %v6026 = vpop.f32.mrb[0].mxu0
    %v6027 = vadd.f32 0.0, %v6026
    %v6028 = vpop.f32.mrb[0].mxu0
    %6029 = vmatprep.mubr.f32.mxu0 0.0
    %6030 = vmatmul.mubr.f32.gmra.mrb[0].mxu0 %v1402
    %v6031 = vpop.f32.mrb[0].mxu0
    %v6032 = vadd.f32 0.0, %v6031
    %v6033 = vpop.f32.mrb[0].mxu0
    %6034 = vmatprep.mubr.f32.mxu0 0.0
    %6035 = vmatmul.mubr.f32.gmra.mrb[0].mxu0 %v1405
    %v6036 = vpop.f32.mrb[0].mxu0
    %v6037 = vadd.f32 0.0, %v6036
    %v6038 = vpop.f32.mrb[0].mxu0
    %6039 = vmatprep.mubr.f32.mxu0 0.0
    %6040 = vmatmul.mubr.f32.gmra.mrb[0].mxu0 %v1408
    %v6041 = vpop.f32.mrb[0].mxu0
    %v6042 = vadd.f32 0.0, %v6041
    %v6043 = vpop.f32.mrb[0].mxu0
    %6044 = vmatprep.mubr.f32.mxu0 0.0
    %6045 = vmatmul.mubr.f32.gmra.mrb[0].mxu0 %v1411
    %v6046 = vpop.f32.mrb[0].mxu0
    %v6047 = vadd.f32 0.0, %v6046
    %v6048 = vpop.f32.mrb[0].mxu0
    %6049 = vmatprep.mubr.f32.mxu0 0.0
    %6050 = vmatmul.mubr.f32.gmra.mrb[0].mxu0 %v1414
    %v6051 = vpop.f32.mrb[0].mxu0
    %v6052 = vadd.f32 0.0, %v6051
    %v6053 = vpop.f32.mrb[0].mxu0
    %6054 = vmatprep.mubr.f32.mxu0 0.0
    %6055 = vmatmul.mubr.f32.gmra.mrb[0].mxu0 %v1417
    %v6056 = vpop.f32.mrb[0].mxu0
    %v6057 = vadd.f32 0.0, %v6056
    %v6058 = vpop.f32.mrb[0].mxu0
    %6059 = vmatprep.mubr.f32.mxu0 0.0
    %6060 = vmatmul.mubr.f32.gmra.mrb[0].mxu0 %v1420
    %v6061 = vpop.f32.mrb[0].mxu0
    %v6062 = vadd.f32 0.0, %v6061
    %v6063 = vpop.f32.mrb[0].mxu0
    %6064 = vmatprep.mubr.f32.mxu0 0.0
    %6065 = vmatmul.mubr.f32.gmra.mrb[0].mxu0 %v1423
    %v6066 = vpop.f32.mrb[0].mxu0
    %v6067 = vadd.f32 0.0, %v6066
    %v6068 = vpop.f32.mrb[0].mxu0
    %6069 = vmatprep.mubr.f32.mxu0 0.0
    %6070 = vmatmul.mubr.f32.gmra.mrb[0].mxu0 %v1426
    %v6071 = vpop.f32.mrb[0].mxu0
    %v6072 = vadd.f32 0.0, %v6071
    %v6073 = vpop.f32.mrb[0].mxu0
    %6074 = vmatprep.mubr.f32.mxu0 0.0
    %6075 = vmatmul.mubr.f32.gmra.mrb[0].mxu0 %v1429
    %v6076 = vpop.f32.mrb[0].mxu0
    %v6077 = vadd.f32 0.0, %v6076
    %v6078 = vpop.f32.mrb[0].mxu0
    %6079 = vmatprep.mubr.f32.mxu0 0.0
    %6080 = vmatmul.mubr.f32.gmra.mrb[0].mxu0 %v1432
    %v6081 = vpop.f32.mrb[0].mxu0
    %v6082 = vadd.f32 0.0, %v6081
    %v6083 = vpop.f32.mrb[0].mxu0
    %6084 = vmatprep.mubr.f32.mxu0 0.0
    %6085 = vmatmul.mubr.f32.gmra.mrb[0].mxu0 %v1435
    %v6086 = vpop.f32.mrb[0].mxu0
    %v6087 = vadd.f32 0.0, %v6086
    %v6088 = vpop.f32.mrb[0].mxu0
    %6089 = vmatprep.mubr.f32.mxu0 0.0
    %6090 = vmatmul.mubr.f32.gmra.mrb[0].mxu0 %v1438
    %v6091 = vpop.f32.mrb[0].mxu0
    %v6092 = vadd.f32 0.0, %v6091
    %v6093 = vpop.f32.mrb[0].mxu0
    %6094 = vmatprep.mubr.f32.mxu0 0.0
    %6095 = vmatmul.mubr.f32.gmra.mrb[0].mxu0 %v1441
    %v6096 = vpop.f32.mrb[0].mxu0
    %v6097 = vadd.f32 0.0, %v6096
    %v6098 = vpop.f32.mrb[0].mxu0
    %6099 = vmatprep.mubr.f32.mxu0 0.0
    %6100 = vmatmul.mubr.f32.gmra.mrb[0].mxu0 %v1444
    %v6101 = vpop.f32.mrb[0].mxu0
    %v6102 = vadd.f32 0.0, %v6101
    %v6103 = vpop.f32.mrb[0].mxu0
    %6104 = vmatprep.mubr.f32.mxu0 0.0
    %6105 = vmatmul.mubr.f32.gmra.mrb[0].mxu0 %v1447
    %v6106 = vpop.f32.mrb[0].mxu0
    %v6107 = vadd.f32 0.0, %v6106
    %v6108 = vpop.f32.mrb[0].mxu0
    %6109 = vmatprep.mubr.f32.mxu0 0.0
    %6110 = vmatmul.mubr.f32.gmra.mrb[0].mxu0 %v1450
    %v6111 = vpop.f32.mrb[0].mxu0
    %v6112 = vadd.f32 0.0, %v6111
    %v6113 = vpop.f32.mrb[0].mxu0
    %6114 = vmatprep.mubr.f32.mxu0 0.0
    %6115 = vmatmul.mubr.f32.gmra.mrb[0].mxu0 %v1453
    %v6116 = vpop.f32.mrb[0].mxu0
    %v6117 = vadd.f32 0.0, %v6116
    %v6118 = vpop.f32.mrb[0].mxu0
    %6119 = vmatprep.mubr.f32.mxu0 0.0
    %6120 = vmatmul.mubr.f32.gmra.mrb[0].mxu0 %v1456
    %v6121 = vpop.f32.mrb[0].mxu0
    %v6122 = vadd.f32 0.0, %v6121
    %v6123 = vpop.f32.mrb[0].mxu0
    %6124 = vmatprep.mubr.f32.mxu0 0.0
    %6125 = vmatmul.mubr.f32.gmra.mrb[0].mxu0 %v1459
    %v6126 = vpop.f32.mrb[0].mxu0
    %v6127 = vadd.f32 0.0, %v6126
    %v6128 = vpop.f32.mrb[0].mxu0
    %6129 = vmatprep.mubr.f32.mxu0 0.0
    %6130 = vmatmul.mubr.f32.gmra.mrb[0].mxu0 %v1462
    %v6131 = vpop.f32.mrb[0].mxu0
    %v6132 = vadd.f32 0.0, %v6131
    %v6133 = vpop.f32.mrb[0].mxu0
    %6134 = vmatprep.mubr.f32.mxu0 0.0
    %6135 = vmatmul.mubr.f32.gmra.mrb[0].mxu0 %v1465
    %v6136 = vpop.f32.mrb[0].mxu0
    %v6137 = vadd.f32 0.0, %v6136
    %v6138 = vpop.f32.mrb[0].mxu0
    %6139 = vmatprep.mubr.f32.mxu0 0.0
    %6140 = vmatmul.mubr.f32.gmra.mrb[0].mxu0 %v1468
    %v6141 = vpop.f32.mrb[0].mxu0
    %v6142 = vadd.f32 0.0, %v6141
    %v6143 = vpop.f32.mrb[0].mxu0
    %6144 = vmatprep.mubr.f32.mxu0 0.0
    %6145 = vmatmul.mubr.f32.gmra.mrb[0].mxu0 %v1471
    %v6146 = vpop.f32.mrb[0].mxu0
    %v6147 = vadd.f32 0.0, %v6146
    %v6148 = vpop.f32.mrb[0].mxu0
    %6149 = vmatprep.mubr.f32.mxu0 0.0
    %6150 = vmatmul.mubr.f32.gmra.mrb[0].mxu0 %v1474
    %v6151 = vpop.f32.mrb[0].mxu0
    %v6152 = vadd.f32 0.0, %v6151
    %v6153 = vpop.f32.mrb[0].mxu0
    %6154 = vmatprep.mubr.f32.mxu0 0.0
    %6155 = vmatmul.mubr.f32.gmra.mrb[0].mxu0 %v1477
    %v6156 = vpop.f32.mrb[0].mxu0
    %v6157 = vadd.f32 0.0, %v6156
    %v6158 = vpop.f32.mrb[0].mxu0
    %6159 = vmatprep.mubr.f32.mxu0 0.0
    %6160 = vmatmul.mubr.f32.gmra.mrb[0].mxu0 %v1480
    %v6161 = vpop.f32.mrb[0].mxu0
    %v6162 = vadd.f32 0.0, %v6161
    %v6163 = vpop.f32.mrb[0].mxu0
    %6164 = vmatprep.mubr.f32.mxu0 0.0
    %6165 = vmatmul.mubr.f32.gmra.mrb[0].mxu0 %v1483
    %v6166 = vpop.f32.mrb[0].mxu0
    %v6167 = vadd.f32 0.0, %v6166
    %v6168 = vpop.f32.mrb[0].mxu0
    %6169 = vmatprep.mubr.f32.mxu0 0.0
    %6170 = vmatmul.mubr.f32.gmra.mrb[0].mxu0 %v1486
    %v6171 = vpop.f32.mrb[0].mxu0
    %v6172 = vadd.f32 0.0, %v6171
    %v6173 = vpop.f32.mrb[0].mxu0
    %6174 = vmatprep.mubr.f32.mxu0 0.0
    %6175 = vmatmul.mubr.f32.gmra.mrb[0].mxu0 %v1489
    %v6176 = vpop.f32.mrb[0].mxu0
    %v6177 = vadd.f32 0.0, %v6176
    %v6178 = vpop.f32.mrb[0].mxu0
    %6179 = vdwg.mxu0
    %6180 = vmatprep.subr.mxu0 0.0
    %6181 = vmatpush1.msra.mxu0 %v5603
    %6182 = vmatprep.subr.mxu0 0.0
    %6183 = vmatpush1.msra.mxu0 %v5604
    %6184 = vmatprep.subr.mxu0 0.0
    %6185 = vmatpush1.msra.mxu0 %v5605
    %6186 = vmatprep.subr.mxu0 0.0
    %6187 = vmatpush1.msra.mxu0 %v5606
    %6188 = vmatprep.subr.mxu0 0.0
    %6189 = vmatpush1.msra.mxu0 0.0
    %6190 = vmatprep.subr.mxu0 0.0
    %6191 = vmatpush1.msra.mxu0 0.0
    %6192 = vmatprep.subr.mxu0 0.0
    %6193 = vmatpush1.msra.mxu0 0.0
    %6194 = vmatprep.subr.mxu0 0.0
    %6195 = vmatpush1.msra.mxu0 0.0
    %6196 = vmatprep.subr.mxu0 0.0
    %6197 = vmatpush1.msra.mxu0 0.0
    %6198 = vmatprep.subr.mxu0 0.0
    %6199 = vmatpush1.msra.mxu0 0.0
    %6200 = vmatprep.subr.mxu0 0.0
    %6201 = vmatpush1.msra.mxu0 0.0
    %6202 = vmatprep.subr.mxu0 0.0
    %6203 = vmatpush1.msra.mxu0 0.0
    %6204 = vmatprep.subr.mxu0 0.0
    %6205 = vmatpush1.msra.mxu0 0.0
    %6206 = vmatprep.subr.mxu0 0.0
    %6207 = vmatpush1.msra.mxu0 0.0
    %6208 = vmatprep.subr.mxu0 0.0
    %6209 = vmatpush1.msra.mxu0 0.0
    %6210 = vmatprep.subr.mxu0 0.0
    %6211 = vmatpush1.msra.mxu0 0.0
    %6212 = vmatprep.subr.mxu0 0.0
    %6213 = vmatpush1.msra.mxu0 0.0
    %6214 = vmatprep.subr.mxu0 0.0
    %6215 = vmatpush1.msra.mxu0 0.0
    %6216 = vmatprep.subr.mxu0 0.0
    %6217 = vmatpush1.msra.mxu0 0.0
    %6218 = vmatprep.subr.mxu0 0.0
    %6219 = vmatpush1.msra.mxu0 0.0
    %6220 = vmatprep.subr.mxu0 0.0
    %6221 = vmatpush1.msra.mxu0 0.0
    %6222 = vmatprep.subr.mxu0 0.0
    %6223 = vmatpush1.msra.mxu0 0.0
    %6224 = vmatprep.subr.mxu0 0.0
    %6225 = vmatpush1.msra.mxu0 0.0
    %6226 = vmatprep.subr.mxu0 0.0
    %6227 = vmatpush1.msra.mxu0 0.0
    %6228 = vmatprep.subr.mxu0 0.0
    %6229 = vmatpush1.msra.mxu0 0.0
    %6230 = vmatprep.subr.mxu0 0.0
    %6231 = vmatpush1.msra.mxu0 0.0
    %6232 = vmatprep.subr.mxu0 0.0
    %6233 = vmatpush1.msra.mxu0 0.0
    %6234 = vmatprep.subr.mxu0 0.0
    %6235 = vmatpush1.msra.mxu0 0.0
    %6236 = vmatprep.subr.mxu0 0.0
    %6237 = vmatpush1.msra.mxu0 0.0
    %6238 = vmatprep.subr.mxu0 0.0
    %6239 = vmatpush1.msra.mxu0 0.0
    %6240 = vmatprep.subr.mxu0 0.0
    %6241 = vmatpush1.msra.mxu0 0.0
    %6242 = vmatprep.subr.mxu0 0.0
    %6243 = vmatpush1.msra.mxu0 0.0
    %6244 = vmatprep.mubr.f32.mxu0 0.0
    %6245 = vmatmul.mubr.f32.gmra.mrb[0].mxu0 %v1300
    %v6246 = vpop.f32.mrb[0].mxu0
    %v6247 = vadd.f32 0.0, %v6246
    %v6248 = vpop.f32.mrb[0].mxu0
    %6249 = vmatprep.mubr.f32.mxu0 0.0
    %6250 = vmatmul.mubr.f32.gmra.mrb[0].mxu0 %v1303
    %v6251 = vpop.f32.mrb[0].mxu0
    %v6252 = vadd.f32 0.0, %v6251
    %v6253 = vpop.f32.mrb[0].mxu0
    %6254 = vmatprep.mubr.f32.mxu0 0.0
    %6255 = vmatmul.mubr.f32.gmra.mrb[0].mxu0 %v1306
    %v6256 = vpop.f32.mrb[0].mxu0
    %v6257 = vadd.f32 0.0, %v6256
    %v6258 = vpop.f32.mrb[0].mxu0
    %6259 = vmatprep.mubr.f32.mxu0 0.0
    %6260 = vmatmul.mubr.f32.gmra.mrb[0].mxu0 %v1309
    %v6261 = vpop.f32.mrb[0].mxu0
    %v6262 = vadd.f32 0.0, %v6261
    %v6263 = vpop.f32.mrb[0].mxu0
    %6264 = vmatprep.mubr.f32.mxu0 0.0
    %6265 = vmatmul.mubr.f32.gmra.mrb[0].mxu0 %v1312
    %v6266 = vpop.f32.mrb[0].mxu0
    %v6267 = vadd.f32 0.0, %v6266
    %v6268 = vpop.f32.mrb[0].mxu0
    %6269 = vmatprep.mubr.f32.mxu0 0.0
    %6270 = vmatmul.mubr.f32.gmra.mrb[0].mxu0 %v1315
    %v6271 = vpop.f32.mrb[0].mxu0
    %v6272 = vadd.f32 0.0, %v6271
    %v6273 = vpop.f32.mrb[0].mxu0
    %6274 = vmatprep.mubr.f32.mxu0 0.0
    %6275 = vmatmul.mubr.f32.gmra.mrb[0].mxu0 %v1318
    %v6276 = vpop.f32.mrb[0].mxu0
    %v6277 = vadd.f32 0.0, %v6276
    %v6278 = vpop.f32.mrb[0].mxu0
    %6279 = vmatprep.mubr.f32.mxu0 0.0
    %6280 = vmatmul.mubr.f32.gmra.mrb[0].mxu0 %v1321
    %v6281 = vpop.f32.mrb[0].mxu0
    %v6282 = vadd.f32 0.0, %v6281
    %v6283 = vpop.f32.mrb[0].mxu0
    %6284 = vmatprep.mubr.f32.mxu0 0.0
    %6285 = vmatmul.mubr.f32.gmra.mrb[0].mxu0 %v1324
    %v6286 = vpop.f32.mrb[0].mxu0
    %v6287 = vadd.f32 0.0, %v6286
    %v6288 = vpop.f32.mrb[0].mxu0
    %6289 = vmatprep.mubr.f32.mxu0 0.0
    %6290 = vmatmul.mubr.f32.gmra.mrb[0].mxu0 %v1327
    %v6291 = vpop.f32.mrb[0].mxu0
    %v6292 = vadd.f32 0.0, %v6291
    %v6293 = vpop.f32.mrb[0].mxu0
    %6294 = vmatprep.mubr.f32.mxu0 0.0
    %6295 = vmatmul.mubr.f32.gmra.mrb[0].mxu0 %v1330
    %v6296 = vpop.f32.mrb[0].mxu0
    %v6297 = vadd.f32 0.0, %v6296
    %v6298 = vpop.f32.mrb[0].mxu0
    %6299 = vmatprep.mubr.f32.mxu0 0.0
    %6300 = vmatmul.mubr.f32.gmra.mrb[0].mxu0 %v1333
    %v6301 = vpop.f32.mrb[0].mxu0
    %v6302 = vadd.f32 0.0, %v6301
    %v6303 = vpop.f32.mrb[0].mxu0
    %6304 = vmatprep.mubr.f32.mxu0 0.0
    %6305 = vmatmul.mubr.f32.gmra.mrb[0].mxu0 %v1336
    %v6306 = vpop.f32.mrb[0].mxu0
    %v6307 = vadd.f32 0.0, %v6306
    %v6308 = vpop.f32.mrb[0].mxu0
    %6309 = vmatprep.mubr.f32.mxu0 0.0
    %6310 = vmatmul.mubr.f32.gmra.mrb[0].mxu0 %v1339
    %v6311 = vpop.f32.mrb[0].mxu0
    %v6312 = vadd.f32 0.0, %v6311
    %v6313 = vpop.f32.mrb[0].mxu0
    %6314 = vmatprep.mubr.f32.mxu0 0.0
    %6315 = vmatmul.mubr.f32.gmra.mrb[0].mxu0 %v1342
    %v6316 = vpop.f32.mrb[0].mxu0
    %v6317 = vadd.f32 0.0, %v6316
    %v6318 = vpop.f32.mrb[0].mxu0
    %6319 = vmatprep.mubr.f32.mxu0 0.0
    %6320 = vmatmul.mubr.f32.gmra.mrb[0].mxu0 %v1345
    %v6321 = vpop.f32.mrb[0].mxu0
    %v6322 = vadd.f32 0.0, %v6321
    %v6323 = vpop.f32.mrb[0].mxu0
    %6324 = vmatprep.mubr.f32.mxu0 0.0
    %6325 = vmatmul.mubr.f32.gmra.mrb[0].mxu0 %v1348
    %v6326 = vpop.f32.mrb[0].mxu0
    %v6327 = vadd.f32 0.0, %v6326
    %v6328 = vpop.f32.mrb[0].mxu0
    %6329 = vmatprep.mubr.f32.mxu0 0.0
    %6330 = vmatmul.mubr.f32.gmra.mrb[0].mxu0 %v1351
    %v6331 = vpop.f32.mrb[0].mxu0
    %v6332 = vadd.f32 0.0, %v6331
    %v6333 = vpop.f32.mrb[0].mxu0
    %6334 = vmatprep.mubr.f32.mxu0 0.0
    %6335 = vmatmul.mubr.f32.gmra.mrb[0].mxu0 %v1354
    %v6336 = vpop.f32.mrb[0].mxu0
    %v6337 = vadd.f32 0.0, %v6336
    %v6338 = vpop.f32.mrb[0].mxu0
    %6339 = vmatprep.mubr.f32.mxu0 0.0
    %6340 = vmatmul.mubr.f32.gmra.mrb[0].mxu0 %v1357
    %v6341 = vpop.f32.mrb[0].mxu0
    %v6342 = vadd.f32 0.0, %v6341
    %v6343 = vpop.f32.mrb[0].mxu0
    %6344 = vmatprep.mubr.f32.mxu0 0.0
    %6345 = vmatmul.mubr.f32.gmra.mrb[0].mxu0 %v1360
    %v6346 = vpop.f32.mrb[0].mxu0
    %v6347 = vadd.f32 0.0, %v6346
    %v6348 = vpop.f32.mrb[0].mxu0
    %6349 = vmatprep.mubr.f32.mxu0 0.0
    %6350 = vmatmul.mubr.f32.gmra.mrb[0].mxu0 %v1363
    %v6351 = vpop.f32.mrb[0].mxu0
    %v6352 = vadd.f32 0.0, %v6351
    %v6353 = vpop.f32.mrb[0].mxu0
    %6354 = vmatprep.mubr.f32.mxu0 0.0
    %6355 = vmatmul.mubr.f32.gmra.mrb[0].mxu0 %v1366
    %v6356 = vpop.f32.mrb[0].mxu0
    %v6357 = vadd.f32 0.0, %v6356
    %v6358 = vpop.f32.mrb[0].mxu0
    %6359 = vmatprep.mubr.f32.mxu0 0.0
    %6360 = vmatmul.mubr.f32.gmra.mrb[0].mxu0 %v1369
    %v6361 = vpop.f32.mrb[0].mxu0
    %v6362 = vadd.f32 0.0, %v6361
    %v6363 = vpop.f32.mrb[0].mxu0
    %6364 = vmatprep.mubr.f32.mxu0 0.0
    %6365 = vmatmul.mubr.f32.gmra.mrb[0].mxu0 %v1372
    %v6366 = vpop.f32.mrb[0].mxu0
    %v6367 = vadd.f32 0.0, %v6366
    %v6368 = vpop.f32.mrb[0].mxu0
    %6369 = vmatprep.mubr.f32.mxu0 0.0
    %6370 = vmatmul.mubr.f32.gmra.mrb[0].mxu0 %v1375
    %v6371 = vpop.f32.mrb[0].mxu0
    %v6372 = vadd.f32 0.0, %v6371
    %v6373 = vpop.f32.mrb[0].mxu0
    %6374 = vmatprep.mubr.f32.mxu0 0.0
    %6375 = vmatmul.mubr.f32.gmra.mrb[0].mxu0 %v1378
    %v6376 = vpop.f32.mrb[0].mxu0
    %v6377 = vadd.f32 0.0, %v6376
    %v6378 = vpop.f32.mrb[0].mxu0
    %6379 = vmatprep.mubr.f32.mxu0 0.0
    %6380 = vmatmul.mubr.f32.gmra.mrb[0].mxu0 %v1381
    %v6381 = vpop.f32.mrb[0].mxu0
    %v6382 = vadd.f32 0.0, %v6381
    %v6383 = vpop.f32.mrb[0].mxu0
    %6384 = vmatprep.mubr.f32.mxu0 0.0
    %6385 = vmatmul.mubr.f32.gmra.mrb[0].mxu0 %v1384
    %v6386 = vpop.f32.mrb[0].mxu0
    %v6387 = vadd.f32 0.0, %v6386
    %v6388 = vpop.f32.mrb[0].mxu0
    %6389 = vmatprep.mubr.f32.mxu0 0.0
    %6390 = vmatmul.mubr.f32.gmra.mrb[0].mxu0 %v1387
    %v6391 = vpop.f32.mrb[0].mxu0
    %v6392 = vadd.f32 0.0, %v6391
    %v6393 = vpop.f32.mrb[0].mxu0
    %6394 = vmatprep.mubr.f32.mxu0 0.0
    %6395 = vmatmul.mubr.f32.gmra.mrb[0].mxu0 %v1390
    %v6396 = vpop.f32.mrb[0].mxu0
    %v6397 = vadd.f32 0.0, %v6396
    %v6398 = vpop.f32.mrb[0].mxu0
    %6399 = vmatprep.mubr.f32.mxu0 0.0
    %6400 = vmatmul.mubr.f32.gmra.mrb[0].mxu0 %v1393
    %v6401 = vpop.f32.mrb[0].mxu0
    %v6402 = vadd.f32 0.0, %v6401
    %v6403 = vpop.f32.mrb[0].mxu0
    %6404 = vmatprep.mubr.f32.mxu0 0.0
    %6405 = vmatmul.mubr.f32.gmra.mrb[0].mxu0 %v1396
    %v6406 = vpop.f32.mrb[0].mxu0
    %v6407 = vadd.f32 0.0, %v6406
    %v6408 = vpop.f32.mrb[0].mxu0
    %6409 = vmatprep.mubr.f32.mxu0 0.0
    %6410 = vmatmul.mubr.f32.gmra.mrb[0].mxu0 %v1399
    %v6411 = vpop.f32.mrb[0].mxu0
    %v6412 = vadd.f32 0.0, %v6411
    %v6413 = vpop.f32.mrb[0].mxu0
    %6414 = vmatprep.mubr.f32.mxu0 0.0
    %6415 = vmatmul.mubr.f32.gmra.mrb[0].mxu0 %v1402
    %v6416 = vpop.f32.mrb[0].mxu0
    %v6417 = vadd.f32 0.0, %v6416
    %v6418 = vpop.f32.mrb[0].mxu0
    %6419 = vmatprep.mubr.f32.mxu0 0.0
    %6420 = vmatmul.mubr.f32.gmra.mrb[0].mxu0 %v1405
    %v6421 = vpop.f32.mrb[0].mxu0
    %v6422 = vadd.f32 0.0, %v6421
    %v6423 = vpop.f32.mrb[0].mxu0
    %6424 = vmatprep.mubr.f32.mxu0 0.0
    %6425 = vmatmul.mubr.f32.gmra.mrb[0].mxu0 %v1408
    %v6426 = vpop.f32.mrb[0].mxu0
    %v6427 = vadd.f32 0.0, %v6426
    %v6428 = vpop.f32.mrb[0].mxu0
    %6429 = vmatprep.mubr.f32.mxu0 0.0
    %6430 = vmatmul.mubr.f32.gmra.mrb[0].mxu0 %v1411
    %v6431 = vpop.f32.mrb[0].mxu0
    %v6432 = vadd.f32 0.0, %v6431
    %v6433 = vpop.f32.mrb[0].mxu0
    %6434 = vmatprep.mubr.f32.mxu0 0.0
    %6435 = vmatmul.mubr.f32.gmra.mrb[0].mxu0 %v1414
    %v6436 = vpop.f32.mrb[0].mxu0
    %v6437 = vadd.f32 0.0, %v6436
    %v6438 = vpop.f32.mrb[0].mxu0
    %6439 = vmatprep.mubr.f32.mxu0 0.0
    %6440 = vmatmul.mubr.f32.gmra.mrb[0].mxu0 %v1417
    %v6441 = vpop.f32.mrb[0].mxu0
    %v6442 = vadd.f32 0.0, %v6441
    %v6443 = vpop.f32.mrb[0].mxu0
    %6444 = vmatprep.mubr.f32.mxu0 0.0
    %6445 = vmatmul.mubr.f32.gmra.mrb[0].mxu0 %v1420
    %v6446 = vpop.f32.mrb[0].mxu0
    %v6447 = vadd.f32 0.0, %v6446
    %v6448 = vpop.f32.mrb[0].mxu0
    %6449 = vmatprep.mubr.f32.mxu0 0.0
    %6450 = vmatmul.mubr.f32.gmra.mrb[0].mxu0 %v1423
    %v6451 = vpop.f32.mrb[0].mxu0
    %v6452 = vadd.f32 0.0, %v6451
    %v6453 = vpop.f32.mrb[0].mxu0
    %6454 = vmatprep.mubr.f32.mxu0 0.0
    %6455 = vmatmul.mubr.f32.gmra.mrb[0].mxu0 %v1426
    %v6456 = vpop.f32.mrb[0].mxu0
    %v6457 = vadd.f32 0.0, %v6456
    %v6458 = vpop.f32.mrb[0].mxu0
    %6459 = vmatprep.mubr.f32.mxu0 0.0
    %6460 = vmatmul.mubr.f32.gmra.mrb[0].mxu0 %v1429
    %v6461 = vpop.f32.mrb[0].mxu0
    %v6462 = vadd.f32 0.0, %v6461
    %v6463 = vpop.f32.mrb[0].mxu0
    %6464 = vmatprep.mubr.f32.mxu0 0.0
    %6465 = vmatmul.mubr.f32.gmra.mrb[0].mxu0 %v1432
    %v6466 = vpop.f32.mrb[0].mxu0
    %v6467 = vadd.f32 0.0, %v6466
    %v6468 = vpop.f32.mrb[0].mxu0
    %6469 = vmatprep.mubr.f32.mxu0 0.0
    %6470 = vmatmul.mubr.f32.gmra.mrb[0].mxu0 %v1435
    %v6471 = vpop.f32.mrb[0].mxu0
    %v6472 = vadd.f32 0.0, %v6471
    %v6473 = vpop.f32.mrb[0].mxu0
    %6474 = vmatprep.mubr.f32.mxu0 0.0
    %6475 = vmatmul.mubr.f32.gmra.mrb[0].mxu0 %v1438
    %v6476 = vpop.f32.mrb[0].mxu0
    %v6477 = vadd.f32 0.0, %v6476
    %v6478 = vpop.f32.mrb[0].mxu0
    %6479 = vmatprep.mubr.f32.mxu0 0.0
    %6480 = vmatmul.mubr.f32.gmra.mrb[0].mxu0 %v1441
    %v6481 = vpop.f32.mrb[0].mxu0
    %v6482 = vadd.f32 0.0, %v6481
    %v6483 = vpop.f32.mrb[0].mxu0
    %6484 = vmatprep.mubr.f32.mxu0 0.0
    %6485 = vmatmul.mubr.f32.gmra.mrb[0].mxu0 %v1444
    %v6486 = vpop.f32.mrb[0].mxu0
    %v6487 = vadd.f32 0.0, %v6486
    %v6488 = vpop.f32.mrb[0].mxu0
    %6489 = vmatprep.mubr.f32.mxu0 0.0
    %6490 = vmatmul.mubr.f32.gmra.mrb[0].mxu0 %v1447
    %v6491 = vpop.f32.mrb[0].mxu0
    %v6492 = vadd.f32 0.0, %v6491
    %v6493 = vpop.f32.mrb[0].mxu0
    %6494 = vmatprep.mubr.f32.mxu0 0.0
    %6495 = vmatmul.mubr.f32.gmra.mrb[0].mxu0 %v1450
    %v6496 = vpop.f32.mrb[0].mxu0
    %v6497 = vadd.f32 0.0, %v6496
    %v6498 = vpop.f32.mrb[0].mxu0
    %6499 = vmatprep.mubr.f32.mxu0 0.0
    %6500 = vmatmul.mubr.f32.gmra.mrb[0].mxu0 %v1453
    %v6501 = vpop.f32.mrb[0].mxu0
    %v6502 = vadd.f32 0.0, %v6501
    %v6503 = vpop.f32.mrb[0].mxu0
    %6504 = vmatprep.mubr.f32.mxu0 0.0
    %6505 = vmatmul.mubr.f32.gmra.mrb[0].mxu0 %v1456
    %v6506 = vpop.f32.mrb[0].mxu0
    %v6507 = vadd.f32 0.0, %v6506
    %v6508 = vpop.f32.mrb[0].mxu0
    %6509 = vmatprep.mubr.f32.mxu0 0.0
    %6510 = vmatmul.mubr.f32.gmra.mrb[0].mxu0 %v1459
    %v6511 = vpop.f32.mrb[0].mxu0
    %v6512 = vadd.f32 0.0, %v6511
    %v6513 = vpop.f32.mrb[0].mxu0
    %6514 = vmatprep.mubr.f32.mxu0 0.0
    %6515 = vmatmul.mubr.f32.gmra.mrb[0].mxu0 %v1462
    %v6516 = vpop.f32.mrb[0].mxu0
    %v6517 = vadd.f32 0.0, %v6516
    %v6518 = vpop.f32.mrb[0].mxu0
    %6519 = vmatprep.mubr.f32.mxu0 0.0
    %6520 = vmatmul.mubr.f32.gmra.mrb[0].mxu0 %v1465
    %v6521 = vpop.f32.mrb[0].mxu0
    %v6522 = vadd.f32 0.0, %v6521
    %v6523 = vpop.f32.mrb[0].mxu0
    %6524 = vmatprep.mubr.f32.mxu0 0.0
    %6525 = vmatmul.mubr.f32.gmra.mrb[0].mxu0 %v1468
    %v6526 = vpop.f32.mrb[0].mxu0
    %v6527 = vadd.f32 0.0, %v6526
    %v6528 = vpop.f32.mrb[0].mxu0
    %6529 = vmatprep.mubr.f32.mxu0 0.0
    %6530 = vmatmul.mubr.f32.gmra.mrb[0].mxu0 %v1471
    %v6531 = vpop.f32.mrb[0].mxu0
    %v6532 = vadd.f32 0.0, %v6531
    %v6533 = vpop.f32.mrb[0].mxu0
    %6534 = vmatprep.mubr.f32.mxu0 0.0
    %6535 = vmatmul.mubr.f32.gmra.mrb[0].mxu0 %v1474
    %v6536 = vpop.f32.mrb[0].mxu0
    %v6537 = vadd.f32 0.0, %v6536
    %v6538 = vpop.f32.mrb[0].mxu0
    %6539 = vmatprep.mubr.f32.mxu0 0.0
    %6540 = vmatmul.mubr.f32.gmra.mrb[0].mxu0 %v1477
    %v6541 = vpop.f32.mrb[0].mxu0
    %v6542 = vadd.f32 0.0, %v6541
    %v6543 = vpop.f32.mrb[0].mxu0
    %6544 = vmatprep.mubr.f32.mxu0 0.0
    %6545 = vmatmul.mubr.f32.gmra.mrb[0].mxu0 %v1480
    %v6546 = vpop.f32.mrb[0].mxu0
    %v6547 = vadd.f32 0.0, %v6546
    %v6548 = vpop.f32.mrb[0].mxu0
    %6549 = vmatprep.mubr.f32.mxu0 0.0
    %6550 = vmatmul.mubr.f32.gmra.mrb[0].mxu0 %v1483
    %v6551 = vpop.f32.mrb[0].mxu0
    %v6552 = vadd.f32 0.0, %v6551
    %v6553 = vpop.f32.mrb[0].mxu0
    %6554 = vmatprep.mubr.f32.mxu0 0.0
    %6555 = vmatmul.mubr.f32.gmra.mrb[0].mxu0 %v1486
    %v6556 = vpop.f32.mrb[0].mxu0
    %v6557 = vadd.f32 0.0, %v6556
    %v6558 = vpop.f32.mrb[0].mxu0
    %6559 = vmatprep.mubr.f32.mxu0 0.0
    %6560 = vmatmul.mubr.f32.gmra.mrb[0].mxu0 %v1489
    %v6561 = vpop.f32.mrb[0].mxu0
    %v6562 = vadd.f32 0.0, %v6561
    %v6563 = vpop.f32.mrb[0].mxu0
    %6564 = vdwg.mxu0
    %6565 = vmatprep.subr.mxu0 0.0
    %6566 = vmatpush1.msra.mxu0 %v5683
    %6567 = vmatprep.subr.mxu0 0.0
    %6568 = vmatpush1.msra.mxu0 %v5688
    %6569 = vmatprep.subr.mxu0 0.0
    %6570 = vmatpush1.msra.mxu0 %v5693
    %6571 = vmatprep.subr.mxu0 0.0
    %6572 = vmatpush1.msra.mxu0 %v5698
    %6573 = vmatprep.subr.mxu0 0.0
    %6574 = vmatpush1.msra.mxu0 0.0
    %6575 = vmatprep.subr.mxu0 0.0
    %6576 = vmatpush1.msra.mxu0 0.0
    %6577 = vmatprep.subr.mxu0 0.0
    %6578 = vmatpush1.msra.mxu0 0.0
    %6579 = vmatprep.subr.mxu0 0.0
    %6580 = vmatpush1.msra.mxu0 0.0
    %6581 = vmatprep.subr.mxu0 0.0
    %6582 = vmatpush1.msra.mxu0 0.0
    %6583 = vmatprep.subr.mxu0 0.0
    %6584 = vmatpush1.msra.mxu0 0.0
    %6585 = vmatprep.subr.mxu0 0.0
    %6586 = vmatpush1.msra.mxu0 0.0
    %6587 = vmatprep.subr.mxu0 0.0
    %6588 = vmatpush1.msra.mxu0 0.0
    %6589 = vmatprep.subr.mxu0 0.0
    %6590 = vmatpush1.msra.mxu0 0.0
    %6591 = vmatprep.subr.mxu0 0.0
    %6592 = vmatpush1.msra.mxu0 0.0
    %6593 = vmatprep.subr.mxu0 0.0
    %6594 = vmatpush1.msra.mxu0 0.0
    %6595 = vmatprep.subr.mxu0 0.0
    %6596 = vmatpush1.msra.mxu0 0.0
    %6597 = vmatprep.subr.mxu0 0.0
    %6598 = vmatpush1.msra.mxu0 0.0
    %6599 = vmatprep.subr.mxu0 0.0
    %6600 = vmatpush1.msra.mxu0 0.0
    %6601 = vmatprep.subr.mxu0 0.0
    %6602 = vmatpush1.msra.mxu0 0.0
    %6603 = vmatprep.subr.mxu0 0.0
    %6604 = vmatpush1.msra.mxu0 0.0
    %6605 = vmatprep.subr.mxu0 0.0
    %6606 = vmatpush1.msra.mxu0 0.0
    %6607 = vmatprep.subr.mxu0 0.0
    %6608 = vmatpush1.msra.mxu0 0.0
    %6609 = vmatprep.subr.mxu0 0.0
    %6610 = vmatpush1.msra.mxu0 0.0
    %6611 = vmatprep.subr.mxu0 0.0
    %6612 = vmatpush1.msra.mxu0 0.0
    %6613 = vmatprep.subr.mxu0 0.0
    %6614 = vmatpush1.msra.mxu0 0.0
    %6615 = vmatprep.subr.mxu0 0.0
    %6616 = vmatpush1.msra.mxu0 0.0
    %6617 = vmatprep.subr.mxu0 0.0
    %6618 = vmatpush1.msra.mxu0 0.0
    %6619 = vmatprep.subr.mxu0 0.0
    %6620 = vmatpush1.msra.mxu0 0.0
    %6621 = vmatprep.subr.mxu0 0.0
    %6622 = vmatpush1.msra.mxu0 0.0
    %6623 = vmatprep.subr.mxu0 0.0
    %6624 = vmatpush1.msra.mxu0 0.0
    %6625 = vmatprep.subr.mxu0 0.0
    %6626 = vmatpush1.msra.mxu0 0.0
    %6627 = vmatprep.subr.mxu0 0.0
    %6628 = vmatpush1.msra.mxu0 0.0
    %6629 = vmatprep.mubr.f32.mxu0 0.0
    %6630 = vmatmul.mubr.f32.gmra.mrb[0].mxu0 %v1300
    %v6631 = vpop.f32.mrb[0].mxu0
    %v6632 = vadd.f32 0.0, %v6631
    %v6633 = vpop.f32.mrb[0].mxu0
    %6634 = vmatprep.mubr.f32.mxu0 0.0
    %6635 = vmatmul.mubr.f32.gmra.mrb[0].mxu0 %v1303
    %v6636 = vpop.f32.mrb[0].mxu0
    %v6637 = vadd.f32 0.0, %v6636
    %v6638 = vpop.f32.mrb[0].mxu0
    %6639 = vmatprep.mubr.f32.mxu0 0.0
    %6640 = vmatmul.mubr.f32.gmra.mrb[0].mxu0 %v1306
    %v6641 = vpop.f32.mrb[0].mxu0
    %v6642 = vadd.f32 0.0, %v6641
    %v6643 = vpop.f32.mrb[0].mxu0
    %6644 = vmatprep.mubr.f32.mxu0 0.0
    %6645 = vmatmul.mubr.f32.gmra.mrb[0].mxu0 %v1309
    %v6646 = vpop.f32.mrb[0].mxu0
    %v6647 = vadd.f32 0.0, %v6646
    %v6648 = vpop.f32.mrb[0].mxu0
    %6649 = vmatprep.mubr.f32.mxu0 0.0
    %6650 = vmatmul.mubr.f32.gmra.mrb[0].mxu0 %v1312
    %v6651 = vpop.f32.mrb[0].mxu0
    %v6652 = vadd.f32 0.0, %v6651
    %v6653 = vpop.f32.mrb[0].mxu0
    %6654 = vmatprep.mubr.f32.mxu0 0.0
    %6655 = vmatmul.mubr.f32.gmra.mrb[0].mxu0 %v1315
    %v6656 = vpop.f32.mrb[0].mxu0
    %v6657 = vadd.f32 0.0, %v6656
    %v6658 = vpop.f32.mrb[0].mxu0
    %6659 = vmatprep.mubr.f32.mxu0 0.0
    %6660 = vmatmul.mubr.f32.gmra.mrb[0].mxu0 %v1318
    %v6661 = vpop.f32.mrb[0].mxu0
    %v6662 = vadd.f32 0.0, %v6661
    %v6663 = vpop.f32.mrb[0].mxu0
    %6664 = vmatprep.mubr.f32.mxu0 0.0
    %6665 = vmatmul.mubr.f32.gmra.mrb[0].mxu0 %v1321
    %v6666 = vpop.f32.mrb[0].mxu0
    %v6667 = vadd.f32 0.0, %v6666
    %v6668 = vpop.f32.mrb[0].mxu0
    %6669 = vmatprep.mubr.f32.mxu0 0.0
    %6670 = vmatmul.mubr.f32.gmra.mrb[0].mxu0 %v1324
    %v6671 = vpop.f32.mrb[0].mxu0
    %v6672 = vadd.f32 0.0, %v6671
    %v6673 = vpop.f32.mrb[0].mxu0
    %6674 = vmatprep.mubr.f32.mxu0 0.0
    %6675 = vmatmul.mubr.f32.gmra.mrb[0].mxu0 %v1327
    %v6676 = vpop.f32.mrb[0].mxu0
    %v6677 = vadd.f32 0.0, %v6676
    %v6678 = vpop.f32.mrb[0].mxu0
    %6679 = vmatprep.mubr.f32.mxu0 0.0
    %6680 = vmatmul.mubr.f32.gmra.mrb[0].mxu0 %v1330
    %v6681 = vpop.f32.mrb[0].mxu0
    %v6682 = vadd.f32 0.0, %v6681
    %v6683 = vpop.f32.mrb[0].mxu0
    %6684 = vmatprep.mubr.f32.mxu0 0.0
    %6685 = vmatmul.mubr.f32.gmra.mrb[0].mxu0 %v1333
    %v6686 = vpop.f32.mrb[0].mxu0
    %v6687 = vadd.f32 0.0, %v6686
    %v6688 = vpop.f32.mrb[0].mxu0
    %6689 = vmatprep.mubr.f32.mxu0 0.0
    %6690 = vmatmul.mubr.f32.gmra.mrb[0].mxu0 %v1336
    %v6691 = vpop.f32.mrb[0].mxu0
    %v6692 = vadd.f32 0.0, %v6691
    %v6693 = vpop.f32.mrb[0].mxu0
    %6694 = vmatprep.mubr.f32.mxu0 0.0
    %6695 = vmatmul.mubr.f32.gmra.mrb[0].mxu0 %v1339
    %v6696 = vpop.f32.mrb[0].mxu0
    %v6697 = vadd.f32 0.0, %v6696
    %v6698 = vpop.f32.mrb[0].mxu0
    %6699 = vmatprep.mubr.f32.mxu0 0.0
    %6700 = vmatmul.mubr.f32.gmra.mrb[0].mxu0 %v1342
    %v6701 = vpop.f32.mrb[0].mxu0
    %v6702 = vadd.f32 0.0, %v6701
    %v6703 = vpop.f32.mrb[0].mxu0
    %6704 = vmatprep.mubr.f32.mxu0 0.0
    %6705 = vmatmul.mubr.f32.gmra.mrb[0].mxu0 %v1345
    %v6706 = vpop.f32.mrb[0].mxu0
    %v6707 = vadd.f32 0.0, %v6706
    %v6708 = vpop.f32.mrb[0].mxu0
    %6709 = vmatprep.mubr.f32.mxu0 0.0
    %6710 = vmatmul.mubr.f32.gmra.mrb[0].mxu0 %v1348
    %v6711 = vpop.f32.mrb[0].mxu0
    %v6712 = vadd.f32 0.0, %v6711
    %v6713 = vpop.f32.mrb[0].mxu0
    %6714 = vmatprep.mubr.f32.mxu0 0.0
    %6715 = vmatmul.mubr.f32.gmra.mrb[0].mxu0 %v1351
    %v6716 = vpop.f32.mrb[0].mxu0
    %v6717 = vadd.f32 0.0, %v6716
    %v6718 = vpop.f32.mrb[0].mxu0
    %6719 = vmatprep.mubr.f32.mxu0 0.0
    %6720 = vmatmul.mubr.f32.gmra.mrb[0].mxu0 %v1354
    %v6721 = vpop.f32.mrb[0].mxu0
    %v6722 = vadd.f32 0.0, %v6721
    %v6723 = vpop.f32.mrb[0].mxu0
    %6724 = vmatprep.mubr.f32.mxu0 0.0
    %6725 = vmatmul.mubr.f32.gmra.mrb[0].mxu0 %v1357
    %v6726 = vpop.f32.mrb[0].mxu0
    %v6727 = vadd.f32 0.0, %v6726
    %v6728 = vpop.f32.mrb[0].mxu0
    %6729 = vmatprep.mubr.f32.mxu0 0.0
    %6730 = vmatmul.mubr.f32.gmra.mrb[0].mxu0 %v1360
    %v6731 = vpop.f32.mrb[0].mxu0
    %v6732 = vadd.f32 0.0, %v6731
    %v6733 = vpop.f32.mrb[0].mxu0
    %6734 = vmatprep.mubr.f32.mxu0 0.0
    %6735 = vmatmul.mubr.f32.gmra.mrb[0].mxu0 %v1363
    %v6736 = vpop.f32.mrb[0].mxu0
    %v6737 = vadd.f32 0.0, %v6736
    %v6738 = vpop.f32.mrb[0].mxu0
    %6739 = vmatprep.mubr.f32.mxu0 0.0
    %6740 = vmatmul.mubr.f32.gmra.mrb[0].mxu0 %v1366
    %v6741 = vpop.f32.mrb[0].mxu0
    %v6742 = vadd.f32 0.0, %v6741
    %v6743 = vpop.f32.mrb[0].mxu0
    %6744 = vmatprep.mubr.f32.mxu0 0.0
    %6745 = vmatmul.mubr.f32.gmra.mrb[0].mxu0 %v1369
    %v6746 = vpop.f32.mrb[0].mxu0
    %v6747 = vadd.f32 0.0, %v6746
    %v6748 = vpop.f32.mrb[0].mxu0
    %6749 = vmatprep.mubr.f32.mxu0 0.0
    %6750 = vmatmul.mubr.f32.gmra.mrb[0].mxu0 %v1372
    %v6751 = vpop.f32.mrb[0].mxu0
    %v6752 = vadd.f32 0.0, %v6751
    %v6753 = vpop.f32.mrb[0].mxu0
    %6754 = vmatprep.mubr.f32.mxu0 0.0
    %6755 = vmatmul.mubr.f32.gmra.mrb[0].mxu0 %v1375
    %v6756 = vpop.f32.mrb[0].mxu0
    %v6757 = vadd.f32 0.0, %v6756
    %v6758 = vpop.f32.mrb[0].mxu0
    %6759 = vmatprep.mubr.f32.mxu0 0.0
    %6760 = vmatmul.mubr.f32.gmra.mrb[0].mxu0 %v1378
    %v6761 = vpop.f32.mrb[0].mxu0
    %v6762 = vadd.f32 0.0, %v6761
    %v6763 = vpop.f32.mrb[0].mxu0
    %6764 = vmatprep.mubr.f32.mxu0 0.0
    %6765 = vmatmul.mubr.f32.gmra.mrb[0].mxu0 %v1381
    %v6766 = vpop.f32.mrb[0].mxu0
    %v6767 = vadd.f32 0.0, %v6766
    %v6768 = vpop.f32.mrb[0].mxu0
    %6769 = vmatprep.mubr.f32.mxu0 0.0
    %6770 = vmatmul.mubr.f32.gmra.mrb[0].mxu0 %v1384
    %v6771 = vpop.f32.mrb[0].mxu0
    %v6772 = vadd.f32 0.0, %v6771
    %v6773 = vpop.f32.mrb[0].mxu0
    %6774 = vmatprep.mubr.f32.mxu0 0.0
    %6775 = vmatmul.mubr.f32.gmra.mrb[0].mxu0 %v1387
    %v6776 = vpop.f32.mrb[0].mxu0
    %v6777 = vadd.f32 0.0, %v6776
    %v6778 = vpop.f32.mrb[0].mxu0
    %6779 = vmatprep.mubr.f32.mxu0 0.0
    %6780 = vmatmul.mubr.f32.gmra.mrb[0].mxu0 %v1390
    %v6781 = vpop.f32.mrb[0].mxu0
    %v6782 = vadd.f32 0.0, %v6781
    %v6783 = vpop.f32.mrb[0].mxu0
    %6784 = vmatprep.mubr.f32.mxu0 0.0
    %6785 = vmatmul.mubr.f32.gmra.mrb[0].mxu0 %v1393
    %v6786 = vpop.f32.mrb[0].mxu0
    %v6787 = vadd.f32 0.0, %v6786
    %v6788 = vpop.f32.mrb[0].mxu0
    %6789 = vmatprep.mubr.f32.mxu0 0.0
    %6790 = vmatmul.mubr.f32.gmra.mrb[0].mxu0 %v1396
    %v6791 = vpop.f32.mrb[0].mxu0
    %v6792 = vadd.f32 0.0, %v6791
    %v6793 = vpop.f32.mrb[0].mxu0
    %6794 = vmatprep.mubr.f32.mxu0 0.0
    %6795 = vmatmul.mubr.f32.gmra.mrb[0].mxu0 %v1399
    %v6796 = vpop.f32.mrb[0].mxu0
    %v6797 = vadd.f32 0.0, %v6796
    %v6798 = vpop.f32.mrb[0].mxu0
    %6799 = vmatprep.mubr.f32.mxu0 0.0
    %6800 = vmatmul.mubr.f32.gmra.mrb[0].mxu0 %v1402
    %v6801 = vpop.f32.mrb[0].mxu0
    %v6802 = vadd.f32 0.0, %v6801
    %v6803 = vpop.f32.mrb[0].mxu0
    %6804 = vmatprep.mubr.f32.mxu0 0.0
    %6805 = vmatmul.mubr.f32.gmra.mrb[0].mxu0 %v1405
    %v6806 = vpop.f32.mrb[0].mxu0
    %v6807 = vadd.f32 0.0, %v6806
    %v6808 = vpop.f32.mrb[0].mxu0
    %6809 = vmatprep.mubr.f32.mxu0 0.0
    %6810 = vmatmul.mubr.f32.gmra.mrb[0].mxu0 %v1408
    %v6811 = vpop.f32.mrb[0].mxu0
    %v6812 = vadd.f32 0.0, %v6811
    %v6813 = vpop.f32.mrb[0].mxu0
    %6814 = vmatprep.mubr.f32.mxu0 0.0
    %6815 = vmatmul.mubr.f32.gmra.mrb[0].mxu0 %v1411
    %v6816 = vpop.f32.mrb[0].mxu0
    %v6817 = vadd.f32 0.0, %v6816
    %v6818 = vpop.f32.mrb[0].mxu0
    %6819 = vmatprep.mubr.f32.mxu0 0.0
    %6820 = vmatmul.mubr.f32.gmra.mrb[0].mxu0 %v1414
    %v6821 = vpop.f32.mrb[0].mxu0
    %v6822 = vadd.f32 0.0, %v6821
    %v6823 = vpop.f32.mrb[0].mxu0
    %6824 = vmatprep.mubr.f32.mxu0 0.0
    %6825 = vmatmul.mubr.f32.gmra.mrb[0].mxu0 %v1417
    %v6826 = vpop.f32.mrb[0].mxu0
    %v6827 = vadd.f32 0.0, %v6826
    %v6828 = vpop.f32.mrb[0].mxu0
    %6829 = vmatprep.mubr.f32.mxu0 0.0
    %6830 = vmatmul.mubr.f32.gmra.mrb[0].mxu0 %v1420
    %v6831 = vpop.f32.mrb[0].mxu0
    %v6832 = vadd.f32 0.0, %v6831
    %v6833 = vpop.f32.mrb[0].mxu0
    %6834 = vmatprep.mubr.f32.mxu0 0.0
    %6835 = vmatmul.mubr.f32.gmra.mrb[0].mxu0 %v1423
    %v6836 = vpop.f32.mrb[0].mxu0
    %v6837 = vadd.f32 0.0, %v6836
    %v6838 = vpop.f32.mrb[0].mxu0
    %6839 = vmatprep.mubr.f32.mxu0 0.0
    %6840 = vmatmul.mubr.f32.gmra.mrb[0].mxu0 %v1426
    %v6841 = vpop.f32.mrb[0].mxu0
    %v6842 = vadd.f32 0.0, %v6841
    %v6843 = vpop.f32.mrb[0].mxu0
    %6844 = vmatprep.mubr.f32.mxu0 0.0
    %6845 = vmatmul.mubr.f32.gmra.mrb[0].mxu0 %v1429
    %v6846 = vpop.f32.mrb[0].mxu0
    %v6847 = vadd.f32 0.0, %v6846
    %v6848 = vpop.f32.mrb[0].mxu0
    %6849 = vmatprep.mubr.f32.mxu0 0.0
    %6850 = vmatmul.mubr.f32.gmra.mrb[0].mxu0 %v1432
    %v6851 = vpop.f32.mrb[0].mxu0
    %v6852 = vadd.f32 0.0, %v6851
    %v6853 = vpop.f32.mrb[0].mxu0
    %6854 = vmatprep.mubr.f32.mxu0 0.0
    %6855 = vmatmul.mubr.f32.gmra.mrb[0].mxu0 %v1435
    %v6856 = vpop.f32.mrb[0].mxu0
    %v6857 = vadd.f32 0.0, %v6856
    %v6858 = vpop.f32.mrb[0].mxu0
    %6859 = vmatprep.mubr.f32.mxu0 0.0
    %6860 = vmatmul.mubr.f32.gmra.mrb[0].mxu0 %v1438
    %v6861 = vpop.f32.mrb[0].mxu0
    %v6862 = vadd.f32 0.0, %v6861
    %v6863 = vpop.f32.mrb[0].mxu0
    %6864 = vmatprep.mubr.f32.mxu0 0.0
    %6865 = vmatmul.mubr.f32.gmra.mrb[0].mxu0 %v1441
    %v6866 = vpop.f32.mrb[0].mxu0
    %v6867 = vadd.f32 0.0, %v6866
    %v6868 = vpop.f32.mrb[0].mxu0
    %6869 = vmatprep.mubr.f32.mxu0 0.0
    %6870 = vmatmul.mubr.f32.gmra.mrb[0].mxu0 %v1444
    %v6871 = vpop.f32.mrb[0].mxu0
    %v6872 = vadd.f32 0.0, %v6871
    %v6873 = vpop.f32.mrb[0].mxu0
    %6874 = vmatprep.mubr.f32.mxu0 0.0
    %6875 = vmatmul.mubr.f32.gmra.mrb[0].mxu0 %v1447
    %v6876 = vpop.f32.mrb[0].mxu0
    %v6877 = vadd.f32 0.0, %v6876
    %v6878 = vpop.f32.mrb[0].mxu0
    %6879 = vmatprep.mubr.f32.mxu0 0.0
    %6880 = vmatmul.mubr.f32.gmra.mrb[0].mxu0 %v1450
    %v6881 = vpop.f32.mrb[0].mxu0
    %v6882 = vadd.f32 0.0, %v6881
    %v6883 = vpop.f32.mrb[0].mxu0
    %6884 = vmatprep.mubr.f32.mxu0 0.0
    %6885 = vmatmul.mubr.f32.gmra.mrb[0].mxu0 %v1453
    %v6886 = vpop.f32.mrb[0].mxu0
    %v6887 = vadd.f32 0.0, %v6886
    %v6888 = vpop.f32.mrb[0].mxu0
    %6889 = vmatprep.mubr.f32.mxu0 0.0
    %6890 = vmatmul.mubr.f32.gmra.mrb[0].mxu0 %v1456
    %v6891 = vpop.f32.mrb[0].mxu0
    %v6892 = vadd.f32 0.0, %v6891
    %v6893 = vpop.f32.mrb[0].mxu0
    %6894 = vmatprep.mubr.f32.mxu0 0.0
    %6895 = vmatmul.mubr.f32.gmra.mrb[0].mxu0 %v1459
    %v6896 = vpop.f32.mrb[0].mxu0
    %v6897 = vadd.f32 0.0, %v6896
    %v6898 = vpop.f32.mrb[0].mxu0
    %6899 = vmatprep.mubr.f32.mxu0 0.0
    %6900 = vmatmul.mubr.f32.gmra.mrb[0].mxu0 %v1462
    %v6901 = vpop.f32.mrb[0].mxu0
    %v6902 = vadd.f32 0.0, %v6901
    %v6903 = vpop.f32.mrb[0].mxu0
    %6904 = vmatprep.mubr.f32.mxu0 0.0
    %6905 = vmatmul.mubr.f32.gmra.mrb[0].mxu0 %v1465
    %v6906 = vpop.f32.mrb[0].mxu0
    %v6907 = vadd.f32 0.0, %v6906
    %v6908 = vpop.f32.mrb[0].mxu0
    %6909 = vmatprep.mubr.f32.mxu0 0.0
    %6910 = vmatmul.mubr.f32.gmra.mrb[0].mxu0 %v1468
    %v6911 = vpop.f32.mrb[0].mxu0
    %v6912 = vadd.f32 0.0, %v6911
    %v6913 = vpop.f32.mrb[0].mxu0
    %6914 = vmatprep.mubr.f32.mxu0 0.0
    %6915 = vmatmul.mubr.f32.gmra.mrb[0].mxu0 %v1471
    %v6916 = vpop.f32.mrb[0].mxu0
    %v6917 = vadd.f32 0.0, %v6916
    %v6918 = vpop.f32.mrb[0].mxu0
    %6919 = vmatprep.mubr.f32.mxu0 0.0
    %6920 = vmatmul.mubr.f32.gmra.mrb[0].mxu0 %v1474
    %v6921 = vpop.f32.mrb[0].mxu0
    %v6922 = vadd.f32 0.0, %v6921
    %v6923 = vpop.f32.mrb[0].mxu0
    %6924 = vmatprep.mubr.f32.mxu0 0.0
    %6925 = vmatmul.mubr.f32.gmra.mrb[0].mxu0 %v1477
    %v6926 = vpop.f32.mrb[0].mxu0
    %v6927 = vadd.f32 0.0, %v6926
    %v6928 = vpop.f32.mrb[0].mxu0
    %6929 = vmatprep.mubr.f32.mxu0 0.0
    %6930 = vmatmul.mubr.f32.gmra.mrb[0].mxu0 %v1480
    %v6931 = vpop.f32.mrb[0].mxu0
    %v6932 = vadd.f32 0.0, %v6931
    %v6933 = vpop.f32.mrb[0].mxu0
    %6934 = vmatprep.mubr.f32.mxu0 0.0
    %6935 = vmatmul.mubr.f32.gmra.mrb[0].mxu0 %v1483
    %v6936 = vpop.f32.mrb[0].mxu0
    %v6937 = vadd.f32 0.0, %v6936
    %v6938 = vpop.f32.mrb[0].mxu0
    %6939 = vmatprep.mubr.f32.mxu0 0.0
    %6940 = vmatmul.mubr.f32.gmra.mrb[0].mxu0 %v1486
    %v6941 = vpop.f32.mrb[0].mxu0
    %v6942 = vadd.f32 0.0, %v6941
    %v6943 = vpop.f32.mrb[0].mxu0
    %6944 = vmatprep.mubr.f32.mxu0 0.0
    %6945 = vmatmul.mubr.f32.gmra.mrb[0].mxu0 %v1489
    %v6946 = vpop.f32.mrb[0].mxu0
    %v6947 = vadd.f32 0.0, %v6946
    %v6948 = vpop.f32.mrb[0].mxu0
    %6949 = vdwg.mxu0
    %v6950 = vmul.f32 %v6632, %v239
    %v6951 = vmul.f32 %v6637, %v240
    %v6952 = vmul.f32 %v6642, %v241
    %v6953 = vmul.f32 %v6647, %v242
    %v6954 = vmul.f32 %v6652, %v243
    %v6955 = vmul.f32 %v6657, %v244
    %v6956 = vmul.f32 %v6662, %v245
    %v6957 = vmul.f32 %v6667, %v246
    %v6958 = vmul.f32 %v6672, %v247
    %v6959 = vmul.f32 %v6677, %v248
    %v6960 = vmul.f32 %v6682, %v249
    %v6961 = vmul.f32 %v6687, %v250
    %v6962 = vmul.f32 %v6692, %v251
    %v6963 = vmul.f32 %v6697, %v252
    %v6964 = vmul.f32 %v6702, %v253
    %v6965 = vmul.f32 %v6707, %v254
    %v6966 = vmul.f32 %v6712, %v255
    %v6967 = vmul.f32 %v6717, %v256
    %v6968 = vmul.f32 %v6722, %v257
    %v6969 = vmul.f32 %v6727, %v258
    %v6970 = vmul.f32 %v6732, %v259
    %v6971 = vmul.f32 %v6737, %v260
    %v6972 = vmul.f32 %v6742, %v261
    %v6973 = vmul.f32 %v6747, %v262
    %v6974 = vmul.f32 %v6752, %v263
    %v6975 = vmul.f32 %v6757, %v264
    %v6976 = vmul.f32 %v6762, %v265
    %v6977 = vmul.f32 %v6767, %v266
    %v6978 = vmul.f32 %v6772, %v267
    %v6979 = vmul.f32 %v6777, %v268
    %v6980 = vmul.f32 %v6782, %v269
    %v6981 = vmul.f32 %v6787, %v270
    %v6982 = vmul.f32 %v6792, %v271
    %v6983 = vmul.f32 %v6797, %v272
    %v6984 = vmul.f32 %v6802, %v273
    %v6985 = vmul.f32 %v6807, %v274
    %v6986 = vmul.f32 %v6812, %v275
    %v6987 = vmul.f32 %v6817, %v276
    %v6988 = vmul.f32 %v6822, %v277
    %v6989 = vmul.f32 %v6827, %v278
    %v6990 = vmul.f32 %v6832, %v279
    %v6991 = vmul.f32 %v6837, %v280
    %v6992 = vmul.f32 %v6842, %v281
    %v6993 = vmul.f32 %v6847, %v282
    %v6994 = vmul.f32 %v6852, %v283
    %v6995 = vmul.f32 %v6857, %v284
    %v6996 = vmul.f32 %v6862, %v285
    %v6997 = vmul.f32 %v6867, %v286
    %v6998 = vmul.f32 %v6872, %v287
    %v6999 = vmul.f32 %v6877, %v288
    %v7000 = vmul.f32 %v6882, %v289
    %v7001 = vmul.f32 %v6887, %v290
    %v7002 = vmul.f32 %v6892, %v291
    %v7003 = vmul.f32 %v6897, %v292
    %v7004 = vmul.f32 %v6902, %v293
    %v7005 = vmul.f32 %v6907, %v294
    %v7006 = vmul.f32 %v6912, %v295
    %v7007 = vmul.f32 %v6917, %v296
    %v7008 = vmul.f32 %v6922, %v297
    %v7009 = vmul.f32 %v6927, %v298
    %v7010 = vmul.f32 %v6932, %v299
    %v7011 = vmul.f32 %v6937, %v300
    %v7012 = vmul.f32 %v6942, %v301
    %v7013 = vmul.f32 %v6947, %v302
    %v7014 = vsel %vm2710, %v6950, 0.0
    %7015 = vadd.xlane.f32.xlu0 %v7014
    %v7016 = vpop.xlane.xlu0 %7015
    %v7017 = vsel %vm2710, %v6951, 0.0
    %7018 = vadd.xlane.f32.xlu0 %v7017
    %v7019 = vpop.xlane.xlu0 %7018
    %v7020 = vsel %vm2710, %v6952, 0.0
    %7021 = vadd.xlane.f32.xlu0 %v7020
    %v7022 = vpop.xlane.xlu0 %7021
    %v7023 = vsel %vm2710, %v6953, 0.0
    %7024 = vadd.xlane.f32.xlu0 %v7023
    %v7025 = vpop.xlane.xlu0 %7024
    %v7026 = vsel %vm2710, %v6954, 0.0
    %7027 = vadd.xlane.f32.xlu0 %v7026
    %v7028 = vpop.xlane.xlu0 %7027
    %v7029 = vsel %vm2710, %v6955, 0.0
    %7030 = vadd.xlane.f32.xlu0 %v7029
    %v7031 = vpop.xlane.xlu0 %7030
    %v7032 = vsel %vm2710, %v6956, 0.0
    %7033 = vadd.xlane.f32.xlu0 %v7032
    %v7034 = vpop.xlane.xlu0 %7033
    %v7035 = vsel %vm2710, %v6957, 0.0
    %7036 = vadd.xlane.f32.xlu0 %v7035
    %v7037 = vpop.xlane.xlu0 %7036
    %v7038 = vsel %vm2710, %v6958, 0.0
    %7039 = vadd.xlane.f32.xlu0 %v7038
    %v7040 = vpop.xlane.xlu0 %7039
    %v7041 = vsel %vm2710, %v6959, 0.0
    %7042 = vadd.xlane.f32.xlu0 %v7041
    %v7043 = vpop.xlane.xlu0 %7042
    %v7044 = vsel %vm2710, %v6960, 0.0
    %7045 = vadd.xlane.f32.xlu0 %v7044
    %v7046 = vpop.xlane.xlu0 %7045
    %v7047 = vsel %vm2710, %v6961, 0.0
    %7048 = vadd.xlane.f32.xlu0 %v7047
    %v7049 = vpop.xlane.xlu0 %7048
    %v7050 = vsel %vm2710, %v6962, 0.0
    %7051 = vadd.xlane.f32.xlu0 %v7050
    %v7052 = vpop.xlane.xlu0 %7051
    %v7053 = vsel %vm2710, %v6963, 0.0
    %7054 = vadd.xlane.f32.xlu0 %v7053
    %v7055 = vpop.xlane.xlu0 %7054
    %v7056 = vsel %vm2710, %v6964, 0.0
    %7057 = vadd.xlane.f32.xlu0 %v7056
    %v7058 = vpop.xlane.xlu0 %7057
    %v7059 = vsel %vm2710, %v6965, 0.0
    %7060 = vadd.xlane.f32.xlu0 %v7059
    %v7061 = vpop.xlane.xlu0 %7060
    %v7062 = vsel %vm2710, %v6966, 0.0
    %7063 = vadd.xlane.f32.xlu0 %v7062
    %v7064 = vpop.xlane.xlu0 %7063
    %v7065 = vsel %vm2710, %v6967, 0.0
    %7066 = vadd.xlane.f32.xlu0 %v7065
    %v7067 = vpop.xlane.xlu0 %7066
    %v7068 = vsel %vm2710, %v6968, 0.0
    %7069 = vadd.xlane.f32.xlu0 %v7068
    %v7070 = vpop.xlane.xlu0 %7069
    %v7071 = vsel %vm2710, %v6969, 0.0
    %7072 = vadd.xlane.f32.xlu0 %v7071
    %v7073 = vpop.xlane.xlu0 %7072
    %v7074 = vsel %vm2710, %v6970, 0.0
    %7075 = vadd.xlane.f32.xlu0 %v7074
    %v7076 = vpop.xlane.xlu0 %7075
    %v7077 = vsel %vm2710, %v6971, 0.0
    %7078 = vadd.xlane.f32.xlu0 %v7077
    %v7079 = vpop.xlane.xlu0 %7078
    %v7080 = vsel %vm2710, %v6972, 0.0
    %7081 = vadd.xlane.f32.xlu0 %v7080
    %v7082 = vpop.xlane.xlu0 %7081
    %v7083 = vsel %vm2710, %v6973, 0.0
    %7084 = vadd.xlane.f32.xlu0 %v7083
    %v7085 = vpop.xlane.xlu0 %7084
    %v7086 = vsel %vm2710, %v6974, 0.0
    %7087 = vadd.xlane.f32.xlu0 %v7086
    %v7088 = vpop.xlane.xlu0 %7087
    %v7089 = vsel %vm2710, %v6975, 0.0
    %7090 = vadd.xlane.f32.xlu0 %v7089
    %v7091 = vpop.xlane.xlu0 %7090
    %v7092 = vsel %vm2710, %v6976, 0.0
    %7093 = vadd.xlane.f32.xlu0 %v7092
    %v7094 = vpop.xlane.xlu0 %7093
    %v7095 = vsel %vm2710, %v6977, 0.0
    %7096 = vadd.xlane.f32.xlu0 %v7095
    %v7097 = vpop.xlane.xlu0 %7096
    %v7098 = vsel %vm2710, %v6978, 0.0
    %7099 = vadd.xlane.f32.xlu0 %v7098
    %v7100 = vpop.xlane.xlu0 %7099
    %v7101 = vsel %vm2710, %v6979, 0.0
    %7102 = vadd.xlane.f32.xlu0 %v7101
    %v7103 = vpop.xlane.xlu0 %7102
    %v7104 = vsel %vm2710, %v6980, 0.0
    %7105 = vadd.xlane.f32.xlu0 %v7104
    %v7106 = vpop.xlane.xlu0 %7105
    %v7107 = vsel %vm2710, %v6981, 0.0
    %7108 = vadd.xlane.f32.xlu0 %v7107
    %v7109 = vpop.xlane.xlu0 %7108
    %v7110 = vsel %vm2710, %v6982, 0.0
    %7111 = vadd.xlane.f32.xlu0 %v7110
    %v7112 = vpop.xlane.xlu0 %7111
    %v7113 = vsel %vm2710, %v6983, 0.0
    %7114 = vadd.xlane.f32.xlu0 %v7113
    %v7115 = vpop.xlane.xlu0 %7114
    %v7116 = vsel %vm2710, %v6984, 0.0
    %7117 = vadd.xlane.f32.xlu0 %v7116
    %v7118 = vpop.xlane.xlu0 %7117
    %v7119 = vsel %vm2710, %v6985, 0.0
    %7120 = vadd.xlane.f32.xlu0 %v7119
    %v7121 = vpop.xlane.xlu0 %7120
    %v7122 = vsel %vm2710, %v6986, 0.0
    %7123 = vadd.xlane.f32.xlu0 %v7122
    %v7124 = vpop.xlane.xlu0 %7123
    %v7125 = vsel %vm2710, %v6987, 0.0
    %7126 = vadd.xlane.f32.xlu0 %v7125
    %v7127 = vpop.xlane.xlu0 %7126
    %v7128 = vsel %vm2710, %v6988, 0.0
    %7129 = vadd.xlane.f32.xlu0 %v7128
    %v7130 = vpop.xlane.xlu0 %7129
    %v7131 = vsel %vm2710, %v6989, 0.0
    %7132 = vadd.xlane.f32.xlu0 %v7131
    %v7133 = vpop.xlane.xlu0 %7132
    %v7134 = vsel %vm2710, %v6990, 0.0
    %7135 = vadd.xlane.f32.xlu0 %v7134
    %v7136 = vpop.xlane.xlu0 %7135
    %v7137 = vsel %vm2710, %v6991, 0.0
    %7138 = vadd.xlane.f32.xlu0 %v7137
    %v7139 = vpop.xlane.xlu0 %7138
    %v7140 = vsel %vm2710, %v6992, 0.0
    %7141 = vadd.xlane.f32.xlu0 %v7140
    %v7142 = vpop.xlane.xlu0 %7141
    %v7143 = vsel %vm2710, %v6993, 0.0
    %7144 = vadd.xlane.f32.xlu0 %v7143
    %v7145 = vpop.xlane.xlu0 %7144
    %v7146 = vsel %vm2710, %v6994, 0.0
    %7147 = vadd.xlane.f32.xlu0 %v7146
    %v7148 = vpop.xlane.xlu0 %7147
    %v7149 = vsel %vm2710, %v6995, 0.0
    %7150 = vadd.xlane.f32.xlu0 %v7149
    %v7151 = vpop.xlane.xlu0 %7150
    %v7152 = vsel %vm2710, %v6996, 0.0
    %7153 = vadd.xlane.f32.xlu0 %v7152
    %v7154 = vpop.xlane.xlu0 %7153
    %v7155 = vsel %vm2710, %v6997, 0.0
    %7156 = vadd.xlane.f32.xlu0 %v7155
    %v7157 = vpop.xlane.xlu0 %7156
    %v7158 = vsel %vm2710, %v6998, 0.0
    %7159 = vadd.xlane.f32.xlu0 %v7158
    %v7160 = vpop.xlane.xlu0 %7159
    %v7161 = vsel %vm2710, %v6999, 0.0
    %7162 = vadd.xlane.f32.xlu0 %v7161
    %v7163 = vpop.xlane.xlu0 %7162
    %v7164 = vsel %vm2710, %v7000, 0.0
    %7165 = vadd.xlane.f32.xlu0 %v7164
    %v7166 = vpop.xlane.xlu0 %7165
    %v7167 = vsel %vm2710, %v7001, 0.0
    %7168 = vadd.xlane.f32.xlu0 %v7167
    %v7169 = vpop.xlane.xlu0 %7168
    %v7170 = vsel %vm2710, %v7002, 0.0
    %7171 = vadd.xlane.f32.xlu0 %v7170
    %v7172 = vpop.xlane.xlu0 %7171
    %v7173 = vsel %vm2710, %v7003, 0.0
    %7174 = vadd.xlane.f32.xlu0 %v7173
    %v7175 = vpop.xlane.xlu0 %7174
    %v7176 = vsel %vm2710, %v7004, 0.0
    %7177 = vadd.xlane.f32.xlu0 %v7176
    %v7178 = vpop.xlane.xlu0 %7177
    %v7179 = vsel %vm2710, %v7005, 0.0
    %7180 = vadd.xlane.f32.xlu0 %v7179
    %v7181 = vpop.xlane.xlu0 %7180
    %v7182 = vsel %vm2710, %v7006, 0.0
    %7183 = vadd.xlane.f32.xlu0 %v7182
    %v7184 = vpop.xlane.xlu0 %7183
    %v7185 = vsel %vm2710, %v7007, 0.0
    %7186 = vadd.xlane.f32.xlu0 %v7185
    %v7187 = vpop.xlane.xlu0 %7186
    %v7188 = vsel %vm2710, %v7008, 0.0
    %7189 = vadd.xlane.f32.xlu0 %v7188
    %v7190 = vpop.xlane.xlu0 %7189
    %v7191 = vsel %vm2710, %v7009, 0.0
    %7192 = vadd.xlane.f32.xlu0 %v7191
    %v7193 = vpop.xlane.xlu0 %7192
    %v7194 = vsel %vm2710, %v7010, 0.0
    %7195 = vadd.xlane.f32.xlu0 %v7194
    %v7196 = vpop.xlane.xlu0 %7195
    %v7197 = vsel %vm2710, %v7011, 0.0
    %7198 = vadd.xlane.f32.xlu0 %v7197
    %v7199 = vpop.xlane.xlu0 %7198
    %v7200 = vsel %vm2710, %v7012, 0.0
    %7201 = vadd.xlane.f32.xlu0 %v7200
    %v7202 = vpop.xlane.xlu0 %7201
    %v7203 = vsel %vm2710, %v7013, 0.0
    %7204 = vadd.xlane.f32.xlu0 %v7203
    %v7205 = vpop.xlane.xlu0 %7204
    %7206 = vmatprep.subr.mxu0 0.0
    %7207 = vmatpush1.msra.mxu0 %v5777
    %7208 = vmatprep.subr.mxu0 0.0
    %7209 = vmatpush1.msra.mxu0 %v5782
    %7210 = vmatprep.subr.mxu0 0.0
    %7211 = vmatpush1.msra.mxu0 %v5787
    %7212 = vmatprep.subr.mxu0 0.0
    %7213 = vmatpush1.msra.mxu0 %v5792
    %7214 = vmatprep.subr.mxu0 0.0
    %7215 = vmatpush1.msra.mxu0 0.0
    %7216 = vmatprep.subr.mxu0 0.0
    %7217 = vmatpush1.msra.mxu0 0.0
    %7218 = vmatprep.subr.mxu0 0.0
    %7219 = vmatpush1.msra.mxu0 0.0
    %7220 = vmatprep.subr.mxu0 0.0
    %7221 = vmatpush1.msra.mxu0 0.0
    %7222 = vmatprep.subr.mxu0 0.0
    %7223 = vmatpush1.msra.mxu0 0.0
    %7224 = vmatprep.subr.mxu0 0.0
    %7225 = vmatpush1.msra.mxu0 0.0
    %7226 = vmatprep.subr.mxu0 0.0
    %7227 = vmatpush1.msra.mxu0 0.0
    %7228 = vmatprep.subr.mxu0 0.0
    %7229 = vmatpush1.msra.mxu0 0.0
    %7230 = vmatprep.subr.mxu0 0.0
    %7231 = vmatpush1.msra.mxu0 0.0
    %7232 = vmatprep.subr.mxu0 0.0
    %7233 = vmatpush1.msra.mxu0 0.0
    %7234 = vmatprep.subr.mxu0 0.0
    %7235 = vmatpush1.msra.mxu0 0.0
    %7236 = vmatprep.subr.mxu0 0.0
    %7237 = vmatpush1.msra.mxu0 0.0
    %7238 = vmatprep.subr.mxu0 0.0
    %7239 = vmatpush1.msra.mxu0 0.0
    %7240 = vmatprep.subr.mxu0 0.0
    %7241 = vmatpush1.msra.mxu0 0.0
    %7242 = vmatprep.subr.mxu0 0.0
    %7243 = vmatpush1.msra.mxu0 0.0
    %7244 = vmatprep.subr.mxu0 0.0
    %7245 = vmatpush1.msra.mxu0 0.0
    %7246 = vmatprep.subr.mxu0 0.0
    %7247 = vmatpush1.msra.mxu0 0.0
    %7248 = vmatprep.subr.mxu0 0.0
    %7249 = vmatpush1.msra.mxu0 0.0
    %7250 = vmatprep.subr.mxu0 0.0
    %7251 = vmatpush1.msra.mxu0 0.0
    %7252 = vmatprep.subr.mxu0 0.0
    %7253 = vmatpush1.msra.mxu0 0.0
    %7254 = vmatprep.subr.mxu0 0.0
    %7255 = vmatpush1.msra.mxu0 0.0
    %7256 = vmatprep.subr.mxu0 0.0
    %7257 = vmatpush1.msra.mxu0 0.0
    %7258 = vmatprep.subr.mxu0 0.0
    %7259 = vmatpush1.msra.mxu0 0.0
    %7260 = vmatprep.subr.mxu0 0.0
    %7261 = vmatpush1.msra.mxu0 0.0
    %7262 = vmatprep.subr.mxu0 0.0
    %7263 = vmatpush1.msra.mxu0 0.0
    %7264 = vmatprep.subr.mxu0 0.0
    %7265 = vmatpush1.msra.mxu0 0.0
    %7266 = vmatprep.subr.mxu0 0.0
    %7267 = vmatpush1.msra.mxu0 0.0
    %7268 = vmatprep.subr.mxu0 0.0
    %7269 = vmatpush1.msra.mxu0 0.0
    %7270 = vmatprep.mubr.f32.mxu0 0.0
    %7271 = vmatmul.mubr.f32.gmra.mrb[0].mxu0 %v1300
    %v7272 = vpop.f32.mrb[0].mxu0
    %v7273 = vadd.f32 0.0, %v7272
    %v7274 = vpop.f32.mrb[0].mxu0
    %7275 = vmatprep.mubr.f32.mxu0 0.0
    %7276 = vmatmul.mubr.f32.gmra.mrb[0].mxu0 %v1303
    %v7277 = vpop.f32.mrb[0].mxu0
    %v7278 = vadd.f32 0.0, %v7277
    %v7279 = vpop.f32.mrb[0].mxu0
    %7280 = vmatprep.mubr.f32.mxu0 0.0
    %7281 = vmatmul.mubr.f32.gmra.mrb[0].mxu0 %v1306
    %v7282 = vpop.f32.mrb[0].mxu0
    %v7283 = vadd.f32 0.0, %v7282
    %v7284 = vpop.f32.mrb[0].mxu0
    %7285 = vmatprep.mubr.f32.mxu0 0.0
    %7286 = vmatmul.mubr.f32.gmra.mrb[0].mxu0 %v1309
    %v7287 = vpop.f32.mrb[0].mxu0
    %v7288 = vadd.f32 0.0, %v7287
    %v7289 = vpop.f32.mrb[0].mxu0
    %7290 = vmatprep.mubr.f32.mxu0 0.0
    %7291 = vmatmul.mubr.f32.gmra.mrb[0].mxu0 %v1312
    %v7292 = vpop.f32.mrb[0].mxu0
    %v7293 = vadd.f32 0.0, %v7292
    %v7294 = vpop.f32.mrb[0].mxu0
    %7295 = vmatprep.mubr.f32.mxu0 0.0
    %7296 = vmatmul.mubr.f32.gmra.mrb[0].mxu0 %v1315
    %v7297 = vpop.f32.mrb[0].mxu0
    %v7298 = vadd.f32 0.0, %v7297
    %v7299 = vpop.f32.mrb[0].mxu0
    %7300 = vmatprep.mubr.f32.mxu0 0.0
    %7301 = vmatmul.mubr.f32.gmra.mrb[0].mxu0 %v1318
    %v7302 = vpop.f32.mrb[0].mxu0
    %v7303 = vadd.f32 0.0, %v7302
    %v7304 = vpop.f32.mrb[0].mxu0
    %7305 = vmatprep.mubr.f32.mxu0 0.0
    %7306 = vmatmul.mubr.f32.gmra.mrb[0].mxu0 %v1321
    %v7307 = vpop.f32.mrb[0].mxu0
    %v7308 = vadd.f32 0.0, %v7307
    %v7309 = vpop.f32.mrb[0].mxu0
    %7310 = vmatprep.mubr.f32.mxu0 0.0
    %7311 = vmatmul.mubr.f32.gmra.mrb[0].mxu0 %v1324
    %v7312 = vpop.f32.mrb[0].mxu0
    %v7313 = vadd.f32 0.0, %v7312
    %v7314 = vpop.f32.mrb[0].mxu0
    %7315 = vmatprep.mubr.f32.mxu0 0.0
    %7316 = vmatmul.mubr.f32.gmra.mrb[0].mxu0 %v1327
    %v7317 = vpop.f32.mrb[0].mxu0
    %v7318 = vadd.f32 0.0, %v7317
    %v7319 = vpop.f32.mrb[0].mxu0
    %7320 = vmatprep.mubr.f32.mxu0 0.0
    %7321 = vmatmul.mubr.f32.gmra.mrb[0].mxu0 %v1330
    %v7322 = vpop.f32.mrb[0].mxu0
    %v7323 = vadd.f32 0.0, %v7322
    %v7324 = vpop.f32.mrb[0].mxu0
    %7325 = vmatprep.mubr.f32.mxu0 0.0
    %7326 = vmatmul.mubr.f32.gmra.mrb[0].mxu0 %v1333
    %v7327 = vpop.f32.mrb[0].mxu0
    %v7328 = vadd.f32 0.0, %v7327
    %v7329 = vpop.f32.mrb[0].mxu0
    %7330 = vmatprep.mubr.f32.mxu0 0.0
    %7331 = vmatmul.mubr.f32.gmra.mrb[0].mxu0 %v1336
    %v7332 = vpop.f32.mrb[0].mxu0
    %v7333 = vadd.f32 0.0, %v7332
    %v7334 = vpop.f32.mrb[0].mxu0
    %7335 = vmatprep.mubr.f32.mxu0 0.0
    %7336 = vmatmul.mubr.f32.gmra.mrb[0].mxu0 %v1339
    %v7337 = vpop.f32.mrb[0].mxu0
    %v7338 = vadd.f32 0.0, %v7337
    %v7339 = vpop.f32.mrb[0].mxu0
    %7340 = vmatprep.mubr.f32.mxu0 0.0
    %7341 = vmatmul.mubr.f32.gmra.mrb[0].mxu0 %v1342
    %v7342 = vpop.f32.mrb[0].mxu0
    %v7343 = vadd.f32 0.0, %v7342
    %v7344 = vpop.f32.mrb[0].mxu0
    %7345 = vmatprep.mubr.f32.mxu0 0.0
    %7346 = vmatmul.mubr.f32.gmra.mrb[0].mxu0 %v1345
    %v7347 = vpop.f32.mrb[0].mxu0
    %v7348 = vadd.f32 0.0, %v7347
    %v7349 = vpop.f32.mrb[0].mxu0
    %7350 = vmatprep.mubr.f32.mxu0 0.0
    %7351 = vmatmul.mubr.f32.gmra.mrb[0].mxu0 %v1348
    %v7352 = vpop.f32.mrb[0].mxu0
    %v7353 = vadd.f32 0.0, %v7352
    %v7354 = vpop.f32.mrb[0].mxu0
    %7355 = vmatprep.mubr.f32.mxu0 0.0
    %7356 = vmatmul.mubr.f32.gmra.mrb[0].mxu0 %v1351
    %v7357 = vpop.f32.mrb[0].mxu0
    %v7358 = vadd.f32 0.0, %v7357
    %v7359 = vpop.f32.mrb[0].mxu0
    %7360 = vmatprep.mubr.f32.mxu0 0.0
    %7361 = vmatmul.mubr.f32.gmra.mrb[0].mxu0 %v1354
    %v7362 = vpop.f32.mrb[0].mxu0
    %v7363 = vadd.f32 0.0, %v7362
    %v7364 = vpop.f32.mrb[0].mxu0
    %7365 = vmatprep.mubr.f32.mxu0 0.0
    %7366 = vmatmul.mubr.f32.gmra.mrb[0].mxu0 %v1357
    %v7367 = vpop.f32.mrb[0].mxu0
    %v7368 = vadd.f32 0.0, %v7367
    %v7369 = vpop.f32.mrb[0].mxu0
    %7370 = vmatprep.mubr.f32.mxu0 0.0
    %7371 = vmatmul.mubr.f32.gmra.mrb[0].mxu0 %v1360
    %v7372 = vpop.f32.mrb[0].mxu0
    %v7373 = vadd.f32 0.0, %v7372
    %v7374 = vpop.f32.mrb[0].mxu0
    %7375 = vmatprep.mubr.f32.mxu0 0.0
    %7376 = vmatmul.mubr.f32.gmra.mrb[0].mxu0 %v1363
    %v7377 = vpop.f32.mrb[0].mxu0
    %v7378 = vadd.f32 0.0, %v7377
    %v7379 = vpop.f32.mrb[0].mxu0
    %7380 = vmatprep.mubr.f32.mxu0 0.0
    %7381 = vmatmul.mubr.f32.gmra.mrb[0].mxu0 %v1366
    %v7382 = vpop.f32.mrb[0].mxu0
    %v7383 = vadd.f32 0.0, %v7382
    %v7384 = vpop.f32.mrb[0].mxu0
    %7385 = vmatprep.mubr.f32.mxu0 0.0
    %7386 = vmatmul.mubr.f32.gmra.mrb[0].mxu0 %v1369
    %v7387 = vpop.f32.mrb[0].mxu0
    %v7388 = vadd.f32 0.0, %v7387
    %v7389 = vpop.f32.mrb[0].mxu0
    %7390 = vmatprep.mubr.f32.mxu0 0.0
    %7391 = vmatmul.mubr.f32.gmra.mrb[0].mxu0 %v1372
    %v7392 = vpop.f32.mrb[0].mxu0
    %v7393 = vadd.f32 0.0, %v7392
    %v7394 = vpop.f32.mrb[0].mxu0
    %7395 = vmatprep.mubr.f32.mxu0 0.0
    %7396 = vmatmul.mubr.f32.gmra.mrb[0].mxu0 %v1375
    %v7397 = vpop.f32.mrb[0].mxu0
    %v7398 = vadd.f32 0.0, %v7397
    %v7399 = vpop.f32.mrb[0].mxu0
    %7400 = vmatprep.mubr.f32.mxu0 0.0
    %7401 = vmatmul.mubr.f32.gmra.mrb[0].mxu0 %v1378
    %v7402 = vpop.f32.mrb[0].mxu0
    %v7403 = vadd.f32 0.0, %v7402
    %v7404 = vpop.f32.mrb[0].mxu0
    %7405 = vmatprep.mubr.f32.mxu0 0.0
    %7406 = vmatmul.mubr.f32.gmra.mrb[0].mxu0 %v1381
    %v7407 = vpop.f32.mrb[0].mxu0
    %v7408 = vadd.f32 0.0, %v7407
    %v7409 = vpop.f32.mrb[0].mxu0
    %7410 = vmatprep.mubr.f32.mxu0 0.0
    %7411 = vmatmul.mubr.f32.gmra.mrb[0].mxu0 %v1384
    %v7412 = vpop.f32.mrb[0].mxu0
    %v7413 = vadd.f32 0.0, %v7412
    %v7414 = vpop.f32.mrb[0].mxu0
    %7415 = vmatprep.mubr.f32.mxu0 0.0
    %7416 = vmatmul.mubr.f32.gmra.mrb[0].mxu0 %v1387
    %v7417 = vpop.f32.mrb[0].mxu0
    %v7418 = vadd.f32 0.0, %v7417
    %v7419 = vpop.f32.mrb[0].mxu0
    %7420 = vmatprep.mubr.f32.mxu0 0.0
    %7421 = vmatmul.mubr.f32.gmra.mrb[0].mxu0 %v1390
    %v7422 = vpop.f32.mrb[0].mxu0
    %v7423 = vadd.f32 0.0, %v7422
    %v7424 = vpop.f32.mrb[0].mxu0
    %7425 = vmatprep.mubr.f32.mxu0 0.0
    %7426 = vmatmul.mubr.f32.gmra.mrb[0].mxu0 %v1393
    %v7427 = vpop.f32.mrb[0].mxu0
    %v7428 = vadd.f32 0.0, %v7427
    %v7429 = vpop.f32.mrb[0].mxu0
    %7430 = vmatprep.mubr.f32.mxu0 0.0
    %7431 = vmatmul.mubr.f32.gmra.mrb[0].mxu0 %v1396
    %v7432 = vpop.f32.mrb[0].mxu0
    %v7433 = vadd.f32 0.0, %v7432
    %v7434 = vpop.f32.mrb[0].mxu0
    %7435 = vmatprep.mubr.f32.mxu0 0.0
    %7436 = vmatmul.mubr.f32.gmra.mrb[0].mxu0 %v1399
    %v7437 = vpop.f32.mrb[0].mxu0
    %v7438 = vadd.f32 0.0, %v7437
    %v7439 = vpop.f32.mrb[0].mxu0
    %7440 = vmatprep.mubr.f32.mxu0 0.0
    %7441 = vmatmul.mubr.f32.gmra.mrb[0].mxu0 %v1402
    %v7442 = vpop.f32.mrb[0].mxu0
    %v7443 = vadd.f32 0.0, %v7442
    %v7444 = vpop.f32.mrb[0].mxu0
    %7445 = vmatprep.mubr.f32.mxu0 0.0
    %7446 = vmatmul.mubr.f32.gmra.mrb[0].mxu0 %v1405
    %v7447 = vpop.f32.mrb[0].mxu0
    %v7448 = vadd.f32 0.0, %v7447
    %v7449 = vpop.f32.mrb[0].mxu0
    %7450 = vmatprep.mubr.f32.mxu0 0.0
    %7451 = vmatmul.mubr.f32.gmra.mrb[0].mxu0 %v1408
    %v7452 = vpop.f32.mrb[0].mxu0
    %v7453 = vadd.f32 0.0, %v7452
    %v7454 = vpop.f32.mrb[0].mxu0
    %7455 = vmatprep.mubr.f32.mxu0 0.0
    %7456 = vmatmul.mubr.f32.gmra.mrb[0].mxu0 %v1411
    %v7457 = vpop.f32.mrb[0].mxu0
    %v7458 = vadd.f32 0.0, %v7457
    %v7459 = vpop.f32.mrb[0].mxu0
    %7460 = vmatprep.mubr.f32.mxu0 0.0
    %7461 = vmatmul.mubr.f32.gmra.mrb[0].mxu0 %v1414
    %v7462 = vpop.f32.mrb[0].mxu0
    %v7463 = vadd.f32 0.0, %v7462
    %v7464 = vpop.f32.mrb[0].mxu0
    %7465 = vmatprep.mubr.f32.mxu0 0.0
    %7466 = vmatmul.mubr.f32.gmra.mrb[0].mxu0 %v1417
    %v7467 = vpop.f32.mrb[0].mxu0
    %v7468 = vadd.f32 0.0, %v7467
    %v7469 = vpop.f32.mrb[0].mxu0
    %7470 = vmatprep.mubr.f32.mxu0 0.0
    %7471 = vmatmul.mubr.f32.gmra.mrb[0].mxu0 %v1420
    %v7472 = vpop.f32.mrb[0].mxu0
    %v7473 = vadd.f32 0.0, %v7472
    %v7474 = vpop.f32.mrb[0].mxu0
    %7475 = vmatprep.mubr.f32.mxu0 0.0
    %7476 = vmatmul.mubr.f32.gmra.mrb[0].mxu0 %v1423
    %v7477 = vpop.f32.mrb[0].mxu0
    %v7478 = vadd.f32 0.0, %v7477
    %v7479 = vpop.f32.mrb[0].mxu0
    %7480 = vmatprep.mubr.f32.mxu0 0.0
    %7481 = vmatmul.mubr.f32.gmra.mrb[0].mxu0 %v1426
    %v7482 = vpop.f32.mrb[0].mxu0
    %v7483 = vadd.f32 0.0, %v7482
    %v7484 = vpop.f32.mrb[0].mxu0
    %7485 = vmatprep.mubr.f32.mxu0 0.0
    %7486 = vmatmul.mubr.f32.gmra.mrb[0].mxu0 %v1429
    %v7487 = vpop.f32.mrb[0].mxu0
    %v7488 = vadd.f32 0.0, %v7487
    %v7489 = vpop.f32.mrb[0].mxu0
    %7490 = vmatprep.mubr.f32.mxu0 0.0
    %7491 = vmatmul.mubr.f32.gmra.mrb[0].mxu0 %v1432
    %v7492 = vpop.f32.mrb[0].mxu0
    %v7493 = vadd.f32 0.0, %v7492
    %v7494 = vpop.f32.mrb[0].mxu0
    %7495 = vmatprep.mubr.f32.mxu0 0.0
    %7496 = vmatmul.mubr.f32.gmra.mrb[0].mxu0 %v1435
    %v7497 = vpop.f32.mrb[0].mxu0
    %v7498 = vadd.f32 0.0, %v7497
    %v7499 = vpop.f32.mrb[0].mxu0
    %7500 = vmatprep.mubr.f32.mxu0 0.0
    %7501 = vmatmul.mubr.f32.gmra.mrb[0].mxu0 %v1438
    %v7502 = vpop.f32.mrb[0].mxu0
    %v7503 = vadd.f32 0.0, %v7502
    %v7504 = vpop.f32.mrb[0].mxu0
    %7505 = vmatprep.mubr.f32.mxu0 0.0
    %7506 = vmatmul.mubr.f32.gmra.mrb[0].mxu0 %v1441
    %v7507 = vpop.f32.mrb[0].mxu0
    %v7508 = vadd.f32 0.0, %v7507
    %v7509 = vpop.f32.mrb[0].mxu0
    %7510 = vmatprep.mubr.f32.mxu0 0.0
    %7511 = vmatmul.mubr.f32.gmra.mrb[0].mxu0 %v1444
    %v7512 = vpop.f32.mrb[0].mxu0
    %v7513 = vadd.f32 0.0, %v7512
    %v7514 = vpop.f32.mrb[0].mxu0
    %7515 = vmatprep.mubr.f32.mxu0 0.0
    %7516 = vmatmul.mubr.f32.gmra.mrb[0].mxu0 %v1447
    %v7517 = vpop.f32.mrb[0].mxu0
    %v7518 = vadd.f32 0.0, %v7517
    %v7519 = vpop.f32.mrb[0].mxu0
    %7520 = vmatprep.mubr.f32.mxu0 0.0
    %7521 = vmatmul.mubr.f32.gmra.mrb[0].mxu0 %v1450
    %v7522 = vpop.f32.mrb[0].mxu0
    %v7523 = vadd.f32 0.0, %v7522
    %v7524 = vpop.f32.mrb[0].mxu0
    %7525 = vmatprep.mubr.f32.mxu0 0.0
    %7526 = vmatmul.mubr.f32.gmra.mrb[0].mxu0 %v1453
    %v7527 = vpop.f32.mrb[0].mxu0
    %v7528 = vadd.f32 0.0, %v7527
    %v7529 = vpop.f32.mrb[0].mxu0
    %7530 = vmatprep.mubr.f32.mxu0 0.0
    %7531 = vmatmul.mubr.f32.gmra.mrb[0].mxu0 %v1456
    %v7532 = vpop.f32.mrb[0].mxu0
    %v7533 = vadd.f32 0.0, %v7532
    %v7534 = vpop.f32.mrb[0].mxu0
    %7535 = vmatprep.mubr.f32.mxu0 0.0
    %7536 = vmatmul.mubr.f32.gmra.mrb[0].mxu0 %v1459
    %v7537 = vpop.f32.mrb[0].mxu0
    %v7538 = vadd.f32 0.0, %v7537
    %v7539 = vpop.f32.mrb[0].mxu0
    %7540 = vmatprep.mubr.f32.mxu0 0.0
    %7541 = vmatmul.mubr.f32.gmra.mrb[0].mxu0 %v1462
    %v7542 = vpop.f32.mrb[0].mxu0
    %v7543 = vadd.f32 0.0, %v7542
    %v7544 = vpop.f32.mrb[0].mxu0
    %7545 = vmatprep.mubr.f32.mxu0 0.0
    %7546 = vmatmul.mubr.f32.gmra.mrb[0].mxu0 %v1465
    %v7547 = vpop.f32.mrb[0].mxu0
    %v7548 = vadd.f32 0.0, %v7547
    %v7549 = vpop.f32.mrb[0].mxu0
    %7550 = vmatprep.mubr.f32.mxu0 0.0
    %7551 = vmatmul.mubr.f32.gmra.mrb[0].mxu0 %v1468
    %v7552 = vpop.f32.mrb[0].mxu0
    %v7553 = vadd.f32 0.0, %v7552
    %v7554 = vpop.f32.mrb[0].mxu0
    %7555 = vmatprep.mubr.f32.mxu0 0.0
    %7556 = vmatmul.mubr.f32.gmra.mrb[0].mxu0 %v1471
    %v7557 = vpop.f32.mrb[0].mxu0
    %v7558 = vadd.f32 0.0, %v7557
    %v7559 = vpop.f32.mrb[0].mxu0
    %7560 = vmatprep.mubr.f32.mxu0 0.0
    %7561 = vmatmul.mubr.f32.gmra.mrb[0].mxu0 %v1474
    %v7562 = vpop.f32.mrb[0].mxu0
    %v7563 = vadd.f32 0.0, %v7562
    %v7564 = vpop.f32.mrb[0].mxu0
    %7565 = vmatprep.mubr.f32.mxu0 0.0
    %7566 = vmatmul.mubr.f32.gmra.mrb[0].mxu0 %v1477
    %v7567 = vpop.f32.mrb[0].mxu0
    %v7568 = vadd.f32 0.0, %v7567
    %v7569 = vpop.f32.mrb[0].mxu0
    %7570 = vmatprep.mubr.f32.mxu0 0.0
    %7571 = vmatmul.mubr.f32.gmra.mrb[0].mxu0 %v1480
    %v7572 = vpop.f32.mrb[0].mxu0
    %v7573 = vadd.f32 0.0, %v7572
    %v7574 = vpop.f32.mrb[0].mxu0
    %7575 = vmatprep.mubr.f32.mxu0 0.0
    %7576 = vmatmul.mubr.f32.gmra.mrb[0].mxu0 %v1483
    %v7577 = vpop.f32.mrb[0].mxu0
    %v7578 = vadd.f32 0.0, %v7577
    %v7579 = vpop.f32.mrb[0].mxu0
    %7580 = vmatprep.mubr.f32.mxu0 0.0
    %7581 = vmatmul.mubr.f32.gmra.mrb[0].mxu0 %v1486
    %v7582 = vpop.f32.mrb[0].mxu0
    %v7583 = vadd.f32 0.0, %v7582
    %v7584 = vpop.f32.mrb[0].mxu0
    %7585 = vmatprep.mubr.f32.mxu0 0.0
    %7586 = vmatmul.mubr.f32.gmra.mrb[0].mxu0 %v1489
    %v7587 = vpop.f32.mrb[0].mxu0
    %v7588 = vadd.f32 0.0, %v7587
    %v7589 = vpop.f32.mrb[0].mxu0
    %7590 = vdwg.mxu0
    %v7591 = vmul.f32 %v7273, %v239
    %v7592 = vmul.f32 %v7278, %v240
    %v7593 = vmul.f32 %v7283, %v241
    %v7594 = vmul.f32 %v7288, %v242
    %v7595 = vmul.f32 %v7293, %v243
    %v7596 = vmul.f32 %v7298, %v244
    %v7597 = vmul.f32 %v7303, %v245
    %v7598 = vmul.f32 %v7308, %v246
    %v7599 = vmul.f32 %v7313, %v247
    %v7600 = vmul.f32 %v7318, %v248
    %v7601 = vmul.f32 %v7323, %v249
    %v7602 = vmul.f32 %v7328, %v250
    %v7603 = vmul.f32 %v7333, %v251
    %v7604 = vmul.f32 %v7338, %v252
    %v7605 = vmul.f32 %v7343, %v253
    %v7606 = vmul.f32 %v7348, %v254
    %v7607 = vmul.f32 %v7353, %v255
    %v7608 = vmul.f32 %v7358, %v256
    %v7609 = vmul.f32 %v7363, %v257
    %v7610 = vmul.f32 %v7368, %v258
    %v7611 = vmul.f32 %v7373, %v259
    %v7612 = vmul.f32 %v7378, %v260
    %v7613 = vmul.f32 %v7383, %v261
    %v7614 = vmul.f32 %v7388, %v262
    %v7615 = vmul.f32 %v7393, %v263
    %v7616 = vmul.f32 %v7398, %v264
    %v7617 = vmul.f32 %v7403, %v265
    %v7618 = vmul.f32 %v7408, %v266
    %v7619 = vmul.f32 %v7413, %v267
    %v7620 = vmul.f32 %v7418, %v268
    %v7621 = vmul.f32 %v7423, %v269
    %v7622 = vmul.f32 %v7428, %v270
    %v7623 = vmul.f32 %v7433, %v271
    %v7624 = vmul.f32 %v7438, %v272
    %v7625 = vmul.f32 %v7443, %v273
    %v7626 = vmul.f32 %v7448, %v274
    %v7627 = vmul.f32 %v7453, %v275
    %v7628 = vmul.f32 %v7458, %v276
    %v7629 = vmul.f32 %v7463, %v277
    %v7630 = vmul.f32 %v7468, %v278
    %v7631 = vmul.f32 %v7473, %v279
    %v7632 = vmul.f32 %v7478, %v280
    %v7633 = vmul.f32 %v7483, %v281
    %v7634 = vmul.f32 %v7488, %v282
    %v7635 = vmul.f32 %v7493, %v283
    %v7636 = vmul.f32 %v7498, %v284
    %v7637 = vmul.f32 %v7503, %v285
    %v7638 = vmul.f32 %v7508, %v286
    %v7639 = vmul.f32 %v7513, %v287
    %v7640 = vmul.f32 %v7518, %v288
    %v7641 = vmul.f32 %v7523, %v289
    %v7642 = vmul.f32 %v7528, %v290
    %v7643 = vmul.f32 %v7533, %v291
    %v7644 = vmul.f32 %v7538, %v292
    %v7645 = vmul.f32 %v7543, %v293
    %v7646 = vmul.f32 %v7548, %v294
    %v7647 = vmul.f32 %v7553, %v295
    %v7648 = vmul.f32 %v7558, %v296
    %v7649 = vmul.f32 %v7563, %v297
    %v7650 = vmul.f32 %v7568, %v298
    %v7651 = vmul.f32 %v7573, %v299
    %v7652 = vmul.f32 %v7578, %v300
    %v7653 = vmul.f32 %v7583, %v301
    %v7654 = vmul.f32 %v7588, %v302
    %v7655 = vsel %vm2710, %v7591, 0.0
    %7656 = vadd.xlane.f32.xlu0 %v7655
    %v7657 = vpop.xlane.xlu0 %7656
    %v7658 = vsel %vm2710, %v7592, 0.0
    %7659 = vadd.xlane.f32.xlu0 %v7658
    %v7660 = vpop.xlane.xlu0 %7659
    %v7661 = vsel %vm2710, %v7593, 0.0
    %7662 = vadd.xlane.f32.xlu0 %v7661
    %v7663 = vpop.xlane.xlu0 %7662
    %v7664 = vsel %vm2710, %v7594, 0.0
    %7665 = vadd.xlane.f32.xlu0 %v7664
    %v7666 = vpop.xlane.xlu0 %7665
    %v7667 = vsel %vm2710, %v7595, 0.0
    %7668 = vadd.xlane.f32.xlu0 %v7667
    %v7669 = vpop.xlane.xlu0 %7668
    %v7670 = vsel %vm2710, %v7596, 0.0
    %7671 = vadd.xlane.f32.xlu0 %v7670
    %v7672 = vpop.xlane.xlu0 %7671
    %v7673 = vsel %vm2710, %v7597, 0.0
    %7674 = vadd.xlane.f32.xlu0 %v7673
    %v7675 = vpop.xlane.xlu0 %7674
    %v7676 = vsel %vm2710, %v7598, 0.0
    %7677 = vadd.xlane.f32.xlu0 %v7676
    %v7678 = vpop.xlane.xlu0 %7677
    %v7679 = vsel %vm2710, %v7599, 0.0
    %7680 = vadd.xlane.f32.xlu0 %v7679
    %v7681 = vpop.xlane.xlu0 %7680
    %v7682 = vsel %vm2710, %v7600, 0.0
    %7683 = vadd.xlane.f32.xlu0 %v7682
    %v7684 = vpop.xlane.xlu0 %7683
    %v7685 = vsel %vm2710, %v7601, 0.0
    %7686 = vadd.xlane.f32.xlu0 %v7685
    %v7687 = vpop.xlane.xlu0 %7686
    %v7688 = vsel %vm2710, %v7602, 0.0
    %7689 = vadd.xlane.f32.xlu0 %v7688
    %v7690 = vpop.xlane.xlu0 %7689
    %v7691 = vsel %vm2710, %v7603, 0.0
    %7692 = vadd.xlane.f32.xlu0 %v7691
    %v7693 = vpop.xlane.xlu0 %7692
    %v7694 = vsel %vm2710, %v7604, 0.0
    %7695 = vadd.xlane.f32.xlu0 %v7694
    %v7696 = vpop.xlane.xlu0 %7695
    %v7697 = vsel %vm2710, %v7605, 0.0
    %7698 = vadd.xlane.f32.xlu0 %v7697
    %v7699 = vpop.xlane.xlu0 %7698
    %v7700 = vsel %vm2710, %v7606, 0.0
    %7701 = vadd.xlane.f32.xlu0 %v7700
    %v7702 = vpop.xlane.xlu0 %7701
    %v7703 = vsel %vm2710, %v7607, 0.0
    %7704 = vadd.xlane.f32.xlu0 %v7703
    %v7705 = vpop.xlane.xlu0 %7704
    %v7706 = vsel %vm2710, %v7608, 0.0
    %7707 = vadd.xlane.f32.xlu0 %v7706
    %v7708 = vpop.xlane.xlu0 %7707
    %v7709 = vsel %vm2710, %v7609, 0.0
    %7710 = vadd.xlane.f32.xlu0 %v7709
    %v7711 = vpop.xlane.xlu0 %7710
    %v7712 = vsel %vm2710, %v7610, 0.0
    %7713 = vadd.xlane.f32.xlu0 %v7712
    %v7714 = vpop.xlane.xlu0 %7713
    %v7715 = vsel %vm2710, %v7611, 0.0
    %7716 = vadd.xlane.f32.xlu0 %v7715
    %v7717 = vpop.xlane.xlu0 %7716
    %v7718 = vsel %vm2710, %v7612, 0.0
    %7719 = vadd.xlane.f32.xlu0 %v7718
    %v7720 = vpop.xlane.xlu0 %7719
    %v7721 = vsel %vm2710, %v7613, 0.0
    %7722 = vadd.xlane.f32.xlu0 %v7721
    %v7723 = vpop.xlane.xlu0 %7722
    %v7724 = vsel %vm2710, %v7614, 0.0
    %7725 = vadd.xlane.f32.xlu0 %v7724
    %v7726 = vpop.xlane.xlu0 %7725
    %v7727 = vsel %vm2710, %v7615, 0.0
    %7728 = vadd.xlane.f32.xlu0 %v7727
    %v7729 = vpop.xlane.xlu0 %7728
    %v7730 = vsel %vm2710, %v7616, 0.0
    %7731 = vadd.xlane.f32.xlu0 %v7730
    %v7732 = vpop.xlane.xlu0 %7731
    %v7733 = vsel %vm2710, %v7617, 0.0
    %7734 = vadd.xlane.f32.xlu0 %v7733
    %v7735 = vpop.xlane.xlu0 %7734
    %v7736 = vsel %vm2710, %v7618, 0.0
    %7737 = vadd.xlane.f32.xlu0 %v7736
    %v7738 = vpop.xlane.xlu0 %7737
    %v7739 = vsel %vm2710, %v7619, 0.0
    %7740 = vadd.xlane.f32.xlu0 %v7739
    %v7741 = vpop.xlane.xlu0 %7740
    %v7742 = vsel %vm2710, %v7620, 0.0
    %7743 = vadd.xlane.f32.xlu0 %v7742
    %v7744 = vpop.xlane.xlu0 %7743
    %v7745 = vsel %vm2710, %v7621, 0.0
    %7746 = vadd.xlane.f32.xlu0 %v7745
    %v7747 = vpop.xlane.xlu0 %7746
    %v7748 = vsel %vm2710, %v7622, 0.0
    %7749 = vadd.xlane.f32.xlu0 %v7748
    %v7750 = vpop.xlane.xlu0 %7749
    %v7751 = vsel %vm2710, %v7623, 0.0
    %7752 = vadd.xlane.f32.xlu0 %v7751
    %v7753 = vpop.xlane.xlu0 %7752
    %v7754 = vsel %vm2710, %v7624, 0.0
    %7755 = vadd.xlane.f32.xlu0 %v7754
    %v7756 = vpop.xlane.xlu0 %7755
    %v7757 = vsel %vm2710, %v7625, 0.0
    %7758 = vadd.xlane.f32.xlu0 %v7757
    %v7759 = vpop.xlane.xlu0 %7758
    %v7760 = vsel %vm2710, %v7626, 0.0
    %7761 = vadd.xlane.f32.xlu0 %v7760
    %v7762 = vpop.xlane.xlu0 %7761
    %v7763 = vsel %vm2710, %v7627, 0.0
    %7764 = vadd.xlane.f32.xlu0 %v7763
    %v7765 = vpop.xlane.xlu0 %7764
    %v7766 = vsel %vm2710, %v7628, 0.0
    %7767 = vadd.xlane.f32.xlu0 %v7766
    %v7768 = vpop.xlane.xlu0 %7767
    %v7769 = vsel %vm2710, %v7629, 0.0
    %7770 = vadd.xlane.f32.xlu0 %v7769
    %v7771 = vpop.xlane.xlu0 %7770
    %v7772 = vsel %vm2710, %v7630, 0.0
    %7773 = vadd.xlane.f32.xlu0 %v7772
    %v7774 = vpop.xlane.xlu0 %7773
    %v7775 = vsel %vm2710, %v7631, 0.0
    %7776 = vadd.xlane.f32.xlu0 %v7775
    %v7777 = vpop.xlane.xlu0 %7776
    %v7778 = vsel %vm2710, %v7632, 0.0
    %7779 = vadd.xlane.f32.xlu0 %v7778
    %v7780 = vpop.xlane.xlu0 %7779
    %v7781 = vsel %vm2710, %v7633, 0.0
    %7782 = vadd.xlane.f32.xlu0 %v7781
    %v7783 = vpop.xlane.xlu0 %7782
    %v7784 = vsel %vm2710, %v7634, 0.0
    %7785 = vadd.xlane.f32.xlu0 %v7784
    %v7786 = vpop.xlane.xlu0 %7785
    %v7787 = vsel %vm2710, %v7635, 0.0
    %7788 = vadd.xlane.f32.xlu0 %v7787
    %v7789 = vpop.xlane.xlu0 %7788
    %v7790 = vsel %vm2710, %v7636, 0.0
    %7791 = vadd.xlane.f32.xlu0 %v7790
    %v7792 = vpop.xlane.xlu0 %7791
    %v7793 = vsel %vm2710, %v7637, 0.0
    %7794 = vadd.xlane.f32.xlu0 %v7793
    %v7795 = vpop.xlane.xlu0 %7794
    %v7796 = vsel %vm2710, %v7638, 0.0
    %7797 = vadd.xlane.f32.xlu0 %v7796
    %v7798 = vpop.xlane.xlu0 %7797
    %v7799 = vsel %vm2710, %v7639, 0.0
    %7800 = vadd.xlane.f32.xlu0 %v7799
    %v7801 = vpop.xlane.xlu0 %7800
    %v7802 = vsel %vm2710, %v7640, 0.0
    %7803 = vadd.xlane.f32.xlu0 %v7802
    %v7804 = vpop.xlane.xlu0 %7803
    %v7805 = vsel %vm2710, %v7641, 0.0
    %7806 = vadd.xlane.f32.xlu0 %v7805
    %v7807 = vpop.xlane.xlu0 %7806
    %v7808 = vsel %vm2710, %v7642, 0.0
    %7809 = vadd.xlane.f32.xlu0 %v7808
    %v7810 = vpop.xlane.xlu0 %7809
    %v7811 = vsel %vm2710, %v7643, 0.0
    %7812 = vadd.xlane.f32.xlu0 %v7811
    %v7813 = vpop.xlane.xlu0 %7812
    %v7814 = vsel %vm2710, %v7644, 0.0
    %7815 = vadd.xlane.f32.xlu0 %v7814
    %v7816 = vpop.xlane.xlu0 %7815
    %v7817 = vsel %vm2710, %v7645, 0.0
    %7818 = vadd.xlane.f32.xlu0 %v7817
    %v7819 = vpop.xlane.xlu0 %7818
    %v7820 = vsel %vm2710, %v7646, 0.0
    %7821 = vadd.xlane.f32.xlu0 %v7820
    %v7822 = vpop.xlane.xlu0 %7821
    %v7823 = vsel %vm2710, %v7647, 0.0
    %7824 = vadd.xlane.f32.xlu0 %v7823
    %v7825 = vpop.xlane.xlu0 %7824
    %v7826 = vsel %vm2710, %v7648, 0.0
    %7827 = vadd.xlane.f32.xlu0 %v7826
    %v7828 = vpop.xlane.xlu0 %7827
    %v7829 = vsel %vm2710, %v7649, 0.0
    %7830 = vadd.xlane.f32.xlu0 %v7829
    %v7831 = vpop.xlane.xlu0 %7830
    %v7832 = vsel %vm2710, %v7650, 0.0
    %7833 = vadd.xlane.f32.xlu0 %v7832
    %v7834 = vpop.xlane.xlu0 %7833
    %v7835 = vsel %vm2710, %v7651, 0.0
    %7836 = vadd.xlane.f32.xlu0 %v7835
    %v7837 = vpop.xlane.xlu0 %7836
    %v7838 = vsel %vm2710, %v7652, 0.0
    %7839 = vadd.xlane.f32.xlu0 %v7838
    %v7840 = vpop.xlane.xlu0 %7839
    %v7841 = vsel %vm2710, %v7653, 0.0
    %7842 = vadd.xlane.f32.xlu0 %v7841
    %v7843 = vpop.xlane.xlu0 %7842
    %v7844 = vsel %vm2710, %v7654, 0.0
    %7845 = vadd.xlane.f32.xlu0 %v7844
    %v7846 = vpop.xlane.xlu0 %7845
    %s7847 = scalar_lea.vmem %s15, 16
    %v7848 = vld [vmem:[%s7847] sm:$0xff]
    %v7849 = vld [vmem:[%s7847 + $0x8] sm:$0xff]
    %7850 = vmatprep.subr.mxu0 0.0
    %7851 = vmatpush1.msra.mxu0 %v7848
    %7852 = vmatprep.subr.mxu0 0.0
    %7853 = vmatpush1.msra.mxu0 %v7849
    %7854 = vmatprep.subr.mxu0 0.0
    %7855 = vmatpush1.msra.mxu0 0.0
    %7856 = vmatprep.subr.mxu0 0.0
    %7857 = vmatpush1.msra.mxu0 0.0
    %7858 = vmatprep.subr.mxu0 0.0
    %7859 = vmatpush1.msra.mxu0 0.0
    %7860 = vmatprep.subr.mxu0 0.0
    %7861 = vmatpush1.msra.mxu0 0.0
    %7862 = vmatprep.subr.mxu0 0.0
    %7863 = vmatpush1.msra.mxu0 0.0
    %7864 = vmatprep.subr.mxu0 0.0
    %7865 = vmatpush1.msra.mxu0 0.0
    %7866 = vmatprep.subr.mxu0 0.0
    %7867 = vmatpush1.msra.mxu0 0.0
    %7868 = vmatprep.subr.mxu0 0.0
    %7869 = vmatpush1.msra.mxu0 0.0
    %7870 = vmatprep.subr.mxu0 0.0
    %7871 = vmatpush1.msra.mxu0 0.0
    %7872 = vmatprep.subr.mxu0 0.0
    %7873 = vmatpush1.msra.mxu0 0.0
    %7874 = vmatprep.subr.mxu0 0.0
    %7875 = vmatpush1.msra.mxu0 0.0
    %7876 = vmatprep.subr.mxu0 0.0
    %7877 = vmatpush1.msra.mxu0 0.0
    %7878 = vmatprep.subr.mxu0 0.0
    %7879 = vmatpush1.msra.mxu0 0.0
    %7880 = vmatprep.subr.mxu0 0.0
    %7881 = vmatpush1.msra.mxu0 0.0
    %7882 = vmatprep.subr.mxu0 0.0
    %7883 = vmatpush1.msra.mxu0 0.0
    %7884 = vmatprep.subr.mxu0 0.0
    %7885 = vmatpush1.msra.mxu0 0.0
    %7886 = vmatprep.subr.mxu0 0.0
    %7887 = vmatpush1.msra.mxu0 0.0
    %7888 = vmatprep.subr.mxu0 0.0
    %7889 = vmatpush1.msra.mxu0 0.0
    %7890 = vmatprep.subr.mxu0 0.0
    %7891 = vmatpush1.msra.mxu0 0.0
    %7892 = vmatprep.subr.mxu0 0.0
    %7893 = vmatpush1.msra.mxu0 0.0
    %7894 = vmatprep.subr.mxu0 0.0
    %7895 = vmatpush1.msra.mxu0 0.0
    %7896 = vmatprep.subr.mxu0 0.0
    %7897 = vmatpush1.msra.mxu0 0.0
    %7898 = vmatprep.subr.mxu0 0.0
    %7899 = vmatpush1.msra.mxu0 0.0
    %7900 = vmatprep.subr.mxu0 0.0
    %7901 = vmatpush1.msra.mxu0 0.0
    %7902 = vmatprep.subr.mxu0 0.0
    %7903 = vmatpush1.msra.mxu0 0.0
    %7904 = vmatprep.subr.mxu0 0.0
    %7905 = vmatpush1.msra.mxu0 0.0
    %7906 = vmatprep.subr.mxu0 0.0
    %7907 = vmatpush1.msra.mxu0 0.0
    %7908 = vmatprep.subr.mxu0 0.0
    %7909 = vmatpush1.msra.mxu0 0.0
    %7910 = vmatprep.subr.mxu0 0.0
    %7911 = vmatpush1.msra.mxu0 0.0
    %7912 = vmatprep.subr.mxu0 0.0
    %7913 = vmatpush1.msra.mxu0 0.0
    %7914 = vmatprep.mubr.f32.mxu0 0.0
    %7915 = vmatmul.mubr.f32.gmra.mrb[0].mxu0 %v3547
    %v7916 = vpop.f32.mrb[0].mxu0
    %v7917 = vadd.f32 0.0, %v7916
    %v7918 = vpop.f32.mrb[0].mxu0
    %7919 = vmatprep.mubr.f32.mxu0 0.0
    %7920 = vmatmul.mubr.f32.gmra.mrb[0].mxu0 %v3550
    %v7921 = vpop.f32.mrb[0].mxu0
    %v7922 = vadd.f32 0.0, %v7921
    %v7923 = vpop.f32.mrb[0].mxu0
    %7924 = vmatprep.mubr.f32.mxu0 0.0
    %7925 = vmatmul.mubr.f32.gmra.mrb[0].mxu0 %v3553
    %v7926 = vpop.f32.mrb[0].mxu0
    %v7927 = vadd.f32 0.0, %v7926
    %v7928 = vpop.f32.mrb[0].mxu0
    %7929 = vmatprep.mubr.f32.mxu0 0.0
    %7930 = vmatmul.mubr.f32.gmra.mrb[0].mxu0 %v3556
    %v7931 = vpop.f32.mrb[0].mxu0
    %v7932 = vadd.f32 0.0, %v7931
    %v7933 = vpop.f32.mrb[0].mxu0
    %7934 = vmatprep.mubr.f32.mxu0 0.0
    %7935 = vmatmul.mubr.f32.gmra.mrb[0].mxu0 %v3559
    %v7936 = vpop.f32.mrb[0].mxu0
    %v7937 = vadd.f32 0.0, %v7936
    %v7938 = vpop.f32.mrb[0].mxu0
    %7939 = vmatprep.mubr.f32.mxu0 0.0
    %7940 = vmatmul.mubr.f32.gmra.mrb[0].mxu0 %v3562
    %v7941 = vpop.f32.mrb[0].mxu0
    %v7942 = vadd.f32 0.0, %v7941
    %v7943 = vpop.f32.mrb[0].mxu0
    %7944 = vmatprep.mubr.f32.mxu0 0.0
    %7945 = vmatmul.mubr.f32.gmra.mrb[0].mxu0 %v3565
    %v7946 = vpop.f32.mrb[0].mxu0
    %v7947 = vadd.f32 0.0, %v7946
    %v7948 = vpop.f32.mrb[0].mxu0
    %7949 = vmatprep.mubr.f32.mxu0 0.0
    %7950 = vmatmul.mubr.f32.gmra.mrb[0].mxu0 %v3568
    %v7951 = vpop.f32.mrb[0].mxu0
    %v7952 = vadd.f32 0.0, %v7951
    %v7953 = vpop.f32.mrb[0].mxu0
    %7954 = vmatprep.mubr.f32.mxu0 0.0
    %7955 = vmatmul.mubr.f32.gmra.mrb[0].mxu0 %v3571
    %v7956 = vpop.f32.mrb[0].mxu0
    %v7957 = vadd.f32 0.0, %v7956
    %v7958 = vpop.f32.mrb[0].mxu0
    %7959 = vmatprep.mubr.f32.mxu0 0.0
    %7960 = vmatmul.mubr.f32.gmra.mrb[0].mxu0 %v3574
    %v7961 = vpop.f32.mrb[0].mxu0
    %v7962 = vadd.f32 0.0, %v7961
    %v7963 = vpop.f32.mrb[0].mxu0
    %7964 = vmatprep.mubr.f32.mxu0 0.0
    %7965 = vmatmul.mubr.f32.gmra.mrb[0].mxu0 %v3577
    %v7966 = vpop.f32.mrb[0].mxu0
    %v7967 = vadd.f32 0.0, %v7966
    %v7968 = vpop.f32.mrb[0].mxu0
    %7969 = vmatprep.mubr.f32.mxu0 0.0
    %7970 = vmatmul.mubr.f32.gmra.mrb[0].mxu0 %v3580
    %v7971 = vpop.f32.mrb[0].mxu0
    %v7972 = vadd.f32 0.0, %v7971
    %v7973 = vpop.f32.mrb[0].mxu0
    %7974 = vmatprep.mubr.f32.mxu0 0.0
    %7975 = vmatmul.mubr.f32.gmra.mrb[0].mxu0 %v3583
    %v7976 = vpop.f32.mrb[0].mxu0
    %v7977 = vadd.f32 0.0, %v7976
    %v7978 = vpop.f32.mrb[0].mxu0
    %7979 = vmatprep.mubr.f32.mxu0 0.0
    %7980 = vmatmul.mubr.f32.gmra.mrb[0].mxu0 %v3586
    %v7981 = vpop.f32.mrb[0].mxu0
    %v7982 = vadd.f32 0.0, %v7981
    %v7983 = vpop.f32.mrb[0].mxu0
    %7984 = vmatprep.mubr.f32.mxu0 0.0
    %7985 = vmatmul.mubr.f32.gmra.mrb[0].mxu0 %v3589
    %v7986 = vpop.f32.mrb[0].mxu0
    %v7987 = vadd.f32 0.0, %v7986
    %v7988 = vpop.f32.mrb[0].mxu0
    %7989 = vmatprep.mubr.f32.mxu0 0.0
    %7990 = vmatmul.mubr.f32.gmra.mrb[0].mxu0 %v3592
    %v7991 = vpop.f32.mrb[0].mxu0
    %v7992 = vadd.f32 0.0, %v7991
    %v7993 = vpop.f32.mrb[0].mxu0
    %7994 = vmatprep.mubr.f32.mxu0 0.0
    %7995 = vmatmul.mubr.f32.gmra.mrb[0].mxu0 %v3595
    %v7996 = vpop.f32.mrb[0].mxu0
    %v7997 = vadd.f32 0.0, %v7996
    %v7998 = vpop.f32.mrb[0].mxu0
    %7999 = vmatprep.mubr.f32.mxu0 0.0
    %8000 = vmatmul.mubr.f32.gmra.mrb[0].mxu0 %v3598
    %v8001 = vpop.f32.mrb[0].mxu0
    %v8002 = vadd.f32 0.0, %v8001
    %v8003 = vpop.f32.mrb[0].mxu0
    %8004 = vmatprep.mubr.f32.mxu0 0.0
    %8005 = vmatmul.mubr.f32.gmra.mrb[0].mxu0 %v3601
    %v8006 = vpop.f32.mrb[0].mxu0
    %v8007 = vadd.f32 0.0, %v8006
    %v8008 = vpop.f32.mrb[0].mxu0
    %8009 = vmatprep.mubr.f32.mxu0 0.0
    %8010 = vmatmul.mubr.f32.gmra.mrb[0].mxu0 %v3604
    %v8011 = vpop.f32.mrb[0].mxu0
    %v8012 = vadd.f32 0.0, %v8011
    %v8013 = vpop.f32.mrb[0].mxu0
    %8014 = vmatprep.mubr.f32.mxu0 0.0
    %8015 = vmatmul.mubr.f32.gmra.mrb[0].mxu0 %v3607
    %v8016 = vpop.f32.mrb[0].mxu0
    %v8017 = vadd.f32 0.0, %v8016
    %v8018 = vpop.f32.mrb[0].mxu0
    %8019 = vmatprep.mubr.f32.mxu0 0.0
    %8020 = vmatmul.mubr.f32.gmra.mrb[0].mxu0 %v3610
    %v8021 = vpop.f32.mrb[0].mxu0
    %v8022 = vadd.f32 0.0, %v8021
    %v8023 = vpop.f32.mrb[0].mxu0
    %8024 = vmatprep.mubr.f32.mxu0 0.0
    %8025 = vmatmul.mubr.f32.gmra.mrb[0].mxu0 %v3613
    %v8026 = vpop.f32.mrb[0].mxu0
    %v8027 = vadd.f32 0.0, %v8026
    %v8028 = vpop.f32.mrb[0].mxu0
    %8029 = vmatprep.mubr.f32.mxu0 0.0
    %8030 = vmatmul.mubr.f32.gmra.mrb[0].mxu0 %v3616
    %v8031 = vpop.f32.mrb[0].mxu0
    %v8032 = vadd.f32 0.0, %v8031
    %v8033 = vpop.f32.mrb[0].mxu0
    %8034 = vmatprep.mubr.f32.mxu0 0.0
    %8035 = vmatmul.mubr.f32.gmra.mrb[0].mxu0 %v3619
    %v8036 = vpop.f32.mrb[0].mxu0
    %v8037 = vadd.f32 0.0, %v8036
    %v8038 = vpop.f32.mrb[0].mxu0
    %8039 = vmatprep.mubr.f32.mxu0 0.0
    %8040 = vmatmul.mubr.f32.gmra.mrb[0].mxu0 %v3622
    %v8041 = vpop.f32.mrb[0].mxu0
    %v8042 = vadd.f32 0.0, %v8041
    %v8043 = vpop.f32.mrb[0].mxu0
    %8044 = vmatprep.mubr.f32.mxu0 0.0
    %8045 = vmatmul.mubr.f32.gmra.mrb[0].mxu0 %v3625
    %v8046 = vpop.f32.mrb[0].mxu0
    %v8047 = vadd.f32 0.0, %v8046
    %v8048 = vpop.f32.mrb[0].mxu0
    %8049 = vmatprep.mubr.f32.mxu0 0.0
    %8050 = vmatmul.mubr.f32.gmra.mrb[0].mxu0 %v3628
    %v8051 = vpop.f32.mrb[0].mxu0
    %v8052 = vadd.f32 0.0, %v8051
    %v8053 = vpop.f32.mrb[0].mxu0
    %8054 = vmatprep.mubr.f32.mxu0 0.0
    %8055 = vmatmul.mubr.f32.gmra.mrb[0].mxu0 %v3631
    %v8056 = vpop.f32.mrb[0].mxu0
    %v8057 = vadd.f32 0.0, %v8056
    %v8058 = vpop.f32.mrb[0].mxu0
    %8059 = vmatprep.mubr.f32.mxu0 0.0
    %8060 = vmatmul.mubr.f32.gmra.mrb[0].mxu0 %v3634
    %v8061 = vpop.f32.mrb[0].mxu0
    %v8062 = vadd.f32 0.0, %v8061
    %v8063 = vpop.f32.mrb[0].mxu0
    %8064 = vmatprep.mubr.f32.mxu0 0.0
    %8065 = vmatmul.mubr.f32.gmra.mrb[0].mxu0 %v3637
    %v8066 = vpop.f32.mrb[0].mxu0
    %v8067 = vadd.f32 0.0, %v8066
    %v8068 = vpop.f32.mrb[0].mxu0
    %8069 = vmatprep.mubr.f32.mxu0 0.0
    %8070 = vmatmul.mubr.f32.gmra.mrb[0].mxu0 %v3640
    %v8071 = vpop.f32.mrb[0].mxu0
    %v8072 = vadd.f32 0.0, %v8071
    %v8073 = vpop.f32.mrb[0].mxu0
    %8074 = vmatprep.mubr.f32.mxu0 0.0
    %8075 = vmatmul.mubr.f32.gmra.mrb[0].mxu0 %v3643
    %v8076 = vpop.f32.mrb[0].mxu0
    %v8077 = vadd.f32 0.0, %v8076
    %v8078 = vpop.f32.mrb[0].mxu0
    %8079 = vmatprep.mubr.f32.mxu0 0.0
    %8080 = vmatmul.mubr.f32.gmra.mrb[0].mxu0 %v3646
    %v8081 = vpop.f32.mrb[0].mxu0
    %v8082 = vadd.f32 0.0, %v8081
    %v8083 = vpop.f32.mrb[0].mxu0
    %8084 = vmatprep.mubr.f32.mxu0 0.0
    %8085 = vmatmul.mubr.f32.gmra.mrb[0].mxu0 %v3649
    %v8086 = vpop.f32.mrb[0].mxu0
    %v8087 = vadd.f32 0.0, %v8086
    %v8088 = vpop.f32.mrb[0].mxu0
    %8089 = vmatprep.mubr.f32.mxu0 0.0
    %8090 = vmatmul.mubr.f32.gmra.mrb[0].mxu0 %v3652
    %v8091 = vpop.f32.mrb[0].mxu0
    %v8092 = vadd.f32 0.0, %v8091
    %v8093 = vpop.f32.mrb[0].mxu0
    %8094 = vmatprep.mubr.f32.mxu0 0.0
    %8095 = vmatmul.mubr.f32.gmra.mrb[0].mxu0 %v3655
    %v8096 = vpop.f32.mrb[0].mxu0
    %v8097 = vadd.f32 0.0, %v8096
    %v8098 = vpop.f32.mrb[0].mxu0
    %8099 = vmatprep.mubr.f32.mxu0 0.0
    %8100 = vmatmul.mubr.f32.gmra.mrb[0].mxu0 %v3658
    %v8101 = vpop.f32.mrb[0].mxu0
    %v8102 = vadd.f32 0.0, %v8101
    %v8103 = vpop.f32.mrb[0].mxu0
    %8104 = vmatprep.mubr.f32.mxu0 0.0
    %8105 = vmatmul.mubr.f32.gmra.mrb[0].mxu0 %v3661
    %v8106 = vpop.f32.mrb[0].mxu0
    %v8107 = vadd.f32 0.0, %v8106
    %v8108 = vpop.f32.mrb[0].mxu0
    %8109 = vmatprep.mubr.f32.mxu0 0.0
    %8110 = vmatmul.mubr.f32.gmra.mrb[0].mxu0 %v3664
    %v8111 = vpop.f32.mrb[0].mxu0
    %v8112 = vadd.f32 0.0, %v8111
    %v8113 = vpop.f32.mrb[0].mxu0
    %8114 = vmatprep.mubr.f32.mxu0 0.0
    %8115 = vmatmul.mubr.f32.gmra.mrb[0].mxu0 %v3667
    %v8116 = vpop.f32.mrb[0].mxu0
    %v8117 = vadd.f32 0.0, %v8116
    %v8118 = vpop.f32.mrb[0].mxu0
    %8119 = vmatprep.mubr.f32.mxu0 0.0
    %8120 = vmatmul.mubr.f32.gmra.mrb[0].mxu0 %v3670
    %v8121 = vpop.f32.mrb[0].mxu0
    %v8122 = vadd.f32 0.0, %v8121
    %v8123 = vpop.f32.mrb[0].mxu0
    %8124 = vmatprep.mubr.f32.mxu0 0.0
    %8125 = vmatmul.mubr.f32.gmra.mrb[0].mxu0 %v3673
    %v8126 = vpop.f32.mrb[0].mxu0
    %v8127 = vadd.f32 0.0, %v8126
    %v8128 = vpop.f32.mrb[0].mxu0
    %8129 = vmatprep.mubr.f32.mxu0 0.0
    %8130 = vmatmul.mubr.f32.gmra.mrb[0].mxu0 %v3676
    %v8131 = vpop.f32.mrb[0].mxu0
    %v8132 = vadd.f32 0.0, %v8131
    %v8133 = vpop.f32.mrb[0].mxu0
    %8134 = vmatprep.mubr.f32.mxu0 0.0
    %8135 = vmatmul.mubr.f32.gmra.mrb[0].mxu0 %v3679
    %v8136 = vpop.f32.mrb[0].mxu0
    %v8137 = vadd.f32 0.0, %v8136
    %v8138 = vpop.f32.mrb[0].mxu0
    %8139 = vmatprep.mubr.f32.mxu0 0.0
    %8140 = vmatmul.mubr.f32.gmra.mrb[0].mxu0 %v3682
    %v8141 = vpop.f32.mrb[0].mxu0
    %v8142 = vadd.f32 0.0, %v8141
    %v8143 = vpop.f32.mrb[0].mxu0
    %8144 = vmatprep.mubr.f32.mxu0 0.0
    %8145 = vmatmul.mubr.f32.gmra.mrb[0].mxu0 %v3685
    %v8146 = vpop.f32.mrb[0].mxu0
    %v8147 = vadd.f32 0.0, %v8146
    %v8148 = vpop.f32.mrb[0].mxu0
    %8149 = vmatprep.mubr.f32.mxu0 0.0
    %8150 = vmatmul.mubr.f32.gmra.mrb[0].mxu0 %v3688
    %v8151 = vpop.f32.mrb[0].mxu0
    %v8152 = vadd.f32 0.0, %v8151
    %v8153 = vpop.f32.mrb[0].mxu0
    %8154 = vmatprep.mubr.f32.mxu0 0.0
    %8155 = vmatmul.mubr.f32.gmra.mrb[0].mxu0 %v3691
    %v8156 = vpop.f32.mrb[0].mxu0
    %v8157 = vadd.f32 0.0, %v8156
    %v8158 = vpop.f32.mrb[0].mxu0
    %8159 = vmatprep.mubr.f32.mxu0 0.0
    %8160 = vmatmul.mubr.f32.gmra.mrb[0].mxu0 %v3694
    %v8161 = vpop.f32.mrb[0].mxu0
    %v8162 = vadd.f32 0.0, %v8161
    %v8163 = vpop.f32.mrb[0].mxu0
    %8164 = vmatprep.mubr.f32.mxu0 0.0
    %8165 = vmatmul.mubr.f32.gmra.mrb[0].mxu0 %v3697
    %v8166 = vpop.f32.mrb[0].mxu0
    %v8167 = vadd.f32 0.0, %v8166
    %v8168 = vpop.f32.mrb[0].mxu0
    %8169 = vmatprep.mubr.f32.mxu0 0.0
    %8170 = vmatmul.mubr.f32.gmra.mrb[0].mxu0 %v3700
    %v8171 = vpop.f32.mrb[0].mxu0
    %v8172 = vadd.f32 0.0, %v8171
    %v8173 = vpop.f32.mrb[0].mxu0
    %8174 = vmatprep.mubr.f32.mxu0 0.0
    %8175 = vmatmul.mubr.f32.gmra.mrb[0].mxu0 %v3703
    %v8176 = vpop.f32.mrb[0].mxu0
    %v8177 = vadd.f32 0.0, %v8176
    %v8178 = vpop.f32.mrb[0].mxu0
    %8179 = vmatprep.mubr.f32.mxu0 0.0
    %8180 = vmatmul.mubr.f32.gmra.mrb[0].mxu0 %v3706
    %v8181 = vpop.f32.mrb[0].mxu0
    %v8182 = vadd.f32 0.0, %v8181
    %v8183 = vpop.f32.mrb[0].mxu0
    %8184 = vmatprep.mubr.f32.mxu0 0.0
    %8185 = vmatmul.mubr.f32.gmra.mrb[0].mxu0 %v3709
    %v8186 = vpop.f32.mrb[0].mxu0
    %v8187 = vadd.f32 0.0, %v8186
    %v8188 = vpop.f32.mrb[0].mxu0
    %8189 = vmatprep.mubr.f32.mxu0 0.0
    %8190 = vmatmul.mubr.f32.gmra.mrb[0].mxu0 %v3712
    %v8191 = vpop.f32.mrb[0].mxu0
    %v8192 = vadd.f32 0.0, %v8191
    %v8193 = vpop.f32.mrb[0].mxu0
    %8194 = vmatprep.mubr.f32.mxu0 0.0
    %8195 = vmatmul.mubr.f32.gmra.mrb[0].mxu0 %v3715
    %v8196 = vpop.f32.mrb[0].mxu0
    %v8197 = vadd.f32 0.0, %v8196
    %v8198 = vpop.f32.mrb[0].mxu0
    %8199 = vmatprep.mubr.f32.mxu0 0.0
    %8200 = vmatmul.mubr.f32.gmra.mrb[0].mxu0 %v3718
    %v8201 = vpop.f32.mrb[0].mxu0
    %v8202 = vadd.f32 0.0, %v8201
    %v8203 = vpop.f32.mrb[0].mxu0
    %8204 = vmatprep.mubr.f32.mxu0 0.0
    %8205 = vmatmul.mubr.f32.gmra.mrb[0].mxu0 %v3721
    %v8206 = vpop.f32.mrb[0].mxu0
    %v8207 = vadd.f32 0.0, %v8206
    %v8208 = vpop.f32.mrb[0].mxu0
    %8209 = vmatprep.mubr.f32.mxu0 0.0
    %8210 = vmatmul.mubr.f32.gmra.mrb[0].mxu0 %v3724
    %v8211 = vpop.f32.mrb[0].mxu0
    %v8212 = vadd.f32 0.0, %v8211
    %v8213 = vpop.f32.mrb[0].mxu0
    %8214 = vmatprep.mubr.f32.mxu0 0.0
    %8215 = vmatmul.mubr.f32.gmra.mrb[0].mxu0 %v3727
    %v8216 = vpop.f32.mrb[0].mxu0
    %v8217 = vadd.f32 0.0, %v8216
    %v8218 = vpop.f32.mrb[0].mxu0
    %8219 = vmatprep.mubr.f32.mxu0 0.0
    %8220 = vmatmul.mubr.f32.gmra.mrb[0].mxu0 %v3730
    %v8221 = vpop.f32.mrb[0].mxu0
    %v8222 = vadd.f32 0.0, %v8221
    %v8223 = vpop.f32.mrb[0].mxu0
    %8224 = vmatprep.mubr.f32.mxu0 0.0
    %8225 = vmatmul.mubr.f32.gmra.mrb[0].mxu0 %v3733
    %v8226 = vpop.f32.mrb[0].mxu0
    %v8227 = vadd.f32 0.0, %v8226
    %v8228 = vpop.f32.mrb[0].mxu0
    %8229 = vmatprep.mubr.f32.mxu0 0.0
    %8230 = vmatmul.mubr.f32.gmra.mrb[0].mxu0 %v3736
    %v8231 = vpop.f32.mrb[0].mxu0
    %v8232 = vadd.f32 0.0, %v8231
    %v8233 = vpop.f32.mrb[0].mxu0
    %8234 = vdwg.mxu0
    %v8235 = vmul.f32 %v6247, %v7917
    %v8236 = vmul.f32 %v6252, %v7922
    %v8237 = vmul.f32 %v6257, %v7927
    %v8238 = vmul.f32 %v6262, %v7932
    %v8239 = vmul.f32 %v6267, %v7937
    %v8240 = vmul.f32 %v6272, %v7942
    %v8241 = vmul.f32 %v6277, %v7947
    %v8242 = vmul.f32 %v6282, %v7952
    %v8243 = vmul.f32 %v6287, %v7957
    %v8244 = vmul.f32 %v6292, %v7962
    %v8245 = vmul.f32 %v6297, %v7967
    %v8246 = vmul.f32 %v6302, %v7972
    %v8247 = vmul.f32 %v6307, %v7977
    %v8248 = vmul.f32 %v6312, %v7982
    %v8249 = vmul.f32 %v6317, %v7987
    %v8250 = vmul.f32 %v6322, %v7992
    %v8251 = vmul.f32 %v6327, %v7997
    %v8252 = vmul.f32 %v6332, %v8002
    %v8253 = vmul.f32 %v6337, %v8007
    %v8254 = vmul.f32 %v6342, %v8012
    %v8255 = vmul.f32 %v6347, %v8017
    %v8256 = vmul.f32 %v6352, %v8022
    %v8257 = vmul.f32 %v6357, %v8027
    %v8258 = vmul.f32 %v6362, %v8032
    %v8259 = vmul.f32 %v6367, %v8037
    %v8260 = vmul.f32 %v6372, %v8042
    %v8261 = vmul.f32 %v6377, %v8047
    %v8262 = vmul.f32 %v6382, %v8052
    %v8263 = vmul.f32 %v6387, %v8057
    %v8264 = vmul.f32 %v6392, %v8062
    %v8265 = vmul.f32 %v6397, %v8067
    %v8266 = vmul.f32 %v6402, %v8072
    %v8267 = vmul.f32 %v6407, %v8077
    %v8268 = vmul.f32 %v6412, %v8082
    %v8269 = vmul.f32 %v6417, %v8087
    %v8270 = vmul.f32 %v6422, %v8092
    %v8271 = vmul.f32 %v6427, %v8097
    %v8272 = vmul.f32 %v6432, %v8102
    %v8273 = vmul.f32 %v6437, %v8107
    %v8274 = vmul.f32 %v6442, %v8112
    %v8275 = vmul.f32 %v6447, %v8117
    %v8276 = vmul.f32 %v6452, %v8122
    %v8277 = vmul.f32 %v6457, %v8127
    %v8278 = vmul.f32 %v6462, %v8132
    %v8279 = vmul.f32 %v6467, %v8137
    %v8280 = vmul.f32 %v6472, %v8142
    %v8281 = vmul.f32 %v6477, %v8147
    %v8282 = vmul.f32 %v6482, %v8152
    %v8283 = vmul.f32 %v6487, %v8157
    %v8284 = vmul.f32 %v6492, %v8162
    %v8285 = vmul.f32 %v6497, %v8167
    %v8286 = vmul.f32 %v6502, %v8172
    %v8287 = vmul.f32 %v6507, %v8177
    %v8288 = vmul.f32 %v6512, %v8182
    %v8289 = vmul.f32 %v6517, %v8187
    %v8290 = vmul.f32 %v6522, %v8192
    %v8291 = vmul.f32 %v6527, %v8197
    %v8292 = vmul.f32 %v6532, %v8202
    %v8293 = vmul.f32 %v6537, %v8207
    %v8294 = vmul.f32 %v6542, %v8212
    %v8295 = vmul.f32 %v6547, %v8217
    %v8296 = vmul.f32 %v6552, %v8222
    %v8297 = vmul.f32 %v6557, %v8227
    %v8298 = vmul.f32 %v6562, %v8232
    %v8299 = vmul.f32 %v8235, 1.442695
    %v8300 = vpow.pop %v8299
    %v8301 = vmul.f32 %v8236, 1.442695
    %v8302 = vpow.pop %v8301
    %v8303 = vmul.f32 %v8237, 1.442695
    %v8304 = vpow.pop %v8303
    %v8305 = vmul.f32 %v8238, 1.442695
    %v8306 = vpow.pop %v8305
    %v8307 = vmul.f32 %v8239, 1.442695
    %v8308 = vpow.pop %v8307
    %v8309 = vmul.f32 %v8240, 1.442695
    %v8310 = vpow.pop %v8309
    %v8311 = vmul.f32 %v8241, 1.442695
    %v8312 = vpow.pop %v8311
    %v8313 = vmul.f32 %v8242, 1.442695
    %v8314 = vpow.pop %v8313
    %v8315 = vmul.f32 %v8243, 1.442695
    %v8316 = vpow.pop %v8315
    %v8317 = vmul.f32 %v8244, 1.442695
    %v8318 = vpow.pop %v8317
    %v8319 = vmul.f32 %v8245, 1.442695
    %v8320 = vpow.pop %v8319
    %v8321 = vmul.f32 %v8246, 1.442695
    %v8322 = vpow.pop %v8321
    %v8323 = vmul.f32 %v8247, 1.442695
    %v8324 = vpow.pop %v8323
    %v8325 = vmul.f32 %v8248, 1.442695
    %v8326 = vpow.pop %v8325
    %v8327 = vmul.f32 %v8249, 1.442695
    %v8328 = vpow.pop %v8327
    %v8329 = vmul.f32 %v8250, 1.442695
    %v8330 = vpow.pop %v8329
    %v8331 = vmul.f32 %v8251, 1.442695
    %v8332 = vpow.pop %v8331
    %v8333 = vmul.f32 %v8252, 1.442695
    %v8334 = vpow.pop %v8333
    %v8335 = vmul.f32 %v8253, 1.442695
    %v8336 = vpow.pop %v8335
    %v8337 = vmul.f32 %v8254, 1.442695
    %v8338 = vpow.pop %v8337
    %v8339 = vmul.f32 %v8255, 1.442695
    %v8340 = vpow.pop %v8339
    %v8341 = vmul.f32 %v8256, 1.442695
    %v8342 = vpow.pop %v8341
    %v8343 = vmul.f32 %v8257, 1.442695
    %v8344 = vpow.pop %v8343
    %v8345 = vmul.f32 %v8258, 1.442695
    %v8346 = vpow.pop %v8345
    %v8347 = vmul.f32 %v8259, 1.442695
    %v8348 = vpow.pop %v8347
    %v8349 = vmul.f32 %v8260, 1.442695
    %v8350 = vpow.pop %v8349
    %v8351 = vmul.f32 %v8261, 1.442695
    %v8352 = vpow.pop %v8351
    %v8353 = vmul.f32 %v8262, 1.442695
    %v8354 = vpow.pop %v8353
    %v8355 = vmul.f32 %v8263, 1.442695
    %v8356 = vpow.pop %v8355
    %v8357 = vmul.f32 %v8264, 1.442695
    %v8358 = vpow.pop %v8357
    %v8359 = vmul.f32 %v8265, 1.442695
    %v8360 = vpow.pop %v8359
    %v8361 = vmul.f32 %v8266, 1.442695
    %v8362 = vpow.pop %v8361
    %v8363 = vmul.f32 %v8267, 1.442695
    %v8364 = vpow.pop %v8363
    %v8365 = vmul.f32 %v8268, 1.442695
    %v8366 = vpow.pop %v8365
    %v8367 = vmul.f32 %v8269, 1.442695
    %v8368 = vpow.pop %v8367
    %v8369 = vmul.f32 %v8270, 1.442695
    %v8370 = vpow.pop %v8369
    %v8371 = vmul.f32 %v8271, 1.442695
    %v8372 = vpow.pop %v8371
    %v8373 = vmul.f32 %v8272, 1.442695
    %v8374 = vpow.pop %v8373
    %v8375 = vmul.f32 %v8273, 1.442695
    %v8376 = vpow.pop %v8375
    %v8377 = vmul.f32 %v8274, 1.442695
    %v8378 = vpow.pop %v8377
    %v8379 = vmul.f32 %v8275, 1.442695
    %v8380 = vpow.pop %v8379
    %v8381 = vmul.f32 %v8276, 1.442695
    %v8382 = vpow.pop %v8381
    %v8383 = vmul.f32 %v8277, 1.442695
    %v8384 = vpow.pop %v8383
    %v8385 = vmul.f32 %v8278, 1.442695
    %v8386 = vpow.pop %v8385
    %v8387 = vmul.f32 %v8279, 1.442695
    %v8388 = vpow.pop %v8387
    %v8389 = vmul.f32 %v8280, 1.442695
    %v8390 = vpow.pop %v8389
    %v8391 = vmul.f32 %v8281, 1.442695
    %v8392 = vpow.pop %v8391
    %v8393 = vmul.f32 %v8282, 1.442695
    %v8394 = vpow.pop %v8393
    %v8395 = vmul.f32 %v8283, 1.442695
    %v8396 = vpow.pop %v8395
    %v8397 = vmul.f32 %v8284, 1.442695
    %v8398 = vpow.pop %v8397
    %v8399 = vmul.f32 %v8285, 1.442695
    %v8400 = vpow.pop %v8399
    %v8401 = vmul.f32 %v8286, 1.442695
    %v8402 = vpow.pop %v8401
    %v8403 = vmul.f32 %v8287, 1.442695
    %v8404 = vpow.pop %v8403
    %v8405 = vmul.f32 %v8288, 1.442695
    %v8406 = vpow.pop %v8405
    %v8407 = vmul.f32 %v8289, 1.442695
    %v8408 = vpow.pop %v8407
    %v8409 = vmul.f32 %v8290, 1.442695
    %v8410 = vpow.pop %v8409
    %v8411 = vmul.f32 %v8291, 1.442695
    %v8412 = vpow.pop %v8411
    %v8413 = vmul.f32 %v8292, 1.442695
    %v8414 = vpow.pop %v8413
    %v8415 = vmul.f32 %v8293, 1.442695
    %v8416 = vpow.pop %v8415
    %v8417 = vmul.f32 %v8294, 1.442695
    %v8418 = vpow.pop %v8417
    %v8419 = vmul.f32 %v8295, 1.442695
    %v8420 = vpow.pop %v8419
    %v8421 = vmul.f32 %v8296, 1.442695
    %v8422 = vpow.pop %v8421
    %v8423 = vmul.f32 %v8297, 1.442695
    %v8424 = vpow.pop %v8423
    %v8425 = vmul.f32 %v8298, 1.442695
    %v8426 = vpow.pop %v8425
    %v8427 = vmul.f32 %v6247, %v5862
    %v8428 = vmul.f32 %v6252, %v5867
    %v8429 = vmul.f32 %v6257, %v5872
    %v8430 = vmul.f32 %v6262, %v5877
    %v8431 = vmul.f32 %v6267, %v5882
    %v8432 = vmul.f32 %v6272, %v5887
    %v8433 = vmul.f32 %v6277, %v5892
    %v8434 = vmul.f32 %v6282, %v5897
    %v8435 = vmul.f32 %v6287, %v5902
    %v8436 = vmul.f32 %v6292, %v5907
    %v8437 = vmul.f32 %v6297, %v5912
    %v8438 = vmul.f32 %v6302, %v5917
    %v8439 = vmul.f32 %v6307, %v5922
    %v8440 = vmul.f32 %v6312, %v5927
    %v8441 = vmul.f32 %v6317, %v5932
    %v8442 = vmul.f32 %v6322, %v5937
    %v8443 = vmul.f32 %v6327, %v5942
    %v8444 = vmul.f32 %v6332, %v5947
    %v8445 = vmul.f32 %v6337, %v5952
    %v8446 = vmul.f32 %v6342, %v5957
    %v8447 = vmul.f32 %v6347, %v5962
    %v8448 = vmul.f32 %v6352, %v5967
    %v8449 = vmul.f32 %v6357, %v5972
    %v8450 = vmul.f32 %v6362, %v5977
    %v8451 = vmul.f32 %v6367, %v5982
    %v8452 = vmul.f32 %v6372, %v5987
    %v8453 = vmul.f32 %v6377, %v5992
    %v8454 = vmul.f32 %v6382, %v5997
    %v8455 = vmul.f32 %v6387, %v6002
    %v8456 = vmul.f32 %v6392, %v6007
    %v8457 = vmul.f32 %v6397, %v6012
    %v8458 = vmul.f32 %v6402, %v6017
    %v8459 = vmul.f32 %v6407, %v6022
    %v8460 = vmul.f32 %v6412, %v6027
    %v8461 = vmul.f32 %v6417, %v6032
    %v8462 = vmul.f32 %v6422, %v6037
    %v8463 = vmul.f32 %v6427, %v6042
    %v8464 = vmul.f32 %v6432, %v6047
    %v8465 = vmul.f32 %v6437, %v6052
    %v8466 = vmul.f32 %v6442, %v6057
    %v8467 = vmul.f32 %v6447, %v6062
    %v8468 = vmul.f32 %v6452, %v6067
    %v8469 = vmul.f32 %v6457, %v6072
    %v8470 = vmul.f32 %v6462, %v6077
    %v8471 = vmul.f32 %v6467, %v6082
    %v8472 = vmul.f32 %v6472, %v6087
    %v8473 = vmul.f32 %v6477, %v6092
    %v8474 = vmul.f32 %v6482, %v6097
    %v8475 = vmul.f32 %v6487, %v6102
    %v8476 = vmul.f32 %v6492, %v6107
    %v8477 = vmul.f32 %v6497, %v6112
    %v8478 = vmul.f32 %v6502, %v6117
    %v8479 = vmul.f32 %v6507, %v6122
    %v8480 = vmul.f32 %v6512, %v6127
    %v8481 = vmul.f32 %v6517, %v6132
    %v8482 = vmul.f32 %v6522, %v6137
    %v8483 = vmul.f32 %v6527, %v6142
    %v8484 = vmul.f32 %v6532, %v6147
    %v8485 = vmul.f32 %v6537, %v6152
    %v8486 = vmul.f32 %v6542, %v6157
    %v8487 = vmul.f32 %v6547, %v6162
    %v8488 = vmul.f32 %v6552, %v6167
    %v8489 = vmul.f32 %v6557, %v6172
    %v8490 = vmul.f32 %v6562, %v6177
    %v8491 = vmul.f32 %v8427, %v7016
    %v8492 = vmul.f32 %v8428, %v7019
    %v8493 = vmul.f32 %v8429, %v7022
    %v8494 = vmul.f32 %v8430, %v7025
    %v8495 = vmul.f32 %v8431, %v7028
    %v8496 = vmul.f32 %v8432, %v7031
    %v8497 = vmul.f32 %v8433, %v7034
    %v8498 = vmul.f32 %v8434, %v7037
    %v8499 = vmul.f32 %v8435, %v7040
    %v8500 = vmul.f32 %v8436, %v7043
    %v8501 = vmul.f32 %v8437, %v7046
    %v8502 = vmul.f32 %v8438, %v7049
    %v8503 = vmul.f32 %v8439, %v7052
    %v8504 = vmul.f32 %v8440, %v7055
    %v8505 = vmul.f32 %v8441, %v7058
    %v8506 = vmul.f32 %v8442, %v7061
    %v8507 = vmul.f32 %v8443, %v7064
    %v8508 = vmul.f32 %v8444, %v7067
    %v8509 = vmul.f32 %v8445, %v7070
    %v8510 = vmul.f32 %v8446, %v7073
    %v8511 = vmul.f32 %v8447, %v7076
    %v8512 = vmul.f32 %v8448, %v7079
    %v8513 = vmul.f32 %v8449, %v7082
    %v8514 = vmul.f32 %v8450, %v7085
    %v8515 = vmul.f32 %v8451, %v7088
    %v8516 = vmul.f32 %v8452, %v7091
    %v8517 = vmul.f32 %v8453, %v7094
    %v8518 = vmul.f32 %v8454, %v7097
    %v8519 = vmul.f32 %v8455, %v7100
    %v8520 = vmul.f32 %v8456, %v7103
    %v8521 = vmul.f32 %v8457, %v7106
    %v8522 = vmul.f32 %v8458, %v7109
    %v8523 = vmul.f32 %v8459, %v7112
    %v8524 = vmul.f32 %v8460, %v7115
    %v8525 = vmul.f32 %v8461, %v7118
    %v8526 = vmul.f32 %v8462, %v7121
    %v8527 = vmul.f32 %v8463, %v7124
    %v8528 = vmul.f32 %v8464, %v7127
    %v8529 = vmul.f32 %v8465, %v7130
    %v8530 = vmul.f32 %v8466, %v7133
    %v8531 = vmul.f32 %v8467, %v7136
    %v8532 = vmul.f32 %v8468, %v7139
    %v8533 = vmul.f32 %v8469, %v7142
    %v8534 = vmul.f32 %v8470, %v7145
    %v8535 = vmul.f32 %v8471, %v7148
    %v8536 = vmul.f32 %v8472, %v7151
    %v8537 = vmul.f32 %v8473, %v7154
    %v8538 = vmul.f32 %v8474, %v7157
    %v8539 = vmul.f32 %v8475, %v7160
    %v8540 = vmul.f32 %v8476, %v7163
    %v8541 = vmul.f32 %v8477, %v7166
    %v8542 = vmul.f32 %v8478, %v7169
    %v8543 = vmul.f32 %v8479, %v7172
    %v8544 = vmul.f32 %v8480, %v7175
    %v8545 = vmul.f32 %v8481, %v7178
    %v8546 = vmul.f32 %v8482, %v7181
    %v8547 = vmul.f32 %v8483, %v7184
    %v8548 = vmul.f32 %v8484, %v7187
    %v8549 = vmul.f32 %v8485, %v7190
    %v8550 = vmul.f32 %v8486, %v7193
    %v8551 = vmul.f32 %v8487, %v7196
    %v8552 = vmul.f32 %v8488, %v7199
    %v8553 = vmul.f32 %v8489, %v7202
    %v8554 = vmul.f32 %v8490, %v7205
    %v8555 = vmul.f32 %v8300, 0.0
    %v8556 = vmul.f32 %v8302, 0.0
    %v8557 = vmul.f32 %v8304, 0.0
    %v8558 = vmul.f32 %v8306, 0.0
    %v8559 = vadd.f32 %v8555, %v8491
    %v8560 = vadd.f32 %v8556, %v8492
    %v8561 = vadd.f32 %v8557, %v8493
    %v8562 = vadd.f32 %v8558, %v8494
    %8563 = vst.msk [vmem:[#allocation2] sm:$0xff] %vm476, %v8559
    %8564 = vst.msk [vmem:[#allocation2 + $0x8] sm:$0xff] %vm476, %v8560
    %8565 = vst.msk [vmem:[#allocation2 + $0x10] sm:$0xff] %vm476, %v8561
    %8566 = vst.msk [vmem:[#allocation2 + $0x18] sm:$0xff] %vm476, %v8562
    %v8567 = vmul.f32 %v8308, %v8559
    %v8568 = vmul.f32 %v8310, %v8560
    %v8569 = vmul.f32 %v8312, %v8561
    %v8570 = vmul.f32 %v8314, %v8562
    %v8571 = vadd.f32 %v8567, %v8495
    %v8572 = vadd.f32 %v8568, %v8496
    %v8573 = vadd.f32 %v8569, %v8497
    %v8574 = vadd.f32 %v8570, %v8498
    %8575 = vst.msk [vmem:[#allocation2 + $0x20] sm:$0xff] %vm476, %v8571
    %8576 = vst.msk [vmem:[#allocation2 + $0x28] sm:$0xff] %vm476, %v8572
    %8577 = vst.msk [vmem:[#allocation2 + $0x30] sm:$0xff] %vm476, %v8573
    %8578 = vst.msk [vmem:[#allocation2 + $0x38] sm:$0xff] %vm476, %v8574
    %v8579 = vmul.f32 %v8316, %v8571
    %v8580 = vmul.f32 %v8318, %v8572
    %v8581 = vmul.f32 %v8320, %v8573
    %v8582 = vmul.f32 %v8322, %v8574
    %v8583 = vadd.f32 %v8579, %v8499
    %v8584 = vadd.f32 %v8580, %v8500
    %v8585 = vadd.f32 %v8581, %v8501
    %v8586 = vadd.f32 %v8582, %v8502
    %8587 = vst.msk [vmem:[#allocation2 + $0x40] sm:$0xff] %vm476, %v8583
    %8588 = vst.msk [vmem:[#allocation2 + $0x48] sm:$0xff] %vm476, %v8584
    %8589 = vst.msk [vmem:[#allocation2 + $0x50] sm:$0xff] %vm476, %v8585
    %8590 = vst.msk [vmem:[#allocation2 + $0x58] sm:$0xff] %vm476, %v8586
    %v8591 = vmul.f32 %v8324, %v8583
    %v8592 = vmul.f32 %v8326, %v8584
    %v8593 = vmul.f32 %v8328, %v8585
    %v8594 = vmul.f32 %v8330, %v8586
    %v8595 = vadd.f32 %v8591, %v8503
    %v8596 = vadd.f32 %v8592, %v8504
    %v8597 = vadd.f32 %v8593, %v8505
    %v8598 = vadd.f32 %v8594, %v8506
    %8599 = vst.msk [vmem:[#allocation2 + $0x60] sm:$0xff] %vm476, %v8595
    %8600 = vst.msk [vmem:[#allocation2 + $0x68] sm:$0xff] %vm476, %v8596
    %8601 = vst.msk [vmem:[#allocation2 + $0x70] sm:$0xff] %vm476, %v8597
    %8602 = vst.msk [vmem:[#allocation2 + $0x78] sm:$0xff] %vm476, %v8598
    %v8603 = vmul.f32 %v8332, %v8595
    %v8604 = vmul.f32 %v8334, %v8596
    %v8605 = vmul.f32 %v8336, %v8597
    %v8606 = vmul.f32 %v8338, %v8598
    %v8607 = vadd.f32 %v8603, %v8507
    %v8608 = vadd.f32 %v8604, %v8508
    %v8609 = vadd.f32 %v8605, %v8509
    %v8610 = vadd.f32 %v8606, %v8510
    %8611 = vst.msk [vmem:[#allocation2 + $0x80] sm:$0xff] %vm476, %v8607
    %8612 = vst.msk [vmem:[#allocation2 + $0x88] sm:$0xff] %vm476, %v8608
    %8613 = vst.msk [vmem:[#allocation2 + $0x90] sm:$0xff] %vm476, %v8609
    %8614 = vst.msk [vmem:[#allocation2 + $0x98] sm:$0xff] %vm476, %v8610
    %v8615 = vmul.f32 %v8340, %v8607
    %v8616 = vmul.f32 %v8342, %v8608
    %v8617 = vmul.f32 %v8344, %v8609
    %v8618 = vmul.f32 %v8346, %v8610
    %v8619 = vadd.f32 %v8615, %v8511
    %v8620 = vadd.f32 %v8616, %v8512
    %v8621 = vadd.f32 %v8617, %v8513
    %v8622 = vadd.f32 %v8618, %v8514
    %8623 = vst.msk [vmem:[#allocation2 + $0xa0] sm:$0xff] %vm476, %v8619
    %8624 = vst.msk [vmem:[#allocation2 + $0xa8] sm:$0xff] %vm476, %v8620
    %8625 = vst.msk [vmem:[#allocation2 + $0xb0] sm:$0xff] %vm476, %v8621
    %8626 = vst.msk [vmem:[#allocation2 + $0xb8] sm:$0xff] %vm476, %v8622
    %v8627 = vmul.f32 %v8348, %v8619
    %v8628 = vmul.f32 %v8350, %v8620
    %v8629 = vmul.f32 %v8352, %v8621
    %v8630 = vmul.f32 %v8354, %v8622
    %v8631 = vadd.f32 %v8627, %v8515
    %v8632 = vadd.f32 %v8628, %v8516
    %v8633 = vadd.f32 %v8629, %v8517
    %v8634 = vadd.f32 %v8630, %v8518
    %8635 = vst.msk [vmem:[#allocation2 + $0xc0] sm:$0xff] %vm476, %v8631
    %8636 = vst.msk [vmem:[#allocation2 + $0xc8] sm:$0xff] %vm476, %v8632
    %8637 = vst.msk [vmem:[#allocation2 + $0xd0] sm:$0xff] %vm476, %v8633
    %8638 = vst.msk [vmem:[#allocation2 + $0xd8] sm:$0xff] %vm476, %v8634
    %v8639 = vmul.f32 %v8356, %v8631
    %v8640 = vmul.f32 %v8358, %v8632
    %v8641 = vmul.f32 %v8360, %v8633
    %v8642 = vmul.f32 %v8362, %v8634
    %v8643 = vadd.f32 %v8639, %v8519
    %v8644 = vadd.f32 %v8640, %v8520
    %v8645 = vadd.f32 %v8641, %v8521
    %v8646 = vadd.f32 %v8642, %v8522
    %8647 = vst.msk [vmem:[#allocation2 + $0xe0] sm:$0xff] %vm476, %v8643
    %8648 = vst.msk [vmem:[#allocation2 + $0xe8] sm:$0xff] %vm476, %v8644
    %8649 = vst.msk [vmem:[#allocation2 + $0xf0] sm:$0xff] %vm476, %v8645
    %8650 = vst.msk [vmem:[#allocation2 + $0xf8] sm:$0xff] %vm476, %v8646
    %v8651 = vmul.f32 %v8364, %v8643
    %v8652 = vmul.f32 %v8366, %v8644
    %v8653 = vmul.f32 %v8368, %v8645
    %v8654 = vmul.f32 %v8370, %v8646
    %v8655 = vadd.f32 %v8651, %v8523
    %v8656 = vadd.f32 %v8652, %v8524
    %v8657 = vadd.f32 %v8653, %v8525
    %v8658 = vadd.f32 %v8654, %v8526
    %8659 = vst.msk [vmem:[#allocation2 + $0x100] sm:$0xff] %vm476, %v8655
    %8660 = vst.msk [vmem:[#allocation2 + $0x108] sm:$0xff] %vm476, %v8656
    %8661 = vst.msk [vmem:[#allocation2 + $0x110] sm:$0xff] %vm476, %v8657
    %8662 = vst.msk [vmem:[#allocation2 + $0x118] sm:$0xff] %vm476, %v8658
    %v8663 = vmul.f32 %v8372, %v8655
    %v8664 = vmul.f32 %v8374, %v8656
    %v8665 = vmul.f32 %v8376, %v8657
    %v8666 = vmul.f32 %v8378, %v8658
    %v8667 = vadd.f32 %v8663, %v8527
    %v8668 = vadd.f32 %v8664, %v8528
    %v8669 = vadd.f32 %v8665, %v8529
    %v8670 = vadd.f32 %v8666, %v8530
    %8671 = vst.msk [vmem:[#allocation2 + $0x120] sm:$0xff] %vm476, %v8667
    %8672 = vst.msk [vmem:[#allocation2 + $0x128] sm:$0xff] %vm476, %v8668
    %8673 = vst.msk [vmem:[#allocation2 + $0x130] sm:$0xff] %vm476, %v8669
    %8674 = vst.msk [vmem:[#allocation2 + $0x138] sm:$0xff] %vm476, %v8670
    %v8675 = vmul.f32 %v8380, %v8667
    %v8676 = vmul.f32 %v8382, %v8668
    %v8677 = vmul.f32 %v8384, %v8669
    %v8678 = vmul.f32 %v8386, %v8670
    %v8679 = vadd.f32 %v8675, %v8531
    %v8680 = vadd.f32 %v8676, %v8532
    %v8681 = vadd.f32 %v8677, %v8533
    %v8682 = vadd.f32 %v8678, %v8534
    %8683 = vst.msk [vmem:[#allocation2 + $0x140] sm:$0xff] %vm476, %v8679
    %8684 = vst.msk [vmem:[#allocation2 + $0x148] sm:$0xff] %vm476, %v8680
    %8685 = vst.msk [vmem:[#allocation2 + $0x150] sm:$0xff] %vm476, %v8681
    %8686 = vst.msk [vmem:[#allocation2 + $0x158] sm:$0xff] %vm476, %v8682
    %v8687 = vmul.f32 %v8388, %v8679
    %v8688 = vmul.f32 %v8390, %v8680
    %v8689 = vmul.f32 %v8392, %v8681
    %v8690 = vmul.f32 %v8394, %v8682
    %v8691 = vadd.f32 %v8687, %v8535
    %v8692 = vadd.f32 %v8688, %v8536
    %v8693 = vadd.f32 %v8689, %v8537
    %v8694 = vadd.f32 %v8690, %v8538
    %8695 = vst.msk [vmem:[#allocation2 + $0x160] sm:$0xff] %vm476, %v8691
    %8696 = vst.msk [vmem:[#allocation2 + $0x168] sm:$0xff] %vm476, %v8692
    %8697 = vst.msk [vmem:[#allocation2 + $0x170] sm:$0xff] %vm476, %v8693
    %8698 = vst.msk [vmem:[#allocation2 + $0x178] sm:$0xff] %vm476, %v8694
    %v8699 = vmul.f32 %v8396, %v8691
    %v8700 = vmul.f32 %v8398, %v8692
    %v8701 = vmul.f32 %v8400, %v8693
    %v8702 = vmul.f32 %v8402, %v8694
    %v8703 = vadd.f32 %v8699, %v8539
    %v8704 = vadd.f32 %v8700, %v8540
    %v8705 = vadd.f32 %v8701, %v8541
    %v8706 = vadd.f32 %v8702, %v8542
    %8707 = vst.msk [vmem:[#allocation2 + $0x180] sm:$0xff] %vm476, %v8703
    %8708 = vst.msk [vmem:[#allocation2 + $0x188] sm:$0xff] %vm476, %v8704
    %8709 = vst.msk [vmem:[#allocation2 + $0x190] sm:$0xff] %vm476, %v8705
    %8710 = vst.msk [vmem:[#allocation2 + $0x198] sm:$0xff] %vm476, %v8706
    %v8711 = vmul.f32 %v8404, %v8703
    %v8712 = vmul.f32 %v8406, %v8704
    %v8713 = vmul.f32 %v8408, %v8705
    %v8714 = vmul.f32 %v8410, %v8706
    %v8715 = vadd.f32 %v8711, %v8543
    %v8716 = vadd.f32 %v8712, %v8544
    %v8717 = vadd.f32 %v8713, %v8545
    %v8718 = vadd.f32 %v8714, %v8546
    %8719 = vst.msk [vmem:[#allocation2 + $0x1a0] sm:$0xff] %vm476, %v8715
    %8720 = vst.msk [vmem:[#allocation2 + $0x1a8] sm:$0xff] %vm476, %v8716
    %8721 = vst.msk [vmem:[#allocation2 + $0x1b0] sm:$0xff] %vm476, %v8717
    %8722 = vst.msk [vmem:[#allocation2 + $0x1b8] sm:$0xff] %vm476, %v8718
    %v8723 = vmul.f32 %v8412, %v8715
    %v8724 = vmul.f32 %v8414, %v8716
    %v8725 = vmul.f32 %v8416, %v8717
    %v8726 = vmul.f32 %v8418, %v8718
    %v8727 = vadd.f32 %v8723, %v8547
    %v8728 = vadd.f32 %v8724, %v8548
    %v8729 = vadd.f32 %v8725, %v8549
    %v8730 = vadd.f32 %v8726, %v8550
    %8731 = vst.msk [vmem:[#allocation2 + $0x1c0] sm:$0xff] %vm476, %v8727
    %8732 = vst.msk [vmem:[#allocation2 + $0x1c8] sm:$0xff] %vm476, %v8728
    %8733 = vst.msk [vmem:[#allocation2 + $0x1d0] sm:$0xff] %vm476, %v8729
    %8734 = vst.msk [vmem:[#allocation2 + $0x1d8] sm:$0xff] %vm476, %v8730
    %v8735 = vmul.f32 %v8420, %v8727
    %v8736 = vmul.f32 %v8422, %v8728
    %v8737 = vmul.f32 %v8424, %v8729
    %v8738 = vmul.f32 %v8426, %v8730
    %v8739 = vadd.f32 %v8735, %v8551
    %v8740 = vadd.f32 %v8736, %v8552
    %v8741 = vadd.f32 %v8737, %v8553
    %v8742 = vadd.f32 %v8738, %v8554
    %8743 = vst.msk [vmem:[#allocation2 + $0x1e0] sm:$0xff] %vm476, %v8739
    %8744 = vst.msk [vmem:[#allocation2 + $0x1e8] sm:$0xff] %vm476, %v8740
    %8745 = vst.msk [vmem:[#allocation2 + $0x1f0] sm:$0xff] %vm476, %v8741
    %8746 = vst.msk [vmem:[#allocation2 + $0x1f8] sm:$0xff] %vm476, %v8742
    %v8747 = vld [vmem:[#allocation2] sm:$0xff]
    %v8748 = vld [vmem:[#allocation2 + $0x8] sm:$0xff]
    %v8749 = vld [vmem:[#allocation2 + $0x10] sm:$0xff]
    %v8750 = vld [vmem:[#allocation2 + $0x18] sm:$0xff]
    %v8751 = vld [vmem:[#allocation2 + $0x20] sm:$0xff]
    %v8752 = vld [vmem:[#allocation2 + $0x28] sm:$0xff]
    %v8753 = vld [vmem:[#allocation2 + $0x30] sm:$0xff]
    %v8754 = vld [vmem:[#allocation2 + $0x38] sm:$0xff]
    %v8755 = vld [vmem:[#allocation2 + $0x40] sm:$0xff]
    %v8756 = vld [vmem:[#allocation2 + $0x48] sm:$0xff]
    %v8757 = vld [vmem:[#allocation2 + $0x50] sm:$0xff]
    %v8758 = vld [vmem:[#allocation2 + $0x58] sm:$0xff]
    %v8759 = vld [vmem:[#allocation2 + $0x60] sm:$0xff]
    %v8760 = vld [vmem:[#allocation2 + $0x68] sm:$0xff]
    %v8761 = vld [vmem:[#allocation2 + $0x70] sm:$0xff]
    %v8762 = vld [vmem:[#allocation2 + $0x78] sm:$0xff]
    %v8763 = vld [vmem:[#allocation2 + $0x80] sm:$0xff]
    %v8764 = vld [vmem:[#allocation2 + $0x88] sm:$0xff]
    %v8765 = vld [vmem:[#allocation2 + $0x90] sm:$0xff]
    %v8766 = vld [vmem:[#allocation2 + $0x98] sm:$0xff]
    %v8767 = vld [vmem:[#allocation2 + $0xa0] sm:$0xff]
    %v8768 = vld [vmem:[#allocation2 + $0xa8] sm:$0xff]
    %v8769 = vld [vmem:[#allocation2 + $0xb0] sm:$0xff]
    %v8770 = vld [vmem:[#allocation2 + $0xb8] sm:$0xff]
    %v8771 = vld [vmem:[#allocation2 + $0xc0] sm:$0xff]
    %v8772 = vld [vmem:[#allocation2 + $0xc8] sm:$0xff]
    %v8773 = vld [vmem:[#allocation2 + $0xd0] sm:$0xff]
    %v8774 = vld [vmem:[#allocation2 + $0xd8] sm:$0xff]
    %v8775 = vld [vmem:[#allocation2 + $0xe0] sm:$0xff]
    %v8776 = vld [vmem:[#allocation2 + $0xe8] sm:$0xff]
    %v8777 = vld [vmem:[#allocation2 + $0xf0] sm:$0xff]
    %v8778 = vld [vmem:[#allocation2 + $0xf8] sm:$0xff]
    %v8779 = vld [vmem:[#allocation2 + $0x100] sm:$0xff]
    %v8780 = vld [vmem:[#allocation2 + $0x108] sm:$0xff]
    %v8781 = vld [vmem:[#allocation2 + $0x110] sm:$0xff]
    %v8782 = vld [vmem:[#allocation2 + $0x118] sm:$0xff]
    %v8783 = vld [vmem:[#allocation2 + $0x120] sm:$0xff]
    %v8784 = vld [vmem:[#allocation2 + $0x128] sm:$0xff]
    %v8785 = vld [vmem:[#allocation2 + $0x130] sm:$0xff]
    %v8786 = vld [vmem:[#allocation2 + $0x138] sm:$0xff]
    %v8787 = vld [vmem:[#allocation2 + $0x140] sm:$0xff]
    %v8788 = vld [vmem:[#allocation2 + $0x148] sm:$0xff]
    %v8789 = vld [vmem:[#allocation2 + $0x150] sm:$0xff]
    %v8790 = vld [vmem:[#allocation2 + $0x158] sm:$0xff]
    %v8791 = vld [vmem:[#allocation2 + $0x160] sm:$0xff]
    %v8792 = vld [vmem:[#allocation2 + $0x168] sm:$0xff]
    %v8793 = vld [vmem:[#allocation2 + $0x170] sm:$0xff]
    %v8794 = vld [vmem:[#allocation2 + $0x178] sm:$0xff]
    %v8795 = vld [vmem:[#allocation2 + $0x180] sm:$0xff]
    %v8796 = vld [vmem:[#allocation2 + $0x188] sm:$0xff]
    %v8797 = vld [vmem:[#allocation2 + $0x190] sm:$0xff]
    %v8798 = vld [vmem:[#allocation2 + $0x198] sm:$0xff]
    %v8799 = vld [vmem:[#allocation2 + $0x1a0] sm:$0xff]
    %v8800 = vld [vmem:[#allocation2 + $0x1a8] sm:$0xff]
    %v8801 = vld [vmem:[#allocation2 + $0x1b0] sm:$0xff]
    %v8802 = vld [vmem:[#allocation2 + $0x1b8] sm:$0xff]
    %v8803 = vld [vmem:[#allocation2 + $0x1c0] sm:$0xff]
    %v8804 = vld [vmem:[#allocation2 + $0x1c8] sm:$0xff]
    %v8805 = vld [vmem:[#allocation2 + $0x1d0] sm:$0xff]
    %v8806 = vld [vmem:[#allocation2 + $0x1d8] sm:$0xff]
    %v8807 = vld [vmem:[#allocation2 + $0x1e0] sm:$0xff]
    %v8808 = vld [vmem:[#allocation2 + $0x1e8] sm:$0xff]
    %v8809 = vld [vmem:[#allocation2 + $0x1f0] sm:$0xff]
    %v8810 = vld [vmem:[#allocation2 + $0x1f8] sm:$0xff]
    %v8811 = vmul.f32 %v8747, %v7657
    %v8812 = vmul.f32 %v8748, %v7660
    %v8813 = vmul.f32 %v8749, %v7663
    %v8814 = vmul.f32 %v8750, %v7666
    %v8815 = vmul.f32 %v8751, %v7669
    %v8816 = vmul.f32 %v8752, %v7672
    %v8817 = vmul.f32 %v8753, %v7675
    %v8818 = vmul.f32 %v8754, %v7678
    %v8819 = vmul.f32 %v8755, %v7681
    %v8820 = vmul.f32 %v8756, %v7684
    %v8821 = vmul.f32 %v8757, %v7687
    %v8822 = vmul.f32 %v8758, %v7690
    %v8823 = vmul.f32 %v8759, %v7693
    %v8824 = vmul.f32 %v8760, %v7696
    %v8825 = vmul.f32 %v8761, %v7699
    %v8826 = vmul.f32 %v8762, %v7702
    %v8827 = vmul.f32 %v8763, %v7705
    %v8828 = vmul.f32 %v8764, %v7708
    %v8829 = vmul.f32 %v8765, %v7711
    %v8830 = vmul.f32 %v8766, %v7714
    %v8831 = vmul.f32 %v8767, %v7717
    %v8832 = vmul.f32 %v8768, %v7720
    %v8833 = vmul.f32 %v8769, %v7723
    %v8834 = vmul.f32 %v8770, %v7726
    %v8835 = vmul.f32 %v8771, %v7729
    %v8836 = vmul.f32 %v8772, %v7732
    %v8837 = vmul.f32 %v8773, %v7735
    %v8838 = vmul.f32 %v8774, %v7738
    %v8839 = vmul.f32 %v8775, %v7741
    %v8840 = vmul.f32 %v8776, %v7744
    %v8841 = vmul.f32 %v8777, %v7747
    %v8842 = vmul.f32 %v8778, %v7750
    %v8843 = vmul.f32 %v8779, %v7753
    %v8844 = vmul.f32 %v8780, %v7756
    %v8845 = vmul.f32 %v8781, %v7759
    %v8846 = vmul.f32 %v8782, %v7762
    %v8847 = vmul.f32 %v8783, %v7765
    %v8848 = vmul.f32 %v8784, %v7768
    %v8849 = vmul.f32 %v8785, %v7771
    %v8850 = vmul.f32 %v8786, %v7774
    %v8851 = vmul.f32 %v8787, %v7777
    %v8852 = vmul.f32 %v8788, %v7780
    %v8853 = vmul.f32 %v8789, %v7783
    %v8854 = vmul.f32 %v8790, %v7786
    %v8855 = vmul.f32 %v8791, %v7789
    %v8856 = vmul.f32 %v8792, %v7792
    %v8857 = vmul.f32 %v8793, %v7795
    %v8858 = vmul.f32 %v8794, %v7798
    %v8859 = vmul.f32 %v8795, %v7801
    %v8860 = vmul.f32 %v8796, %v7804
    %v8861 = vmul.f32 %v8797, %v7807
    %v8862 = vmul.f32 %v8798, %v7810
    %v8863 = vmul.f32 %v8799, %v7813
    %v8864 = vmul.f32 %v8800, %v7816
    %v8865 = vmul.f32 %v8801, %v7819
    %v8866 = vmul.f32 %v8802, %v7822
    %v8867 = vmul.f32 %v8803, %v7825
    %v8868 = vmul.f32 %v8804, %v7828
    %v8869 = vmul.f32 %v8805, %v7831
    %v8870 = vmul.f32 %v8806, %v7834
    %v8871 = vmul.f32 %v8807, %v7837
    %v8872 = vmul.f32 %v8808, %v7840
    %v8873 = vmul.f32 %v8809, %v7843
    %v8874 = vmul.f32 %v8810, %v7846
    %s8875 = scalar_lea.vmem [#allocation12], 1
    %v8876 = vld [vmem:[%s8875] sm:$0x1]
    %v8878 = vlaneseq
    %v8879 = vshrl.u32 %v8878, 7
    %v8880 = vsub.s32 0, %v8879
    %v8881 = vrot.slane %v8876, %v8880
    %v8883 = vmul.f32 %v5433, %v8881
    %v8884 = vmul.f32 %v5434, %v8881
    %v8885 = vmul.f32 %v5435, %v8881
    %v8886 = vmul.f32 %v5436, %v8881
    %8887 = vmatprep.subr.mxu0 0.0
    %8888 = vmatpush1.msra.mxu0 %v8811
    %8889 = vmatprep.subr.mxu0 0.0
    %8890 = vmatpush1.msra.mxu0 %v8812
    %8891 = vmatprep.subr.mxu0 0.0
    %8892 = vmatpush1.msra.mxu0 %v8813
    %8893 = vmatprep.subr.mxu0 0.0
    %8894 = vmatpush1.msra.mxu0 %v8814
    %8895 = vmatprep.subr.mxu0 0.0
    %8896 = vmatpush1.msra.mxu0 %v8815
    %8897 = vmatprep.subr.mxu0 0.0
    %8898 = vmatpush1.msra.mxu0 %v8816
    %8899 = vmatprep.subr.mxu0 0.0
    %8900 = vmatpush1.msra.mxu0 %v8817
    %8901 = vmatprep.subr.mxu0 0.0
    %8902 = vmatpush1.msra.mxu0 %v8818
    %8903 = vmatprep.subr.mxu0 0.0
    %8904 = vmatpush1.msra.mxu0 %v8819
    %8905 = vmatprep.subr.mxu0 0.0
    %8906 = vmatpush1.msra.mxu0 %v8820
    %8907 = vmatprep.subr.mxu0 0.0
    %8908 = vmatpush1.msra.mxu0 %v8821
    %8909 = vmatprep.subr.mxu0 0.0
    %8910 = vmatpush1.msra.mxu0 %v8822
    %8911 = vmatprep.subr.mxu0 0.0
    %8912 = vmatpush1.msra.mxu0 %v8823
    %8913 = vmatprep.subr.mxu0 0.0
    %8914 = vmatpush1.msra.mxu0 %v8824
    %8915 = vmatprep.subr.mxu0 0.0
    %8916 = vmatpush1.msra.mxu0 %v8825
    %8917 = vmatprep.subr.mxu0 0.0
    %8918 = vmatpush1.msra.mxu0 %v8826
    %8919 = vmatprep.subr.mxu0 0.0
    %8920 = vmatpush1.msra.mxu0 %v8827
    %8921 = vmatprep.subr.mxu0 0.0
    %8922 = vmatpush1.msra.mxu0 %v8828
    %8923 = vmatprep.subr.mxu0 0.0
    %8924 = vmatpush1.msra.mxu0 %v8829
    %8925 = vmatprep.subr.mxu0 0.0
    %8926 = vmatpush1.msra.mxu0 %v8830
    %8927 = vmatprep.subr.mxu0 0.0
    %8928 = vmatpush1.msra.mxu0 %v8831
    %8929 = vmatprep.subr.mxu0 0.0
    %8930 = vmatpush1.msra.mxu0 %v8832
    %8931 = vmatprep.subr.mxu0 0.0
    %8932 = vmatpush1.msra.mxu0 %v8833
    %8933 = vmatprep.subr.mxu0 0.0
    %8934 = vmatpush1.msra.mxu0 %v8834
    %8935 = vmatprep.subr.mxu0 0.0
    %8936 = vmatpush1.msra.mxu0 %v8835
    %8937 = vmatprep.subr.mxu0 0.0
    %8938 = vmatpush1.msra.mxu0 %v8836
    %8939 = vmatprep.subr.mxu0 0.0
    %8940 = vmatpush1.msra.mxu0 %v8837
    %8941 = vmatprep.subr.mxu0 0.0
    %8942 = vmatpush1.msra.mxu0 %v8838
    %8943 = vmatprep.subr.mxu0 0.0
    %8944 = vmatpush1.msra.mxu0 %v8839
    %8945 = vmatprep.subr.mxu0 0.0
    %8946 = vmatpush1.msra.mxu0 %v8840
    %8947 = vmatprep.subr.mxu0 0.0
    %8948 = vmatpush1.msra.mxu0 %v8841
    %8949 = vmatprep.subr.mxu0 0.0
    %8950 = vmatpush1.msra.mxu0 %v8842
    %8951 = vmatprep.mubr.f32.mxu0 %v224
    %8952 = vmatmul.mubr.f32.gmra.mrb[0].mxu0 %v223
    %v8953 = vpop.f32.mrb[0].mxu0
    %v8954 = vadd.f32 %v8883, %v8953
    %v8955 = vpop.f32.mrb[0].mxu0
    %8956 = vmatprep.mubr.f32.mxu0 %v228
    %8957 = vmatmul.mubr.f32.gmra.mrb[0].mxu0 %v227
    %v8958 = vpop.f32.mrb[0].mxu0
    %v8959 = vadd.f32 %v8884, %v8958
    %v8960 = vpop.f32.mrb[0].mxu0
    %8961 = vmatprep.mubr.f32.mxu0 %v232
    %8962 = vmatmul.mubr.f32.gmra.mrb[0].mxu0 %v231
    %v8963 = vpop.f32.mrb[0].mxu0
    %v8964 = vadd.f32 %v8885, %v8963
    %v8965 = vpop.f32.mrb[0].mxu0
    %8966 = vmatprep.mubr.f32.mxu0 %v236
    %8967 = vmatmul.mubr.f32.gmra.mrb[0].mxu0 %v235
    %v8968 = vpop.f32.mrb[0].mxu0
    %v8969 = vadd.f32 %v8886, %v8968
    %v8970 = vpop.f32.mrb[0].mxu0
    %8971 = vdwg.mxu0
    %8972 = vmatprep.subr.mxu0 0.0
    %8973 = vmatpush1.msra.mxu0 %v8843
    %8974 = vmatprep.subr.mxu0 0.0
    %8975 = vmatpush1.msra.mxu0 %v8844
    %8976 = vmatprep.subr.mxu0 0.0
    %8977 = vmatpush1.msra.mxu0 %v8845
    %8978 = vmatprep.subr.mxu0 0.0
    %8979 = vmatpush1.msra.mxu0 %v8846
    %8980 = vmatprep.subr.mxu0 0.0
    %8981 = vmatpush1.msra.mxu0 %v8847
    %8982 = vmatprep.subr.mxu0 0.0
    %8983 = vmatpush1.msra.mxu0 %v8848
    %8984 = vmatprep.subr.mxu0 0.0
    %8985 = vmatpush1.msra.mxu0 %v8849
    %8986 = vmatprep.subr.mxu0 0.0
    %8987 = vmatpush1.msra.mxu0 %v8850
    %8988 = vmatprep.subr.mxu0 0.0
    %8989 = vmatpush1.msra.mxu0 %v8851
    %8990 = vmatprep.subr.mxu0 0.0
    %8991 = vmatpush1.msra.mxu0 %v8852
    %8992 = vmatprep.subr.mxu0 0.0
    %8993 = vmatpush1.msra.mxu0 %v8853
    %8994 = vmatprep.subr.mxu0 0.0
    %8995 = vmatpush1.msra.mxu0 %v8854
    %8996 = vmatprep.subr.mxu0 0.0
    %8997 = vmatpush1.msra.mxu0 %v8855
    %8998 = vmatprep.subr.mxu0 0.0
    %8999 = vmatpush1.msra.mxu0 %v8856
    %9000 = vmatprep.subr.mxu0 0.0
    %9001 = vmatpush1.msra.mxu0 %v8857
    %9002 = vmatprep.subr.mxu0 0.0
    %9003 = vmatpush1.msra.mxu0 %v8858
    %9004 = vmatprep.subr.mxu0 0.0
    %9005 = vmatpush1.msra.mxu0 %v8859
    %9006 = vmatprep.subr.mxu0 0.0
    %9007 = vmatpush1.msra.mxu0 %v8860
    %9008 = vmatprep.subr.mxu0 0.0
    %9009 = vmatpush1.msra.mxu0 %v8861
    %9010 = vmatprep.subr.mxu0 0.0
    %9011 = vmatpush1.msra.mxu0 %v8862
    %9012 = vmatprep.subr.mxu0 0.0
    %9013 = vmatpush1.msra.mxu0 %v8863
    %9014 = vmatprep.subr.mxu0 0.0
    %9015 = vmatpush1.msra.mxu0 %v8864
    %9016 = vmatprep.subr.mxu0 0.0
    %9017 = vmatpush1.msra.mxu0 %v8865
    %9018 = vmatprep.subr.mxu0 0.0
    %9019 = vmatpush1.msra.mxu0 %v8866
    %9020 = vmatprep.subr.mxu0 0.0
    %9021 = vmatpush1.msra.mxu0 %v8867
    %9022 = vmatprep.subr.mxu0 0.0
    %9023 = vmatpush1.msra.mxu0 %v8868
    %9024 = vmatprep.subr.mxu0 0.0
    %9025 = vmatpush1.msra.mxu0 %v8869
    %9026 = vmatprep.subr.mxu0 0.0
    %9027 = vmatpush1.msra.mxu0 %v8870
    %9028 = vmatprep.subr.mxu0 0.0
    %9029 = vmatpush1.msra.mxu0 %v8871
    %9030 = vmatprep.subr.mxu0 0.0
    %9031 = vmatpush1.msra.mxu0 %v8872
    %9032 = vmatprep.subr.mxu0 0.0
    %9033 = vmatpush1.msra.mxu0 %v8873
    %9034 = vmatprep.subr.mxu0 0.0
    %9035 = vmatpush1.msra.mxu0 %v8874
    %9036 = vmatprep.mubr.f32.mxu0 %v226
    %9037 = vmatmul.mubr.f32.gmra.mrb[0].mxu0 %v225
    %v9038 = vpop.f32.mrb[0].mxu0
    %v9039 = vadd.f32 %v8954, %v9038
    %v9040 = vpop.f32.mrb[0].mxu0
    %9041 = vmatprep.mubr.f32.mxu0 %v230
    %9042 = vmatmul.mubr.f32.gmra.mrb[0].mxu0 %v229
    %v9043 = vpop.f32.mrb[0].mxu0
    %v9044 = vadd.f32 %v8959, %v9043
    %v9045 = vpop.f32.mrb[0].mxu0
    %9046 = vmatprep.mubr.f32.mxu0 %v234
    %9047 = vmatmul.mubr.f32.gmra.mrb[0].mxu0 %v233
    %v9048 = vpop.f32.mrb[0].mxu0
    %v9049 = vadd.f32 %v8964, %v9048
    %v9050 = vpop.f32.mrb[0].mxu0
    %9051 = vmatprep.mubr.f32.mxu0 %v238
    %9052 = vmatmul.mubr.f32.gmra.mrb[0].mxu0 %v237
    %v9053 = vpop.f32.mrb[0].mxu0
    %v9054 = vadd.f32 %v8969, %v9053
    %v9055 = vpop.f32.mrb[0].mxu0
    %9056 = vdwg.mxu0
    %v9057 = vxor.u32 %v5335, 2147483648
    %v9058 = vxor.u32 %v5340, 2147483648
    %v9059 = vxor.u32 %v5345, 2147483648
    %v9060 = vxor.u32 %v5350, 2147483648
    %v9061 = vmul.f32 %v9057, 1.442695
    %v9062 = vpow.pop %v9061
    %v9063 = vmul.f32 %v9058, 1.442695
    %v9064 = vpow.pop %v9063
    %v9065 = vmul.f32 %v9059, 1.442695
    %v9066 = vpow.pop %v9065
    %v9067 = vmul.f32 %v9060, 1.442695
    %v9068 = vpow.pop %v9067
    %v9069 = vadd.f32 %v9062, 1.0
    %v9070 = vadd.f32 %v9064, 1.0
    %v9071 = vadd.f32 %v9066, 1.0
    %v9072 = vadd.f32 %v9068, 1.0
    %v9073 = vrcp.pop %v9069
    %v9074 = vmul.f32 1.0, %v9073
    %v9075 = vrcp.pop %v9070
    %v9076 = vmul.f32 1.0, %v9075
    %v9077 = vrcp.pop %v9071
    %v9078 = vmul.f32 1.0, %v9077
    %v9079 = vrcp.pop %v9072
    %v9080 = vmul.f32 1.0, %v9079
    %v9081 = vmul.f32 %v5335, %v9074
    %v9082 = vmul.f32 %v5340, %v9076
    %v9083 = vmul.f32 %v5345, %v9078
    %v9084 = vmul.f32 %v5350, %v9080
    %v9085 = vmul.f32 %v9039, %v9081
    %v9086 = vmul.f32 %v9044, %v9082
    %v9087 = vmul.f32 %v9049, %v9083
    %v9088 = vmul.f32 %v9054, %v9084
    %s9089 = scalar_lea.vmem %s17, 64
    %v9090 = vld [vmem:[%s9089] sm:$0xff]
    %v9091 = vld [vmem:[%s9089 + $0x8] sm:$0xff]
    %v9092 = vld [vmem:[%s9089 + $0x10] sm:$0xff]
    %v9093 = vld [vmem:[%s9089 + $0x18] sm:$0xff]
    %v9094 = vld [vmem:[%s9089 + $0x20] sm:$0xff]
    %v9095 = vld [vmem:[%s9089 + $0x28] sm:$0xff]
    %v9096 = vld [vmem:[%s9089 + $0x30] sm:$0xff]
    %v9097 = vld [vmem:[%s9089 + $0x38] sm:$0xff]
    %v9099 = vsel %vm476, %v9085, 0
    %v9102 = vsel %vm476, %v9086, 0
    %v9105 = vsel %vm476, %v9087, 0
    %v9108 = vsel %vm476, %v9088, 0
    %9110 = vmatprep.subr.mxu0 0.0
    %9111 = vmatpush1.msra.mxu0 %v9090
    %9112 = vmatprep.subr.mxu0 0.0
    %9113 = vmatpush1.msra.mxu0 %v9091
    %9114 = vmatprep.subr.mxu0 0.0
    %9115 = vmatpush1.msra.mxu0 %v9092
    %9116 = vmatprep.subr.mxu0 0.0
    %9117 = vmatpush1.msra.mxu0 %v9093
    %9118 = vmatprep.subr.mxu0 0.0
    %9119 = vmatpush1.msra.mxu0 %v9094
    %9120 = vmatprep.subr.mxu0 0.0
    %9121 = vmatpush1.msra.mxu0 %v9095
    %9122 = vmatprep.subr.mxu0 0.0
    %9123 = vmatpush1.msra.mxu0 %v9096
    %9124 = vmatprep.subr.mxu0 0.0
    %9125 = vmatpush1.msra.mxu0 %v9097
    %9126 = vmatprep.subr.mxu0 0.0
    %9127 = vmatpush1.msra.mxu0 0.0
    %9128 = vmatprep.subr.mxu0 0.0
    %9129 = vmatpush1.msra.mxu0 0.0
    %9130 = vmatprep.subr.mxu0 0.0
    %9131 = vmatpush1.msra.mxu0 0.0
    %9132 = vmatprep.subr.mxu0 0.0
    %9133 = vmatpush1.msra.mxu0 0.0
    %9134 = vmatprep.subr.mxu0 0.0
    %9135 = vmatpush1.msra.mxu0 0.0
    %9136 = vmatprep.subr.mxu0 0.0
    %9137 = vmatpush1.msra.mxu0 0.0
    %9138 = vmatprep.subr.mxu0 0.0
    %9139 = vmatpush1.msra.mxu0 0.0
    %9140 = vmatprep.subr.mxu0 0.0
    %9141 = vmatpush1.msra.mxu0 0.0
    %9142 = vmatprep.subr.mxu0 0.0
    %9143 = vmatpush1.msra.mxu0 0.0
    %9144 = vmatprep.subr.mxu0 0.0
    %9145 = vmatpush1.msra.mxu0 0.0
    %9146 = vmatprep.subr.mxu0 0.0
    %9147 = vmatpush1.msra.mxu0 0.0
    %9148 = vmatprep.subr.mxu0 0.0
    %9149 = vmatpush1.msra.mxu0 0.0
    %9150 = vmatprep.subr.mxu0 0.0
    %9151 = vmatpush1.msra.mxu0 0.0
    %9152 = vmatprep.subr.mxu0 0.0
    %9153 = vmatpush1.msra.mxu0 0.0
    %9154 = vmatprep.subr.mxu0 0.0
    %9155 = vmatpush1.msra.mxu0 0.0
    %9156 = vmatprep.subr.mxu0 0.0
    %9157 = vmatpush1.msra.mxu0 0.0
    %9158 = vmatprep.subr.mxu0 0.0
    %9159 = vmatpush1.msra.mxu0 0.0
    %9160 = vmatprep.subr.mxu0 0.0
    %9161 = vmatpush1.msra.mxu0 0.0
    %9162 = vmatprep.subr.mxu0 0.0
    %9163 = vmatpush1.msra.mxu0 0.0
    %9164 = vmatprep.subr.mxu0 0.0
    %9165 = vmatpush1.msra.mxu0 0.0
    %9166 = vmatprep.subr.mxu0 0.0
    %9167 = vmatpush1.msra.mxu0 0.0
    %9168 = vmatprep.subr.mxu0 0.0
    %9169 = vmatpush1.msra.mxu0 0.0
    %9170 = vmatprep.subr.mxu0 0.0
    %9171 = vmatpush1.msra.mxu0 0.0
    %9172 = vmatprep.subr.mxu0 0.0
    %9173 = vmatpush1.msra.mxu0 0.0
    %9174 = vmatprep.mubr.f32.mxu0 0.0
    %9175 = vmatmul.mubr.f32.gmra.mrb[0].mxu0 %v9099
    %v9176 = vpop.f32.mrb[0].mxu0
    %v9177 = vadd.f32 0.0, %v9176
    %v9178 = vpop.f32.mrb[0].mxu0
    %9179 = vmatprep.mubr.f32.mxu0 0.0
    %9180 = vmatmul.mubr.f32.gmra.mrb[0].mxu0 %v9102
    %v9181 = vpop.f32.mrb[0].mxu0
    %v9182 = vadd.f32 0.0, %v9181
    %v9183 = vpop.f32.mrb[0].mxu0
    %9184 = vmatprep.mubr.f32.mxu0 0.0
    %9185 = vmatmul.mubr.f32.gmra.mrb[0].mxu0 %v9105
    %v9186 = vpop.f32.mrb[0].mxu0
    %v9187 = vadd.f32 0.0, %v9186
    %v9188 = vpop.f32.mrb[0].mxu0
    %9189 = vmatprep.mubr.f32.mxu0 0.0
    %9190 = vmatmul.mubr.f32.gmra.mrb[0].mxu0 %v9108
    %v9191 = vpop.f32.mrb[0].mxu0
    %v9192 = vadd.f32 0.0, %v9191
    %v9193 = vpop.f32.mrb[0].mxu0
    %9194 = vdwg.mxu0
    %v9195 = vadd.f32 %v5081, %v9177
    %v9196 = vadd.f32 %v5082, %v9182
    %v9197 = vadd.f32 %v5083, %v9187
    %v9198 = vadd.f32 %v5084, %v9192
    %v9199 = vsel %vm471, %v9195, 0.0
    %v9200 = vsel %vm471, %v9196, 0.0
    %v9201 = vadd.f32 %v9199, %v9200
    %v9202 = vrot.slane %v9201, 4
    %v9203 = vadd.f32 %v9201, %v9202
    %v9204 = vrot.slane %v9203, 2
    %v9205 = vadd.f32 %v9203, %v9204
    %v9206 = vrot.slane %v9205, 1
    %v9207 = vadd.f32 %v9205, %v9206
    %v9208 = vrcp.pop 16.0
    %v9209 = vmul.f32 %v9207, %v9208
    %v9210 = vsel %vm471, %v9197, 0.0
    %v9211 = vsel %vm471, %v9198, 0.0
    %v9212 = vadd.f32 %v9210, %v9211
    %v9213 = vrot.slane %v9212, 4
    %v9214 = vadd.f32 %v9212, %v9213
    %v9215 = vrot.slane %v9214, 2
    %v9216 = vadd.f32 %v9214, %v9215
    %v9217 = vrot.slane %v9216, 1
    %v9218 = vadd.f32 %v9216, %v9217
    %v9219 = vmul.f32 %v9218, %v9208
    %v9220 = vsel %vm417, %v9209, %v9219
    %v9221 = vld [vmem:[%s18] sm:$0xff]
    %v9222 = vld [vmem:[%s18 + $0x8] sm:$0xff]
    %v9223 = vld [vmem:[%s18 + $0x10] sm:$0xff]
    %v9224 = vld [vmem:[%s18 + $0x18] sm:$0xff]
    %v9225 = vld [vmem:[%s19] sm:$0x1]
    %v9227 = vlaneseq
    %v9228 = vshrl.u32 %v9227, 7
    %v9229 = vsub.s32 0, %v9228
    %v9230 = vrot.slane %v9225, %v9229
    %v9233 = vsel %vm471, %v9220, 0
    %9235 = vmatprep.subr.mxu0 0.0
    %9236 = vmatpush1.msra.mxu0 %v9221
    %9237 = vmatprep.subr.mxu0 0.0
    %9238 = vmatpush1.msra.mxu0 %v9222
    %9239 = vmatprep.subr.mxu0 0.0
    %9240 = vmatpush1.msra.mxu0 %v9223
    %9241 = vmatprep.subr.mxu0 0.0
    %9242 = vmatpush1.msra.mxu0 %v9224
    %9243 = vmatprep.subr.mxu0 0.0
    %9244 = vmatpush1.msra.mxu0 0.0
    %9245 = vmatprep.subr.mxu0 0.0
    %9246 = vmatpush1.msra.mxu0 0.0
    %9247 = vmatprep.subr.mxu0 0.0
    %9248 = vmatpush1.msra.mxu0 0.0
    %9249 = vmatprep.subr.mxu0 0.0
    %9250 = vmatpush1.msra.mxu0 0.0
    %9251 = vmatprep.subr.mxu0 0.0
    %9252 = vmatpush1.msra.mxu0 0.0
    %9253 = vmatprep.subr.mxu0 0.0
    %9254 = vmatpush1.msra.mxu0 0.0
    %9255 = vmatprep.subr.mxu0 0.0
    %9256 = vmatpush1.msra.mxu0 0.0
    %9257 = vmatprep.subr.mxu0 0.0
    %9258 = vmatpush1.msra.mxu0 0.0
    %9259 = vmatprep.subr.mxu0 0.0
    %9260 = vmatpush1.msra.mxu0 0.0
    %9261 = vmatprep.subr.mxu0 0.0
    %9262 = vmatpush1.msra.mxu0 0.0
    %9263 = vmatprep.subr.mxu0 0.0
    %9264 = vmatpush1.msra.mxu0 0.0
    %9265 = vmatprep.subr.mxu0 0.0
    %9266 = vmatpush1.msra.mxu0 0.0
    %9267 = vmatprep.subr.mxu0 0.0
    %9268 = vmatpush1.msra.mxu0 0.0
    %9269 = vmatprep.subr.mxu0 0.0
    %9270 = vmatpush1.msra.mxu0 0.0
    %9271 = vmatprep.subr.mxu0 0.0
    %9272 = vmatpush1.msra.mxu0 0.0
    %9273 = vmatprep.subr.mxu0 0.0
    %9274 = vmatpush1.msra.mxu0 0.0
    %9275 = vmatprep.subr.mxu0 0.0
    %9276 = vmatpush1.msra.mxu0 0.0
    %9277 = vmatprep.subr.mxu0 0.0
    %9278 = vmatpush1.msra.mxu0 0.0
    %9279 = vmatprep.subr.mxu0 0.0
    %9280 = vmatpush1.msra.mxu0 0.0
    %9281 = vmatprep.subr.mxu0 0.0
    %9282 = vmatpush1.msra.mxu0 0.0
    %9283 = vmatprep.subr.mxu0 0.0
    %9284 = vmatpush1.msra.mxu0 0.0
    %9285 = vmatprep.subr.mxu0 0.0
    %9286 = vmatpush1.msra.mxu0 0.0
    %9287 = vmatprep.subr.mxu0 0.0
    %9288 = vmatpush1.msra.mxu0 0.0
    %9289 = vmatprep.subr.mxu0 0.0
    %9290 = vmatpush1.msra.mxu0 0.0
    %9291 = vmatprep.subr.mxu0 0.0
    %9292 = vmatpush1.msra.mxu0 0.0
    %9293 = vmatprep.subr.mxu0 0.0
    %9294 = vmatpush1.msra.mxu0 0.0
    %9295 = vmatprep.subr.mxu0 0.0
    %9296 = vmatpush1.msra.mxu0 0.0
    %9297 = vmatprep.subr.mxu0 0.0
    %9298 = vmatpush1.msra.mxu0 0.0
    %9299 = vmatprep.mubr.f32.mxu0 0.0
    %9300 = vmatmul.mubr.f32.gmra.mrb[0].mxu0 %v9233
    %v9301 = vpop.f32.mrb[0].mxu0
    %v9302 = vadd.f32 %v9230, %v9301
    %v9303 = vpop.f32.mrb[0].mxu0
    %9304 = vdwg.mxu0
    %vm9305 = vcmask 17408
    %9306 = vst.msk [vmem:[#allocation14] sm:$0x3] %vm9305, %v9302
    // Predicated region
    $region118: #{mamba_net_forward.1} parent=1 // pred_check
      _
    $region119: #{mamba_net_forward.1} parent=1 // pred_check_branch
      %9308 = sbr.rel (0) target = $region121
    $region120: #{mamba_net_forward.1} parent=1 // pred_region
      %s9310 = ssub.s32 32, 32
      %9311 = vsyncadd [#allocation5], %s9310
      %s9313 = sshll.u32 [#allocation14], 4
      %s9314 = int_to_ptr.vmem [resolvable:$true] %s9313
      %9316 = dma.vmem_to_hbm [thread:$0]  %s9314, 32, %s23, [#allocation5]
    $region121: #{mamba_net_forward.1} parent=1 // pred_fallthru
      _
    // Predicated region
    $region122: #{mamba_net_forward.1} parent=1 // pred_check
      _
    $region123: #{mamba_net_forward.1} parent=1 // pred_check_branch
      %9318 = sbr.rel (0) target = $region125
    $region124: #{mamba_net_forward.1} parent=1 // pred_region
      %9319 = dma.done [#allocation5], 32
    $region125: #{mamba_net_forward.1} parent=1 // pred_fallthru
      _
    %9320 = vsyncpa [#allocation4], 1
    %9321 = vsyncpa [#allocation7], 1
    %9322 = vsyncpa [#allocation10], 1
    %9323 = vsyncpa [#allocation13], 1
    %9324 = vsyncpa [#allocation5], 1

</llo_original>
